<compile_context>
chip_gen: v7x
topology: tpu7x:2x2x1
jax: 0.10.0
libtpu: 0.0.40
codegen_flags: <defaults>
</compile_context>

<pallas_src>
import functools

import jax
import jax.numpy as jnp
from jax.experimental import pallas as pl
from jax.experimental.pallas import tpu as pltpu


_MM_DTYPE = jnp.bfloat16  # MXU input dtype (accumulation stays f32)


# ---------------------------------------------------------------------------
# Fused SelfAttentionLayer kernel (one pallas_call per layer, grid over batch)
# ---------------------------------------------------------------------------

def _fused_layer_kernel(x_ref, wqkv_ref, bqkv_ref, wo_ref, bo_ref,
                        w1_ref, b1_ref, w2_ref, b2_ref,
                        g1_ref, be1_ref, g2_ref, be2_ref,
                        o_ref, *, num_heads):
    x = x_ref[0]                              # (L, D) f32
    L, D = x.shape
    H = num_heads
    hd = D // H
    scale = 1.0 / float(hd) ** 0.5

    # --- fused QKV projection: one (L, D) x (D, 3D) MXU matmul --------------
    qkv = jnp.dot(x.astype(_MM_DTYPE), wqkv_ref[...].astype(_MM_DTYPE),
                  preferred_element_type=jnp.float32) + bqkv_ref[...]
    q = qkv[:, :D] * scale                    # fold 1/sqrt(hd) into q once
    k = qkv[:, D:2 * D]
    v = qkv[:, 2 * D:]

    # --- in-kernel head split: (L, D) -> (H, L, hd) -------------------------
    def heads(t):
        return jnp.transpose(t.reshape(L, H, hd), (1, 0, 2))

    qh = heads(q).astype(_MM_DTYPE)
    kh = heads(k).astype(_MM_DTYPE)
    vh = heads(v).astype(_MM_DTYPE)

    # scores / softmax (f32 statistics) — contraction on last axis, no k.T
    s = jnp.einsum("hqd,hkd->hqk", qh, kh,
                   preferred_element_type=jnp.float32)        # (H, L, L)
    m = jnp.max(s, axis=-1, keepdims=True)
    e = jnp.exp(s - m)
    p = e * pl.reciprocal(jnp.sum(e, axis=-1, keepdims=True), approx=True)

    oh = jnp.einsum("hqk,hkd->hqd", p.astype(_MM_DTYPE), vh,
                    preferred_element_type=jnp.float32)       # (H, L, hd)
    attn = jnp.transpose(oh, (1, 0, 2)).reshape(L, D)          # merge heads

    # --- output projection --------------------------------------------------
    attn = jnp.dot(attn.astype(_MM_DTYPE), wo_ref[...].astype(_MM_DTYPE),
                   preferred_element_type=jnp.float32) + bo_ref[...]

    # --- add & LayerNorm (f32, eps matches torch) ---------------------------
    def layer_norm(z, g, b):
        mu = jnp.mean(z, axis=-1, keepdims=True)
        c = z - mu
        var = jnp.mean(c * c, axis=-1, keepdims=True)
        return c * jax.lax.rsqrt(var + 1e-5) * g + b

    h1 = layer_norm(x + attn, g1_ref[...], be1_ref[...])

    # --- FFN ---------------------------------------------------------------
    hmid = jnp.dot(h1.astype(_MM_DTYPE), w1_ref[...].astype(_MM_DTYPE),
                   preferred_element_type=jnp.float32) + b1_ref[...]
    hmid = jnp.maximum(hmid, 0.0)
    f = jnp.dot(hmid.astype(_MM_DTYPE), w2_ref[...].astype(_MM_DTYPE),
                preferred_element_type=jnp.float32) + b2_ref[...]

    o_ref[0] = layer_norm(h1 + f, g2_ref[...], be2_ref[...])


def fused_self_attention_layer(x, p, num_heads):
    """x: (B, L, D) -> (B, L, D).  Matches torch SelfAttentionLayer with
    dropout=0 and adj_mask=None (so 'spatial' == 'temporal' math)."""
    # TODO(synk): adj_mask masked local-attention branch not implemented
    # (the reference model is built with adj_mask=None, so it never runs).
    B, L, D = x.shape
    F = p["W1"].shape[1]
    kernel = functools.partial(_fused_layer_kernel, num_heads=num_heads)
    full2d = lambda shape: pl.BlockSpec(shape, lambda b: (0, 0))
    return pl.pallas_call(
        kernel,
        out_shape=jax.ShapeDtypeStruct((B, L, D), jnp.float32),
        grid=(B,),
        in_specs=[
            pl.BlockSpec((1, L, D), lambda b: (b, 0, 0)),   # x
            full2d((D, 3 * D)), full2d((1, 3 * D)),          # Wqkv, bqkv
            full2d((D, D)), full2d((1, D)),                  # Wo, bo
            full2d((D, F)), full2d((1, F)),                  # W1, b1
            full2d((F, D)), full2d((1, D)),                  # W2, b2
            full2d((1, D)), full2d((1, D)),                  # ln1 gamma, beta
            full2d((1, D)), full2d((1, D)),                  # ln2 gamma, beta
        ],
        out_specs=pl.BlockSpec((1, L, D), lambda b: (b, 0, 0)),
        compiler_params=pltpu.CompilerParams(dimension_semantics=("parallel",)),
    )(x,
      p["Wqkv"], p["bqkv"].reshape(1, 3 * D),
      p["Wo"], p["bo"].reshape(1, D),
      p["W1"], p["b1"].reshape(1, F),
      p["W2"], p["b2"].reshape(1, D),
      p["g1"].reshape(1, D), p["be1"].reshape(1, D),
      p["g2"].reshape(1, D), p["be2"].reshape(1, D))


# ---------------------------------------------------------------------------
# Small glue linear (input/output projections) — single-step pallas_call
# ---------------------------------------------------------------------------

def _linear_kernel(x_ref, w_ref, b_ref, o_ref):
    o_ref[...] = (
        jnp.dot(x_ref[...], w_ref[...], preferred_element_type=jnp.float32)
        + b_ref[...]
    )


def linear(x, w, b):
    """x: (M, K) @ w: (K, N) + b: (N,) -> (M, N)  [== torch nn.Linear]"""
    M, K = x.shape
    N = w.shape[1]
    return pl.pallas_call(
        _linear_kernel,
        out_shape=jax.ShapeDtypeStruct((M, N), jnp.float32),
        grid=(1,),
        in_specs=[
            pl.BlockSpec((M, K), lambda i: (0, 0)),
            pl.BlockSpec((K, N), lambda i: (0, 0)),
            pl.BlockSpec((1, N), lambda i: (0, 0)),
        ],
        out_specs=pl.BlockSpec((M, N), lambda i: (0, 0)),
    )(x, w, b.reshape(1, N))


# ---------------------------------------------------------------------------
# Tiny (model_dim == in_steps) SelfAttentionLayer kept in plain XLA
# (per perf review: dims of 8 / head_dim 4 waste >90% of every vreg, so a
#  Pallas launch here is pure overhead).
# ---------------------------------------------------------------------------

def self_attention_layer_xla(x, p, num_heads):
    B, L, D = x.shape
    hd = D // num_heads
    q = x @ p["Wqkv"][:, :D] + p["bqkv"][:D]
    k = x @ p["Wqkv"][:, D:2 * D] + p["bqkv"][D:2 * D]
    v = x @ p["Wqkv"][:, 2 * D:] + p["bqkv"][2 * D:]

    def heads(t):  # (B, L, D) -> (B, H, L, hd)
        return t.reshape(B, L, num_heads, hd).transpose(0, 2, 1, 3)

    s = jnp.einsum("bhqd,bhkd->bhqk", heads(q), heads(k)) / (hd ** 0.5)
    pa = jax.nn.softmax(s, axis=-1)
    oh = jnp.einsum("bhqk,bhkd->bhqd", pa, heads(v))
    attn = oh.transpose(0, 2, 1, 3).reshape(B, L, D)
    attn = attn @ p["Wo"] + p["bo"]

    def ln(z, g, b):
        mu = jnp.mean(z, axis=-1, keepdims=True)
        c = z - mu
        var = jnp.mean(c * c, axis=-1, keepdims=True)
        return c * jax.lax.rsqrt(var + 1e-5) * g + b

    h1 = ln(x + attn, p["g1"], p["be1"])
    f = jnp.maximum(h1 @ p["W1"] + p["b1"], 0.0) @ p["W2"] + p["b2"]
    return ln(h1 + f, p["g2"], p["be2"])


# ---------------------------------------------------------------------------
# Full Extralonger forward
# ---------------------------------------------------------------------------

def extralonger_forward(x, P, cfg):
    """x: (B, in_steps, num_nodes, 3) -> (B, out_steps, num_nodes, 1)"""
    B, T, N, _ = x.shape
    D = cfg["model_dim"]
    heads = cfg["num_heads"]
    out_steps = cfg["out_steps"]

    tod = x[:, :, 0, 1]                                   # (B, T)
    dow = x[:, :, 0, 2]                                   # (B, T)
    xv = x[:, :, :, 0] + P["input_noise"][None, :, :]     # (B, T, N)

    x_s = xv
    # temporal branch -------------------------------------------------------
    x_t = linear(xv.reshape(B * T, N), P["t_in_W"], P["t_in_b"]).reshape(B, T, -1)
    # NOTE: jnp.take clamps an out-of-range index (tod == 1.0) to the last row.
    tod_idx = (tod * cfg["steps_per_day"]).astype(jnp.int32)
    tod_emb = jnp.take(P["tod_table"], tod_idx, axis=0)
    dow_emb = jnp.take(P["dow_table"], dow.astype(jnp.int32), axis=0)
    x_t = jnp.concatenate([x_t, tod_emb, dow_emb], axis=-1)   # (B, T, D)
    x_mix = x_t

    for lp in P["attn_t"]:
        x_t = fused_self_attention_layer(x_t, lp, heads)
    x_t = linear(x_t.reshape(B * T, D), P["t_out_W"], P["t_out_b"]).reshape(B, T, N)

    # mix branch ------------------------------------------------------------
    for lp in P["attn_mix_t"]:
        x_mix = fused_self_attention_layer(x_mix, lp, heads)
    x_mix = x_mix.transpose(0, 2, 1)                      # (B, D, T)
    for lp in P["attn_mix_s"]:
        x_mix = self_attention_layer_xla(x_mix, lp, 2)
    m = x_mix.transpose(0, 2, 1)                          # (B, T, D)
    m = linear(m.reshape(B * T, D), P["mix_W1"], P["mix_b1"]).reshape(B, T, N)
    m = m.transpose(0, 2, 1)                              # (B, N, T)
    m = linear(m.reshape(B * N, T), P["mix_W2"], P["mix_b2"]).reshape(B, N, out_steps)
    x_mix = m.transpose(0, 2, 1)                          # (B, out_steps, N)

    # spatial branch --------------------------------------------------------
    xs = x_s.transpose(0, 2, 1)                           # (B, N, T)
    xs = linear(xs.reshape(B * N, T), P["s_in_W"], P["s_in_b"]).reshape(B, N, -1)
    spatial = jnp.broadcast_to(P["node_emb"][None], (B, N, P["node_emb"].shape[1]))
    xs = jnp.concatenate([xs, spatial], axis=-1)          # (B, N, D)
    for lp in P["attn_s"]:
        xs = fused_self_attention_layer(xs, lp, heads)
    xs = linear(xs.reshape(B * N, D), P["s_out_W"], P["s_out_b"]).reshape(B, N, out_steps)
    x_s = xs.transpose(0, 2, 1)                           # (B, out_steps, N)

    out = (2.0 * x_mix + x_s + x_t) / 4.0
    return out.reshape(B, out_steps, N, cfg["output_dim"])


# ---------------------------------------------------------------------------
# Deterministic parameter init (QKV weights stored pre-fused)
# ---------------------------------------------------------------------------

def _init_linear(key, din, dout, scale=0.05):
    kw, kb = jax.random.split(key)
    w = jax.random.normal(kw, (din, dout), jnp.float32) * scale
    b = jax.random.normal(kb, (dout,), jnp.float32) * scale
    return w, b


def _init_attn_layer(key, D, F):
    ks = jax.random.split(key, 6)
    Wq, bq = _init_linear(ks[0], D, D)
    Wk, bk = _init_linear(ks[1], D, D)
    Wv, bv = _init_linear(ks[2], D, D)
    Wo, bo = _init_linear(ks[3], D, D)
    W1, b1 = _init_linear(ks[4], D, F)
    W2, b2 = _init_linear(ks[5], F, D)
    return dict(
        Wqkv=jnp.concatenate([Wq, Wk, Wv], axis=1),
        bqkv=jnp.concatenate([bq, bk, bv]),
        Wo=Wo, bo=bo, W1=W1, b1=b1, W2=W2, b2=b2,
        g1=jnp.ones((D,), jnp.float32), be1=jnp.zeros((D,), jnp.float32),
        g2=jnp.ones((D,), jnp.float32), be2=jnp.zeros((D,), jnp.float32))


def init_params(key, cfg):
    N, T, OUT = cfg["num_nodes"], cfg["in_steps"], cfg["out_steps"]
    D = cfg["model_dim"]
    IN_EMB = cfg["input_embedding_dim"]
    TOD, DOW, SPAT = cfg["tod_dim"], cfg["dow_dim"], cfg["spatial_dim"]
    F = cfg["feed_forward_dim"]
    L = cfg["num_layers"]

    ks = jax.random.split(key, 16)
    P = {}
    P["tod_table"] = jax.random.normal(ks[0], (cfg["steps_per_day"], TOD), jnp.float32) * 0.05
    P["dow_table"] = jax.random.normal(ks[1], (7, DOW), jnp.float32) * 0.05
    P["node_emb"] = jax.random.normal(ks[2], (N, SPAT), jnp.float32) * 0.05
    P["input_noise"] = jax.random.normal(ks[3], (T, N), jnp.float32) * 0.05
    P["t_in_W"], P["t_in_b"] = _init_linear(ks[4], N, IN_EMB)
    P["t_out_W"], P["t_out_b"] = _init_linear(ks[5], D, N)        # in_steps == out_steps path
    P["s_in_W"], P["s_in_b"] = _init_linear(ks[6], T, D - SPAT)
    P["s_out_W"], P["s_out_b"] = _init_linear(ks[7], D, OUT)
    P["mix_W1"], P["mix_b1"] = _init_linear(ks[8], D, N)
    P["mix_W2"], P["mix_b2"] = _init_linear(ks[9], T, OUT)

    P["attn_t"] = [_init_attn_layer(k, D, F) for k in jax.random.split(ks[10], L)]
    P["attn_s"] = [_init_attn_layer(k, D, F) for k in jax.random.split(ks[11], L)]
    P["attn_mix_t"] = [_init_attn_layer(k, D, F) for k in jax.random.split(ks[12], L)]
    P["attn_mix_s"] = [_init_attn_layer(k, T, F) for k in jax.random.split(ks[13], L)]
    return P


# ---------------------------------------------------------------------------

if __name__ == "__main__":
    cfg = dict(
        num_nodes=16, in_steps=8, out_steps=8, steps_per_day=288,
        input_dim=3, output_dim=1,
        input_embedding_dim=64, tod_dim=32, dow_dim=32, spatial_dim=64,
        feed_forward_dim=128, num_heads=8, num_layers=1,
    )
    cfg["model_dim"] = cfg["input_embedding_dim"] + cfg["tod_dim"] + cfg["dow_dim"]  # 128

    key = jax.random.PRNGKey(0)
    k_param, k_data, k_tod, k_dow = jax.random.split(key, 4)
    params = init_params(k_param, cfg)

    B, T, N = 2, cfg["in_steps"], cfg["num_nodes"]
    data = jax.random.normal(k_data, (B, T, N), jnp.float32)
    tod = jax.random.uniform(k_tod, (B, T), minval=0.0, maxval=0.999)
    dow = jax.random.randint(k_dow, (B, T), 0, 7).astype(jnp.float32)
    # x channels: [value, time-of-day fraction, day-of-week]
    x = jnp.stack(
        [data,
         jnp.broadcast_to(tod[..., None], (B, T, N)),
         jnp.broadcast_to(dow[..., None], (B, T, N))],
        axis=-1,
    )  # (B, T, N, 3)

    fwd = jax.jit(functools.partial(extralonger_forward, cfg=cfg))
    out = fwd(x, params)
    out = jax.block_until_ready(out)
    assert out.shape == (B, cfg["out_steps"], N, cfg["output_dim"])
    assert bool(jnp.all(jnp.isfinite(out)))
    print("KERNEL_OK")
</pallas_src>

<mosaic_0001>
module attributes {stable_mosaic.version = 11 : i64} {
  func.func @_linear_kernel(%arg0: i32, %arg1: memref<16x16xf32, #tpu.memory_space<vmem>>, %arg2: memref<16x64xf32, #tpu.memory_space<vmem>>, %arg3: memref<1x64xf32, #tpu.memory_space<vmem>>, %arg4: memref<16x64xf32, #tpu.memory_space<vmem>>) attributes {dimension_semantics = [#tpu.dimension_semantics<arbitrary>], iteration_bounds = array<i64: 1>, scalar_prefetch = 0 : i64, scratch_operands = 0 : i64, tpu.core_type = #tpu.core_type<tc>, window_params = [{pipeline_mode = #tpu.pipeline_mode<synchronous>, transform_indices = @transform_0, window_bounds = array<i64: 16, 16>}, {pipeline_mode = #tpu.pipeline_mode<synchronous>, transform_indices = @transform_1, window_bounds = array<i64: 16, 64>}, {pipeline_mode = #tpu.pipeline_mode<synchronous>, transform_indices = @transform_2, window_bounds = array<i64: 1, 64>}, {pipeline_mode = #tpu.pipeline_mode<synchronous>, transform_indices = @transform_3, window_bounds = array<i64: 16, 64>}]} {
    %c0 = arith.constant 0 : index
    %c0_0 = arith.constant 0 : index
    %0 = vector.load %arg1[%c0, %c0_0] : memref<16x16xf32, #tpu.memory_space<vmem>>, vector<16x16xf32>
    %c0_1 = arith.constant 0 : index
    %c0_2 = arith.constant 0 : index
    %1 = vector.load %arg2[%c0_1, %c0_2] : memref<16x64xf32, #tpu.memory_space<vmem>>, vector<16x64xf32>
    %cst = arith.constant dense<0.000000e+00> : vector<16x64xf32>
    %2 = tpu.matmul %0, %1, %cst {dimension_numbers = #tpu.dot_dimension_numbers<[1], [0], [0], [1], [0, 0, 1, 1], [], []>} : vector<16x16xf32>, vector<16x64xf32>, vector<16x64xf32> -> vector<16x64xf32>
    %c0_3 = arith.constant 0 : index
    %c0_4 = arith.constant 0 : index
    %3 = vector.load %arg3[%c0_3, %c0_4] : memref<1x64xf32, #tpu.memory_space<vmem>>, vector<1x64xf32>
    %4 = vector.broadcast %3 : vector<1x64xf32> to vector<16x64xf32>
    %5 = arith.addf %2, %4 : vector<16x64xf32>
    %c0_5 = arith.constant 0 : index
    %c0_6 = arith.constant 0 : index
    %6 = vector.load %arg4[%c0_5, %c0_6] : memref<16x64xf32, #tpu.memory_space<vmem>>, vector<16x64xf32>
    tpu.vector_store %arg4[%c0_5, %c0_6], %5 {strides = array<i32>} : memref<16x64xf32, #tpu.memory_space<vmem>>, vector<16x64xf32>,
    return
  }
  func.func @transform_0(%arg0: i32) -> (i32, i32) {
    %c0_i32 = arith.constant 0 : i32
    %c0_i32_0 = arith.constant 0 : i32
    %c0_i32_1 = arith.constant 0 : i32
    return %c0_i32, %c0_i32_0 : i32, i32
  }
  func.func @transform_1(%arg0: i32) -> (i32, i32) {
    %c0_i32 = arith.constant 0 : i32
    %c0_i32_0 = arith.constant 0 : i32
    %c0_i32_1 = arith.constant 0 : i32
    return %c0_i32, %c0_i32_0 : i32, i32
  }
  func.func @transform_2(%arg0: i32) -> (i32, i32) {
    %c0_i32 = arith.constant 0 : i32
    %c0_i32_0 = arith.constant 0 : i32
    %c0_i32_1 = arith.constant 0 : i32
    return %c0_i32, %c0_i32_0 : i32, i32
  }
  func.func @transform_3(%arg0: i32) -> (i32, i32) {
    %c0_i32 = arith.constant 0 : i32
    %c0_i32_0 = arith.constant 0 : i32
    %c0_i32_1 = arith.constant 0 : i32
    return %c0_i32, %c0_i32_0 : i32, i32
  }
}

module attributes {stable_mosaic.version = 11 : i64} {
  func.func @_fused_layer_kernel(%arg0: i32, %arg1: memref<1x8x128xf32, #tpu.memory_space<vmem>>, %arg2: memref<128x384xf32, #tpu.memory_space<vmem>>, %arg3: memref<1x384xf32, #tpu.memory_space<vmem>>, %arg4: memref<128x128xf32, #tpu.memory_space<vmem>>, %arg5: memref<1x128xf32, #tpu.memory_space<vmem>>, %arg6: memref<128x128xf32, #tpu.memory_space<vmem>>, %arg7: memref<1x128xf32, #tpu.memory_space<vmem>>, %arg8: memref<128x128xf32, #tpu.memory_space<vmem>>, %arg9: memref<1x128xf32, #tpu.memory_space<vmem>>, %arg10: memref<1x128xf32, #tpu.memory_space<vmem>>, %arg11: memref<1x128xf32, #tpu.memory_space<vmem>>, %arg12: memref<1x128xf32, #tpu.memory_space<vmem>>, %arg13: memref<1x128xf32, #tpu.memory_space<vmem>>, %arg14: memref<1x8x128xf32, #tpu.memory_space<vmem>>) attributes {dimension_semantics = [#tpu.dimension_semantics<parallel>], iteration_bounds = array<i64: 2>, scalar_prefetch = 0 : i64, scratch_operands = 0 : i64, tpu.core_type = #tpu.core_type<tc>, window_params = [{transform_indices = @transform_0, window_bounds = array<i64: 1, 8, 128>}, {pipeline_mode = #tpu.pipeline_mode<synchronous>, transform_indices = @transform_1, window_bounds = array<i64: 128, 384>}, {pipeline_mode = #tpu.pipeline_mode<synchronous>, transform_indices = @transform_2, window_bounds = array<i64: 1, 384>}, {pipeline_mode = #tpu.pipeline_mode<synchronous>, transform_indices = @transform_3, window_bounds = array<i64: 128, 128>}, {pipeline_mode = #tpu.pipeline_mode<synchronous>, transform_indices = @transform_4, window_bounds = array<i64: 1, 128>}, {pipeline_mode = #tpu.pipeline_mode<synchronous>, transform_indices = @transform_5, window_bounds = array<i64: 128, 128>}, {pipeline_mode = #tpu.pipeline_mode<synchronous>, transform_indices = @transform_6, window_bounds = array<i64: 1, 128>}, {pipeline_mode = #tpu.pipeline_mode<synchronous>, transform_indices = @transform_7, window_bounds = array<i64: 128, 128>}, {pipeline_mode = #tpu.pipeline_mode<synchronous>, transform_indices = @transform_8, window_bounds = array<i64: 1, 128>}, {pipeline_mode = #tpu.pipeline_mode<synchronous>, transform_indices = @transform_9, window_bounds = array<i64: 1, 128>}, {pipeline_mode = #tpu.pipeline_mode<synchronous>, transform_indices = @transform_10, window_bounds = array<i64: 1, 128>}, {pipeline_mode = #tpu.pipeline_mode<synchronous>, transform_indices = @transform_11, window_bounds = array<i64: 1, 128>}, {pipeline_mode = #tpu.pipeline_mode<synchronous>, transform_indices = @transform_12, window_bounds = array<i64: 1, 128>}, {transform_indices = @transform_13, window_bounds = array<i64: 1, 8, 128>}]} {
    %c0 = arith.constant 0 : index
    %c0_0 = arith.constant 0 : index
    %c0_1 = arith.constant 0 : index
    %0 = vector.load %arg1[%c0, %c0_0, %c0_1] : memref<1x8x128xf32, #tpu.memory_space<vmem>>, vector<1x8x128xf32>
    %1 = vector.shape_cast %0 : vector<1x8x128xf32> to vector<8x128xf32>
    %2 = arith.truncf %1 : vector<8x128xf32> to vector<8x128xbf16>
    %c0_2 = arith.constant 0 : index
    %c0_3 = arith.constant 0 : index
    %3 = vector.load %arg2[%c0_2, %c0_3] : memref<128x384xf32, #tpu.memory_space<vmem>>, vector<128x384xf32>
    %4 = arith.truncf %3 : vector<128x384xf32> to vector<128x384xbf16>
    %cst = arith.constant dense<0.000000e+00> : vector<8x384xf32>
    %5 = tpu.matmul %2, %4, %cst {dimension_numbers = #tpu.dot_dimension_numbers<[1], [0], [0], [1], [0, 0, 1, 1], [], []>} : vector<8x128xbf16>, vector<128x384xbf16>, vector<8x384xf32> -> vector<8x384xf32>
    %c0_4 = arith.constant 0 : index
    %c0_5 = arith.constant 0 : index
    %6 = vector.load %arg3[%c0_4, %c0_5] : memref<1x384xf32, #tpu.memory_space<vmem>>, vector<1x384xf32>
    %7 = vector.broadcast %6 : vector<1x384xf32> to vector<8x384xf32>
    %8 = arith.addf %5, %7 : vector<8x384xf32>
    %9 = vector.extract_strided_slice %8 {offsets = [0, 0], sizes = [8, 128], strides = [1, 1]} : vector<8x384xf32> to vector<8x128xf32>
    %cst_6 = arith.constant 2.500000e-01 : f32
    %10 = vector.broadcast %cst_6 : f32 to vector<8x128xf32>
    %11 = arith.mulf %9, %10 : vector<8x128xf32>
    %12 = vector.extract_strided_slice %8 {offsets = [0, 128], sizes = [8, 128], strides = [1, 1]} : vector<8x384xf32> to vector<8x128xf32>
    %13 = vector.extract_strided_slice %8 {offsets = [0, 256], sizes = [8, 128], strides = [1, 1]} : vector<8x384xf32> to vector<8x128xf32>
    %14 = vector.shape_cast %11 : vector<8x128xf32> to vector<8x8x16xf32>
    %15 = tpu.transpose %14, [1, 0, 2] : vector<8x8x16xf32> -> vector<8x8x16xf32>
    %16 = arith.truncf %15 : vector<8x8x16xf32> to vector<8x8x16xbf16>
    %17 = vector.shape_cast %12 : vector<8x128xf32> to vector<8x8x16xf32>
    %18 = tpu.transpose %17, [1, 0, 2] : vector<8x8x16xf32> -> vector<8x8x16xf32>
    %19 = arith.truncf %18 : vector<8x8x16xf32> to vector<8x8x16xbf16>
    %20 = vector.shape_cast %13 : vector<8x128xf32> to vector<8x8x16xf32>
    %21 = tpu.transpose %20, [1, 0, 2] : vector<8x8x16xf32> -> vector<8x8x16xf32>
    %22 = arith.truncf %21 : vector<8x8x16xf32> to vector<8x8x16xbf16>
    "tpu.trace_start"() <{level = 10 : i32, message = "hqd,hkd->hqk"}> : () -> ()
    %cst_7 = arith.constant dense<0.000000e+00> : vector<8x8x8xf32>
    %23 = tpu.matmul %16, %19, %cst_7 {dimension_numbers = #tpu.dot_dimension_numbers<[2], [2], [1], [1], [0, 0, 0, 1, 1, 1], [0], [0]>} : vector<8x8x16xbf16>, vector<8x8x16xbf16>, vector<8x8x8xf32> -> vector<8x8x8xf32>
    "tpu.trace_stop"() : () -> ()
    %cst_8 = arith.constant dense<0xFF800000> : vector<8x8xf32>
    %24 = vector.multi_reduction <maximumf>, %23, %cst_8 [2] : vector<8x8x8xf32> to vector<8x8xf32>
    %25 = vector.shape_cast %24 : vector<8x8xf32> to vector<8x8x1xf32>
    %26 = vector.broadcast %25 : vector<8x8x1xf32> to vector<8x8x8xf32>
    %27 = arith.subf %23, %26 : vector<8x8x8xf32>
    %28 = math.exp %27 : vector<8x8x8xf32>
    %cst_9 = arith.constant dense<0.000000e+00> : vector<8x8xf32>
    %29 = vector.multi_reduction <add>, %28, %cst_9 [2] : vector<8x8x8xf32> to vector<8x8xf32>
    %30 = vector.shape_cast %29 : vector<8x8xf32> to vector<8x8x1xf32>
    %31 = tpu.reciprocal %30 {approx = true} : vector<8x8x1xf32> -> vector<8x8x1xf32>
    %32 = vector.broadcast %31 : vector<8x8x1xf32> to vector<8x8x8xf32>
    %33 = arith.mulf %28, %32 : vector<8x8x8xf32>
    %34 = arith.truncf %33 : vector<8x8x8xf32> to vector<8x8x8xbf16>
    "tpu.trace_start"() <{level = 10 : i32, message = "hqk,hkd->hqd"}> : () -> ()
    %cst_10 = arith.constant dense<0.000000e+00> : vector<8x8x16xf32>
    %35 = tpu.matmul %34, %22, %cst_10 {dimension_numbers = #tpu.dot_dimension_numbers<[2], [1], [1], [2], [0, 0, 0, 1, 1, 2], [0], [0]>} : vector<8x8x8xbf16>, vector<8x8x16xbf16>, vector<8x8x16xf32> -> vector<8x8x16xf32>
    "tpu.trace_stop"() : () -> ()
    %36 = tpu.transpose %35, [1, 0, 2] : vector<8x8x16xf32> -> vector<8x8x16xf32>
    %37 = vector.shape_cast %36 : vector<8x8x16xf32> to vector<8x128xf32>
    %38 = arith.truncf %37 : vector<8x128xf32> to vector<8x128xbf16>
    %c0_11 = arith.constant 0 : index
    %c0_12 = arith.constant 0 : index
    %39 = vector.load %arg4[%c0_11, %c0_12] : memref<128x128xf32, #tpu.memory_space<vmem>>, vector<128x128xf32>
    %40 = arith.truncf %39 : vector<128x128xf32> to vector<128x128xbf16>
    %cst_13 = arith.constant dense<0.000000e+00> : vector<8x128xf32>
    %41 = tpu.matmul %38, %40, %cst_13 {dimension_numbers = #tpu.dot_dimension_numbers<[1], [0], [0], [1], [0, 0, 1, 1], [], []>} : vector<8x128xbf16>, vector<128x128xbf16>, vector<8x128xf32> -> vector<8x128xf32>
    %c0_14 = arith.constant 0 : index
    %c0_15 = arith.constant 0 : index
    %42 = vector.load %arg5[%c0_14, %c0_15] : memref<1x128xf32, #tpu.memory_space<vmem>>, vector<1x128xf32>
    %43 = vector.broadcast %42 : vector<1x128xf32> to vector<8x128xf32>
    %44 = arith.addf %41, %43 : vector<8x128xf32>
    %45 = arith.addf %1, %44 : vector<8x128xf32>
    %c0_16 = arith.constant 0 : index
    %c0_17 = arith.constant 0 : index
    %46 = vector.load %arg10[%c0_16, %c0_17] : memref<1x128xf32, #tpu.memory_space<vmem>>, vector<1x128xf32>
    %c0_18 = arith.constant 0 : index
    %c0_19 = arith.constant 0 : index
    %47 = vector.load %arg11[%c0_18, %c0_19] : memref<1x128xf32, #tpu.memory_space<vmem>>, vector<1x128xf32>
    %cst_20 = arith.constant dense<0.000000e+00> : vector<8xf32>
    %48 = vector.multi_reduction <add>, %45, %cst_20 [1] : vector<8x128xf32> to vector<8xf32>
    %49 = vector.shape_cast %48 : vector<8xf32> to vector<8x1xf32>
    %cst_21 = arith.constant 1.280000e+02 : f32
    %50 = vector.broadcast %cst_21 : f32 to vector<8x1xf32>
    %51 = arith.divf %49, %50 : vector<8x1xf32>
    %52 = vector.broadcast %51 : vector<8x1xf32> to vector<8x128xf32>
    %53 = arith.subf %45, %52 : vector<8x128xf32>
    %54 = arith.mulf %53, %53 : vector<8x128xf32>
    %cst_22 = arith.constant dense<0.000000e+00> : vector<8xf32>
    %55 = vector.multi_reduction <add>, %54, %cst_22 [1] : vector<8x128xf32> to vector<8xf32>
    %56 = vector.shape_cast %55 : vector<8xf32> to vector<8x1xf32>
    %cst_23 = arith.constant 1.280000e+02 : f32
    %57 = vector.broadcast %cst_23 : f32 to vector<8x1xf32>
    %58 = arith.divf %56, %57 : vector<8x1xf32>
    %cst_24 = arith.constant 9.99999974E-6 : f32
    %59 = vector.broadcast %cst_24 : f32 to vector<8x1xf32>
    %60 = arith.addf %58, %59 : vector<8x1xf32>
    %61 = math.rsqrt %60 : vector<8x1xf32>
    %62 = vector.broadcast %61 : vector<8x1xf32> to vector<8x128xf32>
    %63 = arith.mulf %53, %62 : vector<8x128xf32>
    %64 = vector.broadcast %46 : vector<1x128xf32> to vector<8x128xf32>
    %65 = arith.mulf %63, %64 : vector<8x128xf32>
    %66 = vector.broadcast %47 : vector<1x128xf32> to vector<8x128xf32>
    %67 = arith.addf %65, %66 : vector<8x128xf32>
    %68 = arith.truncf %67 : vector<8x128xf32> to vector<8x128xbf16>
    %c0_25 = arith.constant 0 : index
    %c0_26 = arith.constant 0 : index
    %69 = vector.load %arg6[%c0_25, %c0_26] : memref<128x128xf32, #tpu.memory_space<vmem>>, vector<128x128xf32>
    %70 = arith.truncf %69 : vector<128x128xf32> to vector<128x128xbf16>
    %cst_27 = arith.constant dense<0.000000e+00> : vector<8x128xf32>
    %71 = tpu.matmul %68, %70, %cst_27 {dimension_numbers = #tpu.dot_dimension_numbers<[1], [0], [0], [1], [0, 0, 1, 1], [], []>} : vector<8x128xbf16>, vector<128x128xbf16>, vector<8x128xf32> -> vector<8x128xf32>
    %c0_28 = arith.constant 0 : index
    %c0_29 = arith.constant 0 : index
    %72 = vector.load %arg7[%c0_28, %c0_29] : memref<1x128xf32, #tpu.memory_space<vmem>>, vector<1x128xf32>
    %73 = vector.broadcast %72 : vector<1x128xf32> to vector<8x128xf32>
    %74 = arith.addf %71, %73 : vector<8x128xf32>
    %cst_30 = arith.constant 0.000000e+00 : f32
    %75 = vector.broadcast %cst_30 : f32 to vector<8x128xf32>
    %76 = arith.maximumf %74, %75 : vector<8x128xf32>
    %77 = arith.truncf %76 : vector<8x128xf32> to vector<8x128xbf16>
    %c0_31 = arith.constant 0 : index
    %c0_32 = arith.constant 0 : index
    %78 = vector.load %arg8[%c0_31, %c0_32] : memref<128x128xf32, #tpu.memory_space<vmem>>, vector<128x128xf32>
    %79 = arith.truncf %78 : vector<128x128xf32> to vector<128x128xbf16>
    %cst_33 = arith.constant dense<0.000000e+00> : vector<8x128xf32>
    %80 = tpu.matmul %77, %79, %cst_33 {dimension_numbers = #tpu.dot_dimension_numbers<[1], [0], [0], [1], [0, 0, 1, 1], [], []>} : vector<8x128xbf16>, vector<128x128xbf16>, vector<8x128xf32> -> vector<8x128xf32>
    %c0_34 = arith.constant 0 : index
    %c0_35 = arith.constant 0 : index
    %81 = vector.load %arg9[%c0_34, %c0_35] : memref<1x128xf32, #tpu.memory_space<vmem>>, vector<1x128xf32>
    %82 = vector.broadcast %81 : vector<1x128xf32> to vector<8x128xf32>
    %83 = arith.addf %80, %82 : vector<8x128xf32>
    %84 = arith.addf %67, %83 : vector<8x128xf32>
    %c0_36 = arith.constant 0 : index
    %c0_37 = arith.constant 0 : index
    %85 = vector.load %arg12[%c0_36, %c0_37] : memref<1x128xf32, #tpu.memory_space<vmem>>, vector<1x128xf32>
    %c0_38 = arith.constant 0 : index
    %c0_39 = arith.constant 0 : index
    %86 = vector.load %arg13[%c0_38, %c0_39] : memref<1x128xf32, #tpu.memory_space<vmem>>, vector<1x128xf32>
    %cst_40 = arith.constant dense<0.000000e+00> : vector<8xf32>
    %87 = vector.multi_reduction <add>, %84, %cst_40 [1] : vector<8x128xf32> to vector<8xf32>
    %88 = vector.shape_cast %87 : vector<8xf32> to vector<8x1xf32>
    %cst_41 = arith.constant 1.280000e+02 : f32
    %89 = vector.broadcast %cst_41 : f32 to vector<8x1xf32>
    %90 = arith.divf %88, %89 : vector<8x1xf32>
    %91 = vector.broadcast %90 : vector<8x1xf32> to vector<8x128xf32>
    %92 = arith.subf %84, %91 : vector<8x128xf32>
    %93 = arith.mulf %92, %92 : vector<8x128xf32>
    %cst_42 = arith.constant dense<0.000000e+00> : vector<8xf32>
    %94 = vector.multi_reduction <add>, %93, %cst_42 [1] : vector<8x128xf32> to vector<8xf32>
    %95 = vector.shape_cast %94 : vector<8xf32> to vector<8x1xf32>
    %cst_43 = arith.constant 1.280000e+02 : f32
    %96 = vector.broadcast %cst_43 : f32 to vector<8x1xf32>
    %97 = arith.divf %95, %96 : vector<8x1xf32>
    %cst_44 = arith.constant 9.99999974E-6 : f32
    %98 = vector.broadcast %cst_44 : f32 to vector<8x1xf32>
    %99 = arith.addf %97, %98 : vector<8x1xf32>
    %100 = math.rsqrt %99 : vector<8x1xf32>
    %101 = vector.broadcast %100 : vector<8x1xf32> to vector<8x128xf32>
    %102 = arith.mulf %92, %101 : vector<8x128xf32>
    %103 = vector.broadcast %85 : vector<1x128xf32> to vector<8x128xf32>
    %104 = arith.mulf %102, %103 : vector<8x128xf32>
    %105 = vector.broadcast %86 : vector<1x128xf32> to vector<8x128xf32>
    %106 = arith.addf %104, %105 : vector<8x128xf32>
    %c0_45 = arith.constant 0 : index
    %c0_46 = arith.constant 0 : index
    %c0_47 = arith.constant 0 : index
    %107 = vector.load %arg14[%c0_45, %c0_46, %c0_47] : memref<1x8x128xf32, #tpu.memory_space<vmem>>, vector<1x8x128xf32>
    %108 = vector.shape_cast %107 : vector<1x8x128xf32> to vector<8x128xf32>
    %109 = vector.shape_cast %106 : vector<8x128xf32> to vector<1x8x128xf32>
    tpu.vector_store %arg14[%c0_45, %c0_46, %c0_47], %109 {strides = array<i32>} : memref<1x8x128xf32, #tpu.memory_space<vmem>>, vector<1x8x128xf32>,
    return
  }
  func.func @transform_0(%arg0: i32) -> (i32, i32, i32) {
    %c0_i32 = arith.constant 0 : i32
    %c0_i32_0 = arith.constant 0 : i32
    %c0_i32_1 = arith.constant 0 : i32
    return %arg0, %c0_i32, %c0_i32_0 : i32, i32, i32
  }
  func.func @transform_1(%arg0: i32) -> (i32, i32) {
    %c0_i32 = arith.constant 0 : i32
    %c0_i32_0 = arith.constant 0 : i32
    %c0_i32_1 = arith.constant 0 : i32
    return %c0_i32, %c0_i32_0 : i32, i32
  }
  func.func @transform_2(%arg0: i32) -> (i32, i32) {
    %c0_i32 = arith.constant 0 : i32
    %c0_i32_0 = arith.constant 0 : i32
    %c0_i32_1 = arith.constant 0 : i32
    return %c0_i32, %c0_i32_0 : i32, i32
  }
  func.func @transform_3(%arg0: i32) -> (i32, i32) {
    %c0_i32 = arith.constant 0 : i32
    %c0_i32_0 = arith.constant 0 : i32
    %c0_i32_1 = arith.constant 0 : i32
    return %c0_i32, %c0_i32_0 : i32, i32
  }
  func.func @transform_4(%arg0: i32) -> (i32, i32) {
    %c0_i32 = arith.constant 0 : i32
    %c0_i32_0 = arith.constant 0 : i32
    %c0_i32_1 = arith.constant 0 : i32
    return %c0_i32, %c0_i32_0 : i32, i32
  }
  func.func @transform_5(%arg0: i32) -> (i32, i32) {
    %c0_i32 = arith.constant 0 : i32
    %c0_i32_0 = arith.constant 0 : i32
    %c0_i32_1 = arith.constant 0 : i32
    return %c0_i32, %c0_i32_0 : i32, i32
  }
  func.func @transform_6(%arg0: i32) -> (i32, i32) {
    %c0_i32 = arith.constant 0 : i32
    %c0_i32_0 = arith.constant 0 : i32
    %c0_i32_1 = arith.constant 0 : i32
    return %c0_i32, %c0_i32_0 : i32, i32
  }
  func.func @transform_7(%arg0: i32) -> (i32, i32) {
    %c0_i32 = arith.constant 0 : i32
    %c0_i32_0 = arith.constant 0 : i32
    %c0_i32_1 = arith.constant 0 : i32
    return %c0_i32, %c0_i32_0 : i32, i32
  }
  func.func @transform_8(%arg0: i32) -> (i32, i32) {
    %c0_i32 = arith.constant 0 : i32
    %c0_i32_0 = arith.constant 0 : i32
    %c0_i32_1 = arith.constant 0 : i32
    return %c0_i32, %c0_i32_0 : i32, i32
  }
  func.func @transform_9(%arg0: i32) -> (i32, i32) {
    %c0_i32 = arith.constant 0 : i32
    %c0_i32_0 = arith.constant 0 : i32
    %c0_i32_1 = arith.constant 0 : i32
    return %c0_i32, %c0_i32_0 : i32, i32
  }
  func.func @transform_10(%arg0: i32) -> (i32, i32) {
    %c0_i32 = arith.constant 0 : i32
    %c0_i32_0 = arith.constant 0 : i32
    %c0_i32_1 = arith.constant 0 : i32
    return %c0_i32, %c0_i32_0 : i32, i32
  }
  func.func @transform_11(%arg0: i32) -> (i32, i32) {
    %c0_i32 = arith.constant 0 : i32
    %c0_i32_0 = arith.constant 0 : i32
    %c0_i32_1 = arith.constant 0 : i32
    return %c0_i32, %c0_i32_0 : i32, i32
  }
  func.func @transform_12(%arg0: i32) -> (i32, i32) {
    %c0_i32 = arith.constant 0 : i32
    %c0_i32_0 = arith.constant 0 : i32
    %c0_i32_1 = arith.constant 0 : i32
    return %c0_i32, %c0_i32_0 : i32, i32
  }
  func.func @transform_13(%arg0: i32) -> (i32, i32, i32) {
    %c0_i32 = arith.constant 0 : i32
    %c0_i32_0 = arith.constant 0 : i32
    %c0_i32_1 = arith.constant 0 : i32
    return %arg0, %c0_i32, %c0_i32_0 : i32, i32, i32
  }
}

module attributes {stable_mosaic.version = 11 : i64} {
  func.func @_linear_kernel(%arg0: i32, %arg1: memref<16x128xf32, #tpu.memory_space<vmem>>, %arg2: memref<128x16xf32, #tpu.memory_space<vmem>>, %arg3: memref<1x16xf32, #tpu.memory_space<vmem>>, %arg4: memref<16x16xf32, #tpu.memory_space<vmem>>) attributes {dimension_semantics = [#tpu.dimension_semantics<arbitrary>], iteration_bounds = array<i64: 1>, scalar_prefetch = 0 : i64, scratch_operands = 0 : i64, tpu.core_type = #tpu.core_type<tc>, window_params = [{pipeline_mode = #tpu.pipeline_mode<synchronous>, transform_indices = @transform_0, window_bounds = array<i64: 16, 128>}, {pipeline_mode = #tpu.pipeline_mode<synchronous>, transform_indices = @transform_1, window_bounds = array<i64: 128, 16>}, {pipeline_mode = #tpu.pipeline_mode<synchronous>, transform_indices = @transform_2, window_bounds = array<i64: 1, 16>}, {pipeline_mode = #tpu.pipeline_mode<synchronous>, transform_indices = @transform_3, window_bounds = array<i64: 16, 16>}]} {
    %c0 = arith.constant 0 : index
    %c0_0 = arith.constant 0 : index
    %0 = vector.load %arg1[%c0, %c0_0] : memref<16x128xf32, #tpu.memory_space<vmem>>, vector<16x128xf32>
    %c0_1 = arith.constant 0 : index
    %c0_2 = arith.constant 0 : index
    %1 = vector.load %arg2[%c0_1, %c0_2] : memref<128x16xf32, #tpu.memory_space<vmem>>, vector<128x16xf32>
    %cst = arith.constant dense<0.000000e+00> : vector<16x16xf32>
    %2 = tpu.matmul %0, %1, %cst {dimension_numbers = #tpu.dot_dimension_numbers<[1], [0], [0], [1], [0, 0, 1, 1], [], []>} : vector<16x128xf32>, vector<128x16xf32>, vector<16x16xf32> -> vector<16x16xf32>
    %c0_3 = arith.constant 0 : index
    %c0_4 = arith.constant 0 : index
    %3 = vector.load %arg3[%c0_3, %c0_4] : memref<1x16xf32, #tpu.memory_space<vmem>>, vector<1x16xf32>
    %4 = vector.broadcast %3 : vector<1x16xf32> to vector<16x16xf32>
    %5 = arith.addf %2, %4 : vector<16x16xf32>
    %c0_5 = arith.constant 0 : index
    %c0_6 = arith.constant 0 : index
    %6 = vector.load %arg4[%c0_5, %c0_6] : memref<16x16xf32, #tpu.memory_space<vmem>>, vector<16x16xf32>
    tpu.vector_store %arg4[%c0_5, %c0_6], %5 {strides = array<i32>} : memref<16x16xf32, #tpu.memory_space<vmem>>, vector<16x16xf32>,
    return
  }
  func.func @transform_0(%arg0: i32) -> (i32, i32) {
    %c0_i32 = arith.constant 0 : i32
    %c0_i32_0 = arith.constant 0 : i32
    %c0_i32_1 = arith.constant 0 : i32
    return %c0_i32, %c0_i32_0 : i32, i32
  }
  func.func @transform_1(%arg0: i32) -> (i32, i32) {
    %c0_i32 = arith.constant 0 : i32
    %c0_i32_0 = arith.constant 0 : i32
    %c0_i32_1 = arith.constant 0 : i32
    return %c0_i32, %c0_i32_0 : i32, i32
  }
  func.func @transform_2(%arg0: i32) -> (i32, i32) {
    %c0_i32 = arith.constant 0 : i32
    %c0_i32_0 = arith.constant 0 : i32
    %c0_i32_1 = arith.constant 0 : i32
    return %c0_i32, %c0_i32_0 : i32, i32
  }
  func.func @transform_3(%arg0: i32) -> (i32, i32) {
    %c0_i32 = arith.constant 0 : i32
    %c0_i32_0 = arith.constant 0 : i32
    %c0_i32_1 = arith.constant 0 : i32
    return %c0_i32, %c0_i32_0 : i32, i32
  }
}

module attributes {stable_mosaic.version = 11 : i64} {
  func.func @_linear_kernel(%arg0: i32, %arg1: memref<32x8xf32, #tpu.memory_space<vmem>>, %arg2: memref<8x8xf32, #tpu.memory_space<vmem>>, %arg3: memref<1x8xf32, #tpu.memory_space<vmem>>, %arg4: memref<32x8xf32, #tpu.memory_space<vmem>>) attributes {dimension_semantics = [#tpu.dimension_semantics<arbitrary>], iteration_bounds = array<i64: 1>, scalar_prefetch = 0 : i64, scratch_operands = 0 : i64, tpu.core_type = #tpu.core_type<tc>, window_params = [{pipeline_mode = #tpu.pipeline_mode<synchronous>, transform_indices = @transform_0, window_bounds = array<i64: 32, 8>}, {pipeline_mode = #tpu.pipeline_mode<synchronous>, transform_indices = @transform_1, window_bounds = array<i64: 8, 8>}, {pipeline_mode = #tpu.pipeline_mode<synchronous>, transform_indices = @transform_2, window_bounds = array<i64: 1, 8>}, {pipeline_mode = #tpu.pipeline_mode<synchronous>, transform_indices = @transform_3, window_bounds = array<i64: 32, 8>}]} {
    %c0 = arith.constant 0 : index
    %c0_0 = arith.constant 0 : index
    %0 = vector.load %arg1[%c0, %c0_0] : memref<32x8xf32, #tpu.memory_space<vmem>>, vector<32x8xf32>
    %c0_1 = arith.constant 0 : index
    %c0_2 = arith.constant 0 : index
    %1 = vector.load %arg2[%c0_1, %c0_2] : memref<8x8xf32, #tpu.memory_space<vmem>>, vector<8x8xf32>
    %cst = arith.constant dense<0.000000e+00> : vector<32x8xf32>
    %2 = tpu.matmul %0, %1, %cst {dimension_numbers = #tpu.dot_dimension_numbers<[1], [0], [0], [1], [0, 0, 1, 1], [], []>} : vector<32x8xf32>, vector<8x8xf32>, vector<32x8xf32> -> vector<32x8xf32>
    %c0_3 = arith.constant 0 : index
    %c0_4 = arith.constant 0 : index
    %3 = vector.load %arg3[%c0_3, %c0_4] : memref<1x8xf32, #tpu.memory_space<vmem>>, vector<1x8xf32>
    %4 = vector.broadcast %3 : vector<1x8xf32> to vector<32x8xf32>
    %5 = arith.addf %2, %4 : vector<32x8xf32>
    %c0_5 = arith.constant 0 : index
    %c0_6 = arith.constant 0 : index
    %6 = vector.load %arg4[%c0_5, %c0_6] : memref<32x8xf32, #tpu.memory_space<vmem>>, vector<32x8xf32>
    tpu.vector_store %arg4[%c0_5, %c0_6], %5 {strides = array<i32>} : memref<32x8xf32, #tpu.memory_space<vmem>>, vector<32x8xf32>,
    return
  }
  func.func @transform_0(%arg0: i32) -> (i32, i32) {
    %c0_i32 = arith.constant 0 : i32
    %c0_i32_0 = arith.constant 0 : i32
    %c0_i32_1 = arith.constant 0 : i32
    return %c0_i32, %c0_i32_0 : i32, i32
  }
  func.func @transform_1(%arg0: i32) -> (i32, i32) {
    %c0_i32 = arith.constant 0 : i32
    %c0_i32_0 = arith.constant 0 : i32
    %c0_i32_1 = arith.constant 0 : i32
    return %c0_i32, %c0_i32_0 : i32, i32
  }
  func.func @transform_2(%arg0: i32) -> (i32, i32) {
    %c0_i32 = arith.constant 0 : i32
    %c0_i32_0 = arith.constant 0 : i32
    %c0_i32_1 = arith.constant 0 : i32
    return %c0_i32, %c0_i32_0 : i32, i32
  }
  func.func @transform_3(%arg0: i32) -> (i32, i32) {
    %c0_i32 = arith.constant 0 : i32
    %c0_i32_0 = arith.constant 0 : i32
    %c0_i32_1 = arith.constant 0 : i32
    return %c0_i32, %c0_i32_0 : i32, i32
  }
}

module attributes {stable_mosaic.version = 11 : i64} {
  func.func @_linear_kernel(%arg0: i32, %arg1: memref<32x8xf32, #tpu.memory_space<vmem>>, %arg2: memref<8x64xf32, #tpu.memory_space<vmem>>, %arg3: memref<1x64xf32, #tpu.memory_space<vmem>>, %arg4: memref<32x64xf32, #tpu.memory_space<vmem>>) attributes {dimension_semantics = [#tpu.dimension_semantics<arbitrary>], iteration_bounds = array<i64: 1>, scalar_prefetch = 0 : i64, scratch_operands = 0 : i64, tpu.core_type = #tpu.core_type<tc>, window_params = [{pipeline_mode = #tpu.pipeline_mode<synchronous>, transform_indices = @transform_0, window_bounds = array<i64: 32, 8>}, {pipeline_mode = #tpu.pipeline_mode<synchronous>, transform_indices = @transform_1, window_bounds = array<i64: 8, 64>}, {pipeline_mode = #tpu.pipeline_mode<synchronous>, transform_indices = @transform_2, window_bounds = array<i64: 1, 64>}, {pipeline_mode = #tpu.pipeline_mode<synchronous>, transform_indices = @transform_3, window_bounds = array<i64: 32, 64>}]} {
    %c0 = arith.constant 0 : index
    %c0_0 = arith.constant 0 : index
    %0 = vector.load %arg1[%c0, %c0_0] : memref<32x8xf32, #tpu.memory_space<vmem>>, vector<32x8xf32>
    %c0_1 = arith.constant 0 : index
    %c0_2 = arith.constant 0 : index
    %1 = vector.load %arg2[%c0_1, %c0_2] : memref<8x64xf32, #tpu.memory_space<vmem>>, vector<8x64xf32>
    %cst = arith.constant dense<0.000000e+00> : vector<32x64xf32>
    %2 = tpu.matmul %0, %1, %cst {dimension_numbers = #tpu.dot_dimension_numbers<[1], [0], [0], [1], [0, 0, 1, 1], [], []>} : vector<32x8xf32>, vector<8x64xf32>, vector<32x64xf32> -> vector<32x64xf32>
    %c0_3 = arith.constant 0 : index
    %c0_4 = arith.constant 0 : index
    %3 = vector.load %arg3[%c0_3, %c0_4] : memref<1x64xf32, #tpu.memory_space<vmem>>, vector<1x64xf32>
    %4 = vector.broadcast %3 : vector<1x64xf32> to vector<32x64xf32>
    %5 = arith.addf %2, %4 : vector<32x64xf32>
    %c0_5 = arith.constant 0 : index
    %c0_6 = arith.constant 0 : index
    %6 = vector.load %arg4[%c0_5, %c0_6] : memref<32x64xf32, #tpu.memory_space<vmem>>, vector<32x64xf32>
    tpu.vector_store %arg4[%c0_5, %c0_6], %5 {strides = array<i32>} : memref<32x64xf32, #tpu.memory_space<vmem>>, vector<32x64xf32>,
    return
  }
  func.func @transform_0(%arg0: i32) -> (i32, i32) {
    %c0_i32 = arith.constant 0 : i32
    %c0_i32_0 = arith.constant 0 : i32
    %c0_i32_1 = arith.constant 0 : i32
    return %c0_i32, %c0_i32_0 : i32, i32
  }
  func.func @transform_1(%arg0: i32) -> (i32, i32) {
    %c0_i32 = arith.constant 0 : i32
    %c0_i32_0 = arith.constant 0 : i32
    %c0_i32_1 = arith.constant 0 : i32
    return %c0_i32, %c0_i32_0 : i32, i32
  }
  func.func @transform_2(%arg0: i32) -> (i32, i32) {
    %c0_i32 = arith.constant 0 : i32
    %c0_i32_0 = arith.constant 0 : i32
    %c0_i32_1 = arith.constant 0 : i32
    return %c0_i32, %c0_i32_0 : i32, i32
  }
  func.func @transform_3(%arg0: i32) -> (i32, i32) {
    %c0_i32 = arith.constant 0 : i32
    %c0_i32_0 = arith.constant 0 : i32
    %c0_i32_1 = arith.constant 0 : i32
    return %c0_i32, %c0_i32_0 : i32, i32
  }
}

module attributes {stable_mosaic.version = 11 : i64} {
  func.func @_fused_layer_kernel(%arg0: i32, %arg1: memref<1x16x128xf32, #tpu.memory_space<vmem>>, %arg2: memref<128x384xf32, #tpu.memory_space<vmem>>, %arg3: memref<1x384xf32, #tpu.memory_space<vmem>>, %arg4: memref<128x128xf32, #tpu.memory_space<vmem>>, %arg5: memref<1x128xf32, #tpu.memory_space<vmem>>, %arg6: memref<128x128xf32, #tpu.memory_space<vmem>>, %arg7: memref<1x128xf32, #tpu.memory_space<vmem>>, %arg8: memref<128x128xf32, #tpu.memory_space<vmem>>, %arg9: memref<1x128xf32, #tpu.memory_space<vmem>>, %arg10: memref<1x128xf32, #tpu.memory_space<vmem>>, %arg11: memref<1x128xf32, #tpu.memory_space<vmem>>, %arg12: memref<1x128xf32, #tpu.memory_space<vmem>>, %arg13: memref<1x128xf32, #tpu.memory_space<vmem>>, %arg14: memref<1x16x128xf32, #tpu.memory_space<vmem>>) attributes {dimension_semantics = [#tpu.dimension_semantics<parallel>], iteration_bounds = array<i64: 2>, scalar_prefetch = 0 : i64, scratch_operands = 0 : i64, tpu.core_type = #tpu.core_type<tc>, window_params = [{transform_indices = @transform_0, window_bounds = array<i64: 1, 16, 128>}, {pipeline_mode = #tpu.pipeline_mode<synchronous>, transform_indices = @transform_1, window_bounds = array<i64: 128, 384>}, {pipeline_mode = #tpu.pipeline_mode<synchronous>, transform_indices = @transform_2, window_bounds = array<i64: 1, 384>}, {pipeline_mode = #tpu.pipeline_mode<synchronous>, transform_indices = @transform_3, window_bounds = array<i64: 128, 128>}, {pipeline_mode = #tpu.pipeline_mode<synchronous>, transform_indices = @transform_4, window_bounds = array<i64: 1, 128>}, {pipeline_mode = #tpu.pipeline_mode<synchronous>, transform_indices = @transform_5, window_bounds = array<i64: 128, 128>}, {pipeline_mode = #tpu.pipeline_mode<synchronous>, transform_indices = @transform_6, window_bounds = array<i64: 1, 128>}, {pipeline_mode = #tpu.pipeline_mode<synchronous>, transform_indices = @transform_7, window_bounds = array<i64: 128, 128>}, {pipeline_mode = #tpu.pipeline_mode<synchronous>, transform_indices = @transform_8, window_bounds = array<i64: 1, 128>}, {pipeline_mode = #tpu.pipeline_mode<synchronous>, transform_indices = @transform_9, window_bounds = array<i64: 1, 128>}, {pipeline_mode = #tpu.pipeline_mode<synchronous>, transform_indices = @transform_10, window_bounds = array<i64: 1, 128>}, {pipeline_mode = #tpu.pipeline_mode<synchronous>, transform_indices = @transform_11, window_bounds = array<i64: 1, 128>}, {pipeline_mode = #tpu.pipeline_mode<synchronous>, transform_indices = @transform_12, window_bounds = array<i64: 1, 128>}, {transform_indices = @transform_13, window_bounds = array<i64: 1, 16, 128>}]} {
    %c0 = arith.constant 0 : index
    %c0_0 = arith.constant 0 : index
    %c0_1 = arith.constant 0 : index
    %0 = vector.load %arg1[%c0, %c0_0, %c0_1] : memref<1x16x128xf32, #tpu.memory_space<vmem>>, vector<1x16x128xf32>
    %1 = vector.shape_cast %0 : vector<1x16x128xf32> to vector<16x128xf32>
    %2 = arith.truncf %1 : vector<16x128xf32> to vector<16x128xbf16>
    %c0_2 = arith.constant 0 : index
    %c0_3 = arith.constant 0 : index
    %3 = vector.load %arg2[%c0_2, %c0_3] : memref<128x384xf32, #tpu.memory_space<vmem>>, vector<128x384xf32>
    %4 = arith.truncf %3 : vector<128x384xf32> to vector<128x384xbf16>
    %cst = arith.constant dense<0.000000e+00> : vector<16x384xf32>
    %5 = tpu.matmul %2, %4, %cst {dimension_numbers = #tpu.dot_dimension_numbers<[1], [0], [0], [1], [0, 0, 1, 1], [], []>} : vector<16x128xbf16>, vector<128x384xbf16>, vector<16x384xf32> -> vector<16x384xf32>
    %c0_4 = arith.constant 0 : index
    %c0_5 = arith.constant 0 : index
    %6 = vector.load %arg3[%c0_4, %c0_5] : memref<1x384xf32, #tpu.memory_space<vmem>>, vector<1x384xf32>
    %7 = vector.broadcast %6 : vector<1x384xf32> to vector<16x384xf32>
    %8 = arith.addf %5, %7 : vector<16x384xf32>
    %9 = vector.extract_strided_slice %8 {offsets = [0, 0], sizes = [16, 128], strides = [1, 1]} : vector<16x384xf32> to vector<16x128xf32>
    %cst_6 = arith.constant 2.500000e-01 : f32
    %10 = vector.broadcast %cst_6 : f32 to vector<16x128xf32>
    %11 = arith.mulf %9, %10 : vector<16x128xf32>
    %12 = vector.extract_strided_slice %8 {offsets = [0, 128], sizes = [16, 128], strides = [1, 1]} : vector<16x384xf32> to vector<16x128xf32>
    %13 = vector.extract_strided_slice %8 {offsets = [0, 256], sizes = [16, 128], strides = [1, 1]} : vector<16x384xf32> to vector<16x128xf32>
    %14 = vector.shape_cast %11 : vector<16x128xf32> to vector<16x8x16xf32>
    %15 = tpu.transpose %14, [1, 0, 2] : vector<16x8x16xf32> -> vector<8x16x16xf32>
    %16 = arith.truncf %15 : vector<8x16x16xf32> to vector<8x16x16xbf16>
    %17 = vector.shape_cast %12 : vector<16x128xf32> to vector<16x8x16xf32>
    %18 = tpu.transpose %17, [1, 0, 2] : vector<16x8x16xf32> -> vector<8x16x16xf32>
    %19 = arith.truncf %18 : vector<8x16x16xf32> to vector<8x16x16xbf16>
    %20 = vector.shape_cast %13 : vector<16x128xf32> to vector<16x8x16xf32>
    %21 = tpu.transpose %20, [1, 0, 2] : vector<16x8x16xf32> -> vector<8x16x16xf32>
    %22 = arith.truncf %21 : vector<8x16x16xf32> to vector<8x16x16xbf16>
    "tpu.trace_start"() <{level = 10 : i32, message = "hqd,hkd->hqk"}> : () -> ()
    %cst_7 = arith.constant dense<0.000000e+00> : vector<8x16x16xf32>
    %23 = tpu.matmul %16, %19, %cst_7 {dimension_numbers = #tpu.dot_dimension_numbers<[2], [2], [1], [1], [0, 0, 0, 1, 1, 1], [0], [0]>} : vector<8x16x16xbf16>, vector<8x16x16xbf16>, vector<8x16x16xf32> -> vector<8x16x16xf32>
    "tpu.trace_stop"() : () -> ()
    %cst_8 = arith.constant dense<0xFF800000> : vector<8x16xf32>
    %24 = vector.multi_reduction <maximumf>, %23, %cst_8 [2] : vector<8x16x16xf32> to vector<8x16xf32>
    %25 = vector.shape_cast %24 : vector<8x16xf32> to vector<8x16x1xf32>
    %26 = vector.broadcast %25 : vector<8x16x1xf32> to vector<8x16x16xf32>
    %27 = arith.subf %23, %26 : vector<8x16x16xf32>
    %28 = math.exp %27 : vector<8x16x16xf32>
    %cst_9 = arith.constant dense<0.000000e+00> : vector<8x16xf32>
    %29 = vector.multi_reduction <add>, %28, %cst_9 [2] : vector<8x16x16xf32> to vector<8x16xf32>
    %30 = vector.shape_cast %29 : vector<8x16xf32> to vector<8x16x1xf32>
    %31 = tpu.reciprocal %30 {approx = true} : vector<8x16x1xf32> -> vector<8x16x1xf32>
    %32 = vector.broadcast %31 : vector<8x16x1xf32> to vector<8x16x16xf32>
    %33 = arith.mulf %28, %32 : vector<8x16x16xf32>
    %34 = arith.truncf %33 : vector<8x16x16xf32> to vector<8x16x16xbf16>
    "tpu.trace_start"() <{level = 10 : i32, message = "hqk,hkd->hqd"}> : () -> ()
    %cst_10 = arith.constant dense<0.000000e+00> : vector<8x16x16xf32>
    %35 = tpu.matmul %34, %22, %cst_10 {dimension_numbers = #tpu.dot_dimension_numbers<[2], [1], [1], [2], [0, 0, 0, 1, 1, 2], [0], [0]>} : vector<8x16x16xbf16>, vector<8x16x16xbf16>, vector<8x16x16xf32> -> vector<8x16x16xf32>
    "tpu.trace_stop"() : () -> ()
    %36 = tpu.transpose %35, [1, 0, 2] : vector<8x16x16xf32> -> vector<16x8x16xf32>
    %37 = vector.shape_cast %36 : vector<16x8x16xf32> to vector<16x128xf32>
    %38 = arith.truncf %37 : vector<16x128xf32> to vector<16x128xbf16>
    %c0_11 = arith.constant 0 : index
    %c0_12 = arith.constant 0 : index
    %39 = vector.load %arg4[%c0_11, %c0_12] : memref<128x128xf32, #tpu.memory_space<vmem>>, vector<128x128xf32>
    %40 = arith.truncf %39 : vector<128x128xf32> to vector<128x128xbf16>
    %cst_13 = arith.constant dense<0.000000e+00> : vector<16x128xf32>
    %41 = tpu.matmul %38, %40, %cst_13 {dimension_numbers = #tpu.dot_dimension_numbers<[1], [0], [0], [1], [0, 0, 1, 1], [], []>} : vector<16x128xbf16>, vector<128x128xbf16>, vector<16x128xf32> -> vector<16x128xf32>
    %c0_14 = arith.constant 0 : index
    %c0_15 = arith.constant 0 : index
    %42 = vector.load %arg5[%c0_14, %c0_15] : memref<1x128xf32, #tpu.memory_space<vmem>>, vector<1x128xf32>
    %43 = vector.broadcast %42 : vector<1x128xf32> to vector<16x128xf32>
    %44 = arith.addf %41, %43 : vector<16x128xf32>
    %45 = arith.addf %1, %44 : vector<16x128xf32>
    %c0_16 = arith.constant 0 : index
    %c0_17 = arith.constant 0 : index
    %46 = vector.load %arg10[%c0_16, %c0_17] : memref<1x128xf32, #tpu.memory_space<vmem>>, vector<1x128xf32>
    %c0_18 = arith.constant 0 : index
    %c0_19 = arith.constant 0 : index
    %47 = vector.load %arg11[%c0_18, %c0_19] : memref<1x128xf32, #tpu.memory_space<vmem>>, vector<1x128xf32>
    %cst_20 = arith.constant dense<0.000000e+00> : vector<16xf32>
    %48 = vector.multi_reduction <add>, %45, %cst_20 [1] : vector<16x128xf32> to vector<16xf32>
    %49 = vector.shape_cast %48 : vector<16xf32> to vector<16x1xf32>
    %cst_21 = arith.constant 1.280000e+02 : f32
    %50 = vector.broadcast %cst_21 : f32 to vector<16x1xf32>
    %51 = arith.divf %49, %50 : vector<16x1xf32>
    %52 = vector.broadcast %51 : vector<16x1xf32> to vector<16x128xf32>
    %53 = arith.subf %45, %52 : vector<16x128xf32>
    %54 = arith.mulf %53, %53 : vector<16x128xf32>
    %cst_22 = arith.constant dense<0.000000e+00> : vector<16xf32>
    %55 = vector.multi_reduction <add>, %54, %cst_22 [1] : vector<16x128xf32> to vector<16xf32>
    %56 = vector.shape_cast %55 : vector<16xf32> to vector<16x1xf32>
    %cst_23 = arith.constant 1.280000e+02 : f32
    %57 = vector.broadcast %cst_23 : f32 to vector<16x1xf32>
    %58 = arith.divf %56, %57 : vector<16x1xf32>
    %cst_24 = arith.constant 9.99999974E-6 : f32
    %59 = vector.broadcast %cst_24 : f32 to vector<16x1xf32>
    %60 = arith.addf %58, %59 : vector<16x1xf32>
    %61 = math.rsqrt %60 : vector<16x1xf32>
    %62 = vector.broadcast %61 : vector<16x1xf32> to vector<16x128xf32>
    %63 = arith.mulf %53, %62 : vector<16x128xf32>
    %64 = vector.broadcast %46 : vector<1x128xf32> to vector<16x128xf32>
    %65 = arith.mulf %63, %64 : vector<16x128xf32>
    %66 = vector.broadcast %47 : vector<1x128xf32> to vector<16x128xf32>
    %67 = arith.addf %65, %66 : vector<16x128xf32>
    %68 = arith.truncf %67 : vector<16x128xf32> to vector<16x128xbf16>
    %c0_25 = arith.constant 0 : index
    %c0_26 = arith.constant 0 : index
    %69 = vector.load %arg6[%c0_25, %c0_26] : memref<128x128xf32, #tpu.memory_space<vmem>>, vector<128x128xf32>
    %70 = arith.truncf %69 : vector<128x128xf32> to vector<128x128xbf16>
    %cst_27 = arith.constant dense<0.000000e+00> : vector<16x128xf32>
    %71 = tpu.matmul %68, %70, %cst_27 {dimension_numbers = #tpu.dot_dimension_numbers<[1], [0], [0], [1], [0, 0, 1, 1], [], []>} : vector<16x128xbf16>, vector<128x128xbf16>, vector<16x128xf32> -> vector<16x128xf32>
    %c0_28 = arith.constant 0 : index
    %c0_29 = arith.constant 0 : index
    %72 = vector.load %arg7[%c0_28, %c0_29] : memref<1x128xf32, #tpu.memory_space<vmem>>, vector<1x128xf32>
    %73 = vector.broadcast %72 : vector<1x128xf32> to vector<16x128xf32>
    %74 = arith.addf %71, %73 : vector<16x128xf32>
    %cst_30 = arith.constant 0.000000e+00 : f32
    %75 = vector.broadcast %cst_30 : f32 to vector<16x128xf32>
    %76 = arith.maximumf %74, %75 : vector<16x128xf32>
    %77 = arith.truncf %76 : vector<16x128xf32> to vector<16x128xbf16>
    %c0_31 = arith.constant 0 : index
    %c0_32 = arith.constant 0 : index
    %78 = vector.load %arg8[%c0_31, %c0_32] : memref<128x128xf32, #tpu.memory_space<vmem>>, vector<128x128xf32>
    %79 = arith.truncf %78 : vector<128x128xf32> to vector<128x128xbf16>
    %cst_33 = arith.constant dense<0.000000e+00> : vector<16x128xf32>
    %80 = tpu.matmul %77, %79, %cst_33 {dimension_numbers = #tpu.dot_dimension_numbers<[1], [0], [0], [1], [0, 0, 1, 1], [], []>} : vector<16x128xbf16>, vector<128x128xbf16>, vector<16x128xf32> -> vector<16x128xf32>
    %c0_34 = arith.constant 0 : index
    %c0_35 = arith.constant 0 : index
    %81 = vector.load %arg9[%c0_34, %c0_35] : memref<1x128xf32, #tpu.memory_space<vmem>>, vector<1x128xf32>
    %82 = vector.broadcast %81 : vector<1x128xf32> to vector<16x128xf32>
    %83 = arith.addf %80, %82 : vector<16x128xf32>
    %84 = arith.addf %67, %83 : vector<16x128xf32>
    %c0_36 = arith.constant 0 : index
    %c0_37 = arith.constant 0 : index
    %85 = vector.load %arg12[%c0_36, %c0_37] : memref<1x128xf32, #tpu.memory_space<vmem>>, vector<1x128xf32>
    %c0_38 = arith.constant 0 : index
    %c0_39 = arith.constant 0 : index
    %86 = vector.load %arg13[%c0_38, %c0_39] : memref<1x128xf32, #tpu.memory_space<vmem>>, vector<1x128xf32>
    %cst_40 = arith.constant dense<0.000000e+00> : vector<16xf32>
    %87 = vector.multi_reduction <add>, %84, %cst_40 [1] : vector<16x128xf32> to vector<16xf32>
    %88 = vector.shape_cast %87 : vector<16xf32> to vector<16x1xf32>
    %cst_41 = arith.constant 1.280000e+02 : f32
    %89 = vector.broadcast %cst_41 : f32 to vector<16x1xf32>
    %90 = arith.divf %88, %89 : vector<16x1xf32>
    %91 = vector.broadcast %90 : vector<16x1xf32> to vector<16x128xf32>
    %92 = arith.subf %84, %91 : vector<16x128xf32>
    %93 = arith.mulf %92, %92 : vector<16x128xf32>
    %cst_42 = arith.constant dense<0.000000e+00> : vector<16xf32>
    %94 = vector.multi_reduction <add>, %93, %cst_42 [1] : vector<16x128xf32> to vector<16xf32>
    %95 = vector.shape_cast %94 : vector<16xf32> to vector<16x1xf32>
    %cst_43 = arith.constant 1.280000e+02 : f32
    %96 = vector.broadcast %cst_43 : f32 to vector<16x1xf32>
    %97 = arith.divf %95, %96 : vector<16x1xf32>
    %cst_44 = arith.constant 9.99999974E-6 : f32
    %98 = vector.broadcast %cst_44 : f32 to vector<16x1xf32>
    %99 = arith.addf %97, %98 : vector<16x1xf32>
    %100 = math.rsqrt %99 : vector<16x1xf32>
    %101 = vector.broadcast %100 : vector<16x1xf32> to vector<16x128xf32>
    %102 = arith.mulf %92, %101 : vector<16x128xf32>
    %103 = vector.broadcast %85 : vector<1x128xf32> to vector<16x128xf32>
    %104 = arith.mulf %102, %103 : vector<16x128xf32>
    %105 = vector.broadcast %86 : vector<1x128xf32> to vector<16x128xf32>
    %106 = arith.addf %104, %105 : vector<16x128xf32>
    %c0_45 = arith.constant 0 : index
    %c0_46 = arith.constant 0 : index
    %c0_47 = arith.constant 0 : index
    %107 = vector.load %arg14[%c0_45, %c0_46, %c0_47] : memref<1x16x128xf32, #tpu.memory_space<vmem>>, vector<1x16x128xf32>
    %108 = vector.shape_cast %107 : vector<1x16x128xf32> to vector<16x128xf32>
    %109 = vector.shape_cast %106 : vector<16x128xf32> to vector<1x16x128xf32>
    tpu.vector_store %arg14[%c0_45, %c0_46, %c0_47], %109 {strides = array<i32>} : memref<1x16x128xf32, #tpu.memory_space<vmem>>, vector<1x16x128xf32>,
    return
  }
  func.func @transform_0(%arg0: i32) -> (i32, i32, i32) {
    %c0_i32 = arith.constant 0 : i32
    %c0_i32_0 = arith.constant 0 : i32
    %c0_i32_1 = arith.constant 0 : i32
    return %arg0, %c0_i32, %c0_i32_0 : i32, i32, i32
  }
  func.func @transform_1(%arg0: i32) -> (i32, i32) {
    %c0_i32 = arith.constant 0 : i32
    %c0_i32_0 = arith.constant 0 : i32
    %c0_i32_1 = arith.constant 0 : i32
    return %c0_i32, %c0_i32_0 : i32, i32
  }
  func.func @transform_2(%arg0: i32) -> (i32, i32) {
    %c0_i32 = arith.constant 0 : i32
    %c0_i32_0 = arith.constant 0 : i32
    %c0_i32_1 = arith.constant 0 : i32
    return %c0_i32, %c0_i32_0 : i32, i32
  }
  func.func @transform_3(%arg0: i32) -> (i32, i32) {
    %c0_i32 = arith.constant 0 : i32
    %c0_i32_0 = arith.constant 0 : i32
    %c0_i32_1 = arith.constant 0 : i32
    return %c0_i32, %c0_i32_0 : i32, i32
  }
  func.func @transform_4(%arg0: i32) -> (i32, i32) {
    %c0_i32 = arith.constant 0 : i32
    %c0_i32_0 = arith.constant 0 : i32
    %c0_i32_1 = arith.constant 0 : i32
    return %c0_i32, %c0_i32_0 : i32, i32
  }
  func.func @transform_5(%arg0: i32) -> (i32, i32) {
    %c0_i32 = arith.constant 0 : i32
    %c0_i32_0 = arith.constant 0 : i32
    %c0_i32_1 = arith.constant 0 : i32
    return %c0_i32, %c0_i32_0 : i32, i32
  }
  func.func @transform_6(%arg0: i32) -> (i32, i32) {
    %c0_i32 = arith.constant 0 : i32
    %c0_i32_0 = arith.constant 0 : i32
    %c0_i32_1 = arith.constant 0 : i32
    return %c0_i32, %c0_i32_0 : i32, i32
  }
  func.func @transform_7(%arg0: i32) -> (i32, i32) {
    %c0_i32 = arith.constant 0 : i32
    %c0_i32_0 = arith.constant 0 : i32
    %c0_i32_1 = arith.constant 0 : i32
    return %c0_i32, %c0_i32_0 : i32, i32
  }
  func.func @transform_8(%arg0: i32) -> (i32, i32) {
    %c0_i32 = arith.constant 0 : i32
    %c0_i32_0 = arith.constant 0 : i32
    %c0_i32_1 = arith.constant 0 : i32
    return %c0_i32, %c0_i32_0 : i32, i32
  }
  func.func @transform_9(%arg0: i32) -> (i32, i32) {
    %c0_i32 = arith.constant 0 : i32
    %c0_i32_0 = arith.constant 0 : i32
    %c0_i32_1 = arith.constant 0 : i32
    return %c0_i32, %c0_i32_0 : i32, i32
  }
  func.func @transform_10(%arg0: i32) -> (i32, i32) {
    %c0_i32 = arith.constant 0 : i32
    %c0_i32_0 = arith.constant 0 : i32
    %c0_i32_1 = arith.constant 0 : i32
    return %c0_i32, %c0_i32_0 : i32, i32
  }
  func.func @transform_11(%arg0: i32) -> (i32, i32) {
    %c0_i32 = arith.constant 0 : i32
    %c0_i32_0 = arith.constant 0 : i32
    %c0_i32_1 = arith.constant 0 : i32
    return %c0_i32, %c0_i32_0 : i32, i32
  }
  func.func @transform_12(%arg0: i32) -> (i32, i32) {
    %c0_i32 = arith.constant 0 : i32
    %c0_i32_0 = arith.constant 0 : i32
    %c0_i32_1 = arith.constant 0 : i32
    return %c0_i32, %c0_i32_0 : i32, i32
  }
  func.func @transform_13(%arg0: i32) -> (i32, i32, i32) {
    %c0_i32 = arith.constant 0 : i32
    %c0_i32_0 = arith.constant 0 : i32
    %c0_i32_1 = arith.constant 0 : i32
    return %arg0, %c0_i32, %c0_i32_0 : i32, i32, i32
  }
}

module attributes {stable_mosaic.version = 11 : i64} {
  func.func @_linear_kernel(%arg0: i32, %arg1: memref<32x128xf32, #tpu.memory_space<vmem>>, %arg2: memref<128x8xf32, #tpu.memory_space<vmem>>, %arg3: memref<1x8xf32, #tpu.memory_space<vmem>>, %arg4: memref<32x8xf32, #tpu.memory_space<vmem>>) attributes {dimension_semantics = [#tpu.dimension_semantics<arbitrary>], iteration_bounds = array<i64: 1>, scalar_prefetch = 0 : i64, scratch_operands = 0 : i64, tpu.core_type = #tpu.core_type<tc>, window_params = [{pipeline_mode = #tpu.pipeline_mode<synchronous>, transform_indices = @transform_0, window_bounds = array<i64: 32, 128>}, {pipeline_mode = #tpu.pipeline_mode<synchronous>, transform_indices = @transform_1, window_bounds = array<i64: 128, 8>}, {pipeline_mode = #tpu.pipeline_mode<synchronous>, transform_indices = @transform_2, window_bounds = array<i64: 1, 8>}, {pipeline_mode = #tpu.pipeline_mode<synchronous>, transform_indices = @transform_3, window_bounds = array<i64: 32, 8>}]} {
    %c0 = arith.constant 0 : index
    %c0_0 = arith.constant 0 : index
    %0 = vector.load %arg1[%c0, %c0_0] : memref<32x128xf32, #tpu.memory_space<vmem>>, vector<32x128xf32>
    %c0_1 = arith.constant 0 : index
    %c0_2 = arith.constant 0 : index
    %1 = vector.load %arg2[%c0_1, %c0_2] : memref<128x8xf32, #tpu.memory_space<vmem>>, vector<128x8xf32>
    %cst = arith.constant dense<0.000000e+00> : vector<32x8xf32>
    %2 = tpu.matmul %0, %1, %cst {dimension_numbers = #tpu.dot_dimension_numbers<[1], [0], [0], [1], [0, 0, 1, 1], [], []>} : vector<32x128xf32>, vector<128x8xf32>, vector<32x8xf32> -> vector<32x8xf32>
    %c0_3 = arith.constant 0 : index
    %c0_4 = arith.constant 0 : index
    %3 = vector.load %arg3[%c0_3, %c0_4] : memref<1x8xf32, #tpu.memory_space<vmem>>, vector<1x8xf32>
    %4 = vector.broadcast %3 : vector<1x8xf32> to vector<32x8xf32>
    %5 = arith.addf %2, %4 : vector<32x8xf32>
    %c0_5 = arith.constant 0 : index
    %c0_6 = arith.constant 0 : index
    %6 = vector.load %arg4[%c0_5, %c0_6] : memref<32x8xf32, #tpu.memory_space<vmem>>, vector<32x8xf32>
    tpu.vector_store %arg4[%c0_5, %c0_6], %5 {strides = array<i32>} : memref<32x8xf32, #tpu.memory_space<vmem>>, vector<32x8xf32>,
    return
  }
  func.func @transform_0(%arg0: i32) -> (i32, i32) {
    %c0_i32 = arith.constant 0 : i32
    %c0_i32_0 = arith.constant 0 : i32
    %c0_i32_1 = arith.constant 0 : i32
    return %c0_i32, %c0_i32_0 : i32, i32
  }
  func.func @transform_1(%arg0: i32) -> (i32, i32) {
    %c0_i32 = arith.constant 0 : i32
    %c0_i32_0 = arith.constant 0 : i32
    %c0_i32_1 = arith.constant 0 : i32
    return %c0_i32, %c0_i32_0 : i32, i32
  }
  func.func @transform_2(%arg0: i32) -> (i32, i32) {
    %c0_i32 = arith.constant 0 : i32
    %c0_i32_0 = arith.constant 0 : i32
    %c0_i32_1 = arith.constant 0 : i32
    return %c0_i32, %c0_i32_0 : i32, i32
  }
  func.func @transform_3(%arg0: i32) -> (i32, i32) {
    %c0_i32 = arith.constant 0 : i32
    %c0_i32_0 = arith.constant 0 : i32
    %c0_i32_1 = arith.constant 0 : i32
    return %c0_i32, %c0_i32_0 : i32, i32
  }
}

</mosaic_0001>

<llo_original>
// kernel: extralonger_forward.9
$region0: #{extralonger_forward.9}
  #allocation0 [shape = 'u32[]', space=smem, size = 0x4, offset = 0x4, fixed_abs, tag = 'smem constant byte address 0x4 - core index']
  #allocation1 [shape = 'u32[144,128]{1,0:T(1,128)}', space=vmem, size = 0x12000, scoped, tag = 'internal scratch']
  %s0 = inlined_call_operand.vmem [shape: f32[16,16], index: 0, kind: input, shape index: {}]
  %s1 = inlined_call_operand.vmem [shape: f32[16,64], index: 1, kind: input, shape index: {}]
  %s2 = inlined_call_operand.vmem [shape: f32[1,64], index: 2, kind: input, shape index: {}]
  %s3 = inlined_call_operand.vmem [shape: f32[16,64], index: 3, kind: output, shape index: {}]
  %s4 = sld [smem:[#allocation0]]
  $region22: #{extralonger_forward.9} parent=0
    _
  %s6 = ssub.s32 1, %s4
  %s7 = scalar_select 0, %s6, %s4
  // Predicated region
  $region2: #{extralonger_forward.9} parent=0 // pred_check
    _
  $region3: #{extralonger_forward.9} parent=0 // pred_check_branch
    %9 = sbr.rel (0) target = $region5
  $region4: #{extralonger_forward.9} parent=0 // pred_region
    _
  $region5: #{extralonger_forward.9} parent=0 // pred_fallthru
    _
  // Predicated region
  $region6: #{extralonger_forward.9} parent=0 // pred_check
    _
  $region7: #{extralonger_forward.9} parent=0 // pred_check_branch
    %11 = sbr.rel (0) target = $region9
  $region8: #{extralonger_forward.9} parent=0 // pred_region
    _
  $region9: #{extralonger_forward.9} parent=0 // pred_fallthru
    _
  // Predicated region
  $region10: #{extralonger_forward.9} parent=0 // pred_check
    _
  $region11: #{extralonger_forward.9} parent=0 // pred_check_branch
    %13 = sbr.rel (0) target = $region13
  $region12: #{extralonger_forward.9} parent=0 // pred_region
    _
  $region13: #{extralonger_forward.9} parent=0 // pred_fallthru
    _
  %v14 = vld [vmem:[%s0] sm:$0xff]
  %v15 = vld [vmem:[%s0 + $0x8] sm:$0xff]
  %v16 = vld [vmem:[%s1] sm:$0xff]
  %v17 = vld [vmem:[%s1 + $0x8] sm:$0xff]
  %v18 = vld [vmem:[%s2] sm:$0x1]
  %v20 = vlaneseq
  %v21 = vshrl.u32 %v20, 7
  %v22 = vsub.s32 0, %v21
  %v23 = vrot.slane %v18, %v22
  %vm25 = vcmask 130048
  %v27 = vsel %vm25, %v14, 0
  %v30 = vsel %vm25, %v15, 0
  %32 = vmatprep.subr.mxu0 0.0
  %33 = vmatpush1.msra.mxu0 %v16
  %34 = vmatprep.subr.mxu0 0.0
  %35 = vmatpush1.msra.mxu0 %v17
  %36 = vmatprep.subr.mxu0 0.0
  %37 = vmatpush1.msra.mxu0 0.0
  %38 = vmatprep.subr.mxu0 0.0
  %39 = vmatpush1.msra.mxu0 0.0
  %40 = vmatprep.subr.mxu0 0.0
  %41 = vmatpush1.msra.mxu0 0.0
  %42 = vmatprep.subr.mxu0 0.0
  %43 = vmatpush1.msra.mxu0 0.0
  %44 = vmatprep.subr.mxu0 0.0
  %45 = vmatpush1.msra.mxu0 0.0
  %46 = vmatprep.subr.mxu0 0.0
  %47 = vmatpush1.msra.mxu0 0.0
  %48 = vmatprep.subr.mxu0 0.0
  %49 = vmatpush1.msra.mxu0 0.0
  %50 = vmatprep.subr.mxu0 0.0
  %51 = vmatpush1.msra.mxu0 0.0
  %52 = vmatprep.subr.mxu0 0.0
  %53 = vmatpush1.msra.mxu0 0.0
  %54 = vmatprep.subr.mxu0 0.0
  %55 = vmatpush1.msra.mxu0 0.0
  %56 = vmatprep.subr.mxu0 0.0
  %57 = vmatpush1.msra.mxu0 0.0
  %58 = vmatprep.subr.mxu0 0.0
  %59 = vmatpush1.msra.mxu0 0.0
  %60 = vmatprep.subr.mxu0 0.0
  %61 = vmatpush1.msra.mxu0 0.0
  %62 = vmatprep.subr.mxu0 0.0
  %63 = vmatpush1.msra.mxu0 0.0
  %64 = vmatprep.subr.mxu0 0.0
  %65 = vmatpush1.msra.mxu0 0.0
  %66 = vmatprep.subr.mxu0 0.0
  %67 = vmatpush1.msra.mxu0 0.0
  %68 = vmatprep.subr.mxu0 0.0
  %69 = vmatpush1.msra.mxu0 0.0
  %70 = vmatprep.subr.mxu0 0.0
  %71 = vmatpush1.msra.mxu0 0.0
  %72 = vmatprep.subr.mxu0 0.0
  %73 = vmatpush1.msra.mxu0 0.0
  %74 = vmatprep.subr.mxu0 0.0
  %75 = vmatpush1.msra.mxu0 0.0
  %76 = vmatprep.subr.mxu0 0.0
  %77 = vmatpush1.msra.mxu0 0.0
  %78 = vmatprep.subr.mxu0 0.0
  %79 = vmatpush1.msra.mxu0 0.0
  %80 = vmatprep.subr.mxu0 0.0
  %81 = vmatpush1.msra.mxu0 0.0
  %82 = vmatprep.subr.mxu0 0.0
  %83 = vmatpush1.msra.mxu0 0.0
  %84 = vmatprep.subr.mxu0 0.0
  %85 = vmatpush1.msra.mxu0 0.0
  %86 = vmatprep.subr.mxu0 0.0
  %87 = vmatpush1.msra.mxu0 0.0
  %88 = vmatprep.subr.mxu0 0.0
  %89 = vmatpush1.msra.mxu0 0.0
  %90 = vmatprep.subr.mxu0 0.0
  %91 = vmatpush1.msra.mxu0 0.0
  %92 = vmatprep.subr.mxu0 0.0
  %93 = vmatpush1.msra.mxu0 0.0
  %94 = vmatprep.subr.mxu0 0.0
  %95 = vmatpush1.msra.mxu0 0.0
  %96 = vmatprep.mubr.f32.mxu0 0.0
  %97 = vmatmul.mubr.f32.gmra.mrb[0].mxu0 %v27
  %v98 = vpop.f32.mrb[0].mxu0
  %v99 = vadd.f32 %v23, %v98
  %v100 = vpop.f32.mrb[0].mxu0
  %101 = vmatprep.mubr.f32.mxu0 0.0
  %102 = vmatmul.mubr.f32.gmra.mrb[0].mxu0 %v30
  %v103 = vpop.f32.mrb[0].mxu0
  %v104 = vadd.f32 %v23, %v103
  %v105 = vpop.f32.mrb[0].mxu0
  %106 = vdwg.mxu0
  %vm107 = vcmask 523264
  %108 = vst.msk [vmem:[%s3] sm:$0xff] %vm107, %v99
  %109 = vst.msk [vmem:[%s3 + $0x8] sm:$0xff] %vm107, %v104
  // Predicated region
  $region14: #{extralonger_forward.9} parent=0 // pred_check
    _
  $region15: #{extralonger_forward.9} parent=0 // pred_check_branch
    %111 = sbr.rel (0) target = $region17
  $region16: #{extralonger_forward.9} parent=0 // pred_region
    _
  $region17: #{extralonger_forward.9} parent=0 // pred_fallthru
    _
  // Predicated region
  $region18: #{extralonger_forward.9} parent=0 // pred_check
    _
  $region19: #{extralonger_forward.9} parent=0 // pred_check_branch
    %113 = sbr.rel (0) target = $region21
  $region20: #{extralonger_forward.9} parent=0 // pred_region
    _
  $region21: #{extralonger_forward.9} parent=0 // pred_fallthru
    _

// kernel: extralonger_forward.13
$region0: #{extralonger_forward.13}
  #allocation0 [shape = 'u32[]', space=smem, size = 0x4, offset = 0x4, fixed_abs, tag = 'smem constant byte address 0x4 - core index']
  #allocation1 [shape = 'u32[144,128]{1,0:T(1,128)}', space=vmem, size = 0x12000, scoped, tag = 'internal scratch']
  %s0 = inlined_call_operand.vmem [shape: f32[16,128], index: 0, kind: input, shape index: {}]
  %s1 = inlined_call_operand.vmem [shape: f32[128,16], index: 1, kind: input, shape index: {}]
  %s2 = inlined_call_operand.vmem [shape: f32[1,16], index: 2, kind: input, shape index: {}]
  %s3 = inlined_call_operand.vmem [shape: f32[16,16], index: 3, kind: output, shape index: {}]
  %s4 = sld [smem:[#allocation0]]
  $region22: #{extralonger_forward.13} parent=0
    _
  %s6 = ssub.s32 1, %s4
  %s7 = scalar_select 0, %s6, %s4
  // Predicated region
  $region2: #{extralonger_forward.13} parent=0 // pred_check
    _
  $region3: #{extralonger_forward.13} parent=0 // pred_check_branch
    %9 = sbr.rel (0) target = $region5
  $region4: #{extralonger_forward.13} parent=0 // pred_region
    _
  $region5: #{extralonger_forward.13} parent=0 // pred_fallthru
    _
  // Predicated region
  $region6: #{extralonger_forward.13} parent=0 // pred_check
    _
  $region7: #{extralonger_forward.13} parent=0 // pred_check_branch
    %11 = sbr.rel (0) target = $region9
  $region8: #{extralonger_forward.13} parent=0 // pred_region
    _
  $region9: #{extralonger_forward.13} parent=0 // pred_fallthru
    _
  // Predicated region
  $region10: #{extralonger_forward.13} parent=0 // pred_check
    _
  $region11: #{extralonger_forward.13} parent=0 // pred_check_branch
    %13 = sbr.rel (0) target = $region13
  $region12: #{extralonger_forward.13} parent=0 // pred_region
    _
  $region13: #{extralonger_forward.13} parent=0 // pred_fallthru
    _
  %v14 = vld [vmem:[%s0] sm:$0xff]
  %v15 = vld [vmem:[%s0 + $0x8] sm:$0xff]
  %v16 = vld [vmem:[%s1] sm:$0xff]
  %v17 = vld [vmem:[%s1 + $0x8] sm:$0xff]
  %v18 = vld [vmem:[%s1 + $0x10] sm:$0xff]
  %v19 = vld [vmem:[%s1 + $0x18] sm:$0xff]
  %v20 = vld [vmem:[%s1 + $0x20] sm:$0xff]
  %v21 = vld [vmem:[%s1 + $0x28] sm:$0xff]
  %v22 = vld [vmem:[%s1 + $0x30] sm:$0xff]
  %v23 = vld [vmem:[%s1 + $0x38] sm:$0xff]
  %v24 = vld [vmem:[%s1 + $0x40] sm:$0xff]
  %v25 = vld [vmem:[%s1 + $0x48] sm:$0xff]
  %v26 = vld [vmem:[%s1 + $0x50] sm:$0xff]
  %v27 = vld [vmem:[%s1 + $0x58] sm:$0xff]
  %v28 = vld [vmem:[%s1 + $0x60] sm:$0xff]
  %v29 = vld [vmem:[%s1 + $0x68] sm:$0xff]
  %v30 = vld [vmem:[%s1 + $0x70] sm:$0xff]
  %v31 = vld [vmem:[%s1 + $0x78] sm:$0xff]
  %v32 = vld [vmem:[%s2] sm:$0x1]
  %v34 = vlaneseq
  %v35 = vshrl.u32 %v34, 7
  %v36 = vsub.s32 0, %v35
  %v37 = vrot.slane %v32, %v36
  %39 = vmatprep.subr.mxu0 0.0
  %40 = vmatpush1.msra.mxu0 %v16
  %41 = vmatprep.subr.mxu0 0.0
  %42 = vmatpush1.msra.mxu0 %v17
  %43 = vmatprep.subr.mxu0 0.0
  %44 = vmatpush1.msra.mxu0 %v18
  %45 = vmatprep.subr.mxu0 0.0
  %46 = vmatpush1.msra.mxu0 %v19
  %47 = vmatprep.subr.mxu0 0.0
  %48 = vmatpush1.msra.mxu0 %v20
  %49 = vmatprep.subr.mxu0 0.0
  %50 = vmatpush1.msra.mxu0 %v21
  %51 = vmatprep.subr.mxu0 0.0
  %52 = vmatpush1.msra.mxu0 %v22
  %53 = vmatprep.subr.mxu0 0.0
  %54 = vmatpush1.msra.mxu0 %v23
  %55 = vmatprep.subr.mxu0 0.0
  %56 = vmatpush1.msra.mxu0 %v24
  %57 = vmatprep.subr.mxu0 0.0
  %58 = vmatpush1.msra.mxu0 %v25
  %59 = vmatprep.subr.mxu0 0.0
  %60 = vmatpush1.msra.mxu0 %v26
  %61 = vmatprep.subr.mxu0 0.0
  %62 = vmatpush1.msra.mxu0 %v27
  %63 = vmatprep.subr.mxu0 0.0
  %64 = vmatpush1.msra.mxu0 %v28
  %65 = vmatprep.subr.mxu0 0.0
  %66 = vmatpush1.msra.mxu0 %v29
  %67 = vmatprep.subr.mxu0 0.0
  %68 = vmatpush1.msra.mxu0 %v30
  %69 = vmatprep.subr.mxu0 0.0
  %70 = vmatpush1.msra.mxu0 %v31
  %71 = vmatprep.subr.mxu0 0.0
  %72 = vmatpush1.msra.mxu0 0.0
  %73 = vmatprep.subr.mxu0 0.0
  %74 = vmatpush1.msra.mxu0 0.0
  %75 = vmatprep.subr.mxu0 0.0
  %76 = vmatpush1.msra.mxu0 0.0
  %77 = vmatprep.subr.mxu0 0.0
  %78 = vmatpush1.msra.mxu0 0.0
  %79 = vmatprep.subr.mxu0 0.0
  %80 = vmatpush1.msra.mxu0 0.0
  %81 = vmatprep.subr.mxu0 0.0
  %82 = vmatpush1.msra.mxu0 0.0
  %83 = vmatprep.subr.mxu0 0.0
  %84 = vmatpush1.msra.mxu0 0.0
  %85 = vmatprep.subr.mxu0 0.0
  %86 = vmatpush1.msra.mxu0 0.0
  %87 = vmatprep.subr.mxu0 0.0
  %88 = vmatpush1.msra.mxu0 0.0
  %89 = vmatprep.subr.mxu0 0.0
  %90 = vmatpush1.msra.mxu0 0.0
  %91 = vmatprep.subr.mxu0 0.0
  %92 = vmatpush1.msra.mxu0 0.0
  %93 = vmatprep.subr.mxu0 0.0
  %94 = vmatpush1.msra.mxu0 0.0
  %95 = vmatprep.subr.mxu0 0.0
  %96 = vmatpush1.msra.mxu0 0.0
  %97 = vmatprep.subr.mxu0 0.0
  %98 = vmatpush1.msra.mxu0 0.0
  %99 = vmatprep.subr.mxu0 0.0
  %100 = vmatpush1.msra.mxu0 0.0
  %101 = vmatprep.subr.mxu0 0.0
  %102 = vmatpush1.msra.mxu0 0.0
  %103 = vmatprep.mubr.f32.mxu0 0.0
  %104 = vmatmul.mubr.f32.gmra.mrb[0].mxu0 %v14
  %v105 = vpop.f32.mrb[0].mxu0
  %v106 = vadd.f32 %v37, %v105
  %v107 = vpop.f32.mrb[0].mxu0
  %108 = vmatprep.mubr.f32.mxu0 0.0
  %109 = vmatmul.mubr.f32.gmra.mrb[0].mxu0 %v15
  %v110 = vpop.f32.mrb[0].mxu0
  %v111 = vadd.f32 %v37, %v110
  %v112 = vpop.f32.mrb[0].mxu0
  %113 = vdwg.mxu0
  %vm114 = vcmask 130048
  %115 = vst.msk [vmem:[%s3] sm:$0xff] %vm114, %v106
  %116 = vst.msk [vmem:[%s3 + $0x8] sm:$0xff] %vm114, %v111
  // Predicated region
  $region14: #{extralonger_forward.13} parent=0 // pred_check
    _
  $region15: #{extralonger_forward.13} parent=0 // pred_check_branch
    %118 = sbr.rel (0) target = $region17
  $region16: #{extralonger_forward.13} parent=0 // pred_region
    _
  $region17: #{extralonger_forward.13} parent=0 // pred_fallthru
    _
  // Predicated region
  $region18: #{extralonger_forward.13} parent=0 // pred_check
    _
  $region19: #{extralonger_forward.13} parent=0 // pred_check_branch
    %120 = sbr.rel (0) target = $region21
  $region20: #{extralonger_forward.13} parent=0 // pred_region
    _
  $region21: #{extralonger_forward.13} parent=0 // pred_fallthru
    _

// kernel: extralonger_forward.14
$region0: #{extralonger_forward.14}
  #allocation0 [shape = 'u32[]', space=smem, size = 0x4, offset = 0x4, fixed_abs, tag = 'smem constant byte address 0x4 - core index']
  #allocation1 [shape = 'u32[144,128]{1,0:T(1,128)}', space=vmem, size = 0x12000, scoped, tag = 'internal scratch']
  %s0 = inlined_call_operand.vmem [shape: f32[32,8], index: 0, kind: input, shape index: {}]
  %s1 = inlined_call_operand.vmem [shape: f32[8,8], index: 1, kind: input, shape index: {}]
  %s2 = inlined_call_operand.vmem [shape: f32[1,8], index: 2, kind: input, shape index: {}]
  %s3 = inlined_call_operand.vmem [shape: f32[32,8], index: 3, kind: output, shape index: {}]
  %s4 = sld [smem:[#allocation0]]
  $region22: #{extralonger_forward.14} parent=0
    _
  %s6 = ssub.s32 1, %s4
  %s7 = scalar_select 0, %s6, %s4
  // Predicated region
  $region2: #{extralonger_forward.14} parent=0 // pred_check
    _
  $region3: #{extralonger_forward.14} parent=0 // pred_check_branch
    %9 = sbr.rel (0) target = $region5
  $region4: #{extralonger_forward.14} parent=0 // pred_region
    _
  $region5: #{extralonger_forward.14} parent=0 // pred_fallthru
    _
  // Predicated region
  $region6: #{extralonger_forward.14} parent=0 // pred_check
    _
  $region7: #{extralonger_forward.14} parent=0 // pred_check_branch
    %11 = sbr.rel (0) target = $region9
  $region8: #{extralonger_forward.14} parent=0 // pred_region
    _
  $region9: #{extralonger_forward.14} parent=0 // pred_fallthru
    _
  // Predicated region
  $region10: #{extralonger_forward.14} parent=0 // pred_check
    _
  $region11: #{extralonger_forward.14} parent=0 // pred_check_branch
    %13 = sbr.rel (0) target = $region13
  $region12: #{extralonger_forward.14} parent=0 // pred_region
    _
  $region13: #{extralonger_forward.14} parent=0 // pred_fallthru
    _
  %v14 = vld [vmem:[%s0] sm:$0xff]
  %v15 = vld [vmem:[%s0 + $0x8] sm:$0xff]
  %v16 = vld [vmem:[%s0 + $0x10] sm:$0xff]
  %v17 = vld [vmem:[%s0 + $0x18] sm:$0xff]
  %v18 = vld [vmem:[%s1] sm:$0xff]
  %v19 = vld [vmem:[%s2] sm:$0x1]
  %v21 = vlaneseq
  %v22 = vshrl.u32 %v21, 7
  %v23 = vsub.s32 0, %v22
  %v24 = vrot.slane %v19, %v23
  %vm26 = vcmask 64512
  %v28 = vsel %vm26, %v14, 0
  %v31 = vsel %vm26, %v15, 0
  %v34 = vsel %vm26, %v16, 0
  %v37 = vsel %vm26, %v17, 0
  %39 = vmatprep.subr.mxu0 0.0
  %40 = vmatpush1.msra.mxu0 %v18
  %41 = vmatprep.subr.mxu0 0.0
  %42 = vmatpush1.msra.mxu0 0.0
  %43 = vmatprep.subr.mxu0 0.0
  %44 = vmatpush1.msra.mxu0 0.0
  %45 = vmatprep.subr.mxu0 0.0
  %46 = vmatpush1.msra.mxu0 0.0
  %47 = vmatprep.subr.mxu0 0.0
  %48 = vmatpush1.msra.mxu0 0.0
  %49 = vmatprep.subr.mxu0 0.0
  %50 = vmatpush1.msra.mxu0 0.0
  %51 = vmatprep.subr.mxu0 0.0
  %52 = vmatpush1.msra.mxu0 0.0
  %53 = vmatprep.subr.mxu0 0.0
  %54 = vmatpush1.msra.mxu0 0.0
  %55 = vmatprep.subr.mxu0 0.0
  %56 = vmatpush1.msra.mxu0 0.0
  %57 = vmatprep.subr.mxu0 0.0
  %58 = vmatpush1.msra.mxu0 0.0
  %59 = vmatprep.subr.mxu0 0.0
  %60 = vmatpush1.msra.mxu0 0.0
  %61 = vmatprep.subr.mxu0 0.0
  %62 = vmatpush1.msra.mxu0 0.0
  %63 = vmatprep.subr.mxu0 0.0
  %64 = vmatpush1.msra.mxu0 0.0
  %65 = vmatprep.subr.mxu0 0.0
  %66 = vmatpush1.msra.mxu0 0.0
  %67 = vmatprep.subr.mxu0 0.0
  %68 = vmatpush1.msra.mxu0 0.0
  %69 = vmatprep.subr.mxu0 0.0
  %70 = vmatpush1.msra.mxu0 0.0
  %71 = vmatprep.subr.mxu0 0.0
  %72 = vmatpush1.msra.mxu0 0.0
  %73 = vmatprep.subr.mxu0 0.0
  %74 = vmatpush1.msra.mxu0 0.0
  %75 = vmatprep.subr.mxu0 0.0
  %76 = vmatpush1.msra.mxu0 0.0
  %77 = vmatprep.subr.mxu0 0.0
  %78 = vmatpush1.msra.mxu0 0.0
  %79 = vmatprep.subr.mxu0 0.0
  %80 = vmatpush1.msra.mxu0 0.0
  %81 = vmatprep.subr.mxu0 0.0
  %82 = vmatpush1.msra.mxu0 0.0
  %83 = vmatprep.subr.mxu0 0.0
  %84 = vmatpush1.msra.mxu0 0.0
  %85 = vmatprep.subr.mxu0 0.0
  %86 = vmatpush1.msra.mxu0 0.0
  %87 = vmatprep.subr.mxu0 0.0
  %88 = vmatpush1.msra.mxu0 0.0
  %89 = vmatprep.subr.mxu0 0.0
  %90 = vmatpush1.msra.mxu0 0.0
  %91 = vmatprep.subr.mxu0 0.0
  %92 = vmatpush1.msra.mxu0 0.0
  %93 = vmatprep.subr.mxu0 0.0
  %94 = vmatpush1.msra.mxu0 0.0
  %95 = vmatprep.subr.mxu0 0.0
  %96 = vmatpush1.msra.mxu0 0.0
  %97 = vmatprep.subr.mxu0 0.0
  %98 = vmatpush1.msra.mxu0 0.0
  %99 = vmatprep.subr.mxu0 0.0
  %100 = vmatpush1.msra.mxu0 0.0
  %101 = vmatprep.subr.mxu0 0.0
  %102 = vmatpush1.msra.mxu0 0.0
  %103 = vmatprep.mubr.f32.mxu0 0.0
  %104 = vmatmul.mubr.f32.gmra.mrb[0].mxu0 %v28
  %v105 = vpop.f32.mrb[0].mxu0
  %v106 = vadd.f32 %v24, %v105
  %v107 = vpop.f32.mrb[0].mxu0
  %108 = vmatprep.mubr.f32.mxu0 0.0
  %109 = vmatmul.mubr.f32.gmra.mrb[0].mxu0 %v31
  %v110 = vpop.f32.mrb[0].mxu0
  %v111 = vadd.f32 %v24, %v110
  %v112 = vpop.f32.mrb[0].mxu0
  %113 = vmatprep.mubr.f32.mxu0 0.0
  %114 = vmatmul.mubr.f32.gmra.mrb[0].mxu0 %v34
  %v115 = vpop.f32.mrb[0].mxu0
  %v116 = vadd.f32 %v24, %v115
  %v117 = vpop.f32.mrb[0].mxu0
  %118 = vmatprep.mubr.f32.mxu0 0.0
  %119 = vmatmul.mubr.f32.gmra.mrb[0].mxu0 %v37
  %v120 = vpop.f32.mrb[0].mxu0
  %v121 = vadd.f32 %v24, %v120
  %v122 = vpop.f32.mrb[0].mxu0
  %123 = vdwg.mxu0
  %124 = vst.msk [vmem:[%s3] sm:$0xff] %vm26, %v106
  %125 = vst.msk [vmem:[%s3 + $0x8] sm:$0xff] %vm26, %v111
  %126 = vst.msk [vmem:[%s3 + $0x10] sm:$0xff] %vm26, %v116
  %127 = vst.msk [vmem:[%s3 + $0x18] sm:$0xff] %vm26, %v121
  // Predicated region
  $region14: #{extralonger_forward.14} parent=0 // pred_check
    _
  $region15: #{extralonger_forward.14} parent=0 // pred_check_branch
    %129 = sbr.rel (0) target = $region17
  $region16: #{extralonger_forward.14} parent=0 // pred_region
    _
  $region17: #{extralonger_forward.14} parent=0 // pred_fallthru
    _
  // Predicated region
  $region18: #{extralonger_forward.14} parent=0 // pred_check
    _
  $region19: #{extralonger_forward.14} parent=0 // pred_check_branch
    %131 = sbr.rel (0) target = $region21
  $region20: #{extralonger_forward.14} parent=0 // pred_region
    _
  $region21: #{extralonger_forward.14} parent=0 // pred_fallthru
    _

// kernel: extralonger_forward.15
$region0: #{extralonger_forward.15}
  #allocation0 [shape = 'u32[]', space=smem, size = 0x4, offset = 0x4, fixed_abs, tag = 'smem constant byte address 0x4 - core index']
  #allocation1 [shape = 'u32[144,128]{1,0:T(1,128)}', space=vmem, size = 0x12000, scoped, tag = 'internal scratch']
  %s0 = inlined_call_operand.vmem [shape: f32[32,8], index: 0, kind: input, shape index: {}]
  %s1 = inlined_call_operand.vmem [shape: f32[8,64], index: 1, kind: input, shape index: {}]
  %s2 = inlined_call_operand.vmem [shape: f32[1,64], index: 2, kind: input, shape index: {}]
  %s3 = inlined_call_operand.vmem [shape: f32[32,64], index: 3, kind: output, shape index: {}]
  %s4 = sld [smem:[#allocation0]]
  $region22: #{extralonger_forward.15} parent=0
    _
  %s6 = ssub.s32 1, %s4
  %s7 = scalar_select 0, %s6, %s4
  // Predicated region
  $region2: #{extralonger_forward.15} parent=0 // pred_check
    _
  $region3: #{extralonger_forward.15} parent=0 // pred_check_branch
    %9 = sbr.rel (0) target = $region5
  $region4: #{extralonger_forward.15} parent=0 // pred_region
    _
  $region5: #{extralonger_forward.15} parent=0 // pred_fallthru
    _
  // Predicated region
  $region6: #{extralonger_forward.15} parent=0 // pred_check
    _
  $region7: #{extralonger_forward.15} parent=0 // pred_check_branch
    %11 = sbr.rel (0) target = $region9
  $region8: #{extralonger_forward.15} parent=0 // pred_region
    _
  $region9: #{extralonger_forward.15} parent=0 // pred_fallthru
    _
  // Predicated region
  $region10: #{extralonger_forward.15} parent=0 // pred_check
    _
  $region11: #{extralonger_forward.15} parent=0 // pred_check_branch
    %13 = sbr.rel (0) target = $region13
  $region12: #{extralonger_forward.15} parent=0 // pred_region
    _
  $region13: #{extralonger_forward.15} parent=0 // pred_fallthru
    _
  %v14 = vld [vmem:[%s0] sm:$0xff]
  %v15 = vld [vmem:[%s0 + $0x8] sm:$0xff]
  %v16 = vld [vmem:[%s0 + $0x10] sm:$0xff]
  %v17 = vld [vmem:[%s0 + $0x18] sm:$0xff]
  %v18 = vld [vmem:[%s1] sm:$0xff]
  %v19 = vld [vmem:[%s2] sm:$0x1]
  %v21 = vlaneseq
  %v22 = vshrl.u32 %v21, 7
  %v23 = vsub.s32 0, %v22
  %v24 = vrot.slane %v19, %v23
  %vm26 = vcmask 64512
  %v28 = vsel %vm26, %v14, 0
  %v31 = vsel %vm26, %v15, 0
  %v34 = vsel %vm26, %v16, 0
  %v37 = vsel %vm26, %v17, 0
  %39 = vmatprep.subr.mxu0 0.0
  %40 = vmatpush1.msra.mxu0 %v18
  %41 = vmatprep.subr.mxu0 0.0
  %42 = vmatpush1.msra.mxu0 0.0
  %43 = vmatprep.subr.mxu0 0.0
  %44 = vmatpush1.msra.mxu0 0.0
  %45 = vmatprep.subr.mxu0 0.0
  %46 = vmatpush1.msra.mxu0 0.0
  %47 = vmatprep.subr.mxu0 0.0
  %48 = vmatpush1.msra.mxu0 0.0
  %49 = vmatprep.subr.mxu0 0.0
  %50 = vmatpush1.msra.mxu0 0.0
  %51 = vmatprep.subr.mxu0 0.0
  %52 = vmatpush1.msra.mxu0 0.0
  %53 = vmatprep.subr.mxu0 0.0
  %54 = vmatpush1.msra.mxu0 0.0
  %55 = vmatprep.subr.mxu0 0.0
  %56 = vmatpush1.msra.mxu0 0.0
  %57 = vmatprep.subr.mxu0 0.0
  %58 = vmatpush1.msra.mxu0 0.0
  %59 = vmatprep.subr.mxu0 0.0
  %60 = vmatpush1.msra.mxu0 0.0
  %61 = vmatprep.subr.mxu0 0.0
  %62 = vmatpush1.msra.mxu0 0.0
  %63 = vmatprep.subr.mxu0 0.0
  %64 = vmatpush1.msra.mxu0 0.0
  %65 = vmatprep.subr.mxu0 0.0
  %66 = vmatpush1.msra.mxu0 0.0
  %67 = vmatprep.subr.mxu0 0.0
  %68 = vmatpush1.msra.mxu0 0.0
  %69 = vmatprep.subr.mxu0 0.0
  %70 = vmatpush1.msra.mxu0 0.0
  %71 = vmatprep.subr.mxu0 0.0
  %72 = vmatpush1.msra.mxu0 0.0
  %73 = vmatprep.subr.mxu0 0.0
  %74 = vmatpush1.msra.mxu0 0.0
  %75 = vmatprep.subr.mxu0 0.0
  %76 = vmatpush1.msra.mxu0 0.0
  %77 = vmatprep.subr.mxu0 0.0
  %78 = vmatpush1.msra.mxu0 0.0
  %79 = vmatprep.subr.mxu0 0.0
  %80 = vmatpush1.msra.mxu0 0.0
  %81 = vmatprep.subr.mxu0 0.0
  %82 = vmatpush1.msra.mxu0 0.0
  %83 = vmatprep.subr.mxu0 0.0
  %84 = vmatpush1.msra.mxu0 0.0
  %85 = vmatprep.subr.mxu0 0.0
  %86 = vmatpush1.msra.mxu0 0.0
  %87 = vmatprep.subr.mxu0 0.0
  %88 = vmatpush1.msra.mxu0 0.0
  %89 = vmatprep.subr.mxu0 0.0
  %90 = vmatpush1.msra.mxu0 0.0
  %91 = vmatprep.subr.mxu0 0.0
  %92 = vmatpush1.msra.mxu0 0.0
  %93 = vmatprep.subr.mxu0 0.0
  %94 = vmatpush1.msra.mxu0 0.0
  %95 = vmatprep.subr.mxu0 0.0
  %96 = vmatpush1.msra.mxu0 0.0
  %97 = vmatprep.subr.mxu0 0.0
  %98 = vmatpush1.msra.mxu0 0.0
  %99 = vmatprep.subr.mxu0 0.0
  %100 = vmatpush1.msra.mxu0 0.0
  %101 = vmatprep.subr.mxu0 0.0
  %102 = vmatpush1.msra.mxu0 0.0
  %103 = vmatprep.mubr.f32.mxu0 0.0
  %104 = vmatmul.mubr.f32.gmra.mrb[0].mxu0 %v28
  %v105 = vpop.f32.mrb[0].mxu0
  %v106 = vadd.f32 %v24, %v105
  %v107 = vpop.f32.mrb[0].mxu0
  %108 = vmatprep.mubr.f32.mxu0 0.0
  %109 = vmatmul.mubr.f32.gmra.mrb[0].mxu0 %v31
  %v110 = vpop.f32.mrb[0].mxu0
  %v111 = vadd.f32 %v24, %v110
  %v112 = vpop.f32.mrb[0].mxu0
  %113 = vmatprep.mubr.f32.mxu0 0.0
  %114 = vmatmul.mubr.f32.gmra.mrb[0].mxu0 %v34
  %v115 = vpop.f32.mrb[0].mxu0
  %v116 = vadd.f32 %v24, %v115
  %v117 = vpop.f32.mrb[0].mxu0
  %118 = vmatprep.mubr.f32.mxu0 0.0
  %119 = vmatmul.mubr.f32.gmra.mrb[0].mxu0 %v37
  %v120 = vpop.f32.mrb[0].mxu0
  %v121 = vadd.f32 %v24, %v120
  %v122 = vpop.f32.mrb[0].mxu0
  %123 = vdwg.mxu0
  %vm124 = vcmask 523264
  %125 = vst.msk [vmem:[%s3] sm:$0xff] %vm124, %v106
  %126 = vst.msk [vmem:[%s3 + $0x8] sm:$0xff] %vm124, %v111
  %127 = vst.msk [vmem:[%s3 + $0x10] sm:$0xff] %vm124, %v116
  %128 = vst.msk [vmem:[%s3 + $0x18] sm:$0xff] %vm124, %v121
  // Predicated region
  $region14: #{extralonger_forward.15} parent=0 // pred_check
    _
  $region15: #{extralonger_forward.15} parent=0 // pred_check_branch
    %130 = sbr.rel (0) target = $region17
  $region16: #{extralonger_forward.15} parent=0 // pred_region
    _
  $region17: #{extralonger_forward.15} parent=0 // pred_fallthru
    _
  // Predicated region
  $region18: #{extralonger_forward.15} parent=0 // pred_check
    _
  $region19: #{extralonger_forward.15} parent=0 // pred_check_branch
    %132 = sbr.rel (0) target = $region21
  $region20: #{extralonger_forward.15} parent=0 // pred_region
    _
  $region21: #{extralonger_forward.15} parent=0 // pred_fallthru
    _

// kernel: extralonger_forward.12
$region0: #{extralonger_forward.12}
  #allocation0 [shape = 'u32[]', space=smem, size = 0x4, offset = 0x4, fixed_abs, tag = 'smem constant byte address 0x4 - core index']
  #allocation1 [shape = 'u32[144,128]{1,0:T(1,128)}', space=vmem, size = 0x12000, scoped, tag = 'internal scratch']
  %s0 = inlined_call_operand.vmem [shape: f32[2,8,128], index: 0, kind: input, shape index: {}]
  %s1 = inlined_call_operand.vmem [shape: f32[128,384], index: 1, kind: input, shape index: {}]
  %s2 = inlined_call_operand.vmem [shape: f32[1,384], index: 2, kind: input, shape index: {}]
  %s3 = inlined_call_operand.vmem [shape: f32[128,128], index: 3, kind: input, shape index: {}]
  %s4 = inlined_call_operand.vmem [shape: f32[1,128], index: 4, kind: input, shape index: {}]
  %s5 = inlined_call_operand.vmem [shape: f32[128,128], index: 5, kind: input, shape index: {}]
  %s6 = inlined_call_operand.vmem [shape: f32[1,128], index: 6, kind: input, shape index: {}]
  %s7 = inlined_call_operand.vmem [shape: f32[128,128], index: 7, kind: input, shape index: {}]
  %s8 = inlined_call_operand.vmem [shape: f32[1,128], index: 8, kind: input, shape index: {}]
  %s9 = inlined_call_operand.vmem [shape: f32[1,128], index: 9, kind: input, shape index: {}]
  %s10 = inlined_call_operand.vmem [shape: f32[1,128], index: 10, kind: input, shape index: {}]
  %s11 = inlined_call_operand.vmem [shape: f32[1,128], index: 11, kind: input, shape index: {}]
  %s12 = inlined_call_operand.vmem [shape: f32[1,128], index: 12, kind: input, shape index: {}]
  %s13 = inlined_call_operand.vmem [shape: f32[2,8,128], index: 13, kind: output, shape index: {}]
  %s14 = sld [smem:[#allocation0]]
  $region85: #{extralonger_forward.12} parent=0
    _
  %s16 = ssub.s32 1, %s14
  %s17 = scalar_select 0, %s16, %s14
  loop: start=0, step=1, limit=4
  $region2: #{extralonger_forward.12} parent=0 // loop_pre_header
    _
  $region3: #{extralonger_forward.12} parent=0 // loop_header
    %s19 = sphi 0, %s23
    %p20 = scmp.ge.s32.totalorder %s19, 4
    %s29 = sphi 0, %s31
    %s32 = sphi 0, %s29
    %s33 = sphi 0, %s32
    %s49 = sphi 0, %s33
    %s53 = sphi 0, %s53
    %s55 = sphi 0, %s53
    %s56 = sphi 0, %s55
    %s70 = sphi 0, %s56
    %s74 = sphi 0, %s74
    %s76 = sphi 0, %s74
    %s77 = sphi 0, %s76
    %s91 = sphi 0, %s77
    %s95 = sphi 0, %s95
    %s97 = sphi 0, %s95
    %s98 = sphi 0, %s97
    %s112 = sphi 0, %s98
    %s116 = sphi 0, %s116
    %s118 = sphi 0, %s116
    %s119 = sphi 0, %s118
    %s133 = sphi 0, %s119
    %s137 = sphi 0, %s137
    %s139 = sphi 0, %s137
    %s140 = sphi 0, %s139
    %s154 = sphi 0, %s140
    %s158 = sphi 0, %s158
    %s160 = sphi 0, %s158
    %s161 = sphi 0, %s160
    %s175 = sphi 0, %s161
    %s179 = sphi 0, %s179
    %s181 = sphi 0, %s179
    %s182 = sphi 0, %s181
    %s196 = sphi 0, %s182
    %s200 = sphi 0, %s200
    %s202 = sphi 0, %s200
    %s203 = sphi 0, %s202
    %s217 = sphi 0, %s203
    %s221 = sphi 0, %s221
    %s223 = sphi 0, %s221
    %s224 = sphi 0, %s223
    %s238 = sphi 0, %s224
    %s242 = sphi 0, %s242
    %s244 = sphi 0, %s242
    %s245 = sphi 0, %s244
    %s259 = sphi 0, %s245
    %s263 = sphi 0, %s263
    %s265 = sphi 0, %s263
    %s266 = sphi 0, %s265
    %s280 = sphi 0, %s266
    %s284 = sphi 0, %s284
    %s286 = sphi 0, %s284
    %s287 = sphi 0, %s286
    %s301 = sphi 0, %s287
    %s307 = sphi 0, %s309
    %s310 = sphi 0, %s307
    %s311 = sphi 0, %s310
    %s327 = sphi 0, %s311
  $region4: #{extralonger_forward.12} parent=0 // loop_header_branch
    %22 = sbr.rel (%p20) target = $region8
  $region5: #{extralonger_forward.12} parent=0 // loop_body
    %s24 = ssub.s32 %s19, 1
    %s25 = ssub.s32 %s19, 2
    %s26 = sadd.s32 %s19, 1
    %s27 = ssub.s32 %s19, %s26
    %p28 = scmp.eq.s32.totalorder %s27, 0
    %s30 = sadd.s32 %s29, 1
    %s31 = scalar_select %p28, %s29, %s30
    %p34 = pneg %p28
    %p35 = scmp.eq.s32.totalorder %s19, 1
    %p36 = por %p34, %p35
    %p37 = scmp.ne.s32.totalorder %s29, %s32
    %p38 = scmp.eq.s32.totalorder %s19, 0
    %p39 = por %p37, %p38
    %p40 = scmp.ne.s32.totalorder %s29, %s32
    %p41 = scmp.eq.s32.totalorder %s24, 1
    %p42 = por %p40, %p41
    %p43 = scmp.ne.s32.totalorder %s32, %s33
    %p44 = scmp.eq.s32.totalorder %s24, 0
    %p45 = por %p43, %p44
    %p46 = scmp.ne.s32.totalorder %s32, %s33
    %p47 = scmp.eq.s32.totalorder %s25, 1
    %p48 = por %p46, %p47
    %p50 = scmp.ne.s32.totalorder %s33, %s49
    %p51 = scmp.eq.s32.totalorder %s25, 0
    %p52 = por %p50, %p51
    %s54 = sadd.s32 %s53, 1
    %p57 = scmp.eq.s32.totalorder %s19, 1
    %p58 = scmp.ne.s32.totalorder %s53, %s55
    %p59 = scmp.eq.s32.totalorder %s19, 0
    %p60 = por %p58, %p59
    %p61 = scmp.ne.s32.totalorder %s53, %s55
    %p62 = scmp.eq.s32.totalorder %s24, 1
    %p63 = por %p61, %p62
    %p64 = scmp.ne.s32.totalorder %s55, %s56
    %p65 = scmp.eq.s32.totalorder %s24, 0
    %p66 = por %p64, %p65
    %p67 = scmp.ne.s32.totalorder %s55, %s56
    %p68 = scmp.eq.s32.totalorder %s25, 1
    %p69 = por %p67, %p68
    %p71 = scmp.ne.s32.totalorder %s56, %s70
    %p72 = scmp.eq.s32.totalorder %s25, 0
    %p73 = por %p71, %p72
    %s75 = sadd.s32 %s74, 1
    %p78 = scmp.eq.s32.totalorder %s19, 1
    %p79 = scmp.ne.s32.totalorder %s74, %s76
    %p80 = scmp.eq.s32.totalorder %s19, 0
    %p81 = por %p79, %p80
    %p82 = scmp.ne.s32.totalorder %s74, %s76
    %p83 = scmp.eq.s32.totalorder %s24, 1
    %p84 = por %p82, %p83
    %p85 = scmp.ne.s32.totalorder %s76, %s77
    %p86 = scmp.eq.s32.totalorder %s24, 0
    %p87 = por %p85, %p86
    %p88 = scmp.ne.s32.totalorder %s76, %s77
    %p89 = scmp.eq.s32.totalorder %s25, 1
    %p90 = por %p88, %p89
    %p92 = scmp.ne.s32.totalorder %s77, %s91
    %p93 = scmp.eq.s32.totalorder %s25, 0
    %p94 = por %p92, %p93
    %s96 = sadd.s32 %s95, 1
    %p99 = scmp.eq.s32.totalorder %s19, 1
    %p100 = scmp.ne.s32.totalorder %s95, %s97
    %p101 = scmp.eq.s32.totalorder %s19, 0
    %p102 = por %p100, %p101
    %p103 = scmp.ne.s32.totalorder %s95, %s97
    %p104 = scmp.eq.s32.totalorder %s24, 1
    %p105 = por %p103, %p104
    %p106 = scmp.ne.s32.totalorder %s97, %s98
    %p107 = scmp.eq.s32.totalorder %s24, 0
    %p108 = por %p106, %p107
    %p109 = scmp.ne.s32.totalorder %s97, %s98
    %p110 = scmp.eq.s32.totalorder %s25, 1
    %p111 = por %p109, %p110
    %p113 = scmp.ne.s32.totalorder %s98, %s112
    %p114 = scmp.eq.s32.totalorder %s25, 0
    %p115 = por %p113, %p114
    %s117 = sadd.s32 %s116, 1
    %p120 = scmp.eq.s32.totalorder %s19, 1
    %p121 = scmp.ne.s32.totalorder %s116, %s118
    %p122 = scmp.eq.s32.totalorder %s19, 0
    %p123 = por %p121, %p122
    %p124 = scmp.ne.s32.totalorder %s116, %s118
    %p125 = scmp.eq.s32.totalorder %s24, 1
    %p126 = por %p124, %p125
    %p127 = scmp.ne.s32.totalorder %s118, %s119
    %p128 = scmp.eq.s32.totalorder %s24, 0
    %p129 = por %p127, %p128
    %p130 = scmp.ne.s32.totalorder %s118, %s119
    %p131 = scmp.eq.s32.totalorder %s25, 1
    %p132 = por %p130, %p131
    %p134 = scmp.ne.s32.totalorder %s119, %s133
    %p135 = scmp.eq.s32.totalorder %s25, 0
    %p136 = por %p134, %p135
    %s138 = sadd.s32 %s137, 1
    %p141 = scmp.eq.s32.totalorder %s19, 1
    %p142 = scmp.ne.s32.totalorder %s137, %s139
    %p143 = scmp.eq.s32.totalorder %s19, 0
    %p144 = por %p142, %p143
    %p145 = scmp.ne.s32.totalorder %s137, %s139
    %p146 = scmp.eq.s32.totalorder %s24, 1
    %p147 = por %p145, %p146
    %p148 = scmp.ne.s32.totalorder %s139, %s140
    %p149 = scmp.eq.s32.totalorder %s24, 0
    %p150 = por %p148, %p149
    %p151 = scmp.ne.s32.totalorder %s139, %s140
    %p152 = scmp.eq.s32.totalorder %s25, 1
    %p153 = por %p151, %p152
    %p155 = scmp.ne.s32.totalorder %s140, %s154
    %p156 = scmp.eq.s32.totalorder %s25, 0
    %p157 = por %p155, %p156
    %s159 = sadd.s32 %s158, 1
    %p162 = scmp.eq.s32.totalorder %s19, 1
    %p163 = scmp.ne.s32.totalorder %s158, %s160
    %p164 = scmp.eq.s32.totalorder %s19, 0
    %p165 = por %p163, %p164
    %p166 = scmp.ne.s32.totalorder %s158, %s160
    %p167 = scmp.eq.s32.totalorder %s24, 1
    %p168 = por %p166, %p167
    %p169 = scmp.ne.s32.totalorder %s160, %s161
    %p170 = scmp.eq.s32.totalorder %s24, 0
    %p171 = por %p169, %p170
    %p172 = scmp.ne.s32.totalorder %s160, %s161
    %p173 = scmp.eq.s32.totalorder %s25, 1
    %p174 = por %p172, %p173
    %p176 = scmp.ne.s32.totalorder %s161, %s175
    %p177 = scmp.eq.s32.totalorder %s25, 0
    %p178 = por %p176, %p177
    %s180 = sadd.s32 %s179, 1
    %p183 = scmp.eq.s32.totalorder %s19, 1
    %p184 = scmp.ne.s32.totalorder %s179, %s181
    %p185 = scmp.eq.s32.totalorder %s19, 0
    %p186 = por %p184, %p185
    %p187 = scmp.ne.s32.totalorder %s179, %s181
    %p188 = scmp.eq.s32.totalorder %s24, 1
    %p189 = por %p187, %p188
    %p190 = scmp.ne.s32.totalorder %s181, %s182
    %p191 = scmp.eq.s32.totalorder %s24, 0
    %p192 = por %p190, %p191
    %p193 = scmp.ne.s32.totalorder %s181, %s182
    %p194 = scmp.eq.s32.totalorder %s25, 1
    %p195 = por %p193, %p194
    %p197 = scmp.ne.s32.totalorder %s182, %s196
    %p198 = scmp.eq.s32.totalorder %s25, 0
    %p199 = por %p197, %p198
    %s201 = sadd.s32 %s200, 1
    %p204 = scmp.eq.s32.totalorder %s19, 1
    %p205 = scmp.ne.s32.totalorder %s200, %s202
    %p206 = scmp.eq.s32.totalorder %s19, 0
    %p207 = por %p205, %p206
    %p208 = scmp.ne.s32.totalorder %s200, %s202
    %p209 = scmp.eq.s32.totalorder %s24, 1
    %p210 = por %p208, %p209
    %p211 = scmp.ne.s32.totalorder %s202, %s203
    %p212 = scmp.eq.s32.totalorder %s24, 0
    %p213 = por %p211, %p212
    %p214 = scmp.ne.s32.totalorder %s202, %s203
    %p215 = scmp.eq.s32.totalorder %s25, 1
    %p216 = por %p214, %p215
    %p218 = scmp.ne.s32.totalorder %s203, %s217
    %p219 = scmp.eq.s32.totalorder %s25, 0
    %p220 = por %p218, %p219
    %s222 = sadd.s32 %s221, 1
    %p225 = scmp.eq.s32.totalorder %s19, 1
    %p226 = scmp.ne.s32.totalorder %s221, %s223
    %p227 = scmp.eq.s32.totalorder %s19, 0
    %p228 = por %p226, %p227
    %p229 = scmp.ne.s32.totalorder %s221, %s223
    %p230 = scmp.eq.s32.totalorder %s24, 1
    %p231 = por %p229, %p230
    %p232 = scmp.ne.s32.totalorder %s223, %s224
    %p233 = scmp.eq.s32.totalorder %s24, 0
    %p234 = por %p232, %p233
    %p235 = scmp.ne.s32.totalorder %s223, %s224
    %p236 = scmp.eq.s32.totalorder %s25, 1
    %p237 = por %p235, %p236
    %p239 = scmp.ne.s32.totalorder %s224, %s238
    %p240 = scmp.eq.s32.totalorder %s25, 0
    %p241 = por %p239, %p240
    %s243 = sadd.s32 %s242, 1
    %p246 = scmp.eq.s32.totalorder %s19, 1
    %p247 = scmp.ne.s32.totalorder %s242, %s244
    %p248 = scmp.eq.s32.totalorder %s19, 0
    %p249 = por %p247, %p248
    %p250 = scmp.ne.s32.totalorder %s242, %s244
    %p251 = scmp.eq.s32.totalorder %s24, 1
    %p252 = por %p250, %p251
    %p253 = scmp.ne.s32.totalorder %s244, %s245
    %p254 = scmp.eq.s32.totalorder %s24, 0
    %p255 = por %p253, %p254
    %p256 = scmp.ne.s32.totalorder %s244, %s245
    %p257 = scmp.eq.s32.totalorder %s25, 1
    %p258 = por %p256, %p257
    %p260 = scmp.ne.s32.totalorder %s245, %s259
    %p261 = scmp.eq.s32.totalorder %s25, 0
    %p262 = por %p260, %p261
    %s264 = sadd.s32 %s263, 1
    %p267 = scmp.eq.s32.totalorder %s19, 1
    %p268 = scmp.ne.s32.totalorder %s263, %s265
    %p269 = scmp.eq.s32.totalorder %s19, 0
    %p270 = por %p268, %p269
    %p271 = scmp.ne.s32.totalorder %s263, %s265
    %p272 = scmp.eq.s32.totalorder %s24, 1
    %p273 = por %p271, %p272
    %p274 = scmp.ne.s32.totalorder %s265, %s266
    %p275 = scmp.eq.s32.totalorder %s24, 0
    %p276 = por %p274, %p275
    %p277 = scmp.ne.s32.totalorder %s265, %s266
    %p278 = scmp.eq.s32.totalorder %s25, 1
    %p279 = por %p277, %p278
    %p281 = scmp.ne.s32.totalorder %s266, %s280
    %p282 = scmp.eq.s32.totalorder %s25, 0
    %p283 = por %p281, %p282
    %s285 = sadd.s32 %s284, 1
    %p288 = scmp.eq.s32.totalorder %s19, 1
    %p289 = scmp.ne.s32.totalorder %s284, %s286
    %p290 = scmp.eq.s32.totalorder %s19, 0
    %p291 = por %p289, %p290
    %p292 = scmp.ne.s32.totalorder %s284, %s286
    %p293 = scmp.eq.s32.totalorder %s24, 1
    %p294 = por %p292, %p293
    %p295 = scmp.ne.s32.totalorder %s286, %s287
    %p296 = scmp.eq.s32.totalorder %s24, 0
    %p297 = por %p295, %p296
    %p298 = scmp.ne.s32.totalorder %s286, %s287
    %p299 = scmp.eq.s32.totalorder %s25, 1
    %p300 = por %p298, %p299
    %p302 = scmp.ne.s32.totalorder %s287, %s301
    %p303 = scmp.eq.s32.totalorder %s25, 0
    %p304 = por %p302, %p303
    %s305 = ssub.s32 %s19, %s26
    %p306 = scmp.eq.s32.totalorder %s305, 0
    %s308 = sadd.s32 %s307, 1
    %s309 = scalar_select %p306, %s307, %s308
    %p312 = pneg %p306
    %p313 = scmp.eq.s32.totalorder %s19, 1
    %p314 = por %p312, %p313
    %p315 = scmp.ne.s32.totalorder %s307, %s310
    %p316 = scmp.eq.s32.totalorder %s19, 0
    %p317 = por %p315, %p316
    %p318 = scmp.ne.s32.totalorder %s307, %s310
    %p319 = scmp.eq.s32.totalorder %s24, 1
    %p320 = por %p318, %p319
    %p321 = scmp.ne.s32.totalorder %s310, %s311
    %p322 = scmp.eq.s32.totalorder %s24, 0
    %p323 = por %p321, %p322
    %p324 = scmp.ne.s32.totalorder %s310, %s311
    %p325 = scmp.eq.s32.totalorder %s25, 1
    %p326 = por %p324, %p325
    %p328 = scmp.ne.s32.totalorder %s311, %s327
    %p329 = scmp.eq.s32.totalorder %s25, 0
    %p330 = por %p328, %p329
    %p331 = scmp.le.s32.totalorder 1, %s19
    %p332 = scmp.lt.s32.totalorder %s19, 3
    %p333 = pnand %p331, %p332
    %p334 = pneg %p333
    // Predicated region
    $region9: #{extralonger_forward.12} parent=5 // pred_check
      _
    $region10: #{extralonger_forward.12} parent=5 // pred_check_branch
      %336 = sbr.rel (%p333) target = $region12
    $region11: #{extralonger_forward.12} parent=5 // pred_region
      %s337 = ssub.s32 %s19, 1
      // Predicated region
      $region13: #{extralonger_forward.12} parent=11 // pred_check
        %p338 = pneg %p66
      $region14: #{extralonger_forward.12} parent=11 // pred_check_branch
        %340 = sbr.rel (%p338) target = $region16
      $region15: #{extralonger_forward.12} parent=11 // pred_region
        _
      $region16: #{extralonger_forward.12} parent=11 // pred_fallthru
        _
      // Predicated region
      $region17: #{extralonger_forward.12} parent=11 // pred_check
        %p341 = pneg %p87
      $region18: #{extralonger_forward.12} parent=11 // pred_check_branch
        %343 = sbr.rel (%p341) target = $region20
      $region19: #{extralonger_forward.12} parent=11 // pred_region
        _
      $region20: #{extralonger_forward.12} parent=11 // pred_fallthru
        _
      // Predicated region
      $region21: #{extralonger_forward.12} parent=11 // pred_check
        %p344 = pneg %p108
      $region22: #{extralonger_forward.12} parent=11 // pred_check_branch
        %346 = sbr.rel (%p344) target = $region24
      $region23: #{extralonger_forward.12} parent=11 // pred_region
        _
      $region24: #{extralonger_forward.12} parent=11 // pred_fallthru
        _
      // Predicated region
      $region25: #{extralonger_forward.12} parent=11 // pred_check
        %p347 = pneg %p129
      $region26: #{extralonger_forward.12} parent=11 // pred_check_branch
        %349 = sbr.rel (%p347) target = $region28
      $region27: #{extralonger_forward.12} parent=11 // pred_region
        _
      $region28: #{extralonger_forward.12} parent=11 // pred_fallthru
        _
      // Predicated region
      $region29: #{extralonger_forward.12} parent=11 // pred_check
        %p350 = pneg %p150
      $region30: #{extralonger_forward.12} parent=11 // pred_check_branch
        %352 = sbr.rel (%p350) target = $region32
      $region31: #{extralonger_forward.12} parent=11 // pred_region
        _
      $region32: #{extralonger_forward.12} parent=11 // pred_fallthru
        _
      // Predicated region
      $region33: #{extralonger_forward.12} parent=11 // pred_check
        %p353 = pneg %p171
      $region34: #{extralonger_forward.12} parent=11 // pred_check_branch
        %355 = sbr.rel (%p353) target = $region36
      $region35: #{extralonger_forward.12} parent=11 // pred_region
        _
      $region36: #{extralonger_forward.12} parent=11 // pred_fallthru
        _
      // Predicated region
      $region37: #{extralonger_forward.12} parent=11 // pred_check
        %p356 = pneg %p192
      $region38: #{extralonger_forward.12} parent=11 // pred_check_branch
        %358 = sbr.rel (%p356) target = $region40
      $region39: #{extralonger_forward.12} parent=11 // pred_region
        _
      $region40: #{extralonger_forward.12} parent=11 // pred_fallthru
        _
      // Predicated region
      $region41: #{extralonger_forward.12} parent=11 // pred_check
        %p359 = pneg %p213
      $region42: #{extralonger_forward.12} parent=11 // pred_check_branch
        %361 = sbr.rel (%p359) target = $region44
      $region43: #{extralonger_forward.12} parent=11 // pred_region
        _
      $region44: #{extralonger_forward.12} parent=11 // pred_fallthru
        _
      // Predicated region
      $region45: #{extralonger_forward.12} parent=11 // pred_check
        %p362 = pneg %p234
      $region46: #{extralonger_forward.12} parent=11 // pred_check_branch
        %364 = sbr.rel (%p362) target = $region48
      $region47: #{extralonger_forward.12} parent=11 // pred_region
        _
      $region48: #{extralonger_forward.12} parent=11 // pred_fallthru
        _
      // Predicated region
      $region49: #{extralonger_forward.12} parent=11 // pred_check
        %p365 = pneg %p255
      $region50: #{extralonger_forward.12} parent=11 // pred_check_branch
        %367 = sbr.rel (%p365) target = $region52
      $region51: #{extralonger_forward.12} parent=11 // pred_region
        _
      $region52: #{extralonger_forward.12} parent=11 // pred_fallthru
        _
      // Predicated region
      $region53: #{extralonger_forward.12} parent=11 // pred_check
        %p368 = pneg %p276
      $region54: #{extralonger_forward.12} parent=11 // pred_check_branch
        %370 = sbr.rel (%p368) target = $region56
      $region55: #{extralonger_forward.12} parent=11 // pred_region
        _
      $region56: #{extralonger_forward.12} parent=11 // pred_fallthru
        _
      // Predicated region
      $region57: #{extralonger_forward.12} parent=11 // pred_check
        %p371 = pneg %p297
      $region58: #{extralonger_forward.12} parent=11 // pred_check_branch
        %373 = sbr.rel (%p371) target = $region60
      $region59: #{extralonger_forward.12} parent=11 // pred_region
        _
      $region60: #{extralonger_forward.12} parent=11 // pred_fallthru
        _
    $region12: #{extralonger_forward.12} parent=5 // pred_fallthru
      _
    %p374 = scmp.lt.s32.totalorder %s19, 2
    // Predicated region
    $region61: #{extralonger_forward.12} parent=5 // pred_check
      %p375 = pneg %p374
    $region62: #{extralonger_forward.12} parent=5 // pred_check_branch
      %377 = sbr.rel (%p375) target = $region64
    $region63: #{extralonger_forward.12} parent=5 // pred_region
      // Predicated region
      $region65: #{extralonger_forward.12} parent=63 // pred_check
        %p378 = pneg %p39
      $region66: #{extralonger_forward.12} parent=63 // pred_check_branch
        %380 = sbr.rel (%p378) target = $region68
      $region67: #{extralonger_forward.12} parent=63 // pred_region
        %p381 = scmp.lt.s32.totalorder %s19, 1
        %s382 = scalar_select %p381, %s19, 1
        %s383 = smul.addr %s382, 8
        %s384 = scalar_lea.vmem %s0, %s383
      $region68: #{extralonger_forward.12} parent=63 // pred_fallthru
        _
    $region64: #{extralonger_forward.12} parent=5 // pred_fallthru
      _
    %p385 = scmp.le.s32.totalorder 1, %s19
    %p386 = scmp.lt.s32.totalorder %s19, 3
    %p387 = pnand %p385, %p386
    %p388 = pneg %p387
    // Predicated region
    $region69: #{extralonger_forward.12} parent=5 // pred_check
      _
    $region70: #{extralonger_forward.12} parent=5 // pred_check_branch
      %390 = sbr.rel (%p387) target = $region72
    $region71: #{extralonger_forward.12} parent=5 // pred_region
      %s391 = ssub.s32 %s19, 1
      %p392 = scmp.lt.s32.totalorder %s24, 1
      %s393 = scalar_select %p392, %s24, 1
      %s394 = smul.addr %s393, 8
      %s395 = scalar_lea.vmem %s0, %s394
      %p396 = pneg %p45
      %p397 = pneg %p42
      %p398 = pneg %p66
      %p399 = pneg %p63
      %p400 = pneg %p87
      %p401 = pneg %p84
      %p402 = pneg %p108
      %p403 = pneg %p105
      %p404 = pneg %p129
      %p405 = pneg %p126
      %p406 = pneg %p150
      %p407 = pneg %p147
      %p408 = pneg %p171
      %p409 = pneg %p168
      %p410 = pneg %p192
      %p411 = pneg %p189
      %p412 = pneg %p213
      %p413 = pneg %p210
      %p414 = pneg %p234
      %p415 = pneg %p231
      %p416 = pneg %p255
      %p417 = pneg %p252
      %p418 = pneg %p276
      %p419 = pneg %p273
      %p420 = pneg %p297
      %p421 = pneg %p294
      %p422 = pneg %p323
      %p423 = pneg %p320
      %p424 = scmp.lt.s32.totalorder %s24, 1
      %s425 = scalar_select %p424, %s24, 1
      %s426 = smul.addr %s425, 8
      %s427 = scalar_lea.vmem %s13, %s426
      %p428 = scmp.lt.s32.totalorder %s24, 1
      %s429 = scalar_select %p428, %s24, 1
      %s430 = smul.addr %s429, 8
      %s431 = scalar_lea.vmem %s0, %s430
      %p432 = scmp.lt.s32.totalorder %s24, 1
      %s433 = scalar_select %p432, %s24, 1
      %s434 = smul.addr %s433, 8
      %s435 = scalar_lea.vmem %s13, %s434
      %v437 = vld [vmem:[%s431] sm:$0xff]
      %v438 = vpack.c.bf16 %v437, %v437
      %v439 = vld [vmem:[%s1] sm:$0xff]
      %v440 = vld [vmem:[%s1 + $0x8] sm:$0xff]
      %v441 = vld [vmem:[%s1 + $0x10] sm:$0xff]
      %v442 = vld [vmem:[%s1 + $0x18] sm:$0xff]
      %v443 = vld [vmem:[%s1 + $0x20] sm:$0xff]
      %v444 = vld [vmem:[%s1 + $0x28] sm:$0xff]
      %v445 = vld [vmem:[%s1 + $0x30] sm:$0xff]
      %v446 = vld [vmem:[%s1 + $0x38] sm:$0xff]
      %v447 = vld [vmem:[%s1 + $0x40] sm:$0xff]
      %v448 = vld [vmem:[%s1 + $0x48] sm:$0xff]
      %v449 = vld [vmem:[%s1 + $0x50] sm:$0xff]
      %v450 = vld [vmem:[%s1 + $0x58] sm:$0xff]
      %v451 = vld [vmem:[%s1 + $0x60] sm:$0xff]
      %v452 = vld [vmem:[%s1 + $0x68] sm:$0xff]
      %v453 = vld [vmem:[%s1 + $0x70] sm:$0xff]
      %v454 = vld [vmem:[%s1 + $0x78] sm:$0xff]
      %v455 = vld [vmem:[%s1 + $0x80] sm:$0xff]
      %v456 = vld [vmem:[%s1 + $0x88] sm:$0xff]
      %v457 = vld [vmem:[%s1 + $0x90] sm:$0xff]
      %v458 = vld [vmem:[%s1 + $0x98] sm:$0xff]
      %v459 = vld [vmem:[%s1 + $0xa0] sm:$0xff]
      %v460 = vld [vmem:[%s1 + $0xa8] sm:$0xff]
      %v461 = vld [vmem:[%s1 + $0xb0] sm:$0xff]
      %v462 = vld [vmem:[%s1 + $0xb8] sm:$0xff]
      %v463 = vld [vmem:[%s1 + $0xc0] sm:$0xff]
      %v464 = vld [vmem:[%s1 + $0xc8] sm:$0xff]
      %v465 = vld [vmem:[%s1 + $0xd0] sm:$0xff]
      %v466 = vld [vmem:[%s1 + $0xd8] sm:$0xff]
      %v467 = vld [vmem:[%s1 + $0xe0] sm:$0xff]
      %v468 = vld [vmem:[%s1 + $0xe8] sm:$0xff]
      %v469 = vld [vmem:[%s1 + $0xf0] sm:$0xff]
      %v470 = vld [vmem:[%s1 + $0xf8] sm:$0xff]
      %v471 = vld [vmem:[%s1 + $0x100] sm:$0xff]
      %v472 = vld [vmem:[%s1 + $0x108] sm:$0xff]
      %v473 = vld [vmem:[%s1 + $0x110] sm:$0xff]
      %v474 = vld [vmem:[%s1 + $0x118] sm:$0xff]
      %v475 = vld [vmem:[%s1 + $0x120] sm:$0xff]
      %v476 = vld [vmem:[%s1 + $0x128] sm:$0xff]
      %v477 = vld [vmem:[%s1 + $0x130] sm:$0xff]
      %v478 = vld [vmem:[%s1 + $0x138] sm:$0xff]
      %v479 = vld [vmem:[%s1 + $0x140] sm:$0xff]
      %v480 = vld [vmem:[%s1 + $0x148] sm:$0xff]
      %v481 = vld [vmem:[%s1 + $0x150] sm:$0xff]
      %v482 = vld [vmem:[%s1 + $0x158] sm:$0xff]
      %v483 = vld [vmem:[%s1 + $0x160] sm:$0xff]
      %v484 = vld [vmem:[%s1 + $0x168] sm:$0xff]
      %v485 = vld [vmem:[%s1 + $0x170] sm:$0xff]
      %v486 = vld [vmem:[%s1 + $0x178] sm:$0xff]
      %v487 = vpack.c.bf16 %v442, %v439
      %v488 = vpack.c.bf16 %v443, %v440
      %v489 = vpack.c.bf16 %v444, %v441
      %v490 = vpack.c.bf16 %v448, %v445
      %v491 = vpack.c.bf16 %v449, %v446
      %v492 = vpack.c.bf16 %v450, %v447
      %v493 = vpack.c.bf16 %v454, %v451
      %v494 = vpack.c.bf16 %v455, %v452
      %v495 = vpack.c.bf16 %v456, %v453
      %v496 = vpack.c.bf16 %v460, %v457
      %v497 = vpack.c.bf16 %v461, %v458
      %v498 = vpack.c.bf16 %v462, %v459
      %v499 = vpack.c.bf16 %v466, %v463
      %v500 = vpack.c.bf16 %v467, %v464
      %v501 = vpack.c.bf16 %v468, %v465
      %v502 = vpack.c.bf16 %v472, %v469
      %v503 = vpack.c.bf16 %v473, %v470
      %v504 = vpack.c.bf16 %v474, %v471
      %v505 = vpack.c.bf16 %v478, %v475
      %v506 = vpack.c.bf16 %v479, %v476
      %v507 = vpack.c.bf16 %v480, %v477
      %v508 = vpack.c.bf16 %v484, %v481
      %v509 = vpack.c.bf16 %v485, %v482
      %v510 = vpack.c.bf16 %v486, %v483
      %v511 = vld [vmem:[%s2] sm:$0x7]
      %v513 = vlaneseq
      %v514 = vshrl.u32 %v513, 7
      %v515 = vsub.s32 0, %v514
      %v516 = vrot.slane %v511, %v515
      %v517 = vlaneseq
      %v518 = vshrl.u32 %v517, 7
      %v519 = vsub.s32 1, %v518
      %v520 = vrot.slane %v511, %v519
      %v521 = vlaneseq
      %v522 = vshrl.u32 %v521, 7
      %v523 = vsub.s32 2, %v522
      %v524 = vrot.slane %v511, %v523
      %528 = vmatprep.subr.bf16.mxu0 %v488
      %529 = vmatpush1.bf16.msra.mxu0 %v487
      %530 = vmatprep.subr.bf16.mxu0 %v491
      %531 = vmatpush1.bf16.msra.mxu0 %v490
      %532 = vmatprep.subr.bf16.mxu0 %v494
      %533 = vmatpush1.bf16.msra.mxu0 %v493
      %534 = vmatprep.subr.bf16.mxu0 %v497
      %535 = vmatpush1.bf16.msra.mxu0 %v496
      %536 = vmatprep.subr.bf16.mxu0 %v500
      %537 = vmatpush1.bf16.msra.mxu0 %v499
      %538 = vmatprep.subr.bf16.mxu0 %v503
      %539 = vmatpush1.bf16.msra.mxu0 %v502
      %540 = vmatprep.subr.bf16.mxu0 %v506
      %541 = vmatpush1.bf16.msra.mxu0 %v505
      %542 = vmatprep.subr.bf16.mxu0 %v509
      %543 = vmatpush1.bf16.msra.mxu0 %v508
      %544 = vmatprep.subr.bf16.mxu0 0
      %545 = vmatpush1.bf16.msra.mxu0 0
      %546 = vmatprep.subr.bf16.mxu0 0
      %547 = vmatpush1.bf16.msra.mxu0 0
      %548 = vmatprep.subr.bf16.mxu0 0
      %549 = vmatpush1.bf16.msra.mxu0 0
      %550 = vmatprep.subr.bf16.mxu0 0
      %551 = vmatpush1.bf16.msra.mxu0 0
      %552 = vmatprep.subr.bf16.mxu0 0
      %553 = vmatpush1.bf16.msra.mxu0 0
      %554 = vmatprep.subr.bf16.mxu0 0
      %555 = vmatpush1.bf16.msra.mxu0 0
      %556 = vmatprep.subr.bf16.mxu0 0
      %557 = vmatpush1.bf16.msra.mxu0 0
      %558 = vmatprep.subr.bf16.mxu0 0
      %559 = vmatpush1.bf16.msra.mxu0 0
      %560 = vmatprep.mubr.bf16.mxu0 0
      %561 = vmatmul.mubr.bf16.gmra.mrb[0].mxu0 %v438
      %v562 = vpop.f32.mrb[0].mxu0
      %v563 = vadd.f32 %v516, %v562
      %v564 = vpop.f32.mrb[0].mxu0
      %v565 = vadd.f32 %v520, %v564
      %v566 = vpop.f32.mrb[0].mxu0
      %v567 = vpop.f32.mrb[0].mxu0
      %568 = vdwg.mxu0
      %569 = vmatprep.subr.bf16.mxu0 0
      %570 = vmatpush1.bf16.msra.mxu0 %v489
      %571 = vmatprep.subr.bf16.mxu0 0
      %572 = vmatpush1.bf16.msra.mxu0 %v492
      %573 = vmatprep.subr.bf16.mxu0 0
      %574 = vmatpush1.bf16.msra.mxu0 %v495
      %575 = vmatprep.subr.bf16.mxu0 0
      %576 = vmatpush1.bf16.msra.mxu0 %v498
      %577 = vmatprep.subr.bf16.mxu0 0
      %578 = vmatpush1.bf16.msra.mxu0 %v501
      %579 = vmatprep.subr.bf16.mxu0 0
      %580 = vmatpush1.bf16.msra.mxu0 %v504
      %581 = vmatprep.subr.bf16.mxu0 0
      %582 = vmatpush1.bf16.msra.mxu0 %v507
      %583 = vmatprep.subr.bf16.mxu0 0
      %584 = vmatpush1.bf16.msra.mxu0 %v510
      %585 = vmatprep.subr.bf16.mxu0 0
      %586 = vmatpush1.bf16.msra.mxu0 0
      %587 = vmatprep.subr.bf16.mxu0 0
      %588 = vmatpush1.bf16.msra.mxu0 0
      %589 = vmatprep.subr.bf16.mxu0 0
      %590 = vmatpush1.bf16.msra.mxu0 0
      %591 = vmatprep.subr.bf16.mxu0 0
      %592 = vmatpush1.bf16.msra.mxu0 0
      %593 = vmatprep.subr.bf16.mxu0 0
      %594 = vmatpush1.bf16.msra.mxu0 0
      %595 = vmatprep.subr.bf16.mxu0 0
      %596 = vmatpush1.bf16.msra.mxu0 0
      %597 = vmatprep.subr.bf16.mxu0 0
      %598 = vmatpush1.bf16.msra.mxu0 0
      %599 = vmatprep.subr.bf16.mxu0 0
      %600 = vmatpush1.bf16.msra.mxu0 0
      %601 = vmatprep.mubr.bf16.mxu0 0
      %602 = vmatmul.mubr.bf16.gmra.mrb[0].mxu0 %v438
      %v603 = vpop.f32.mrb[0].mxu0
      %v604 = vadd.f32 %v524, %v603
      %v605 = vpop.f32.mrb[0].mxu0
      %v606 = vpop.f32.mrb[0].mxu0
      %v607 = vpop.f32.mrb[0].mxu0
      %608 = vdwg.mxu0
      %v609 = vmul.f32 %v563, 0.25
      %611 = vrot.lane.b32.xlu0 %v609, 112
      %v612 = vpop.permute.xlu0 %611
      %614 = vrot.lane.b32.xlu0 %v609, 96
      %v615 = vpop.permute.xlu0 %614
      %617 = vrot.lane.b32.xlu0 %v609, 80
      %v618 = vpop.permute.xlu0 %617
      %620 = vrot.lane.b32.xlu0 %v609, 64
      %v621 = vpop.permute.xlu0 %620
      %623 = vrot.lane.b32.xlu0 %v609, 48
      %v624 = vpop.permute.xlu0 %623
      %626 = vrot.lane.b32.xlu0 %v609, 32
      %v627 = vpop.permute.xlu0 %626
      %629 = vrot.lane.b32.xlu0 %v609, 16
      %v630 = vpop.permute.xlu0 %629
      %v632 = vcombine.low %v609, %v615
      %v633 = vcombine.high %v609, %v615
      %v635 = vunpack.c.l.s4 1983009808
      %v636 = vunpack.c.0.s8 %v635
      %v637 = vlaneseq
      %v638 = vshrl.u32 %v637, 7
      %v639 = vsub.s32 %v636, %v638
      %v640 = vrot.slane %v632, %v639
      %v642 = vunpack.c.l.s4 1983009808
      %v643 = vunpack.c.0.s8 %v642
      %v644 = vlaneseq
      %v645 = vshrl.u32 %v644, 7
      %v646 = vsub.s32 %v643, %v645
      %v647 = vrot.slane %v633, %v646
      %v648 = vcombine.low %v612, %v618
      %v649 = vcombine.high %v612, %v618
      %v651 = vunpack.c.l.s4 1983009808
      %v652 = vunpack.c.0.s8 %v651
      %v653 = vlaneseq
      %v654 = vshrl.u32 %v653, 7
      %v655 = vsub.s32 %v652, %v654
      %v656 = vrot.slane %v648, %v655
      %v658 = vunpack.c.l.s4 1983009808
      %v659 = vunpack.c.0.s8 %v658
      %v660 = vlaneseq
      %v661 = vshrl.u32 %v660, 7
      %v662 = vsub.s32 %v659, %v661
      %v663 = vrot.slane %v649, %v662
      %v664 = vcombine.low %v621, %v627
      %v665 = vcombine.high %v621, %v627
      %v667 = vunpack.c.l.s4 1983009808
      %v668 = vunpack.c.0.s8 %v667
      %v669 = vlaneseq
      %v670 = vshrl.u32 %v669, 7
      %v671 = vsub.s32 %v668, %v670
      %v672 = vrot.slane %v664, %v671
      %v674 = vunpack.c.l.s4 1983009808
      %v675 = vunpack.c.0.s8 %v674
      %v676 = vlaneseq
      %v677 = vshrl.u32 %v676, 7
      %v678 = vsub.s32 %v675, %v677
      %v679 = vrot.slane %v665, %v678
      %v680 = vcombine.low %v624, %v630
      %v681 = vcombine.high %v624, %v630
      %v683 = vunpack.c.l.s4 1983009808
      %v684 = vunpack.c.0.s8 %v683
      %v685 = vlaneseq
      %v686 = vshrl.u32 %v685, 7
      %v687 = vsub.s32 %v684, %v686
      %v688 = vrot.slane %v680, %v687
      %v690 = vunpack.c.l.s4 1983009808
      %v691 = vunpack.c.0.s8 %v690
      %v692 = vlaneseq
      %v693 = vshrl.u32 %v692, 7
      %v694 = vsub.s32 %v691, %v693
      %v695 = vrot.slane %v681, %v694
      %v696 = vcombine.low %v640, %v656
      %v697 = vcombine.high %v640, %v656
      %v699 = vunpack.c.l.s4 1934713408
      %v700 = vunpack.c.0.s8 %v699
      %v701 = vlaneseq
      %v702 = vshrl.u32 %v701, 7
      %v703 = vsub.s32 %v700, %v702
      %v704 = vrot.slane %v696, %v703
      %v706 = vunpack.c.l.s4 1934713408
      %v707 = vunpack.c.0.s8 %v706
      %v708 = vlaneseq
      %v709 = vshrl.u32 %v708, 7
      %v710 = vsub.s32 %v707, %v709
      %v711 = vrot.slane %v697, %v710
      %v712 = vcombine.low %v647, %v663
      %v713 = vcombine.high %v647, %v663
      %v715 = vunpack.c.l.s4 1934713408
      %v716 = vunpack.c.0.s8 %v715
      %v717 = vlaneseq
      %v718 = vshrl.u32 %v717, 7
      %v719 = vsub.s32 %v716, %v718
      %v720 = vrot.slane %v712, %v719
      %v722 = vunpack.c.l.s4 1934713408
      %v723 = vunpack.c.0.s8 %v722
      %v724 = vlaneseq
      %v725 = vshrl.u32 %v724, 7
      %v726 = vsub.s32 %v723, %v725
      %v727 = vrot.slane %v713, %v726
      %v728 = vcombine.low %v672, %v688
      %v729 = vcombine.high %v672, %v688
      %v731 = vunpack.c.l.s4 1934713408
      %v732 = vunpack.c.0.s8 %v731
      %v733 = vlaneseq
      %v734 = vshrl.u32 %v733, 7
      %v735 = vsub.s32 %v732, %v734
      %v736 = vrot.slane %v728, %v735
      %v738 = vunpack.c.l.s4 1934713408
      %v739 = vunpack.c.0.s8 %v738
      %v740 = vlaneseq
      %v741 = vshrl.u32 %v740, 7
      %v742 = vsub.s32 %v739, %v741
      %v743 = vrot.slane %v729, %v742
      %v744 = vcombine.low %v679, %v695
      %v745 = vcombine.high %v679, %v695
      %v747 = vunpack.c.l.s4 1934713408
      %v748 = vunpack.c.0.s8 %v747
      %v749 = vlaneseq
      %v750 = vshrl.u32 %v749, 7
      %v751 = vsub.s32 %v748, %v750
      %v752 = vrot.slane %v744, %v751
      %v754 = vunpack.c.l.s4 1934713408
      %v755 = vunpack.c.0.s8 %v754
      %v756 = vlaneseq
      %v757 = vshrl.u32 %v756, 7
      %v758 = vsub.s32 %v755, %v757
      %v759 = vrot.slane %v745, %v758
      %v760 = vcombine.low %v704, %v736
      %v761 = vcombine.high %v704, %v736
      %v762 = vcombine.low %v711, %v743
      %v763 = vcombine.high %v711, %v743
      %v764 = vcombine.low %v720, %v752
      %v765 = vcombine.high %v720, %v752
      %v766 = vcombine.low %v727, %v759
      %v767 = vcombine.high %v727, %v759
      %v768 = vcombine.low %v760, %v762
      %v769 = vcombine.high %v760, %v762
      %v771 = vunpack.c.l.s4 1983009808
      %v772 = vunpack.c.0.s8 %v771
      %v773 = vlaneseq
      %v774 = vshrl.u32 %v773, 7
      %v775 = vsub.s32 %v772, %v774
      %v776 = vrot.slane %v768, %v775
      %v778 = vunpack.c.l.s4 1983009808
      %v779 = vunpack.c.0.s8 %v778
      %v780 = vlaneseq
      %v781 = vshrl.u32 %v780, 7
      %v782 = vsub.s32 %v779, %v781
      %v783 = vrot.slane %v769, %v782
      %v784 = vcombine.low %v761, %v763
      %v785 = vcombine.high %v761, %v763
      %v787 = vunpack.c.l.s4 1983009808
      %v788 = vunpack.c.0.s8 %v787
      %v789 = vlaneseq
      %v790 = vshrl.u32 %v789, 7
      %v791 = vsub.s32 %v788, %v790
      %v792 = vrot.slane %v784, %v791
      %v794 = vunpack.c.l.s4 1983009808
      %v795 = vunpack.c.0.s8 %v794
      %v796 = vlaneseq
      %v797 = vshrl.u32 %v796, 7
      %v798 = vsub.s32 %v795, %v797
      %v799 = vrot.slane %v785, %v798
      %v800 = vcombine.low %v764, %v766
      %v801 = vcombine.high %v764, %v766
      %v803 = vunpack.c.l.s4 1983009808
      %v804 = vunpack.c.0.s8 %v803
      %v805 = vlaneseq
      %v806 = vshrl.u32 %v805, 7
      %v807 = vsub.s32 %v804, %v806
      %v808 = vrot.slane %v800, %v807
      %v810 = vunpack.c.l.s4 1983009808
      %v811 = vunpack.c.0.s8 %v810
      %v812 = vlaneseq
      %v813 = vshrl.u32 %v812, 7
      %v814 = vsub.s32 %v811, %v813
      %v815 = vrot.slane %v801, %v814
      %v816 = vcombine.low %v765, %v767
      %v817 = vcombine.high %v765, %v767
      %v819 = vunpack.c.l.s4 1983009808
      %v820 = vunpack.c.0.s8 %v819
      %v821 = vlaneseq
      %v822 = vshrl.u32 %v821, 7
      %v823 = vsub.s32 %v820, %v822
      %v824 = vrot.slane %v816, %v823
      %v826 = vunpack.c.l.s4 1983009808
      %v827 = vunpack.c.0.s8 %v826
      %v828 = vlaneseq
      %v829 = vshrl.u32 %v828, 7
      %v830 = vsub.s32 %v827, %v829
      %v831 = vrot.slane %v817, %v830
      %v832 = vcombine.low %v776, %v792
      %v833 = vcombine.high %v776, %v792
      %v835 = vunpack.c.l.s4 1934713408
      %v836 = vunpack.c.0.s8 %v835
      %v837 = vlaneseq
      %v838 = vshrl.u32 %v837, 7
      %v839 = vsub.s32 %v836, %v838
      %v840 = vrot.slane %v832, %v839
      %v842 = vunpack.c.l.s4 1934713408
      %v843 = vunpack.c.0.s8 %v842
      %v844 = vlaneseq
      %v845 = vshrl.u32 %v844, 7
      %v846 = vsub.s32 %v843, %v845
      %v847 = vrot.slane %v833, %v846
      %v848 = vcombine.low %v783, %v799
      %v849 = vcombine.high %v783, %v799
      %v851 = vunpack.c.l.s4 1934713408
      %v852 = vunpack.c.0.s8 %v851
      %v853 = vlaneseq
      %v854 = vshrl.u32 %v853, 7
      %v855 = vsub.s32 %v852, %v854
      %v856 = vrot.slane %v848, %v855
      %v858 = vunpack.c.l.s4 1934713408
      %v859 = vunpack.c.0.s8 %v858
      %v860 = vlaneseq
      %v861 = vshrl.u32 %v860, 7
      %v862 = vsub.s32 %v859, %v861
      %v863 = vrot.slane %v849, %v862
      %v864 = vcombine.low %v808, %v824
      %v865 = vcombine.high %v808, %v824
      %v867 = vunpack.c.l.s4 1934713408
      %v868 = vunpack.c.0.s8 %v867
      %v869 = vlaneseq
      %v870 = vshrl.u32 %v869, 7
      %v871 = vsub.s32 %v868, %v870
      %v872 = vrot.slane %v864, %v871
      %v874 = vunpack.c.l.s4 1934713408
      %v875 = vunpack.c.0.s8 %v874
      %v876 = vlaneseq
      %v877 = vshrl.u32 %v876, 7
      %v878 = vsub.s32 %v875, %v877
      %v879 = vrot.slane %v865, %v878
      %v880 = vcombine.low %v815, %v831
      %v881 = vcombine.high %v815, %v831
      %v883 = vunpack.c.l.s4 1934713408
      %v884 = vunpack.c.0.s8 %v883
      %v885 = vlaneseq
      %v886 = vshrl.u32 %v885, 7
      %v887 = vsub.s32 %v884, %v886
      %v888 = vrot.slane %v880, %v887
      %v890 = vunpack.c.l.s4 1934713408
      %v891 = vunpack.c.0.s8 %v890
      %v892 = vlaneseq
      %v893 = vshrl.u32 %v892, 7
      %v894 = vsub.s32 %v891, %v893
      %v895 = vrot.slane %v881, %v894
      %v896 = vcombine.low %v840, %v872
      %v897 = vcombine.high %v840, %v872
      %v898 = vcombine.low %v847, %v879
      %v899 = vcombine.high %v847, %v879
      %v900 = vcombine.low %v856, %v888
      %v901 = vcombine.high %v856, %v888
      %v902 = vcombine.low %v863, %v895
      %v903 = vcombine.high %v863, %v895
      %v904 = vpack.c.bf16 %v896, %v896
      %v905 = vpack.c.bf16 %v897, %v897
      %v906 = vpack.c.bf16 %v898, %v898
      %v907 = vpack.c.bf16 %v899, %v899
      %v908 = vpack.c.bf16 %v900, %v900
      %v909 = vpack.c.bf16 %v901, %v901
      %v910 = vpack.c.bf16 %v902, %v902
      %v911 = vpack.c.bf16 %v903, %v903
      %913 = vrot.lane.b32.xlu0 %v565, 112
      %v914 = vpop.permute.xlu0 %913
      %916 = vrot.lane.b32.xlu0 %v565, 96
      %v917 = vpop.permute.xlu0 %916
      %919 = vrot.lane.b32.xlu0 %v565, 80
      %v920 = vpop.permute.xlu0 %919
      %922 = vrot.lane.b32.xlu0 %v565, 64
      %v923 = vpop.permute.xlu0 %922
      %925 = vrot.lane.b32.xlu0 %v565, 48
      %v926 = vpop.permute.xlu0 %925
      %928 = vrot.lane.b32.xlu0 %v565, 32
      %v929 = vpop.permute.xlu0 %928
      %931 = vrot.lane.b32.xlu0 %v565, 16
      %v932 = vpop.permute.xlu0 %931
      %v934 = vcombine.low %v565, %v917
      %v935 = vcombine.high %v565, %v917
      %v937 = vunpack.c.l.s4 1983009808
      %v938 = vunpack.c.0.s8 %v937
      %v939 = vlaneseq
      %v940 = vshrl.u32 %v939, 7
      %v941 = vsub.s32 %v938, %v940
      %v942 = vrot.slane %v934, %v941
      %v944 = vunpack.c.l.s4 1983009808
      %v945 = vunpack.c.0.s8 %v944
      %v946 = vlaneseq
      %v947 = vshrl.u32 %v946, 7
      %v948 = vsub.s32 %v945, %v947
      %v949 = vrot.slane %v935, %v948
      %v950 = vcombine.low %v914, %v920
      %v951 = vcombine.high %v914, %v920
      %v953 = vunpack.c.l.s4 1983009808
      %v954 = vunpack.c.0.s8 %v953
      %v955 = vlaneseq
      %v956 = vshrl.u32 %v955, 7
      %v957 = vsub.s32 %v954, %v956
      %v958 = vrot.slane %v950, %v957
      %v960 = vunpack.c.l.s4 1983009808
      %v961 = vunpack.c.0.s8 %v960
      %v962 = vlaneseq
      %v963 = vshrl.u32 %v962, 7
      %v964 = vsub.s32 %v961, %v963
      %v965 = vrot.slane %v951, %v964
      %v966 = vcombine.low %v923, %v929
      %v967 = vcombine.high %v923, %v929
      %v969 = vunpack.c.l.s4 1983009808
      %v970 = vunpack.c.0.s8 %v969
      %v971 = vlaneseq
      %v972 = vshrl.u32 %v971, 7
      %v973 = vsub.s32 %v970, %v972
      %v974 = vrot.slane %v966, %v973
      %v976 = vunpack.c.l.s4 1983009808
      %v977 = vunpack.c.0.s8 %v976
      %v978 = vlaneseq
      %v979 = vshrl.u32 %v978, 7
      %v980 = vsub.s32 %v977, %v979
      %v981 = vrot.slane %v967, %v980
      %v982 = vcombine.low %v926, %v932
      %v983 = vcombine.high %v926, %v932
      %v985 = vunpack.c.l.s4 1983009808
      %v986 = vunpack.c.0.s8 %v985
      %v987 = vlaneseq
      %v988 = vshrl.u32 %v987, 7
      %v989 = vsub.s32 %v986, %v988
      %v990 = vrot.slane %v982, %v989
      %v992 = vunpack.c.l.s4 1983009808
      %v993 = vunpack.c.0.s8 %v992
      %v994 = vlaneseq
      %v995 = vshrl.u32 %v994, 7
      %v996 = vsub.s32 %v993, %v995
      %v997 = vrot.slane %v983, %v996
      %v998 = vcombine.low %v942, %v958
      %v999 = vcombine.high %v942, %v958
      %v1001 = vunpack.c.l.s4 1934713408
      %v1002 = vunpack.c.0.s8 %v1001
      %v1003 = vlaneseq
      %v1004 = vshrl.u32 %v1003, 7
      %v1005 = vsub.s32 %v1002, %v1004
      %v1006 = vrot.slane %v998, %v1005
      %v1008 = vunpack.c.l.s4 1934713408
      %v1009 = vunpack.c.0.s8 %v1008
      %v1010 = vlaneseq
      %v1011 = vshrl.u32 %v1010, 7
      %v1012 = vsub.s32 %v1009, %v1011
      %v1013 = vrot.slane %v999, %v1012
      %v1014 = vcombine.low %v949, %v965
      %v1015 = vcombine.high %v949, %v965
      %v1017 = vunpack.c.l.s4 1934713408
      %v1018 = vunpack.c.0.s8 %v1017
      %v1019 = vlaneseq
      %v1020 = vshrl.u32 %v1019, 7
      %v1021 = vsub.s32 %v1018, %v1020
      %v1022 = vrot.slane %v1014, %v1021
      %v1024 = vunpack.c.l.s4 1934713408
      %v1025 = vunpack.c.0.s8 %v1024
      %v1026 = vlaneseq
      %v1027 = vshrl.u32 %v1026, 7
      %v1028 = vsub.s32 %v1025, %v1027
      %v1029 = vrot.slane %v1015, %v1028
      %v1030 = vcombine.low %v974, %v990
      %v1031 = vcombine.high %v974, %v990
      %v1033 = vunpack.c.l.s4 1934713408
      %v1034 = vunpack.c.0.s8 %v1033
      %v1035 = vlaneseq
      %v1036 = vshrl.u32 %v1035, 7
      %v1037 = vsub.s32 %v1034, %v1036
      %v1038 = vrot.slane %v1030, %v1037
      %v1040 = vunpack.c.l.s4 1934713408
      %v1041 = vunpack.c.0.s8 %v1040
      %v1042 = vlaneseq
      %v1043 = vshrl.u32 %v1042, 7
      %v1044 = vsub.s32 %v1041, %v1043
      %v1045 = vrot.slane %v1031, %v1044
      %v1046 = vcombine.low %v981, %v997
      %v1047 = vcombine.high %v981, %v997
      %v1049 = vunpack.c.l.s4 1934713408
      %v1050 = vunpack.c.0.s8 %v1049
      %v1051 = vlaneseq
      %v1052 = vshrl.u32 %v1051, 7
      %v1053 = vsub.s32 %v1050, %v1052
      %v1054 = vrot.slane %v1046, %v1053
      %v1056 = vunpack.c.l.s4 1934713408
      %v1057 = vunpack.c.0.s8 %v1056
      %v1058 = vlaneseq
      %v1059 = vshrl.u32 %v1058, 7
      %v1060 = vsub.s32 %v1057, %v1059
      %v1061 = vrot.slane %v1047, %v1060
      %v1062 = vcombine.low %v1006, %v1038
      %v1063 = vcombine.high %v1006, %v1038
      %v1064 = vcombine.low %v1013, %v1045
      %v1065 = vcombine.high %v1013, %v1045
      %v1066 = vcombine.low %v1022, %v1054
      %v1067 = vcombine.high %v1022, %v1054
      %v1068 = vcombine.low %v1029, %v1061
      %v1069 = vcombine.high %v1029, %v1061
      %v1070 = vcombine.low %v1062, %v1064
      %v1071 = vcombine.high %v1062, %v1064
      %v1073 = vunpack.c.l.s4 1983009808
      %v1074 = vunpack.c.0.s8 %v1073
      %v1075 = vlaneseq
      %v1076 = vshrl.u32 %v1075, 7
      %v1077 = vsub.s32 %v1074, %v1076
      %v1078 = vrot.slane %v1070, %v1077
      %v1080 = vunpack.c.l.s4 1983009808
      %v1081 = vunpack.c.0.s8 %v1080
      %v1082 = vlaneseq
      %v1083 = vshrl.u32 %v1082, 7
      %v1084 = vsub.s32 %v1081, %v1083
      %v1085 = vrot.slane %v1071, %v1084
      %v1086 = vcombine.low %v1063, %v1065
      %v1087 = vcombine.high %v1063, %v1065
      %v1089 = vunpack.c.l.s4 1983009808
      %v1090 = vunpack.c.0.s8 %v1089
      %v1091 = vlaneseq
      %v1092 = vshrl.u32 %v1091, 7
      %v1093 = vsub.s32 %v1090, %v1092
      %v1094 = vrot.slane %v1086, %v1093
      %v1096 = vunpack.c.l.s4 1983009808
      %v1097 = vunpack.c.0.s8 %v1096
      %v1098 = vlaneseq
      %v1099 = vshrl.u32 %v1098, 7
      %v1100 = vsub.s32 %v1097, %v1099
      %v1101 = vrot.slane %v1087, %v1100
      %v1102 = vcombine.low %v1066, %v1068
      %v1103 = vcombine.high %v1066, %v1068
      %v1105 = vunpack.c.l.s4 1983009808
      %v1106 = vunpack.c.0.s8 %v1105
      %v1107 = vlaneseq
      %v1108 = vshrl.u32 %v1107, 7
      %v1109 = vsub.s32 %v1106, %v1108
      %v1110 = vrot.slane %v1102, %v1109
      %v1112 = vunpack.c.l.s4 1983009808
      %v1113 = vunpack.c.0.s8 %v1112
      %v1114 = vlaneseq
      %v1115 = vshrl.u32 %v1114, 7
      %v1116 = vsub.s32 %v1113, %v1115
      %v1117 = vrot.slane %v1103, %v1116
      %v1118 = vcombine.low %v1067, %v1069
      %v1119 = vcombine.high %v1067, %v1069
      %v1121 = vunpack.c.l.s4 1983009808
      %v1122 = vunpack.c.0.s8 %v1121
      %v1123 = vlaneseq
      %v1124 = vshrl.u32 %v1123, 7
      %v1125 = vsub.s32 %v1122, %v1124
      %v1126 = vrot.slane %v1118, %v1125
      %v1128 = vunpack.c.l.s4 1983009808
      %v1129 = vunpack.c.0.s8 %v1128
      %v1130 = vlaneseq
      %v1131 = vshrl.u32 %v1130, 7
      %v1132 = vsub.s32 %v1129, %v1131
      %v1133 = vrot.slane %v1119, %v1132
      %v1134 = vcombine.low %v1078, %v1094
      %v1135 = vcombine.high %v1078, %v1094
      %v1137 = vunpack.c.l.s4 1934713408
      %v1138 = vunpack.c.0.s8 %v1137
      %v1139 = vlaneseq
      %v1140 = vshrl.u32 %v1139, 7
      %v1141 = vsub.s32 %v1138, %v1140
      %v1142 = vrot.slane %v1134, %v1141
      %v1144 = vunpack.c.l.s4 1934713408
      %v1145 = vunpack.c.0.s8 %v1144
      %v1146 = vlaneseq
      %v1147 = vshrl.u32 %v1146, 7
      %v1148 = vsub.s32 %v1145, %v1147
      %v1149 = vrot.slane %v1135, %v1148
      %v1150 = vcombine.low %v1085, %v1101
      %v1151 = vcombine.high %v1085, %v1101
      %v1153 = vunpack.c.l.s4 1934713408
      %v1154 = vunpack.c.0.s8 %v1153
      %v1155 = vlaneseq
      %v1156 = vshrl.u32 %v1155, 7
      %v1157 = vsub.s32 %v1154, %v1156
      %v1158 = vrot.slane %v1150, %v1157
      %v1160 = vunpack.c.l.s4 1934713408
      %v1161 = vunpack.c.0.s8 %v1160
      %v1162 = vlaneseq
      %v1163 = vshrl.u32 %v1162, 7
      %v1164 = vsub.s32 %v1161, %v1163
      %v1165 = vrot.slane %v1151, %v1164
      %v1166 = vcombine.low %v1110, %v1126
      %v1167 = vcombine.high %v1110, %v1126
      %v1169 = vunpack.c.l.s4 1934713408
      %v1170 = vunpack.c.0.s8 %v1169
      %v1171 = vlaneseq
      %v1172 = vshrl.u32 %v1171, 7
      %v1173 = vsub.s32 %v1170, %v1172
      %v1174 = vrot.slane %v1166, %v1173
      %v1176 = vunpack.c.l.s4 1934713408
      %v1177 = vunpack.c.0.s8 %v1176
      %v1178 = vlaneseq
      %v1179 = vshrl.u32 %v1178, 7
      %v1180 = vsub.s32 %v1177, %v1179
      %v1181 = vrot.slane %v1167, %v1180
      %v1182 = vcombine.low %v1117, %v1133
      %v1183 = vcombine.high %v1117, %v1133
      %v1185 = vunpack.c.l.s4 1934713408
      %v1186 = vunpack.c.0.s8 %v1185
      %v1187 = vlaneseq
      %v1188 = vshrl.u32 %v1187, 7
      %v1189 = vsub.s32 %v1186, %v1188
      %v1190 = vrot.slane %v1182, %v1189
      %v1192 = vunpack.c.l.s4 1934713408
      %v1193 = vunpack.c.0.s8 %v1192
      %v1194 = vlaneseq
      %v1195 = vshrl.u32 %v1194, 7
      %v1196 = vsub.s32 %v1193, %v1195
      %v1197 = vrot.slane %v1183, %v1196
      %v1198 = vcombine.low %v1142, %v1174
      %v1199 = vcombine.high %v1142, %v1174
      %v1200 = vcombine.low %v1149, %v1181
      %v1201 = vcombine.high %v1149, %v1181
      %v1202 = vcombine.low %v1158, %v1190
      %v1203 = vcombine.high %v1158, %v1190
      %v1204 = vcombine.low %v1165, %v1197
      %v1205 = vcombine.high %v1165, %v1197
      %v1206 = vpack.c.bf16 %v1198, %v1198
      %v1207 = vpack.c.bf16 %v1199, %v1199
      %v1208 = vpack.c.bf16 %v1200, %v1200
      %v1209 = vpack.c.bf16 %v1201, %v1201
      %v1210 = vpack.c.bf16 %v1202, %v1202
      %v1211 = vpack.c.bf16 %v1203, %v1203
      %v1212 = vpack.c.bf16 %v1204, %v1204
      %v1213 = vpack.c.bf16 %v1205, %v1205
      %1215 = vrot.lane.b32.xlu0 %v604, 112
      %v1216 = vpop.permute.xlu0 %1215
      %1218 = vrot.lane.b32.xlu0 %v604, 96
      %v1219 = vpop.permute.xlu0 %1218
      %1221 = vrot.lane.b32.xlu0 %v604, 80
      %v1222 = vpop.permute.xlu0 %1221
      %1224 = vrot.lane.b32.xlu0 %v604, 64
      %v1225 = vpop.permute.xlu0 %1224
      %1227 = vrot.lane.b32.xlu0 %v604, 48
      %v1228 = vpop.permute.xlu0 %1227
      %1230 = vrot.lane.b32.xlu0 %v604, 32
      %v1231 = vpop.permute.xlu0 %1230
      %1233 = vrot.lane.b32.xlu0 %v604, 16
      %v1234 = vpop.permute.xlu0 %1233
      %v1236 = vcombine.low %v604, %v1219
      %v1237 = vcombine.high %v604, %v1219
      %v1239 = vunpack.c.l.s4 1983009808
      %v1240 = vunpack.c.0.s8 %v1239
      %v1241 = vlaneseq
      %v1242 = vshrl.u32 %v1241, 7
      %v1243 = vsub.s32 %v1240, %v1242
      %v1244 = vrot.slane %v1236, %v1243
      %v1246 = vunpack.c.l.s4 1983009808
      %v1247 = vunpack.c.0.s8 %v1246
      %v1248 = vlaneseq
      %v1249 = vshrl.u32 %v1248, 7
      %v1250 = vsub.s32 %v1247, %v1249
      %v1251 = vrot.slane %v1237, %v1250
      %v1252 = vcombine.low %v1216, %v1222
      %v1253 = vcombine.high %v1216, %v1222
      %v1255 = vunpack.c.l.s4 1983009808
      %v1256 = vunpack.c.0.s8 %v1255
      %v1257 = vlaneseq
      %v1258 = vshrl.u32 %v1257, 7
      %v1259 = vsub.s32 %v1256, %v1258
      %v1260 = vrot.slane %v1252, %v1259
      %v1262 = vunpack.c.l.s4 1983009808
      %v1263 = vunpack.c.0.s8 %v1262
      %v1264 = vlaneseq
      %v1265 = vshrl.u32 %v1264, 7
      %v1266 = vsub.s32 %v1263, %v1265
      %v1267 = vrot.slane %v1253, %v1266
      %v1268 = vcombine.low %v1225, %v1231
      %v1269 = vcombine.high %v1225, %v1231
      %v1271 = vunpack.c.l.s4 1983009808
      %v1272 = vunpack.c.0.s8 %v1271
      %v1273 = vlaneseq
      %v1274 = vshrl.u32 %v1273, 7
      %v1275 = vsub.s32 %v1272, %v1274
      %v1276 = vrot.slane %v1268, %v1275
      %v1278 = vunpack.c.l.s4 1983009808
      %v1279 = vunpack.c.0.s8 %v1278
      %v1280 = vlaneseq
      %v1281 = vshrl.u32 %v1280, 7
      %v1282 = vsub.s32 %v1279, %v1281
      %v1283 = vrot.slane %v1269, %v1282
      %v1284 = vcombine.low %v1228, %v1234
      %v1285 = vcombine.high %v1228, %v1234
      %v1287 = vunpack.c.l.s4 1983009808
      %v1288 = vunpack.c.0.s8 %v1287
      %v1289 = vlaneseq
      %v1290 = vshrl.u32 %v1289, 7
      %v1291 = vsub.s32 %v1288, %v1290
      %v1292 = vrot.slane %v1284, %v1291
      %v1294 = vunpack.c.l.s4 1983009808
      %v1295 = vunpack.c.0.s8 %v1294
      %v1296 = vlaneseq
      %v1297 = vshrl.u32 %v1296, 7
      %v1298 = vsub.s32 %v1295, %v1297
      %v1299 = vrot.slane %v1285, %v1298
      %v1300 = vcombine.low %v1244, %v1260
      %v1301 = vcombine.high %v1244, %v1260
      %v1303 = vunpack.c.l.s4 1934713408
      %v1304 = vunpack.c.0.s8 %v1303
      %v1305 = vlaneseq
      %v1306 = vshrl.u32 %v1305, 7
      %v1307 = vsub.s32 %v1304, %v1306
      %v1308 = vrot.slane %v1300, %v1307
      %v1310 = vunpack.c.l.s4 1934713408
      %v1311 = vunpack.c.0.s8 %v1310
      %v1312 = vlaneseq
      %v1313 = vshrl.u32 %v1312, 7
      %v1314 = vsub.s32 %v1311, %v1313
      %v1315 = vrot.slane %v1301, %v1314
      %v1316 = vcombine.low %v1251, %v1267
      %v1317 = vcombine.high %v1251, %v1267
      %v1319 = vunpack.c.l.s4 1934713408
      %v1320 = vunpack.c.0.s8 %v1319
      %v1321 = vlaneseq
      %v1322 = vshrl.u32 %v1321, 7
      %v1323 = vsub.s32 %v1320, %v1322
      %v1324 = vrot.slane %v1316, %v1323
      %v1326 = vunpack.c.l.s4 1934713408
      %v1327 = vunpack.c.0.s8 %v1326
      %v1328 = vlaneseq
      %v1329 = vshrl.u32 %v1328, 7
      %v1330 = vsub.s32 %v1327, %v1329
      %v1331 = vrot.slane %v1317, %v1330
      %v1332 = vcombine.low %v1276, %v1292
      %v1333 = vcombine.high %v1276, %v1292
      %v1335 = vunpack.c.l.s4 1934713408
      %v1336 = vunpack.c.0.s8 %v1335
      %v1337 = vlaneseq
      %v1338 = vshrl.u32 %v1337, 7
      %v1339 = vsub.s32 %v1336, %v1338
      %v1340 = vrot.slane %v1332, %v1339
      %v1342 = vunpack.c.l.s4 1934713408
      %v1343 = vunpack.c.0.s8 %v1342
      %v1344 = vlaneseq
      %v1345 = vshrl.u32 %v1344, 7
      %v1346 = vsub.s32 %v1343, %v1345
      %v1347 = vrot.slane %v1333, %v1346
      %v1348 = vcombine.low %v1283, %v1299
      %v1349 = vcombine.high %v1283, %v1299
      %v1351 = vunpack.c.l.s4 1934713408
      %v1352 = vunpack.c.0.s8 %v1351
      %v1353 = vlaneseq
      %v1354 = vshrl.u32 %v1353, 7
      %v1355 = vsub.s32 %v1352, %v1354
      %v1356 = vrot.slane %v1348, %v1355
      %v1358 = vunpack.c.l.s4 1934713408
      %v1359 = vunpack.c.0.s8 %v1358
      %v1360 = vlaneseq
      %v1361 = vshrl.u32 %v1360, 7
      %v1362 = vsub.s32 %v1359, %v1361
      %v1363 = vrot.slane %v1349, %v1362
      %v1364 = vcombine.low %v1308, %v1340
      %v1365 = vcombine.high %v1308, %v1340
      %v1366 = vcombine.low %v1315, %v1347
      %v1367 = vcombine.high %v1315, %v1347
      %v1368 = vcombine.low %v1324, %v1356
      %v1369 = vcombine.high %v1324, %v1356
      %v1370 = vcombine.low %v1331, %v1363
      %v1371 = vcombine.high %v1331, %v1363
      %v1372 = vcombine.low %v1364, %v1366
      %v1373 = vcombine.high %v1364, %v1366
      %v1375 = vunpack.c.l.s4 1983009808
      %v1376 = vunpack.c.0.s8 %v1375
      %v1377 = vlaneseq
      %v1378 = vshrl.u32 %v1377, 7
      %v1379 = vsub.s32 %v1376, %v1378
      %v1380 = vrot.slane %v1372, %v1379
      %v1382 = vunpack.c.l.s4 1983009808
      %v1383 = vunpack.c.0.s8 %v1382
      %v1384 = vlaneseq
      %v1385 = vshrl.u32 %v1384, 7
      %v1386 = vsub.s32 %v1383, %v1385
      %v1387 = vrot.slane %v1373, %v1386
      %v1388 = vcombine.low %v1365, %v1367
      %v1389 = vcombine.high %v1365, %v1367
      %v1391 = vunpack.c.l.s4 1983009808
      %v1392 = vunpack.c.0.s8 %v1391
      %v1393 = vlaneseq
      %v1394 = vshrl.u32 %v1393, 7
      %v1395 = vsub.s32 %v1392, %v1394
      %v1396 = vrot.slane %v1388, %v1395
      %v1398 = vunpack.c.l.s4 1983009808
      %v1399 = vunpack.c.0.s8 %v1398
      %v1400 = vlaneseq
      %v1401 = vshrl.u32 %v1400, 7
      %v1402 = vsub.s32 %v1399, %v1401
      %v1403 = vrot.slane %v1389, %v1402
      %v1404 = vcombine.low %v1368, %v1370
      %v1405 = vcombine.high %v1368, %v1370
      %v1407 = vunpack.c.l.s4 1983009808
      %v1408 = vunpack.c.0.s8 %v1407
      %v1409 = vlaneseq
      %v1410 = vshrl.u32 %v1409, 7
      %v1411 = vsub.s32 %v1408, %v1410
      %v1412 = vrot.slane %v1404, %v1411
      %v1414 = vunpack.c.l.s4 1983009808
      %v1415 = vunpack.c.0.s8 %v1414
      %v1416 = vlaneseq
      %v1417 = vshrl.u32 %v1416, 7
      %v1418 = vsub.s32 %v1415, %v1417
      %v1419 = vrot.slane %v1405, %v1418
      %v1420 = vcombine.low %v1369, %v1371
      %v1421 = vcombine.high %v1369, %v1371
      %v1423 = vunpack.c.l.s4 1983009808
      %v1424 = vunpack.c.0.s8 %v1423
      %v1425 = vlaneseq
      %v1426 = vshrl.u32 %v1425, 7
      %v1427 = vsub.s32 %v1424, %v1426
      %v1428 = vrot.slane %v1420, %v1427
      %v1430 = vunpack.c.l.s4 1983009808
      %v1431 = vunpack.c.0.s8 %v1430
      %v1432 = vlaneseq
      %v1433 = vshrl.u32 %v1432, 7
      %v1434 = vsub.s32 %v1431, %v1433
      %v1435 = vrot.slane %v1421, %v1434
      %v1436 = vcombine.low %v1380, %v1396
      %v1437 = vcombine.high %v1380, %v1396
      %v1439 = vunpack.c.l.s4 1934713408
      %v1440 = vunpack.c.0.s8 %v1439
      %v1441 = vlaneseq
      %v1442 = vshrl.u32 %v1441, 7
      %v1443 = vsub.s32 %v1440, %v1442
      %v1444 = vrot.slane %v1436, %v1443
      %v1446 = vunpack.c.l.s4 1934713408
      %v1447 = vunpack.c.0.s8 %v1446
      %v1448 = vlaneseq
      %v1449 = vshrl.u32 %v1448, 7
      %v1450 = vsub.s32 %v1447, %v1449
      %v1451 = vrot.slane %v1437, %v1450
      %v1452 = vcombine.low %v1387, %v1403
      %v1453 = vcombine.high %v1387, %v1403
      %v1455 = vunpack.c.l.s4 1934713408
      %v1456 = vunpack.c.0.s8 %v1455
      %v1457 = vlaneseq
      %v1458 = vshrl.u32 %v1457, 7
      %v1459 = vsub.s32 %v1456, %v1458
      %v1460 = vrot.slane %v1452, %v1459
      %v1462 = vunpack.c.l.s4 1934713408
      %v1463 = vunpack.c.0.s8 %v1462
      %v1464 = vlaneseq
      %v1465 = vshrl.u32 %v1464, 7
      %v1466 = vsub.s32 %v1463, %v1465
      %v1467 = vrot.slane %v1453, %v1466
      %v1468 = vcombine.low %v1412, %v1428
      %v1469 = vcombine.high %v1412, %v1428
      %v1471 = vunpack.c.l.s4 1934713408
      %v1472 = vunpack.c.0.s8 %v1471
      %v1473 = vlaneseq
      %v1474 = vshrl.u32 %v1473, 7
      %v1475 = vsub.s32 %v1472, %v1474
      %v1476 = vrot.slane %v1468, %v1475
      %v1478 = vunpack.c.l.s4 1934713408
      %v1479 = vunpack.c.0.s8 %v1478
      %v1480 = vlaneseq
      %v1481 = vshrl.u32 %v1480, 7
      %v1482 = vsub.s32 %v1479, %v1481
      %v1483 = vrot.slane %v1469, %v1482
      %v1484 = vcombine.low %v1419, %v1435
      %v1485 = vcombine.high %v1419, %v1435
      %v1487 = vunpack.c.l.s4 1934713408
      %v1488 = vunpack.c.0.s8 %v1487
      %v1489 = vlaneseq
      %v1490 = vshrl.u32 %v1489, 7
      %v1491 = vsub.s32 %v1488, %v1490
      %v1492 = vrot.slane %v1484, %v1491
      %v1494 = vunpack.c.l.s4 1934713408
      %v1495 = vunpack.c.0.s8 %v1494
      %v1496 = vlaneseq
      %v1497 = vshrl.u32 %v1496, 7
      %v1498 = vsub.s32 %v1495, %v1497
      %v1499 = vrot.slane %v1485, %v1498
      %v1500 = vcombine.low %v1444, %v1476
      %v1501 = vcombine.high %v1444, %v1476
      %v1502 = vcombine.low %v1451, %v1483
      %v1503 = vcombine.high %v1451, %v1483
      %v1504 = vcombine.low %v1460, %v1492
      %v1505 = vcombine.high %v1460, %v1492
      %v1506 = vcombine.low %v1467, %v1499
      %v1507 = vcombine.high %v1467, %v1499
      %v1508 = vpack.c.bf16 %v1500, %v1500
      %v1509 = vpack.c.bf16 %v1501, %v1501
      %v1510 = vpack.c.bf16 %v1502, %v1502
      %v1511 = vpack.c.bf16 %v1503, %v1503
      %v1512 = vpack.c.bf16 %v1504, %v1504
      %v1513 = vpack.c.bf16 %v1505, %v1505
      %v1514 = vpack.c.bf16 %v1506, %v1506
      %v1515 = vpack.c.bf16 %v1507, %v1507
      %vm1516 = vcmask 130048
      %v1518 = vsel %vm1516, %v904, 0
      %v1521 = vsel %vm1516, %v1206, 0
      %1523 = vmatprep.subr.bf16.mxu0 0
      %1524 = vmatpush1.bf16.xpose.msra.mxu0 %v1521
      %1525 = vmatprep.subr.bf16.mxu0 0
      %1526 = vmatpush1.bf16.xpose.msra.mxu0 0
      %1527 = vmatprep.subr.bf16.mxu0 0
      %1528 = vmatpush1.bf16.xpose.msra.mxu0 0
      %1529 = vmatprep.subr.bf16.mxu0 0
      %1530 = vmatpush1.bf16.xpose.msra.mxu0 0
      %1531 = vmatprep.subr.bf16.mxu0 0
      %1532 = vmatpush1.bf16.xpose.msra.mxu0 0
      %1533 = vmatprep.subr.bf16.mxu0 0
      %1534 = vmatpush1.bf16.xpose.msra.mxu0 0
      %1535 = vmatprep.subr.bf16.mxu0 0
      %1536 = vmatpush1.bf16.xpose.msra.mxu0 0
      %1537 = vmatprep.subr.bf16.mxu0 0
      %1538 = vmatpush1.bf16.xpose.msra.mxu0 0
      %1539 = vmatprep.subr.bf16.mxu0 0
      %1540 = vmatpush1.bf16.xpose.msra.mxu0 0
      %1541 = vmatprep.subr.bf16.mxu0 0
      %1542 = vmatpush1.bf16.xpose.msra.mxu0 0
      %1543 = vmatprep.subr.bf16.mxu0 0
      %1544 = vmatpush1.bf16.xpose.msra.mxu0 0
      %1545 = vmatprep.subr.bf16.mxu0 0
      %1546 = vmatpush1.bf16.xpose.msra.mxu0 0
      %1547 = vmatprep.subr.bf16.mxu0 0
      %1548 = vmatpush1.bf16.xpose.msra.mxu0 0
      %1549 = vmatprep.subr.bf16.mxu0 0
      %1550 = vmatpush1.bf16.xpose.msra.mxu0 0
      %1551 = vmatprep.subr.bf16.mxu0 0
      %1552 = vmatpush1.bf16.xpose.msra.mxu0 0
      %1553 = vmatprep.subr.bf16.mxu0 0
      %1554 = vmatpush1.bf16.xpose.msra.mxu0 0
      %1555 = vmatprep.mubr.bf16.mxu0 0
      %1556 = vmatmul.mubr.bf16.gmra.mrb[0].mxu0 %v1518
      %v1557 = vpop.f32.mrb[0].mxu0
      %v1558 = vadd.f32 0.0, %v1557
      %v1559 = vpop.f32.mrb[0].mxu0
      %v1560 = vpop.f32.mrb[0].mxu0
      %v1561 = vpop.f32.mrb[0].mxu0
      %1562 = vdwg.mxu0
      %v1564 = vsel %vm1516, %v905, 0
      %v1567 = vsel %vm1516, %v1207, 0
      %1569 = vmatprep.subr.bf16.mxu0 0
      %1570 = vmatpush1.bf16.xpose.msra.mxu0 %v1567
      %1571 = vmatprep.subr.bf16.mxu0 0
      %1572 = vmatpush1.bf16.xpose.msra.mxu0 0
      %1573 = vmatprep.subr.bf16.mxu0 0
      %1574 = vmatpush1.bf16.xpose.msra.mxu0 0
      %1575 = vmatprep.subr.bf16.mxu0 0
      %1576 = vmatpush1.bf16.xpose.msra.mxu0 0
      %1577 = vmatprep.subr.bf16.mxu0 0
      %1578 = vmatpush1.bf16.xpose.msra.mxu0 0
      %1579 = vmatprep.subr.bf16.mxu0 0
      %1580 = vmatpush1.bf16.xpose.msra.mxu0 0
      %1581 = vmatprep.subr.bf16.mxu0 0
      %1582 = vmatpush1.bf16.xpose.msra.mxu0 0
      %1583 = vmatprep.subr.bf16.mxu0 0
      %1584 = vmatpush1.bf16.xpose.msra.mxu0 0
      %1585 = vmatprep.subr.bf16.mxu0 0
      %1586 = vmatpush1.bf16.xpose.msra.mxu0 0
      %1587 = vmatprep.subr.bf16.mxu0 0
      %1588 = vmatpush1.bf16.xpose.msra.mxu0 0
      %1589 = vmatprep.subr.bf16.mxu0 0
      %1590 = vmatpush1.bf16.xpose.msra.mxu0 0
      %1591 = vmatprep.subr.bf16.mxu0 0
      %1592 = vmatpush1.bf16.xpose.msra.mxu0 0
      %1593 = vmatprep.subr.bf16.mxu0 0
      %1594 = vmatpush1.bf16.xpose.msra.mxu0 0
      %1595 = vmatprep.subr.bf16.mxu0 0
      %1596 = vmatpush1.bf16.xpose.msra.mxu0 0
      %1597 = vmatprep.subr.bf16.mxu0 0
      %1598 = vmatpush1.bf16.xpose.msra.mxu0 0
      %1599 = vmatprep.subr.bf16.mxu0 0
      %1600 = vmatpush1.bf16.xpose.msra.mxu0 0
      %1601 = vmatprep.mubr.bf16.mxu0 0
      %1602 = vmatmul.mubr.bf16.gmra.mrb[0].mxu0 %v1564
      %v1603 = vpop.f32.mrb[0].mxu0
      %v1604 = vadd.f32 0.0, %v1603
      %v1605 = vpop.f32.mrb[0].mxu0
      %v1606 = vpop.f32.mrb[0].mxu0
      %v1607 = vpop.f32.mrb[0].mxu0
      %1608 = vdwg.mxu0
      %v1610 = vsel %vm1516, %v906, 0
      %v1613 = vsel %vm1516, %v1208, 0
      %1615 = vmatprep.subr.bf16.mxu0 0
      %1616 = vmatpush1.bf16.xpose.msra.mxu0 %v1613
      %1617 = vmatprep.subr.bf16.mxu0 0
      %1618 = vmatpush1.bf16.xpose.msra.mxu0 0
      %1619 = vmatprep.subr.bf16.mxu0 0
      %1620 = vmatpush1.bf16.xpose.msra.mxu0 0
      %1621 = vmatprep.subr.bf16.mxu0 0
      %1622 = vmatpush1.bf16.xpose.msra.mxu0 0
      %1623 = vmatprep.subr.bf16.mxu0 0
      %1624 = vmatpush1.bf16.xpose.msra.mxu0 0
      %1625 = vmatprep.subr.bf16.mxu0 0
      %1626 = vmatpush1.bf16.xpose.msra.mxu0 0
      %1627 = vmatprep.subr.bf16.mxu0 0
      %1628 = vmatpush1.bf16.xpose.msra.mxu0 0
      %1629 = vmatprep.subr.bf16.mxu0 0
      %1630 = vmatpush1.bf16.xpose.msra.mxu0 0
      %1631 = vmatprep.subr.bf16.mxu0 0
      %1632 = vmatpush1.bf16.xpose.msra.mxu0 0
      %1633 = vmatprep.subr.bf16.mxu0 0
      %1634 = vmatpush1.bf16.xpose.msra.mxu0 0
      %1635 = vmatprep.subr.bf16.mxu0 0
      %1636 = vmatpush1.bf16.xpose.msra.mxu0 0
      %1637 = vmatprep.subr.bf16.mxu0 0
      %1638 = vmatpush1.bf16.xpose.msra.mxu0 0
      %1639 = vmatprep.subr.bf16.mxu0 0
      %1640 = vmatpush1.bf16.xpose.msra.mxu0 0
      %1641 = vmatprep.subr.bf16.mxu0 0
      %1642 = vmatpush1.bf16.xpose.msra.mxu0 0
      %1643 = vmatprep.subr.bf16.mxu0 0
      %1644 = vmatpush1.bf16.xpose.msra.mxu0 0
      %1645 = vmatprep.subr.bf16.mxu0 0
      %1646 = vmatpush1.bf16.xpose.msra.mxu0 0
      %1647 = vmatprep.mubr.bf16.mxu0 0
      %1648 = vmatmul.mubr.bf16.gmra.mrb[0].mxu0 %v1610
      %v1649 = vpop.f32.mrb[0].mxu0
      %v1650 = vadd.f32 0.0, %v1649
      %v1651 = vpop.f32.mrb[0].mxu0
      %v1652 = vpop.f32.mrb[0].mxu0
      %v1653 = vpop.f32.mrb[0].mxu0
      %1654 = vdwg.mxu0
      %v1656 = vsel %vm1516, %v907, 0
      %v1659 = vsel %vm1516, %v1209, 0
      %1661 = vmatprep.subr.bf16.mxu0 0
      %1662 = vmatpush1.bf16.xpose.msra.mxu0 %v1659
      %1663 = vmatprep.subr.bf16.mxu0 0
      %1664 = vmatpush1.bf16.xpose.msra.mxu0 0
      %1665 = vmatprep.subr.bf16.mxu0 0
      %1666 = vmatpush1.bf16.xpose.msra.mxu0 0
      %1667 = vmatprep.subr.bf16.mxu0 0
      %1668 = vmatpush1.bf16.xpose.msra.mxu0 0
      %1669 = vmatprep.subr.bf16.mxu0 0
      %1670 = vmatpush1.bf16.xpose.msra.mxu0 0
      %1671 = vmatprep.subr.bf16.mxu0 0
      %1672 = vmatpush1.bf16.xpose.msra.mxu0 0
      %1673 = vmatprep.subr.bf16.mxu0 0
      %1674 = vmatpush1.bf16.xpose.msra.mxu0 0
      %1675 = vmatprep.subr.bf16.mxu0 0
      %1676 = vmatpush1.bf16.xpose.msra.mxu0 0
      %1677 = vmatprep.subr.bf16.mxu0 0
      %1678 = vmatpush1.bf16.xpose.msra.mxu0 0
      %1679 = vmatprep.subr.bf16.mxu0 0
      %1680 = vmatpush1.bf16.xpose.msra.mxu0 0
      %1681 = vmatprep.subr.bf16.mxu0 0
      %1682 = vmatpush1.bf16.xpose.msra.mxu0 0
      %1683 = vmatprep.subr.bf16.mxu0 0
      %1684 = vmatpush1.bf16.xpose.msra.mxu0 0
      %1685 = vmatprep.subr.bf16.mxu0 0
      %1686 = vmatpush1.bf16.xpose.msra.mxu0 0
      %1687 = vmatprep.subr.bf16.mxu0 0
      %1688 = vmatpush1.bf16.xpose.msra.mxu0 0
      %1689 = vmatprep.subr.bf16.mxu0 0
      %1690 = vmatpush1.bf16.xpose.msra.mxu0 0
      %1691 = vmatprep.subr.bf16.mxu0 0
      %1692 = vmatpush1.bf16.xpose.msra.mxu0 0
      %1693 = vmatprep.mubr.bf16.mxu0 0
      %1694 = vmatmul.mubr.bf16.gmra.mrb[0].mxu0 %v1656
      %v1695 = vpop.f32.mrb[0].mxu0
      %v1696 = vadd.f32 0.0, %v1695
      %v1697 = vpop.f32.mrb[0].mxu0
      %v1698 = vpop.f32.mrb[0].mxu0
      %v1699 = vpop.f32.mrb[0].mxu0
      %1700 = vdwg.mxu0
      %v1702 = vsel %vm1516, %v908, 0
      %v1705 = vsel %vm1516, %v1210, 0
      %1707 = vmatprep.subr.bf16.mxu0 0
      %1708 = vmatpush1.bf16.xpose.msra.mxu0 %v1705
      %1709 = vmatprep.subr.bf16.mxu0 0
      %1710 = vmatpush1.bf16.xpose.msra.mxu0 0
      %1711 = vmatprep.subr.bf16.mxu0 0
      %1712 = vmatpush1.bf16.xpose.msra.mxu0 0
      %1713 = vmatprep.subr.bf16.mxu0 0
      %1714 = vmatpush1.bf16.xpose.msra.mxu0 0
      %1715 = vmatprep.subr.bf16.mxu0 0
      %1716 = vmatpush1.bf16.xpose.msra.mxu0 0
      %1717 = vmatprep.subr.bf16.mxu0 0
      %1718 = vmatpush1.bf16.xpose.msra.mxu0 0
      %1719 = vmatprep.subr.bf16.mxu0 0
      %1720 = vmatpush1.bf16.xpose.msra.mxu0 0
      %1721 = vmatprep.subr.bf16.mxu0 0
      %1722 = vmatpush1.bf16.xpose.msra.mxu0 0
      %1723 = vmatprep.subr.bf16.mxu0 0
      %1724 = vmatpush1.bf16.xpose.msra.mxu0 0
      %1725 = vmatprep.subr.bf16.mxu0 0
      %1726 = vmatpush1.bf16.xpose.msra.mxu0 0
      %1727 = vmatprep.subr.bf16.mxu0 0
      %1728 = vmatpush1.bf16.xpose.msra.mxu0 0
      %1729 = vmatprep.subr.bf16.mxu0 0
      %1730 = vmatpush1.bf16.xpose.msra.mxu0 0
      %1731 = vmatprep.subr.bf16.mxu0 0
      %1732 = vmatpush1.bf16.xpose.msra.mxu0 0
      %1733 = vmatprep.subr.bf16.mxu0 0
      %1734 = vmatpush1.bf16.xpose.msra.mxu0 0
      %1735 = vmatprep.subr.bf16.mxu0 0
      %1736 = vmatpush1.bf16.xpose.msra.mxu0 0
      %1737 = vmatprep.subr.bf16.mxu0 0
      %1738 = vmatpush1.bf16.xpose.msra.mxu0 0
      %1739 = vmatprep.mubr.bf16.mxu0 0
      %1740 = vmatmul.mubr.bf16.gmra.mrb[0].mxu0 %v1702
      %v1741 = vpop.f32.mrb[0].mxu0
      %v1742 = vadd.f32 0.0, %v1741
      %v1743 = vpop.f32.mrb[0].mxu0
      %v1744 = vpop.f32.mrb[0].mxu0
      %v1745 = vpop.f32.mrb[0].mxu0
      %1746 = vdwg.mxu0
      %v1748 = vsel %vm1516, %v909, 0
      %v1751 = vsel %vm1516, %v1211, 0
      %1753 = vmatprep.subr.bf16.mxu0 0
      %1754 = vmatpush1.bf16.xpose.msra.mxu0 %v1751
      %1755 = vmatprep.subr.bf16.mxu0 0
      %1756 = vmatpush1.bf16.xpose.msra.mxu0 0
      %1757 = vmatprep.subr.bf16.mxu0 0
      %1758 = vmatpush1.bf16.xpose.msra.mxu0 0
      %1759 = vmatprep.subr.bf16.mxu0 0
      %1760 = vmatpush1.bf16.xpose.msra.mxu0 0
      %1761 = vmatprep.subr.bf16.mxu0 0
      %1762 = vmatpush1.bf16.xpose.msra.mxu0 0
      %1763 = vmatprep.subr.bf16.mxu0 0
      %1764 = vmatpush1.bf16.xpose.msra.mxu0 0
      %1765 = vmatprep.subr.bf16.mxu0 0
      %1766 = vmatpush1.bf16.xpose.msra.mxu0 0
      %1767 = vmatprep.subr.bf16.mxu0 0
      %1768 = vmatpush1.bf16.xpose.msra.mxu0 0
      %1769 = vmatprep.subr.bf16.mxu0 0
      %1770 = vmatpush1.bf16.xpose.msra.mxu0 0
      %1771 = vmatprep.subr.bf16.mxu0 0
      %1772 = vmatpush1.bf16.xpose.msra.mxu0 0
      %1773 = vmatprep.subr.bf16.mxu0 0
      %1774 = vmatpush1.bf16.xpose.msra.mxu0 0
      %1775 = vmatprep.subr.bf16.mxu0 0
      %1776 = vmatpush1.bf16.xpose.msra.mxu0 0
      %1777 = vmatprep.subr.bf16.mxu0 0
      %1778 = vmatpush1.bf16.xpose.msra.mxu0 0
      %1779 = vmatprep.subr.bf16.mxu0 0
      %1780 = vmatpush1.bf16.xpose.msra.mxu0 0
      %1781 = vmatprep.subr.bf16.mxu0 0
      %1782 = vmatpush1.bf16.xpose.msra.mxu0 0
      %1783 = vmatprep.subr.bf16.mxu0 0
      %1784 = vmatpush1.bf16.xpose.msra.mxu0 0
      %1785 = vmatprep.mubr.bf16.mxu0 0
      %1786 = vmatmul.mubr.bf16.gmra.mrb[0].mxu0 %v1748
      %v1787 = vpop.f32.mrb[0].mxu0
      %v1788 = vadd.f32 0.0, %v1787
      %v1789 = vpop.f32.mrb[0].mxu0
      %v1790 = vpop.f32.mrb[0].mxu0
      %v1791 = vpop.f32.mrb[0].mxu0
      %1792 = vdwg.mxu0
      %v1794 = vsel %vm1516, %v910, 0
      %v1797 = vsel %vm1516, %v1212, 0
      %1799 = vmatprep.subr.bf16.mxu0 0
      %1800 = vmatpush1.bf16.xpose.msra.mxu0 %v1797
      %1801 = vmatprep.subr.bf16.mxu0 0
      %1802 = vmatpush1.bf16.xpose.msra.mxu0 0
      %1803 = vmatprep.subr.bf16.mxu0 0
      %1804 = vmatpush1.bf16.xpose.msra.mxu0 0
      %1805 = vmatprep.subr.bf16.mxu0 0
      %1806 = vmatpush1.bf16.xpose.msra.mxu0 0
      %1807 = vmatprep.subr.bf16.mxu0 0
      %1808 = vmatpush1.bf16.xpose.msra.mxu0 0
      %1809 = vmatprep.subr.bf16.mxu0 0
      %1810 = vmatpush1.bf16.xpose.msra.mxu0 0
      %1811 = vmatprep.subr.bf16.mxu0 0
      %1812 = vmatpush1.bf16.xpose.msra.mxu0 0
      %1813 = vmatprep.subr.bf16.mxu0 0
      %1814 = vmatpush1.bf16.xpose.msra.mxu0 0
      %1815 = vmatprep.subr.bf16.mxu0 0
      %1816 = vmatpush1.bf16.xpose.msra.mxu0 0
      %1817 = vmatprep.subr.bf16.mxu0 0
      %1818 = vmatpush1.bf16.xpose.msra.mxu0 0
      %1819 = vmatprep.subr.bf16.mxu0 0
      %1820 = vmatpush1.bf16.xpose.msra.mxu0 0
      %1821 = vmatprep.subr.bf16.mxu0 0
      %1822 = vmatpush1.bf16.xpose.msra.mxu0 0
      %1823 = vmatprep.subr.bf16.mxu0 0
      %1824 = vmatpush1.bf16.xpose.msra.mxu0 0
      %1825 = vmatprep.subr.bf16.mxu0 0
      %1826 = vmatpush1.bf16.xpose.msra.mxu0 0
      %1827 = vmatprep.subr.bf16.mxu0 0
      %1828 = vmatpush1.bf16.xpose.msra.mxu0 0
      %1829 = vmatprep.subr.bf16.mxu0 0
      %1830 = vmatpush1.bf16.xpose.msra.mxu0 0
      %1831 = vmatprep.mubr.bf16.mxu0 0
      %1832 = vmatmul.mubr.bf16.gmra.mrb[0].mxu0 %v1794
      %v1833 = vpop.f32.mrb[0].mxu0
      %v1834 = vadd.f32 0.0, %v1833
      %v1835 = vpop.f32.mrb[0].mxu0
      %v1836 = vpop.f32.mrb[0].mxu0
      %v1837 = vpop.f32.mrb[0].mxu0
      %1838 = vdwg.mxu0
      %v1840 = vsel %vm1516, %v911, 0
      %v1843 = vsel %vm1516, %v1213, 0
      %1845 = vmatprep.subr.bf16.mxu0 0
      %1846 = vmatpush1.bf16.xpose.msra.mxu0 %v1843
      %1847 = vmatprep.subr.bf16.mxu0 0
      %1848 = vmatpush1.bf16.xpose.msra.mxu0 0
      %1849 = vmatprep.subr.bf16.mxu0 0
      %1850 = vmatpush1.bf16.xpose.msra.mxu0 0
      %1851 = vmatprep.subr.bf16.mxu0 0
      %1852 = vmatpush1.bf16.xpose.msra.mxu0 0
      %1853 = vmatprep.subr.bf16.mxu0 0
      %1854 = vmatpush1.bf16.xpose.msra.mxu0 0
      %1855 = vmatprep.subr.bf16.mxu0 0
      %1856 = vmatpush1.bf16.xpose.msra.mxu0 0
      %1857 = vmatprep.subr.bf16.mxu0 0
      %1858 = vmatpush1.bf16.xpose.msra.mxu0 0
      %1859 = vmatprep.subr.bf16.mxu0 0
      %1860 = vmatpush1.bf16.xpose.msra.mxu0 0
      %1861 = vmatprep.subr.bf16.mxu0 0
      %1862 = vmatpush1.bf16.xpose.msra.mxu0 0
      %1863 = vmatprep.subr.bf16.mxu0 0
      %1864 = vmatpush1.bf16.xpose.msra.mxu0 0
      %1865 = vmatprep.subr.bf16.mxu0 0
      %1866 = vmatpush1.bf16.xpose.msra.mxu0 0
      %1867 = vmatprep.subr.bf16.mxu0 0
      %1868 = vmatpush1.bf16.xpose.msra.mxu0 0
      %1869 = vmatprep.subr.bf16.mxu0 0
      %1870 = vmatpush1.bf16.xpose.msra.mxu0 0
      %1871 = vmatprep.subr.bf16.mxu0 0
      %1872 = vmatpush1.bf16.xpose.msra.mxu0 0
      %1873 = vmatprep.subr.bf16.mxu0 0
      %1874 = vmatpush1.bf16.xpose.msra.mxu0 0
      %1875 = vmatprep.subr.bf16.mxu0 0
      %1876 = vmatpush1.bf16.xpose.msra.mxu0 0
      %1877 = vmatprep.mubr.bf16.mxu0 0
      %1878 = vmatmul.mubr.bf16.gmra.mrb[0].mxu0 %v1840
      %v1879 = vpop.f32.mrb[0].mxu0
      %v1880 = vadd.f32 0.0, %v1879
      %v1881 = vpop.f32.mrb[0].mxu0
      %v1882 = vpop.f32.mrb[0].mxu0
      %v1883 = vpop.f32.mrb[0].mxu0
      %1884 = vdwg.mxu0
      %vm1885 = vcmask 64512
      %v1886 = vsel %vm1885, %v1558, -inf
      %1887 = vmax.xlane.f32.xlu0 %v1886
      %v1888 = vpop.xlane.xlu0 %1887
      %v1889 = vsel %vm1885, %v1604, -inf
      %1890 = vmax.xlane.f32.xlu0 %v1889
      %v1891 = vpop.xlane.xlu0 %1890
      %v1892 = vsel %vm1885, %v1650, -inf
      %1893 = vmax.xlane.f32.xlu0 %v1892
      %v1894 = vpop.xlane.xlu0 %1893
      %v1895 = vsel %vm1885, %v1696, -inf
      %1896 = vmax.xlane.f32.xlu0 %v1895
      %v1897 = vpop.xlane.xlu0 %1896
      %v1898 = vsel %vm1885, %v1742, -inf
      %1899 = vmax.xlane.f32.xlu0 %v1898
      %v1900 = vpop.xlane.xlu0 %1899
      %v1901 = vsel %vm1885, %v1788, -inf
      %1902 = vmax.xlane.f32.xlu0 %v1901
      %v1903 = vpop.xlane.xlu0 %1902
      %v1904 = vsel %vm1885, %v1834, -inf
      %1905 = vmax.xlane.f32.xlu0 %v1904
      %v1906 = vpop.xlane.xlu0 %1905
      %v1907 = vsel %vm1885, %v1880, -inf
      %1908 = vmax.xlane.f32.xlu0 %v1907
      %v1909 = vpop.xlane.xlu0 %1908
      %v1910 = vsub.f32 %v1558, %v1888
      %v1911 = vsub.f32 %v1604, %v1891
      %v1912 = vsub.f32 %v1650, %v1894
      %v1913 = vsub.f32 %v1696, %v1897
      %v1914 = vsub.f32 %v1742, %v1900
      %v1915 = vsub.f32 %v1788, %v1903
      %v1916 = vsub.f32 %v1834, %v1906
      %v1917 = vsub.f32 %v1880, %v1909
      %v1918 = vmul.f32 %v1910, 1.442695
      %v1919 = vpow.pop %v1918
      %v1920 = vmul.f32 %v1911, 1.442695
      %v1921 = vpow.pop %v1920
      %v1922 = vmul.f32 %v1912, 1.442695
      %v1923 = vpow.pop %v1922
      %v1924 = vmul.f32 %v1913, 1.442695
      %v1925 = vpow.pop %v1924
      %v1926 = vmul.f32 %v1914, 1.442695
      %v1927 = vpow.pop %v1926
      %v1928 = vmul.f32 %v1915, 1.442695
      %v1929 = vpow.pop %v1928
      %v1930 = vmul.f32 %v1916, 1.442695
      %v1931 = vpow.pop %v1930
      %v1932 = vmul.f32 %v1917, 1.442695
      %v1933 = vpow.pop %v1932
      %v1934 = vsel %vm1885, %v1919, 0.0
      %1935 = vadd.xlane.f32.xlu0 %v1934
      %v1936 = vpop.xlane.xlu0 %1935
      %v1937 = vsel %vm1885, %v1921, 0.0
      %1938 = vadd.xlane.f32.xlu0 %v1937
      %v1939 = vpop.xlane.xlu0 %1938
      %v1940 = vsel %vm1885, %v1923, 0.0
      %1941 = vadd.xlane.f32.xlu0 %v1940
      %v1942 = vpop.xlane.xlu0 %1941
      %v1943 = vsel %vm1885, %v1925, 0.0
      %1944 = vadd.xlane.f32.xlu0 %v1943
      %v1945 = vpop.xlane.xlu0 %1944
      %v1946 = vsel %vm1885, %v1927, 0.0
      %1947 = vadd.xlane.f32.xlu0 %v1946
      %v1948 = vpop.xlane.xlu0 %1947
      %v1949 = vsel %vm1885, %v1929, 0.0
      %1950 = vadd.xlane.f32.xlu0 %v1949
      %v1951 = vpop.xlane.xlu0 %1950
      %v1952 = vsel %vm1885, %v1931, 0.0
      %1953 = vadd.xlane.f32.xlu0 %v1952
      %v1954 = vpop.xlane.xlu0 %1953
      %v1955 = vsel %vm1885, %v1933, 0.0
      %1956 = vadd.xlane.f32.xlu0 %v1955
      %v1957 = vpop.xlane.xlu0 %1956
      %v1958 = vrcp.pop %v1936
      %v1959 = vrcp.pop %v1939
      %v1960 = vrcp.pop %v1942
      %v1961 = vrcp.pop %v1945
      %v1962 = vrcp.pop %v1948
      %v1963 = vrcp.pop %v1951
      %v1964 = vrcp.pop %v1954
      %v1965 = vrcp.pop %v1957
      %v1966 = vmul.f32 %v1919, %v1958
      %v1967 = vmul.f32 %v1921, %v1959
      %v1968 = vmul.f32 %v1923, %v1960
      %v1969 = vmul.f32 %v1925, %v1961
      %v1970 = vmul.f32 %v1927, %v1962
      %v1971 = vmul.f32 %v1929, %v1963
      %v1972 = vmul.f32 %v1931, %v1964
      %v1973 = vmul.f32 %v1933, %v1965
      %v1974 = vpack.c.bf16 %v1966, %v1966
      %v1975 = vpack.c.bf16 %v1967, %v1967
      %v1976 = vpack.c.bf16 %v1968, %v1968
      %v1977 = vpack.c.bf16 %v1969, %v1969
      %v1978 = vpack.c.bf16 %v1970, %v1970
      %v1979 = vpack.c.bf16 %v1971, %v1971
      %v1980 = vpack.c.bf16 %v1972, %v1972
      %v1981 = vpack.c.bf16 %v1973, %v1973
      %v1983 = vsel %vm1885, %v1974, 0
      %vm1985 = vcmask 1043456
      %v1987 = vsel %vm1985, %v1508, 0
      %1989 = vmatprep.subr.bf16.mxu0 0
      %1990 = vmatpush1.bf16.msra.mxu0 %v1987
      %1991 = vmatprep.subr.bf16.mxu0 0
      %1992 = vmatpush1.bf16.msra.mxu0 0
      %1993 = vmatprep.subr.bf16.mxu0 0
      %1994 = vmatpush1.bf16.msra.mxu0 0
      %1995 = vmatprep.subr.bf16.mxu0 0
      %1996 = vmatpush1.bf16.msra.mxu0 0
      %1997 = vmatprep.subr.bf16.mxu0 0
      %1998 = vmatpush1.bf16.msra.mxu0 0
      %1999 = vmatprep.subr.bf16.mxu0 0
      %2000 = vmatpush1.bf16.msra.mxu0 0
      %2001 = vmatprep.subr.bf16.mxu0 0
      %2002 = vmatpush1.bf16.msra.mxu0 0
      %2003 = vmatprep.subr.bf16.mxu0 0
      %2004 = vmatpush1.bf16.msra.mxu0 0
      %2005 = vmatprep.subr.bf16.mxu0 0
      %2006 = vmatpush1.bf16.msra.mxu0 0
      %2007 = vmatprep.subr.bf16.mxu0 0
      %2008 = vmatpush1.bf16.msra.mxu0 0
      %2009 = vmatprep.subr.bf16.mxu0 0
      %2010 = vmatpush1.bf16.msra.mxu0 0
      %2011 = vmatprep.subr.bf16.mxu0 0
      %2012 = vmatpush1.bf16.msra.mxu0 0
      %2013 = vmatprep.subr.bf16.mxu0 0
      %2014 = vmatpush1.bf16.msra.mxu0 0
      %2015 = vmatprep.subr.bf16.mxu0 0
      %2016 = vmatpush1.bf16.msra.mxu0 0
      %2017 = vmatprep.subr.bf16.mxu0 0
      %2018 = vmatpush1.bf16.msra.mxu0 0
      %2019 = vmatprep.subr.bf16.mxu0 0
      %2020 = vmatpush1.bf16.msra.mxu0 0
      %2021 = vmatprep.mubr.bf16.mxu0 0
      %2022 = vmatmul.mubr.bf16.gmra.mrb[0].mxu0 %v1983
      %v2023 = vpop.f32.mrb[0].mxu0
      %v2024 = vadd.f32 0.0, %v2023
      %v2025 = vpop.f32.mrb[0].mxu0
      %v2026 = vpop.f32.mrb[0].mxu0
      %v2027 = vpop.f32.mrb[0].mxu0
      %2028 = vdwg.mxu0
      %v2030 = vsel %vm1885, %v1975, 0
      %v2033 = vsel %vm1985, %v1509, 0
      %2035 = vmatprep.subr.bf16.mxu0 0
      %2036 = vmatpush1.bf16.msra.mxu0 %v2033
      %2037 = vmatprep.subr.bf16.mxu0 0
      %2038 = vmatpush1.bf16.msra.mxu0 0
      %2039 = vmatprep.subr.bf16.mxu0 0
      %2040 = vmatpush1.bf16.msra.mxu0 0
      %2041 = vmatprep.subr.bf16.mxu0 0
      %2042 = vmatpush1.bf16.msra.mxu0 0
      %2043 = vmatprep.subr.bf16.mxu0 0
      %2044 = vmatpush1.bf16.msra.mxu0 0
      %2045 = vmatprep.subr.bf16.mxu0 0
      %2046 = vmatpush1.bf16.msra.mxu0 0
      %2047 = vmatprep.subr.bf16.mxu0 0
      %2048 = vmatpush1.bf16.msra.mxu0 0
      %2049 = vmatprep.subr.bf16.mxu0 0
      %2050 = vmatpush1.bf16.msra.mxu0 0
      %2051 = vmatprep.subr.bf16.mxu0 0
      %2052 = vmatpush1.bf16.msra.mxu0 0
      %2053 = vmatprep.subr.bf16.mxu0 0
      %2054 = vmatpush1.bf16.msra.mxu0 0
      %2055 = vmatprep.subr.bf16.mxu0 0
      %2056 = vmatpush1.bf16.msra.mxu0 0
      %2057 = vmatprep.subr.bf16.mxu0 0
      %2058 = vmatpush1.bf16.msra.mxu0 0
      %2059 = vmatprep.subr.bf16.mxu0 0
      %2060 = vmatpush1.bf16.msra.mxu0 0
      %2061 = vmatprep.subr.bf16.mxu0 0
      %2062 = vmatpush1.bf16.msra.mxu0 0
      %2063 = vmatprep.subr.bf16.mxu0 0
      %2064 = vmatpush1.bf16.msra.mxu0 0
      %2065 = vmatprep.subr.bf16.mxu0 0
      %2066 = vmatpush1.bf16.msra.mxu0 0
      %2067 = vmatprep.mubr.bf16.mxu0 0
      %2068 = vmatmul.mubr.bf16.gmra.mrb[0].mxu0 %v2030
      %v2069 = vpop.f32.mrb[0].mxu0
      %v2070 = vadd.f32 0.0, %v2069
      %v2071 = vpop.f32.mrb[0].mxu0
      %v2072 = vpop.f32.mrb[0].mxu0
      %v2073 = vpop.f32.mrb[0].mxu0
      %2074 = vdwg.mxu0
      %v2076 = vsel %vm1885, %v1976, 0
      %v2079 = vsel %vm1985, %v1510, 0
      %2081 = vmatprep.subr.bf16.mxu0 0
      %2082 = vmatpush1.bf16.msra.mxu0 %v2079
      %2083 = vmatprep.subr.bf16.mxu0 0
      %2084 = vmatpush1.bf16.msra.mxu0 0
      %2085 = vmatprep.subr.bf16.mxu0 0
      %2086 = vmatpush1.bf16.msra.mxu0 0
      %2087 = vmatprep.subr.bf16.mxu0 0
      %2088 = vmatpush1.bf16.msra.mxu0 0
      %2089 = vmatprep.subr.bf16.mxu0 0
      %2090 = vmatpush1.bf16.msra.mxu0 0
      %2091 = vmatprep.subr.bf16.mxu0 0
      %2092 = vmatpush1.bf16.msra.mxu0 0
      %2093 = vmatprep.subr.bf16.mxu0 0
      %2094 = vmatpush1.bf16.msra.mxu0 0
      %2095 = vmatprep.subr.bf16.mxu0 0
      %2096 = vmatpush1.bf16.msra.mxu0 0
      %2097 = vmatprep.subr.bf16.mxu0 0
      %2098 = vmatpush1.bf16.msra.mxu0 0
      %2099 = vmatprep.subr.bf16.mxu0 0
      %2100 = vmatpush1.bf16.msra.mxu0 0
      %2101 = vmatprep.subr.bf16.mxu0 0
      %2102 = vmatpush1.bf16.msra.mxu0 0
      %2103 = vmatprep.subr.bf16.mxu0 0
      %2104 = vmatpush1.bf16.msra.mxu0 0
      %2105 = vmatprep.subr.bf16.mxu0 0
      %2106 = vmatpush1.bf16.msra.mxu0 0
      %2107 = vmatprep.subr.bf16.mxu0 0
      %2108 = vmatpush1.bf16.msra.mxu0 0
      %2109 = vmatprep.subr.bf16.mxu0 0
      %2110 = vmatpush1.bf16.msra.mxu0 0
      %2111 = vmatprep.subr.bf16.mxu0 0
      %2112 = vmatpush1.bf16.msra.mxu0 0
      %2113 = vmatprep.mubr.bf16.mxu0 0
      %2114 = vmatmul.mubr.bf16.gmra.mrb[0].mxu0 %v2076
      %v2115 = vpop.f32.mrb[0].mxu0
      %v2116 = vadd.f32 0.0, %v2115
      %v2117 = vpop.f32.mrb[0].mxu0
      %v2118 = vpop.f32.mrb[0].mxu0
      %v2119 = vpop.f32.mrb[0].mxu0
      %2120 = vdwg.mxu0
      %v2122 = vsel %vm1885, %v1977, 0
      %v2125 = vsel %vm1985, %v1511, 0
      %2127 = vmatprep.subr.bf16.mxu0 0
      %2128 = vmatpush1.bf16.msra.mxu0 %v2125
      %2129 = vmatprep.subr.bf16.mxu0 0
      %2130 = vmatpush1.bf16.msra.mxu0 0
      %2131 = vmatprep.subr.bf16.mxu0 0
      %2132 = vmatpush1.bf16.msra.mxu0 0
      %2133 = vmatprep.subr.bf16.mxu0 0
      %2134 = vmatpush1.bf16.msra.mxu0 0
      %2135 = vmatprep.subr.bf16.mxu0 0
      %2136 = vmatpush1.bf16.msra.mxu0 0
      %2137 = vmatprep.subr.bf16.mxu0 0
      %2138 = vmatpush1.bf16.msra.mxu0 0
      %2139 = vmatprep.subr.bf16.mxu0 0
      %2140 = vmatpush1.bf16.msra.mxu0 0
      %2141 = vmatprep.subr.bf16.mxu0 0
      %2142 = vmatpush1.bf16.msra.mxu0 0
      %2143 = vmatprep.subr.bf16.mxu0 0
      %2144 = vmatpush1.bf16.msra.mxu0 0
      %2145 = vmatprep.subr.bf16.mxu0 0
      %2146 = vmatpush1.bf16.msra.mxu0 0
      %2147 = vmatprep.subr.bf16.mxu0 0
      %2148 = vmatpush1.bf16.msra.mxu0 0
      %2149 = vmatprep.subr.bf16.mxu0 0
      %2150 = vmatpush1.bf16.msra.mxu0 0
      %2151 = vmatprep.subr.bf16.mxu0 0
      %2152 = vmatpush1.bf16.msra.mxu0 0
      %2153 = vmatprep.subr.bf16.mxu0 0
      %2154 = vmatpush1.bf16.msra.mxu0 0
      %2155 = vmatprep.subr.bf16.mxu0 0
      %2156 = vmatpush1.bf16.msra.mxu0 0
      %2157 = vmatprep.subr.bf16.mxu0 0
      %2158 = vmatpush1.bf16.msra.mxu0 0
      %2159 = vmatprep.mubr.bf16.mxu0 0
      %2160 = vmatmul.mubr.bf16.gmra.mrb[0].mxu0 %v2122
      %v2161 = vpop.f32.mrb[0].mxu0
      %v2162 = vadd.f32 0.0, %v2161
      %v2163 = vpop.f32.mrb[0].mxu0
      %v2164 = vpop.f32.mrb[0].mxu0
      %v2165 = vpop.f32.mrb[0].mxu0
      %2166 = vdwg.mxu0
      %v2168 = vsel %vm1885, %v1978, 0
      %v2171 = vsel %vm1985, %v1512, 0
      %2173 = vmatprep.subr.bf16.mxu0 0
      %2174 = vmatpush1.bf16.msra.mxu0 %v2171
      %2175 = vmatprep.subr.bf16.mxu0 0
      %2176 = vmatpush1.bf16.msra.mxu0 0
      %2177 = vmatprep.subr.bf16.mxu0 0
      %2178 = vmatpush1.bf16.msra.mxu0 0
      %2179 = vmatprep.subr.bf16.mxu0 0
      %2180 = vmatpush1.bf16.msra.mxu0 0
      %2181 = vmatprep.subr.bf16.mxu0 0
      %2182 = vmatpush1.bf16.msra.mxu0 0
      %2183 = vmatprep.subr.bf16.mxu0 0
      %2184 = vmatpush1.bf16.msra.mxu0 0
      %2185 = vmatprep.subr.bf16.mxu0 0
      %2186 = vmatpush1.bf16.msra.mxu0 0
      %2187 = vmatprep.subr.bf16.mxu0 0
      %2188 = vmatpush1.bf16.msra.mxu0 0
      %2189 = vmatprep.subr.bf16.mxu0 0
      %2190 = vmatpush1.bf16.msra.mxu0 0
      %2191 = vmatprep.subr.bf16.mxu0 0
      %2192 = vmatpush1.bf16.msra.mxu0 0
      %2193 = vmatprep.subr.bf16.mxu0 0
      %2194 = vmatpush1.bf16.msra.mxu0 0
      %2195 = vmatprep.subr.bf16.mxu0 0
      %2196 = vmatpush1.bf16.msra.mxu0 0
      %2197 = vmatprep.subr.bf16.mxu0 0
      %2198 = vmatpush1.bf16.msra.mxu0 0
      %2199 = vmatprep.subr.bf16.mxu0 0
      %2200 = vmatpush1.bf16.msra.mxu0 0
      %2201 = vmatprep.subr.bf16.mxu0 0
      %2202 = vmatpush1.bf16.msra.mxu0 0
      %2203 = vmatprep.subr.bf16.mxu0 0
      %2204 = vmatpush1.bf16.msra.mxu0 0
      %2205 = vmatprep.mubr.bf16.mxu0 0
      %2206 = vmatmul.mubr.bf16.gmra.mrb[0].mxu0 %v2168
      %v2207 = vpop.f32.mrb[0].mxu0
      %v2208 = vadd.f32 0.0, %v2207
      %v2209 = vpop.f32.mrb[0].mxu0
      %v2210 = vpop.f32.mrb[0].mxu0
      %v2211 = vpop.f32.mrb[0].mxu0
      %2212 = vdwg.mxu0
      %v2214 = vsel %vm1885, %v1979, 0
      %v2217 = vsel %vm1985, %v1513, 0
      %2219 = vmatprep.subr.bf16.mxu0 0
      %2220 = vmatpush1.bf16.msra.mxu0 %v2217
      %2221 = vmatprep.subr.bf16.mxu0 0
      %2222 = vmatpush1.bf16.msra.mxu0 0
      %2223 = vmatprep.subr.bf16.mxu0 0
      %2224 = vmatpush1.bf16.msra.mxu0 0
      %2225 = vmatprep.subr.bf16.mxu0 0
      %2226 = vmatpush1.bf16.msra.mxu0 0
      %2227 = vmatprep.subr.bf16.mxu0 0
      %2228 = vmatpush1.bf16.msra.mxu0 0
      %2229 = vmatprep.subr.bf16.mxu0 0
      %2230 = vmatpush1.bf16.msra.mxu0 0
      %2231 = vmatprep.subr.bf16.mxu0 0
      %2232 = vmatpush1.bf16.msra.mxu0 0
      %2233 = vmatprep.subr.bf16.mxu0 0
      %2234 = vmatpush1.bf16.msra.mxu0 0
      %2235 = vmatprep.subr.bf16.mxu0 0
      %2236 = vmatpush1.bf16.msra.mxu0 0
      %2237 = vmatprep.subr.bf16.mxu0 0
      %2238 = vmatpush1.bf16.msra.mxu0 0
      %2239 = vmatprep.subr.bf16.mxu0 0
      %2240 = vmatpush1.bf16.msra.mxu0 0
      %2241 = vmatprep.subr.bf16.mxu0 0
      %2242 = vmatpush1.bf16.msra.mxu0 0
      %2243 = vmatprep.subr.bf16.mxu0 0
      %2244 = vmatpush1.bf16.msra.mxu0 0
      %2245 = vmatprep.subr.bf16.mxu0 0
      %2246 = vmatpush1.bf16.msra.mxu0 0
      %2247 = vmatprep.subr.bf16.mxu0 0
      %2248 = vmatpush1.bf16.msra.mxu0 0
      %2249 = vmatprep.subr.bf16.mxu0 0
      %2250 = vmatpush1.bf16.msra.mxu0 0
      %2251 = vmatprep.mubr.bf16.mxu0 0
      %2252 = vmatmul.mubr.bf16.gmra.mrb[0].mxu0 %v2214
      %v2253 = vpop.f32.mrb[0].mxu0
      %v2254 = vadd.f32 0.0, %v2253
      %v2255 = vpop.f32.mrb[0].mxu0
      %v2256 = vpop.f32.mrb[0].mxu0
      %v2257 = vpop.f32.mrb[0].mxu0
      %2258 = vdwg.mxu0
      %v2260 = vsel %vm1885, %v1980, 0
      %v2263 = vsel %vm1985, %v1514, 0
      %2265 = vmatprep.subr.bf16.mxu0 0
      %2266 = vmatpush1.bf16.msra.mxu0 %v2263
      %2267 = vmatprep.subr.bf16.mxu0 0
      %2268 = vmatpush1.bf16.msra.mxu0 0
      %2269 = vmatprep.subr.bf16.mxu0 0
      %2270 = vmatpush1.bf16.msra.mxu0 0
      %2271 = vmatprep.subr.bf16.mxu0 0
      %2272 = vmatpush1.bf16.msra.mxu0 0
      %2273 = vmatprep.subr.bf16.mxu0 0
      %2274 = vmatpush1.bf16.msra.mxu0 0
      %2275 = vmatprep.subr.bf16.mxu0 0
      %2276 = vmatpush1.bf16.msra.mxu0 0
      %2277 = vmatprep.subr.bf16.mxu0 0
      %2278 = vmatpush1.bf16.msra.mxu0 0
      %2279 = vmatprep.subr.bf16.mxu0 0
      %2280 = vmatpush1.bf16.msra.mxu0 0
      %2281 = vmatprep.subr.bf16.mxu0 0
      %2282 = vmatpush1.bf16.msra.mxu0 0
      %2283 = vmatprep.subr.bf16.mxu0 0
      %2284 = vmatpush1.bf16.msra.mxu0 0
      %2285 = vmatprep.subr.bf16.mxu0 0
      %2286 = vmatpush1.bf16.msra.mxu0 0
      %2287 = vmatprep.subr.bf16.mxu0 0
      %2288 = vmatpush1.bf16.msra.mxu0 0
      %2289 = vmatprep.subr.bf16.mxu0 0
      %2290 = vmatpush1.bf16.msra.mxu0 0
      %2291 = vmatprep.subr.bf16.mxu0 0
      %2292 = vmatpush1.bf16.msra.mxu0 0
      %2293 = vmatprep.subr.bf16.mxu0 0
      %2294 = vmatpush1.bf16.msra.mxu0 0
      %2295 = vmatprep.subr.bf16.mxu0 0
      %2296 = vmatpush1.bf16.msra.mxu0 0
      %2297 = vmatprep.mubr.bf16.mxu0 0
      %2298 = vmatmul.mubr.bf16.gmra.mrb[0].mxu0 %v2260
      %v2299 = vpop.f32.mrb[0].mxu0
      %v2300 = vadd.f32 0.0, %v2299
      %v2301 = vpop.f32.mrb[0].mxu0
      %v2302 = vpop.f32.mrb[0].mxu0
      %v2303 = vpop.f32.mrb[0].mxu0
      %2304 = vdwg.mxu0
      %v2306 = vsel %vm1885, %v1981, 0
      %v2309 = vsel %vm1985, %v1515, 0
      %2311 = vmatprep.subr.bf16.mxu0 0
      %2312 = vmatpush1.bf16.msra.mxu0 %v2309
      %2313 = vmatprep.subr.bf16.mxu0 0
      %2314 = vmatpush1.bf16.msra.mxu0 0
      %2315 = vmatprep.subr.bf16.mxu0 0
      %2316 = vmatpush1.bf16.msra.mxu0 0
      %2317 = vmatprep.subr.bf16.mxu0 0
      %2318 = vmatpush1.bf16.msra.mxu0 0
      %2319 = vmatprep.subr.bf16.mxu0 0
      %2320 = vmatpush1.bf16.msra.mxu0 0
      %2321 = vmatprep.subr.bf16.mxu0 0
      %2322 = vmatpush1.bf16.msra.mxu0 0
      %2323 = vmatprep.subr.bf16.mxu0 0
      %2324 = vmatpush1.bf16.msra.mxu0 0
      %2325 = vmatprep.subr.bf16.mxu0 0
      %2326 = vmatpush1.bf16.msra.mxu0 0
      %2327 = vmatprep.subr.bf16.mxu0 0
      %2328 = vmatpush1.bf16.msra.mxu0 0
      %2329 = vmatprep.subr.bf16.mxu0 0
      %2330 = vmatpush1.bf16.msra.mxu0 0
      %2331 = vmatprep.subr.bf16.mxu0 0
      %2332 = vmatpush1.bf16.msra.mxu0 0
      %2333 = vmatprep.subr.bf16.mxu0 0
      %2334 = vmatpush1.bf16.msra.mxu0 0
      %2335 = vmatprep.subr.bf16.mxu0 0
      %2336 = vmatpush1.bf16.msra.mxu0 0
      %2337 = vmatprep.subr.bf16.mxu0 0
      %2338 = vmatpush1.bf16.msra.mxu0 0
      %2339 = vmatprep.subr.bf16.mxu0 0
      %2340 = vmatpush1.bf16.msra.mxu0 0
      %2341 = vmatprep.subr.bf16.mxu0 0
      %2342 = vmatpush1.bf16.msra.mxu0 0
      %2343 = vmatprep.mubr.bf16.mxu0 0
      %2344 = vmatmul.mubr.bf16.gmra.mrb[0].mxu0 %v2306
      %v2345 = vpop.f32.mrb[0].mxu0
      %v2346 = vadd.f32 0.0, %v2345
      %v2347 = vpop.f32.mrb[0].mxu0
      %v2348 = vpop.f32.mrb[0].mxu0
      %v2349 = vpop.f32.mrb[0].mxu0
      %2350 = vdwg.mxu0
      %v2351 = vcombine.low %v2024, %v2116
      %v2352 = vcombine.high %v2024, %v2116
      %v2354 = vunpack.c.l.s4 1983009808
      %v2355 = vunpack.c.0.s8 %v2354
      %v2356 = vlaneseq
      %v2357 = vshrl.u32 %v2356, 7
      %v2358 = vsub.s32 %v2355, %v2357
      %v2359 = vrot.slane %v2351, %v2358
      %v2361 = vunpack.c.l.s4 1983009808
      %v2362 = vunpack.c.0.s8 %v2361
      %v2363 = vlaneseq
      %v2364 = vshrl.u32 %v2363, 7
      %v2365 = vsub.s32 %v2362, %v2364
      %v2366 = vrot.slane %v2352, %v2365
      %v2367 = vcombine.low %v2070, %v2162
      %v2368 = vcombine.high %v2070, %v2162
      %v2370 = vunpack.c.l.s4 1983009808
      %v2371 = vunpack.c.0.s8 %v2370
      %v2372 = vlaneseq
      %v2373 = vshrl.u32 %v2372, 7
      %v2374 = vsub.s32 %v2371, %v2373
      %v2375 = vrot.slane %v2367, %v2374
      %v2377 = vunpack.c.l.s4 1983009808
      %v2378 = vunpack.c.0.s8 %v2377
      %v2379 = vlaneseq
      %v2380 = vshrl.u32 %v2379, 7
      %v2381 = vsub.s32 %v2378, %v2380
      %v2382 = vrot.slane %v2368, %v2381
      %v2383 = vcombine.low %v2208, %v2300
      %v2384 = vcombine.high %v2208, %v2300
      %v2386 = vunpack.c.l.s4 1983009808
      %v2387 = vunpack.c.0.s8 %v2386
      %v2388 = vlaneseq
      %v2389 = vshrl.u32 %v2388, 7
      %v2390 = vsub.s32 %v2387, %v2389
      %v2391 = vrot.slane %v2383, %v2390
      %v2393 = vunpack.c.l.s4 1983009808
      %v2394 = vunpack.c.0.s8 %v2393
      %v2395 = vlaneseq
      %v2396 = vshrl.u32 %v2395, 7
      %v2397 = vsub.s32 %v2394, %v2396
      %v2398 = vrot.slane %v2384, %v2397
      %v2399 = vcombine.low %v2254, %v2346
      %v2400 = vcombine.high %v2254, %v2346
      %v2402 = vunpack.c.l.s4 1983009808
      %v2403 = vunpack.c.0.s8 %v2402
      %v2404 = vlaneseq
      %v2405 = vshrl.u32 %v2404, 7
      %v2406 = vsub.s32 %v2403, %v2405
      %v2407 = vrot.slane %v2399, %v2406
      %v2409 = vunpack.c.l.s4 1983009808
      %v2410 = vunpack.c.0.s8 %v2409
      %v2411 = vlaneseq
      %v2412 = vshrl.u32 %v2411, 7
      %v2413 = vsub.s32 %v2410, %v2412
      %v2414 = vrot.slane %v2400, %v2413
      %v2415 = vcombine.low %v2359, %v2375
      %v2416 = vcombine.high %v2359, %v2375
      %v2418 = vunpack.c.l.s4 1934713408
      %v2419 = vunpack.c.0.s8 %v2418
      %v2420 = vlaneseq
      %v2421 = vshrl.u32 %v2420, 7
      %v2422 = vsub.s32 %v2419, %v2421
      %v2423 = vrot.slane %v2415, %v2422
      %v2425 = vunpack.c.l.s4 1934713408
      %v2426 = vunpack.c.0.s8 %v2425
      %v2427 = vlaneseq
      %v2428 = vshrl.u32 %v2427, 7
      %v2429 = vsub.s32 %v2426, %v2428
      %v2430 = vrot.slane %v2416, %v2429
      %v2431 = vcombine.low %v2366, %v2382
      %v2432 = vcombine.high %v2366, %v2382
      %v2434 = vunpack.c.l.s4 1934713408
      %v2435 = vunpack.c.0.s8 %v2434
      %v2436 = vlaneseq
      %v2437 = vshrl.u32 %v2436, 7
      %v2438 = vsub.s32 %v2435, %v2437
      %v2439 = vrot.slane %v2431, %v2438
      %v2441 = vunpack.c.l.s4 1934713408
      %v2442 = vunpack.c.0.s8 %v2441
      %v2443 = vlaneseq
      %v2444 = vshrl.u32 %v2443, 7
      %v2445 = vsub.s32 %v2442, %v2444
      %v2446 = vrot.slane %v2432, %v2445
      %v2447 = vcombine.low %v2391, %v2407
      %v2448 = vcombine.high %v2391, %v2407
      %v2450 = vunpack.c.l.s4 1934713408
      %v2451 = vunpack.c.0.s8 %v2450
      %v2452 = vlaneseq
      %v2453 = vshrl.u32 %v2452, 7
      %v2454 = vsub.s32 %v2451, %v2453
      %v2455 = vrot.slane %v2447, %v2454
      %v2457 = vunpack.c.l.s4 1934713408
      %v2458 = vunpack.c.0.s8 %v2457
      %v2459 = vlaneseq
      %v2460 = vshrl.u32 %v2459, 7
      %v2461 = vsub.s32 %v2458, %v2460
      %v2462 = vrot.slane %v2448, %v2461
      %v2463 = vcombine.low %v2398, %v2414
      %v2464 = vcombine.high %v2398, %v2414
      %v2466 = vunpack.c.l.s4 1934713408
      %v2467 = vunpack.c.0.s8 %v2466
      %v2468 = vlaneseq
      %v2469 = vshrl.u32 %v2468, 7
      %v2470 = vsub.s32 %v2467, %v2469
      %v2471 = vrot.slane %v2463, %v2470
      %v2473 = vunpack.c.l.s4 1934713408
      %v2474 = vunpack.c.0.s8 %v2473
      %v2475 = vlaneseq
      %v2476 = vshrl.u32 %v2475, 7
      %v2477 = vsub.s32 %v2474, %v2476
      %v2478 = vrot.slane %v2464, %v2477
      %v2479 = vcombine.low %v2423, %v2455
      %v2480 = vcombine.high %v2423, %v2455
      %v2481 = vcombine.low %v2430, %v2462
      %v2482 = vcombine.high %v2430, %v2462
      %v2483 = vcombine.low %v2439, %v2471
      %v2484 = vcombine.high %v2439, %v2471
      %v2485 = vcombine.low %v2446, %v2478
      %v2486 = vcombine.high %v2446, %v2478
      %v2487 = vcombine.low %v2479, %v2481
      %v2488 = vcombine.high %v2479, %v2481
      %v2490 = vunpack.c.l.s4 1983009808
      %v2491 = vunpack.c.0.s8 %v2490
      %v2492 = vlaneseq
      %v2493 = vshrl.u32 %v2492, 7
      %v2494 = vsub.s32 %v2491, %v2493
      %v2495 = vrot.slane %v2487, %v2494
      %v2497 = vunpack.c.l.s4 1983009808
      %v2498 = vunpack.c.0.s8 %v2497
      %v2499 = vlaneseq
      %v2500 = vshrl.u32 %v2499, 7
      %v2501 = vsub.s32 %v2498, %v2500
      %v2502 = vrot.slane %v2488, %v2501
      %v2503 = vcombine.low %v2480, %v2482
      %v2504 = vcombine.high %v2480, %v2482
      %v2506 = vunpack.c.l.s4 1983009808
      %v2507 = vunpack.c.0.s8 %v2506
      %v2508 = vlaneseq
      %v2509 = vshrl.u32 %v2508, 7
      %v2510 = vsub.s32 %v2507, %v2509
      %v2511 = vrot.slane %v2503, %v2510
      %v2513 = vunpack.c.l.s4 1983009808
      %v2514 = vunpack.c.0.s8 %v2513
      %v2515 = vlaneseq
      %v2516 = vshrl.u32 %v2515, 7
      %v2517 = vsub.s32 %v2514, %v2516
      %v2518 = vrot.slane %v2504, %v2517
      %v2519 = vcombine.low %v2483, %v2485
      %v2520 = vcombine.high %v2483, %v2485
      %v2522 = vunpack.c.l.s4 1983009808
      %v2523 = vunpack.c.0.s8 %v2522
      %v2524 = vlaneseq
      %v2525 = vshrl.u32 %v2524, 7
      %v2526 = vsub.s32 %v2523, %v2525
      %v2527 = vrot.slane %v2519, %v2526
      %v2529 = vunpack.c.l.s4 1983009808
      %v2530 = vunpack.c.0.s8 %v2529
      %v2531 = vlaneseq
      %v2532 = vshrl.u32 %v2531, 7
      %v2533 = vsub.s32 %v2530, %v2532
      %v2534 = vrot.slane %v2520, %v2533
      %v2535 = vcombine.low %v2484, %v2486
      %v2536 = vcombine.high %v2484, %v2486
      %v2538 = vunpack.c.l.s4 1983009808
      %v2539 = vunpack.c.0.s8 %v2538
      %v2540 = vlaneseq
      %v2541 = vshrl.u32 %v2540, 7
      %v2542 = vsub.s32 %v2539, %v2541
      %v2543 = vrot.slane %v2535, %v2542
      %v2545 = vunpack.c.l.s4 1983009808
      %v2546 = vunpack.c.0.s8 %v2545
      %v2547 = vlaneseq
      %v2548 = vshrl.u32 %v2547, 7
      %v2549 = vsub.s32 %v2546, %v2548
      %v2550 = vrot.slane %v2536, %v2549
      %v2551 = vcombine.low %v2495, %v2511
      %v2552 = vcombine.high %v2495, %v2511
      %v2554 = vunpack.c.l.s4 1934713408
      %v2555 = vunpack.c.0.s8 %v2554
      %v2556 = vlaneseq
      %v2557 = vshrl.u32 %v2556, 7
      %v2558 = vsub.s32 %v2555, %v2557
      %v2559 = vrot.slane %v2551, %v2558
      %v2561 = vunpack.c.l.s4 1934713408
      %v2562 = vunpack.c.0.s8 %v2561
      %v2563 = vlaneseq
      %v2564 = vshrl.u32 %v2563, 7
      %v2565 = vsub.s32 %v2562, %v2564
      %v2566 = vrot.slane %v2552, %v2565
      %v2567 = vcombine.low %v2502, %v2518
      %v2568 = vcombine.high %v2502, %v2518
      %v2570 = vunpack.c.l.s4 1934713408
      %v2571 = vunpack.c.0.s8 %v2570
      %v2572 = vlaneseq
      %v2573 = vshrl.u32 %v2572, 7
      %v2574 = vsub.s32 %v2571, %v2573
      %v2575 = vrot.slane %v2567, %v2574
      %v2577 = vunpack.c.l.s4 1934713408
      %v2578 = vunpack.c.0.s8 %v2577
      %v2579 = vlaneseq
      %v2580 = vshrl.u32 %v2579, 7
      %v2581 = vsub.s32 %v2578, %v2580
      %v2582 = vrot.slane %v2568, %v2581
      %v2583 = vcombine.low %v2527, %v2543
      %v2584 = vcombine.high %v2527, %v2543
      %v2586 = vunpack.c.l.s4 1934713408
      %v2587 = vunpack.c.0.s8 %v2586
      %v2588 = vlaneseq
      %v2589 = vshrl.u32 %v2588, 7
      %v2590 = vsub.s32 %v2587, %v2589
      %v2591 = vrot.slane %v2583, %v2590
      %v2593 = vunpack.c.l.s4 1934713408
      %v2594 = vunpack.c.0.s8 %v2593
      %v2595 = vlaneseq
      %v2596 = vshrl.u32 %v2595, 7
      %v2597 = vsub.s32 %v2594, %v2596
      %v2598 = vrot.slane %v2584, %v2597
      %v2599 = vcombine.low %v2534, %v2550
      %v2600 = vcombine.high %v2534, %v2550
      %v2602 = vunpack.c.l.s4 1934713408
      %v2603 = vunpack.c.0.s8 %v2602
      %v2604 = vlaneseq
      %v2605 = vshrl.u32 %v2604, 7
      %v2606 = vsub.s32 %v2603, %v2605
      %v2607 = vrot.slane %v2599, %v2606
      %v2609 = vunpack.c.l.s4 1934713408
      %v2610 = vunpack.c.0.s8 %v2609
      %v2611 = vlaneseq
      %v2612 = vshrl.u32 %v2611, 7
      %v2613 = vsub.s32 %v2610, %v2612
      %v2614 = vrot.slane %v2600, %v2613
      %v2615 = vcombine.low %v2559, %v2591
      %v2616 = vcombine.high %v2559, %v2591
      %v2617 = vcombine.low %v2566, %v2598
      %v2618 = vcombine.high %v2566, %v2598
      %v2619 = vcombine.low %v2575, %v2607
      %v2620 = vcombine.high %v2575, %v2607
      %v2621 = vcombine.low %v2582, %v2614
      %v2622 = vcombine.high %v2582, %v2614
      %2624 = vrot.lane.b32.xlu0 %v2616, 16
      %v2625 = vpop.permute.xlu0 %2624
      %2628 = vrot.lane.b32.xlu0 %v2617, 32
      %v2629 = vpop.permute.xlu0 %2628
      %2632 = vrot.lane.b32.xlu0 %v2618, 48
      %v2633 = vpop.permute.xlu0 %2632
      %2636 = vrot.lane.b32.xlu0 %v2619, 64
      %v2637 = vpop.permute.xlu0 %2636
      %2640 = vrot.lane.b32.xlu0 %v2620, 80
      %v2641 = vpop.permute.xlu0 %2640
      %2644 = vrot.lane.b32.xlu0 %v2621, 96
      %v2645 = vpop.permute.xlu0 %2644
      %2648 = vrot.lane.b32.xlu0 %v2622, 112
      %v2649 = vpop.permute.xlu0 %2648
      %v2651 = vsel %vm1516, %v2615, %v2625
      %vm2652 = vcmask 261120
      %v2653 = vsel %vm2652, %v2651, %v2629
      %vm2654 = vcmask 392192
      %v2655 = vsel %vm2654, %v2653, %v2633
      %vm2656 = vcmask 523264
      %v2657 = vsel %vm2656, %v2655, %v2637
      %vm2658 = vcmask 654336
      %v2659 = vsel %vm2658, %v2657, %v2641
      %vm2660 = vcmask 785408
      %v2661 = vsel %vm2660, %v2659, %v2645
      %vm2662 = vcmask 916480
      %v2663 = vsel %vm2662, %v2661, %v2649
      %v2664 = vpack.c.bf16 %v2663, %v2663
      %v2665 = vld [vmem:[%s3] sm:$0xff]
      %v2666 = vld [vmem:[%s3 + $0x8] sm:$0xff]
      %v2667 = vld [vmem:[%s3 + $0x10] sm:$0xff]
      %v2668 = vld [vmem:[%s3 + $0x18] sm:$0xff]
      %v2669 = vld [vmem:[%s3 + $0x20] sm:$0xff]
      %v2670 = vld [vmem:[%s3 + $0x28] sm:$0xff]
      %v2671 = vld [vmem:[%s3 + $0x30] sm:$0xff]
      %v2672 = vld [vmem:[%s3 + $0x38] sm:$0xff]
      %v2673 = vld [vmem:[%s3 + $0x40] sm:$0xff]
      %v2674 = vld [vmem:[%s3 + $0x48] sm:$0xff]
      %v2675 = vld [vmem:[%s3 + $0x50] sm:$0xff]
      %v2676 = vld [vmem:[%s3 + $0x58] sm:$0xff]
      %v2677 = vld [vmem:[%s3 + $0x60] sm:$0xff]
      %v2678 = vld [vmem:[%s3 + $0x68] sm:$0xff]
      %v2679 = vld [vmem:[%s3 + $0x70] sm:$0xff]
      %v2680 = vld [vmem:[%s3 + $0x78] sm:$0xff]
      %v2681 = vpack.c.bf16 %v2666, %v2665
      %v2682 = vpack.c.bf16 %v2668, %v2667
      %v2683 = vpack.c.bf16 %v2670, %v2669
      %v2684 = vpack.c.bf16 %v2672, %v2671
      %v2685 = vpack.c.bf16 %v2674, %v2673
      %v2686 = vpack.c.bf16 %v2676, %v2675
      %v2687 = vpack.c.bf16 %v2678, %v2677
      %v2688 = vpack.c.bf16 %v2680, %v2679
      %v2689 = vld [vmem:[%s4] sm:$0x1]
      %v2691 = vlaneseq
      %v2692 = vshrl.u32 %v2691, 7
      %v2693 = vsub.s32 0, %v2692
      %v2694 = vrot.slane %v2689, %v2693
      %2696 = vmatprep.subr.bf16.mxu0 0
      %2697 = vmatpush1.bf16.msra.mxu0 %v2681
      %2698 = vmatprep.subr.bf16.mxu0 0
      %2699 = vmatpush1.bf16.msra.mxu0 %v2682
      %2700 = vmatprep.subr.bf16.mxu0 0
      %2701 = vmatpush1.bf16.msra.mxu0 %v2683
      %2702 = vmatprep.subr.bf16.mxu0 0
      %2703 = vmatpush1.bf16.msra.mxu0 %v2684
      %2704 = vmatprep.subr.bf16.mxu0 0
      %2705 = vmatpush1.bf16.msra.mxu0 %v2685
      %2706 = vmatprep.subr.bf16.mxu0 0
      %2707 = vmatpush1.bf16.msra.mxu0 %v2686
      %2708 = vmatprep.subr.bf16.mxu0 0
      %2709 = vmatpush1.bf16.msra.mxu0 %v2687
      %2710 = vmatprep.subr.bf16.mxu0 0
      %2711 = vmatpush1.bf16.msra.mxu0 %v2688
      %2712 = vmatprep.subr.bf16.mxu0 0
      %2713 = vmatpush1.bf16.msra.mxu0 0
      %2714 = vmatprep.subr.bf16.mxu0 0
      %2715 = vmatpush1.bf16.msra.mxu0 0
      %2716 = vmatprep.subr.bf16.mxu0 0
      %2717 = vmatpush1.bf16.msra.mxu0 0
      %2718 = vmatprep.subr.bf16.mxu0 0
      %2719 = vmatpush1.bf16.msra.mxu0 0
      %2720 = vmatprep.subr.bf16.mxu0 0
      %2721 = vmatpush1.bf16.msra.mxu0 0
      %2722 = vmatprep.subr.bf16.mxu0 0
      %2723 = vmatpush1.bf16.msra.mxu0 0
      %2724 = vmatprep.subr.bf16.mxu0 0
      %2725 = vmatpush1.bf16.msra.mxu0 0
      %2726 = vmatprep.subr.bf16.mxu0 0
      %2727 = vmatpush1.bf16.msra.mxu0 0
      %2728 = vmatprep.mubr.bf16.mxu0 0
      %2729 = vmatmul.mubr.bf16.gmra.mrb[0].mxu0 %v2664
      %v2730 = vpop.f32.mrb[0].mxu0
      %v2731 = vadd.f32 %v2694, %v2730
      %v2732 = vpop.f32.mrb[0].mxu0
      %v2733 = vpop.f32.mrb[0].mxu0
      %v2734 = vpop.f32.mrb[0].mxu0
      %2735 = vdwg.mxu0
      %v2736 = vadd.f32 %v437, %v2731
      %v2737 = vld [vmem:[%s9] sm:$0x1]
      %v2738 = vld [vmem:[%s10] sm:$0x1]
      %2739 = vadd.xlane.f32.xlu0 %v2736
      %v2740 = vpop.xlane.xlu0 %2739
      %v2741 = vrcp.pop 128.0
      %v2742 = vmul.f32 %v2740, %v2741
      %v2743 = vsub.f32 %v2736, %v2742
      %v2744 = vmul.f32 %v2743, %v2743
      %2745 = vadd.xlane.f32.xlu0 %v2744
      %v2746 = vpop.xlane.xlu0 %2745
      %v2747 = vmul.f32 %v2746, %v2741
      %v2748 = vadd.f32 %v2747, 1e-05
      %v2749 = vrsqrt.pop %v2748
      %v2750 = vmul.f32 %v2743, %v2749
      %v2752 = vlaneseq
      %v2753 = vshrl.u32 %v2752, 7
      %v2754 = vsub.s32 0, %v2753
      %v2755 = vrot.slane %v2737, %v2754
      %v2757 = vmul.f32 %v2750, %v2755
      %v2759 = vlaneseq
      %v2760 = vshrl.u32 %v2759, 7
      %v2761 = vsub.s32 0, %v2760
      %v2762 = vrot.slane %v2738, %v2761
      %v2764 = vadd.f32 %v2757, %v2762
      %v2765 = vpack.c.bf16 %v2764, %v2764
      %v2766 = vld [vmem:[%s5] sm:$0xff]
      %v2767 = vld [vmem:[%s5 + $0x8] sm:$0xff]
      %v2768 = vld [vmem:[%s5 + $0x10] sm:$0xff]
      %v2769 = vld [vmem:[%s5 + $0x18] sm:$0xff]
      %v2770 = vld [vmem:[%s5 + $0x20] sm:$0xff]
      %v2771 = vld [vmem:[%s5 + $0x28] sm:$0xff]
      %v2772 = vld [vmem:[%s5 + $0x30] sm:$0xff]
      %v2773 = vld [vmem:[%s5 + $0x38] sm:$0xff]
      %v2774 = vld [vmem:[%s5 + $0x40] sm:$0xff]
      %v2775 = vld [vmem:[%s5 + $0x48] sm:$0xff]
      %v2776 = vld [vmem:[%s5 + $0x50] sm:$0xff]
      %v2777 = vld [vmem:[%s5 + $0x58] sm:$0xff]
      %v2778 = vld [vmem:[%s5 + $0x60] sm:$0xff]
      %v2779 = vld [vmem:[%s5 + $0x68] sm:$0xff]
      %v2780 = vld [vmem:[%s5 + $0x70] sm:$0xff]
      %v2781 = vld [vmem:[%s5 + $0x78] sm:$0xff]
      %v2782 = vpack.c.bf16 %v2767, %v2766
      %v2783 = vpack.c.bf16 %v2769, %v2768
      %v2784 = vpack.c.bf16 %v2771, %v2770
      %v2785 = vpack.c.bf16 %v2773, %v2772
      %v2786 = vpack.c.bf16 %v2775, %v2774
      %v2787 = vpack.c.bf16 %v2777, %v2776
      %v2788 = vpack.c.bf16 %v2779, %v2778
      %v2789 = vpack.c.bf16 %v2781, %v2780
      %v2790 = vld [vmem:[%s6] sm:$0x1]
      %v2792 = vlaneseq
      %v2793 = vshrl.u32 %v2792, 7
      %v2794 = vsub.s32 0, %v2793
      %v2795 = vrot.slane %v2790, %v2794
      %2797 = vmatprep.subr.bf16.mxu0 0
      %2798 = vmatpush1.bf16.msra.mxu0 %v2782
      %2799 = vmatprep.subr.bf16.mxu0 0
      %2800 = vmatpush1.bf16.msra.mxu0 %v2783
      %2801 = vmatprep.subr.bf16.mxu0 0
      %2802 = vmatpush1.bf16.msra.mxu0 %v2784
      %2803 = vmatprep.subr.bf16.mxu0 0
      %2804 = vmatpush1.bf16.msra.mxu0 %v2785
      %2805 = vmatprep.subr.bf16.mxu0 0
      %2806 = vmatpush1.bf16.msra.mxu0 %v2786
      %2807 = vmatprep.subr.bf16.mxu0 0
      %2808 = vmatpush1.bf16.msra.mxu0 %v2787
      %2809 = vmatprep.subr.bf16.mxu0 0
      %2810 = vmatpush1.bf16.msra.mxu0 %v2788
      %2811 = vmatprep.subr.bf16.mxu0 0
      %2812 = vmatpush1.bf16.msra.mxu0 %v2789
      %2813 = vmatprep.subr.bf16.mxu0 0
      %2814 = vmatpush1.bf16.msra.mxu0 0
      %2815 = vmatprep.subr.bf16.mxu0 0
      %2816 = vmatpush1.bf16.msra.mxu0 0
      %2817 = vmatprep.subr.bf16.mxu0 0
      %2818 = vmatpush1.bf16.msra.mxu0 0
      %2819 = vmatprep.subr.bf16.mxu0 0
      %2820 = vmatpush1.bf16.msra.mxu0 0
      %2821 = vmatprep.subr.bf16.mxu0 0
      %2822 = vmatpush1.bf16.msra.mxu0 0
      %2823 = vmatprep.subr.bf16.mxu0 0
      %2824 = vmatpush1.bf16.msra.mxu0 0
      %2825 = vmatprep.subr.bf16.mxu0 0
      %2826 = vmatpush1.bf16.msra.mxu0 0
      %2827 = vmatprep.subr.bf16.mxu0 0
      %2828 = vmatpush1.bf16.msra.mxu0 0
      %2829 = vmatprep.mubr.bf16.mxu0 0
      %2830 = vmatmul.mubr.bf16.gmra.mrb[0].mxu0 %v2765
      %v2831 = vpop.f32.mrb[0].mxu0
      %v2832 = vadd.f32 %v2795, %v2831
      %v2833 = vpop.f32.mrb[0].mxu0
      %v2834 = vpop.f32.mrb[0].mxu0
      %v2835 = vpop.f32.mrb[0].mxu0
      %2836 = vdwg.mxu0
      %v2837 = vmax.f32 %v2832, 0.0
      %v2838 = vpack.c.bf16 %v2837, %v2837
      %v2839 = vld [vmem:[%s7] sm:$0xff]
      %v2840 = vld [vmem:[%s7 + $0x8] sm:$0xff]
      %v2841 = vld [vmem:[%s7 + $0x10] sm:$0xff]
      %v2842 = vld [vmem:[%s7 + $0x18] sm:$0xff]
      %v2843 = vld [vmem:[%s7 + $0x20] sm:$0xff]
      %v2844 = vld [vmem:[%s7 + $0x28] sm:$0xff]
      %v2845 = vld [vmem:[%s7 + $0x30] sm:$0xff]
      %v2846 = vld [vmem:[%s7 + $0x38] sm:$0xff]
      %v2847 = vld [vmem:[%s7 + $0x40] sm:$0xff]
      %v2848 = vld [vmem:[%s7 + $0x48] sm:$0xff]
      %v2849 = vld [vmem:[%s7 + $0x50] sm:$0xff]
      %v2850 = vld [vmem:[%s7 + $0x58] sm:$0xff]
      %v2851 = vld [vmem:[%s7 + $0x60] sm:$0xff]
      %v2852 = vld [vmem:[%s7 + $0x68] sm:$0xff]
      %v2853 = vld [vmem:[%s7 + $0x70] sm:$0xff]
      %v2854 = vld [vmem:[%s7 + $0x78] sm:$0xff]
      %v2855 = vpack.c.bf16 %v2840, %v2839
      %v2856 = vpack.c.bf16 %v2842, %v2841
      %v2857 = vpack.c.bf16 %v2844, %v2843
      %v2858 = vpack.c.bf16 %v2846, %v2845
      %v2859 = vpack.c.bf16 %v2848, %v2847
      %v2860 = vpack.c.bf16 %v2850, %v2849
      %v2861 = vpack.c.bf16 %v2852, %v2851
      %v2862 = vpack.c.bf16 %v2854, %v2853
      %v2863 = vld [vmem:[%s8] sm:$0x1]
      %v2865 = vlaneseq
      %v2866 = vshrl.u32 %v2865, 7
      %v2867 = vsub.s32 0, %v2866
      %v2868 = vrot.slane %v2863, %v2867
      %2870 = vmatprep.subr.bf16.mxu0 0
      %2871 = vmatpush1.bf16.msra.mxu0 %v2855
      %2872 = vmatprep.subr.bf16.mxu0 0
      %2873 = vmatpush1.bf16.msra.mxu0 %v2856
      %2874 = vmatprep.subr.bf16.mxu0 0
      %2875 = vmatpush1.bf16.msra.mxu0 %v2857
      %2876 = vmatprep.subr.bf16.mxu0 0
      %2877 = vmatpush1.bf16.msra.mxu0 %v2858
      %2878 = vmatprep.subr.bf16.mxu0 0
      %2879 = vmatpush1.bf16.msra.mxu0 %v2859
      %2880 = vmatprep.subr.bf16.mxu0 0
      %2881 = vmatpush1.bf16.msra.mxu0 %v2860
      %2882 = vmatprep.subr.bf16.mxu0 0
      %2883 = vmatpush1.bf16.msra.mxu0 %v2861
      %2884 = vmatprep.subr.bf16.mxu0 0
      %2885 = vmatpush1.bf16.msra.mxu0 %v2862
      %2886 = vmatprep.subr.bf16.mxu0 0
      %2887 = vmatpush1.bf16.msra.mxu0 0
      %2888 = vmatprep.subr.bf16.mxu0 0
      %2889 = vmatpush1.bf16.msra.mxu0 0
      %2890 = vmatprep.subr.bf16.mxu0 0
      %2891 = vmatpush1.bf16.msra.mxu0 0
      %2892 = vmatprep.subr.bf16.mxu0 0
      %2893 = vmatpush1.bf16.msra.mxu0 0
      %2894 = vmatprep.subr.bf16.mxu0 0
      %2895 = vmatpush1.bf16.msra.mxu0 0
      %2896 = vmatprep.subr.bf16.mxu0 0
      %2897 = vmatpush1.bf16.msra.mxu0 0
      %2898 = vmatprep.subr.bf16.mxu0 0
      %2899 = vmatpush1.bf16.msra.mxu0 0
      %2900 = vmatprep.subr.bf16.mxu0 0
      %2901 = vmatpush1.bf16.msra.mxu0 0
      %2902 = vmatprep.mubr.bf16.mxu0 0
      %2903 = vmatmul.mubr.bf16.gmra.mrb[0].mxu0 %v2838
      %v2904 = vpop.f32.mrb[0].mxu0
      %v2905 = vadd.f32 %v2868, %v2904
      %v2906 = vpop.f32.mrb[0].mxu0
      %v2907 = vpop.f32.mrb[0].mxu0
      %v2908 = vpop.f32.mrb[0].mxu0
      %2909 = vdwg.mxu0
      %v2910 = vadd.f32 %v2764, %v2905
      %v2911 = vld [vmem:[%s11] sm:$0x1]
      %v2912 = vld [vmem:[%s12] sm:$0x1]
      %2913 = vadd.xlane.f32.xlu0 %v2910
      %v2914 = vpop.xlane.xlu0 %2913
      %v2915 = vmul.f32 %v2914, %v2741
      %v2916 = vsub.f32 %v2910, %v2915
      %v2917 = vmul.f32 %v2916, %v2916
      %2918 = vadd.xlane.f32.xlu0 %v2917
      %v2919 = vpop.xlane.xlu0 %2918
      %v2920 = vmul.f32 %v2919, %v2741
      %v2921 = vadd.f32 %v2920, 1e-05
      %v2922 = vrsqrt.pop %v2921
      %v2923 = vmul.f32 %v2916, %v2922
      %v2925 = vlaneseq
      %v2926 = vshrl.u32 %v2925, 7
      %v2927 = vsub.s32 0, %v2926
      %v2928 = vrot.slane %v2911, %v2927
      %v2930 = vmul.f32 %v2923, %v2928
      %v2932 = vlaneseq
      %v2933 = vshrl.u32 %v2932, 7
      %v2934 = vsub.s32 0, %v2933
      %v2935 = vrot.slane %v2912, %v2934
      %v2937 = vadd.f32 %v2930, %v2935
      %2938 = vst [vmem:[%s435] sm:$0xff] %v2937
      %p2939 = scmp.lt.s32.totalorder %s24, 1
      %s2940 = scalar_select %p2939, %s24, 1
      %s2941 = smul.addr %s2940, 8
      %s2942 = scalar_lea.vmem %s13, %s2941
      // Predicated region
      $region73: #{extralonger_forward.12} parent=71 // pred_check
        %p2943 = pneg %p320
      $region74: #{extralonger_forward.12} parent=71 // pred_check_branch
        %2945 = sbr.rel (%p2943) target = $region76
      $region75: #{extralonger_forward.12} parent=71 // pred_region
        _
      $region76: #{extralonger_forward.12} parent=71 // pred_fallthru
        _
    $region72: #{extralonger_forward.12} parent=5 // pred_fallthru
      _
    %p2946 = scmp.le.s32.totalorder 2, %s19
    // Predicated region
    $region77: #{extralonger_forward.12} parent=5 // pred_check
      %p2947 = pneg %p2946
    $region78: #{extralonger_forward.12} parent=5 // pred_check_branch
      %2949 = sbr.rel (%p2947) target = $region80
    $region79: #{extralonger_forward.12} parent=5 // pred_region
      %s2950 = ssub.s32 %s19, 2
      // Predicated region
      $region81: #{extralonger_forward.12} parent=79 // pred_check
        %p2951 = pneg %p326
      $region82: #{extralonger_forward.12} parent=79 // pred_check_branch
        %2953 = sbr.rel (%p2951) target = $region84
      $region83: #{extralonger_forward.12} parent=79 // pred_region
        %p2954 = scmp.lt.s32.totalorder %s25, 1
        %s2955 = scalar_select %p2954, %s25, 1
        %s2956 = smul.addr %s2955, 8
        %s2957 = scalar_lea.vmem %s13, %s2956
      $region84: #{extralonger_forward.12} parent=79 // pred_fallthru
        _
    $region80: #{extralonger_forward.12} parent=5 // pred_fallthru
      _
  $region6: #{extralonger_forward.12} parent=0 // loop_footer
    %s23 = sadd.s32 1, %s19
  $region7: #{extralonger_forward.12} parent=0 // loop_footer_branch
    %18 = sbr.rel target = $region3
  $region8: #{extralonger_forward.12} parent=0 // loop_exit
    _

// kernel: extralonger_forward.17
$region0: #{extralonger_forward.17}
  #allocation0 [shape = 'u32[]', space=smem, size = 0x4, offset = 0x4, fixed_abs, tag = 'smem constant byte address 0x4 - core index']
  #allocation1 [shape = 'u32[144,128]{1,0:T(1,128)}', space=vmem, size = 0x12000, scoped, tag = 'internal scratch']
  %s0 = inlined_call_operand.vmem [shape: f32[32,128], index: 0, kind: input, shape index: {}]
  %s1 = inlined_call_operand.vmem [shape: f32[128,8], index: 1, kind: input, shape index: {}]
  %s2 = inlined_call_operand.vmem [shape: f32[1,8], index: 2, kind: input, shape index: {}]
  %s3 = inlined_call_operand.vmem [shape: f32[32,8], index: 3, kind: output, shape index: {}]
  %s4 = sld [smem:[#allocation0]]
  $region22: #{extralonger_forward.17} parent=0
    _
  %s6 = ssub.s32 1, %s4
  %s7 = scalar_select 0, %s6, %s4
  // Predicated region
  $region2: #{extralonger_forward.17} parent=0 // pred_check
    _
  $region3: #{extralonger_forward.17} parent=0 // pred_check_branch
    %9 = sbr.rel (0) target = $region5
  $region4: #{extralonger_forward.17} parent=0 // pred_region
    _
  $region5: #{extralonger_forward.17} parent=0 // pred_fallthru
    _
  // Predicated region
  $region6: #{extralonger_forward.17} parent=0 // pred_check
    _
  $region7: #{extralonger_forward.17} parent=0 // pred_check_branch
    %11 = sbr.rel (0) target = $region9
  $region8: #{extralonger_forward.17} parent=0 // pred_region
    _
  $region9: #{extralonger_forward.17} parent=0 // pred_fallthru
    _
  // Predicated region
  $region10: #{extralonger_forward.17} parent=0 // pred_check
    _
  $region11: #{extralonger_forward.17} parent=0 // pred_check_branch
    %13 = sbr.rel (0) target = $region13
  $region12: #{extralonger_forward.17} parent=0 // pred_region
    _
  $region13: #{extralonger_forward.17} parent=0 // pred_fallthru
    _
  %v14 = vld [vmem:[%s0] sm:$0xff]
  %v15 = vld [vmem:[%s0 + $0x8] sm:$0xff]
  %v16 = vld [vmem:[%s0 + $0x10] sm:$0xff]
  %v17 = vld [vmem:[%s0 + $0x18] sm:$0xff]
  %v18 = vld [vmem:[%s1] sm:$0xff]
  %v19 = vld [vmem:[%s1 + $0x8] sm:$0xff]
  %v20 = vld [vmem:[%s1 + $0x10] sm:$0xff]
  %v21 = vld [vmem:[%s1 + $0x18] sm:$0xff]
  %v22 = vld [vmem:[%s1 + $0x20] sm:$0xff]
  %v23 = vld [vmem:[%s1 + $0x28] sm:$0xff]
  %v24 = vld [vmem:[%s1 + $0x30] sm:$0xff]
  %v25 = vld [vmem:[%s1 + $0x38] sm:$0xff]
  %v26 = vld [vmem:[%s1 + $0x40] sm:$0xff]
  %v27 = vld [vmem:[%s1 + $0x48] sm:$0xff]
  %v28 = vld [vmem:[%s1 + $0x50] sm:$0xff]
  %v29 = vld [vmem:[%s1 + $0x58] sm:$0xff]
  %v30 = vld [vmem:[%s1 + $0x60] sm:$0xff]
  %v31 = vld [vmem:[%s1 + $0x68] sm:$0xff]
  %v32 = vld [vmem:[%s1 + $0x70] sm:$0xff]
  %v33 = vld [vmem:[%s1 + $0x78] sm:$0xff]
  %v34 = vld [vmem:[%s2] sm:$0x1]
  %v36 = vlaneseq
  %v37 = vshrl.u32 %v36, 7
  %v38 = vsub.s32 0, %v37
  %v39 = vrot.slane %v34, %v38
  %41 = vmatprep.subr.mxu0 0.0
  %42 = vmatpush1.msra.mxu0 %v18
  %43 = vmatprep.subr.mxu0 0.0
  %44 = vmatpush1.msra.mxu0 %v19
  %45 = vmatprep.subr.mxu0 0.0
  %46 = vmatpush1.msra.mxu0 %v20
  %47 = vmatprep.subr.mxu0 0.0
  %48 = vmatpush1.msra.mxu0 %v21
  %49 = vmatprep.subr.mxu0 0.0
  %50 = vmatpush1.msra.mxu0 %v22
  %51 = vmatprep.subr.mxu0 0.0
  %52 = vmatpush1.msra.mxu0 %v23
  %53 = vmatprep.subr.mxu0 0.0
  %54 = vmatpush1.msra.mxu0 %v24
  %55 = vmatprep.subr.mxu0 0.0
  %56 = vmatpush1.msra.mxu0 %v25
  %57 = vmatprep.subr.mxu0 0.0
  %58 = vmatpush1.msra.mxu0 %v26
  %59 = vmatprep.subr.mxu0 0.0
  %60 = vmatpush1.msra.mxu0 %v27
  %61 = vmatprep.subr.mxu0 0.0
  %62 = vmatpush1.msra.mxu0 %v28
  %63 = vmatprep.subr.mxu0 0.0
  %64 = vmatpush1.msra.mxu0 %v29
  %65 = vmatprep.subr.mxu0 0.0
  %66 = vmatpush1.msra.mxu0 %v30
  %67 = vmatprep.subr.mxu0 0.0
  %68 = vmatpush1.msra.mxu0 %v31
  %69 = vmatprep.subr.mxu0 0.0
  %70 = vmatpush1.msra.mxu0 %v32
  %71 = vmatprep.subr.mxu0 0.0
  %72 = vmatpush1.msra.mxu0 %v33
  %73 = vmatprep.subr.mxu0 0.0
  %74 = vmatpush1.msra.mxu0 0.0
  %75 = vmatprep.subr.mxu0 0.0
  %76 = vmatpush1.msra.mxu0 0.0
  %77 = vmatprep.subr.mxu0 0.0
  %78 = vmatpush1.msra.mxu0 0.0
  %79 = vmatprep.subr.mxu0 0.0
  %80 = vmatpush1.msra.mxu0 0.0
  %81 = vmatprep.subr.mxu0 0.0
  %82 = vmatpush1.msra.mxu0 0.0
  %83 = vmatprep.subr.mxu0 0.0
  %84 = vmatpush1.msra.mxu0 0.0
  %85 = vmatprep.subr.mxu0 0.0
  %86 = vmatpush1.msra.mxu0 0.0
  %87 = vmatprep.subr.mxu0 0.0
  %88 = vmatpush1.msra.mxu0 0.0
  %89 = vmatprep.subr.mxu0 0.0
  %90 = vmatpush1.msra.mxu0 0.0
  %91 = vmatprep.subr.mxu0 0.0
  %92 = vmatpush1.msra.mxu0 0.0
  %93 = vmatprep.subr.mxu0 0.0
  %94 = vmatpush1.msra.mxu0 0.0
  %95 = vmatprep.subr.mxu0 0.0
  %96 = vmatpush1.msra.mxu0 0.0
  %97 = vmatprep.subr.mxu0 0.0
  %98 = vmatpush1.msra.mxu0 0.0
  %99 = vmatprep.subr.mxu0 0.0
  %100 = vmatpush1.msra.mxu0 0.0
  %101 = vmatprep.subr.mxu0 0.0
  %102 = vmatpush1.msra.mxu0 0.0
  %103 = vmatprep.subr.mxu0 0.0
  %104 = vmatpush1.msra.mxu0 0.0
  %105 = vmatprep.mubr.f32.mxu0 0.0
  %106 = vmatmul.mubr.f32.gmra.mrb[0].mxu0 %v14
  %v107 = vpop.f32.mrb[0].mxu0
  %v108 = vadd.f32 %v39, %v107
  %v109 = vpop.f32.mrb[0].mxu0
  %110 = vmatprep.mubr.f32.mxu0 0.0
  %111 = vmatmul.mubr.f32.gmra.mrb[0].mxu0 %v15
  %v112 = vpop.f32.mrb[0].mxu0
  %v113 = vadd.f32 %v39, %v112
  %v114 = vpop.f32.mrb[0].mxu0
  %115 = vmatprep.mubr.f32.mxu0 0.0
  %116 = vmatmul.mubr.f32.gmra.mrb[0].mxu0 %v16
  %v117 = vpop.f32.mrb[0].mxu0
  %v118 = vadd.f32 %v39, %v117
  %v119 = vpop.f32.mrb[0].mxu0
  %120 = vmatprep.mubr.f32.mxu0 0.0
  %121 = vmatmul.mubr.f32.gmra.mrb[0].mxu0 %v17
  %v122 = vpop.f32.mrb[0].mxu0
  %v123 = vadd.f32 %v39, %v122
  %v124 = vpop.f32.mrb[0].mxu0
  %125 = vdwg.mxu0
  %vm126 = vcmask 64512
  %127 = vst.msk [vmem:[%s3] sm:$0xff] %vm126, %v108
  %128 = vst.msk [vmem:[%s3 + $0x8] sm:$0xff] %vm126, %v113
  %129 = vst.msk [vmem:[%s3 + $0x10] sm:$0xff] %vm126, %v118
  %130 = vst.msk [vmem:[%s3 + $0x18] sm:$0xff] %vm126, %v123
  // Predicated region
  $region14: #{extralonger_forward.17} parent=0 // pred_check
    _
  $region15: #{extralonger_forward.17} parent=0 // pred_check_branch
    %132 = sbr.rel (0) target = $region17
  $region16: #{extralonger_forward.17} parent=0 // pred_region
    _
  $region17: #{extralonger_forward.17} parent=0 // pred_fallthru
    _
  // Predicated region
  $region18: #{extralonger_forward.17} parent=0 // pred_check
    _
  $region19: #{extralonger_forward.17} parent=0 // pred_check_branch
    %134 = sbr.rel (0) target = $region21
  $region20: #{extralonger_forward.17} parent=0 // pred_region
    _
  $region21: #{extralonger_forward.17} parent=0 // pred_fallthru
    _

// kernel: extralonger_forward.16
$region0: #{extralonger_forward.16}
  #allocation0 [shape = 'u32[]', space=smem, size = 0x4, offset = 0x4, fixed_abs, tag = 'smem constant byte address 0x4 - core index']
  #allocation1 [shape = 'u32[144,128]{1,0:T(1,128)}', space=vmem, size = 0x12000, scoped, tag = 'internal scratch']
  %s0 = inlined_call_operand.vmem [shape: f32[2,16,128], index: 0, kind: input, shape index: {}]
  %s1 = inlined_call_operand.vmem [shape: f32[128,384], index: 1, kind: input, shape index: {}]
  %s2 = inlined_call_operand.vmem [shape: f32[1,384], index: 2, kind: input, shape index: {}]
  %s3 = inlined_call_operand.vmem [shape: f32[128,128], index: 3, kind: input, shape index: {}]
  %s4 = inlined_call_operand.vmem [shape: f32[1,128], index: 4, kind: input, shape index: {}]
  %s5 = inlined_call_operand.vmem [shape: f32[128,128], index: 5, kind: input, shape index: {}]
  %s6 = inlined_call_operand.vmem [shape: f32[1,128], index: 6, kind: input, shape index: {}]
  %s7 = inlined_call_operand.vmem [shape: f32[128,128], index: 7, kind: input, shape index: {}]
  %s8 = inlined_call_operand.vmem [shape: f32[1,128], index: 8, kind: input, shape index: {}]
  %s9 = inlined_call_operand.vmem [shape: f32[1,128], index: 9, kind: input, shape index: {}]
  %s10 = inlined_call_operand.vmem [shape: f32[1,128], index: 10, kind: input, shape index: {}]
  %s11 = inlined_call_operand.vmem [shape: f32[1,128], index: 11, kind: input, shape index: {}]
  %s12 = inlined_call_operand.vmem [shape: f32[1,128], index: 12, kind: input, shape index: {}]
  %s13 = inlined_call_operand.vmem [shape: f32[2,16,128], index: 13, kind: output, shape index: {}]
  %s14 = sld [smem:[#allocation0]]
  $region85: #{extralonger_forward.16} parent=0
    _
  %s16 = ssub.s32 1, %s14
  %s17 = scalar_select 0, %s16, %s14
  loop: start=0, step=1, limit=4
  $region2: #{extralonger_forward.16} parent=0 // loop_pre_header
    _
  $region3: #{extralonger_forward.16} parent=0 // loop_header
    %s19 = sphi 0, %s23
    %p20 = scmp.ge.s32.totalorder %s19, 4
    %s29 = sphi 0, %s31
    %s32 = sphi 0, %s29
    %s33 = sphi 0, %s32
    %s49 = sphi 0, %s33
    %s53 = sphi 0, %s53
    %s55 = sphi 0, %s53
    %s56 = sphi 0, %s55
    %s70 = sphi 0, %s56
    %s74 = sphi 0, %s74
    %s76 = sphi 0, %s74
    %s77 = sphi 0, %s76
    %s91 = sphi 0, %s77
    %s95 = sphi 0, %s95
    %s97 = sphi 0, %s95
    %s98 = sphi 0, %s97
    %s112 = sphi 0, %s98
    %s116 = sphi 0, %s116
    %s118 = sphi 0, %s116
    %s119 = sphi 0, %s118
    %s133 = sphi 0, %s119
    %s137 = sphi 0, %s137
    %s139 = sphi 0, %s137
    %s140 = sphi 0, %s139
    %s154 = sphi 0, %s140
    %s158 = sphi 0, %s158
    %s160 = sphi 0, %s158
    %s161 = sphi 0, %s160
    %s175 = sphi 0, %s161
    %s179 = sphi 0, %s179
    %s181 = sphi 0, %s179
    %s182 = sphi 0, %s181
    %s196 = sphi 0, %s182
    %s200 = sphi 0, %s200
    %s202 = sphi 0, %s200
    %s203 = sphi 0, %s202
    %s217 = sphi 0, %s203
    %s221 = sphi 0, %s221
    %s223 = sphi 0, %s221
    %s224 = sphi 0, %s223
    %s238 = sphi 0, %s224
    %s242 = sphi 0, %s242
    %s244 = sphi 0, %s242
    %s245 = sphi 0, %s244
    %s259 = sphi 0, %s245
    %s263 = sphi 0, %s263
    %s265 = sphi 0, %s263
    %s266 = sphi 0, %s265
    %s280 = sphi 0, %s266
    %s284 = sphi 0, %s284
    %s286 = sphi 0, %s284
    %s287 = sphi 0, %s286
    %s301 = sphi 0, %s287
    %s307 = sphi 0, %s309
    %s310 = sphi 0, %s307
    %s311 = sphi 0, %s310
    %s327 = sphi 0, %s311
  $region4: #{extralonger_forward.16} parent=0 // loop_header_branch
    %22 = sbr.rel (%p20) target = $region8
  $region5: #{extralonger_forward.16} parent=0 // loop_body
    %s24 = ssub.s32 %s19, 1
    %s25 = ssub.s32 %s19, 2
    %s26 = sadd.s32 %s19, 1
    %s27 = ssub.s32 %s19, %s26
    %p28 = scmp.eq.s32.totalorder %s27, 0
    %s30 = sadd.s32 %s29, 1
    %s31 = scalar_select %p28, %s29, %s30
    %p34 = pneg %p28
    %p35 = scmp.eq.s32.totalorder %s19, 1
    %p36 = por %p34, %p35
    %p37 = scmp.ne.s32.totalorder %s29, %s32
    %p38 = scmp.eq.s32.totalorder %s19, 0
    %p39 = por %p37, %p38
    %p40 = scmp.ne.s32.totalorder %s29, %s32
    %p41 = scmp.eq.s32.totalorder %s24, 1
    %p42 = por %p40, %p41
    %p43 = scmp.ne.s32.totalorder %s32, %s33
    %p44 = scmp.eq.s32.totalorder %s24, 0
    %p45 = por %p43, %p44
    %p46 = scmp.ne.s32.totalorder %s32, %s33
    %p47 = scmp.eq.s32.totalorder %s25, 1
    %p48 = por %p46, %p47
    %p50 = scmp.ne.s32.totalorder %s33, %s49
    %p51 = scmp.eq.s32.totalorder %s25, 0
    %p52 = por %p50, %p51
    %s54 = sadd.s32 %s53, 1
    %p57 = scmp.eq.s32.totalorder %s19, 1
    %p58 = scmp.ne.s32.totalorder %s53, %s55
    %p59 = scmp.eq.s32.totalorder %s19, 0
    %p60 = por %p58, %p59
    %p61 = scmp.ne.s32.totalorder %s53, %s55
    %p62 = scmp.eq.s32.totalorder %s24, 1
    %p63 = por %p61, %p62
    %p64 = scmp.ne.s32.totalorder %s55, %s56
    %p65 = scmp.eq.s32.totalorder %s24, 0
    %p66 = por %p64, %p65
    %p67 = scmp.ne.s32.totalorder %s55, %s56
    %p68 = scmp.eq.s32.totalorder %s25, 1
    %p69 = por %p67, %p68
    %p71 = scmp.ne.s32.totalorder %s56, %s70
    %p72 = scmp.eq.s32.totalorder %s25, 0
    %p73 = por %p71, %p72
    %s75 = sadd.s32 %s74, 1
    %p78 = scmp.eq.s32.totalorder %s19, 1
    %p79 = scmp.ne.s32.totalorder %s74, %s76
    %p80 = scmp.eq.s32.totalorder %s19, 0
    %p81 = por %p79, %p80
    %p82 = scmp.ne.s32.totalorder %s74, %s76
    %p83 = scmp.eq.s32.totalorder %s24, 1
    %p84 = por %p82, %p83
    %p85 = scmp.ne.s32.totalorder %s76, %s77
    %p86 = scmp.eq.s32.totalorder %s24, 0
    %p87 = por %p85, %p86
    %p88 = scmp.ne.s32.totalorder %s76, %s77
    %p89 = scmp.eq.s32.totalorder %s25, 1
    %p90 = por %p88, %p89
    %p92 = scmp.ne.s32.totalorder %s77, %s91
    %p93 = scmp.eq.s32.totalorder %s25, 0
    %p94 = por %p92, %p93
    %s96 = sadd.s32 %s95, 1
    %p99 = scmp.eq.s32.totalorder %s19, 1
    %p100 = scmp.ne.s32.totalorder %s95, %s97
    %p101 = scmp.eq.s32.totalorder %s19, 0
    %p102 = por %p100, %p101
    %p103 = scmp.ne.s32.totalorder %s95, %s97
    %p104 = scmp.eq.s32.totalorder %s24, 1
    %p105 = por %p103, %p104
    %p106 = scmp.ne.s32.totalorder %s97, %s98
    %p107 = scmp.eq.s32.totalorder %s24, 0
    %p108 = por %p106, %p107
    %p109 = scmp.ne.s32.totalorder %s97, %s98
    %p110 = scmp.eq.s32.totalorder %s25, 1
    %p111 = por %p109, %p110
    %p113 = scmp.ne.s32.totalorder %s98, %s112
    %p114 = scmp.eq.s32.totalorder %s25, 0
    %p115 = por %p113, %p114
    %s117 = sadd.s32 %s116, 1
    %p120 = scmp.eq.s32.totalorder %s19, 1
    %p121 = scmp.ne.s32.totalorder %s116, %s118
    %p122 = scmp.eq.s32.totalorder %s19, 0
    %p123 = por %p121, %p122
    %p124 = scmp.ne.s32.totalorder %s116, %s118
    %p125 = scmp.eq.s32.totalorder %s24, 1
    %p126 = por %p124, %p125
    %p127 = scmp.ne.s32.totalorder %s118, %s119
    %p128 = scmp.eq.s32.totalorder %s24, 0
    %p129 = por %p127, %p128
    %p130 = scmp.ne.s32.totalorder %s118, %s119
    %p131 = scmp.eq.s32.totalorder %s25, 1
    %p132 = por %p130, %p131
    %p134 = scmp.ne.s32.totalorder %s119, %s133
    %p135 = scmp.eq.s32.totalorder %s25, 0
    %p136 = por %p134, %p135
    %s138 = sadd.s32 %s137, 1
    %p141 = scmp.eq.s32.totalorder %s19, 1
    %p142 = scmp.ne.s32.totalorder %s137, %s139
    %p143 = scmp.eq.s32.totalorder %s19, 0
    %p144 = por %p142, %p143
    %p145 = scmp.ne.s32.totalorder %s137, %s139
    %p146 = scmp.eq.s32.totalorder %s24, 1
    %p147 = por %p145, %p146
    %p148 = scmp.ne.s32.totalorder %s139, %s140
    %p149 = scmp.eq.s32.totalorder %s24, 0
    %p150 = por %p148, %p149
    %p151 = scmp.ne.s32.totalorder %s139, %s140
    %p152 = scmp.eq.s32.totalorder %s25, 1
    %p153 = por %p151, %p152
    %p155 = scmp.ne.s32.totalorder %s140, %s154
    %p156 = scmp.eq.s32.totalorder %s25, 0
    %p157 = por %p155, %p156
    %s159 = sadd.s32 %s158, 1
    %p162 = scmp.eq.s32.totalorder %s19, 1
    %p163 = scmp.ne.s32.totalorder %s158, %s160
    %p164 = scmp.eq.s32.totalorder %s19, 0
    %p165 = por %p163, %p164
    %p166 = scmp.ne.s32.totalorder %s158, %s160
    %p167 = scmp.eq.s32.totalorder %s24, 1
    %p168 = por %p166, %p167
    %p169 = scmp.ne.s32.totalorder %s160, %s161
    %p170 = scmp.eq.s32.totalorder %s24, 0
    %p171 = por %p169, %p170
    %p172 = scmp.ne.s32.totalorder %s160, %s161
    %p173 = scmp.eq.s32.totalorder %s25, 1
    %p174 = por %p172, %p173
    %p176 = scmp.ne.s32.totalorder %s161, %s175
    %p177 = scmp.eq.s32.totalorder %s25, 0
    %p178 = por %p176, %p177
    %s180 = sadd.s32 %s179, 1
    %p183 = scmp.eq.s32.totalorder %s19, 1
    %p184 = scmp.ne.s32.totalorder %s179, %s181
    %p185 = scmp.eq.s32.totalorder %s19, 0
    %p186 = por %p184, %p185
    %p187 = scmp.ne.s32.totalorder %s179, %s181
    %p188 = scmp.eq.s32.totalorder %s24, 1
    %p189 = por %p187, %p188
    %p190 = scmp.ne.s32.totalorder %s181, %s182
    %p191 = scmp.eq.s32.totalorder %s24, 0
    %p192 = por %p190, %p191
    %p193 = scmp.ne.s32.totalorder %s181, %s182
    %p194 = scmp.eq.s32.totalorder %s25, 1
    %p195 = por %p193, %p194
    %p197 = scmp.ne.s32.totalorder %s182, %s196
    %p198 = scmp.eq.s32.totalorder %s25, 0
    %p199 = por %p197, %p198
    %s201 = sadd.s32 %s200, 1
    %p204 = scmp.eq.s32.totalorder %s19, 1
    %p205 = scmp.ne.s32.totalorder %s200, %s202
    %p206 = scmp.eq.s32.totalorder %s19, 0
    %p207 = por %p205, %p206
    %p208 = scmp.ne.s32.totalorder %s200, %s202
    %p209 = scmp.eq.s32.totalorder %s24, 1
    %p210 = por %p208, %p209
    %p211 = scmp.ne.s32.totalorder %s202, %s203
    %p212 = scmp.eq.s32.totalorder %s24, 0
    %p213 = por %p211, %p212
    %p214 = scmp.ne.s32.totalorder %s202, %s203
    %p215 = scmp.eq.s32.totalorder %s25, 1
    %p216 = por %p214, %p215
    %p218 = scmp.ne.s32.totalorder %s203, %s217
    %p219 = scmp.eq.s32.totalorder %s25, 0
    %p220 = por %p218, %p219
    %s222 = sadd.s32 %s221, 1
    %p225 = scmp.eq.s32.totalorder %s19, 1
    %p226 = scmp.ne.s32.totalorder %s221, %s223
    %p227 = scmp.eq.s32.totalorder %s19, 0
    %p228 = por %p226, %p227
    %p229 = scmp.ne.s32.totalorder %s221, %s223
    %p230 = scmp.eq.s32.totalorder %s24, 1
    %p231 = por %p229, %p230
    %p232 = scmp.ne.s32.totalorder %s223, %s224
    %p233 = scmp.eq.s32.totalorder %s24, 0
    %p234 = por %p232, %p233
    %p235 = scmp.ne.s32.totalorder %s223, %s224
    %p236 = scmp.eq.s32.totalorder %s25, 1
    %p237 = por %p235, %p236
    %p239 = scmp.ne.s32.totalorder %s224, %s238
    %p240 = scmp.eq.s32.totalorder %s25, 0
    %p241 = por %p239, %p240
    %s243 = sadd.s32 %s242, 1
    %p246 = scmp.eq.s32.totalorder %s19, 1
    %p247 = scmp.ne.s32.totalorder %s242, %s244
    %p248 = scmp.eq.s32.totalorder %s19, 0
    %p249 = por %p247, %p248
    %p250 = scmp.ne.s32.totalorder %s242, %s244
    %p251 = scmp.eq.s32.totalorder %s24, 1
    %p252 = por %p250, %p251
    %p253 = scmp.ne.s32.totalorder %s244, %s245
    %p254 = scmp.eq.s32.totalorder %s24, 0
    %p255 = por %p253, %p254
    %p256 = scmp.ne.s32.totalorder %s244, %s245
    %p257 = scmp.eq.s32.totalorder %s25, 1
    %p258 = por %p256, %p257
    %p260 = scmp.ne.s32.totalorder %s245, %s259
    %p261 = scmp.eq.s32.totalorder %s25, 0
    %p262 = por %p260, %p261
    %s264 = sadd.s32 %s263, 1
    %p267 = scmp.eq.s32.totalorder %s19, 1
    %p268 = scmp.ne.s32.totalorder %s263, %s265
    %p269 = scmp.eq.s32.totalorder %s19, 0
    %p270 = por %p268, %p269
    %p271 = scmp.ne.s32.totalorder %s263, %s265
    %p272 = scmp.eq.s32.totalorder %s24, 1
    %p273 = por %p271, %p272
    %p274 = scmp.ne.s32.totalorder %s265, %s266
    %p275 = scmp.eq.s32.totalorder %s24, 0
    %p276 = por %p274, %p275
    %p277 = scmp.ne.s32.totalorder %s265, %s266
    %p278 = scmp.eq.s32.totalorder %s25, 1
    %p279 = por %p277, %p278
    %p281 = scmp.ne.s32.totalorder %s266, %s280
    %p282 = scmp.eq.s32.totalorder %s25, 0
    %p283 = por %p281, %p282
    %s285 = sadd.s32 %s284, 1
    %p288 = scmp.eq.s32.totalorder %s19, 1
    %p289 = scmp.ne.s32.totalorder %s284, %s286
    %p290 = scmp.eq.s32.totalorder %s19, 0
    %p291 = por %p289, %p290
    %p292 = scmp.ne.s32.totalorder %s284, %s286
    %p293 = scmp.eq.s32.totalorder %s24, 1
    %p294 = por %p292, %p293
    %p295 = scmp.ne.s32.totalorder %s286, %s287
    %p296 = scmp.eq.s32.totalorder %s24, 0
    %p297 = por %p295, %p296
    %p298 = scmp.ne.s32.totalorder %s286, %s287
    %p299 = scmp.eq.s32.totalorder %s25, 1
    %p300 = por %p298, %p299
    %p302 = scmp.ne.s32.totalorder %s287, %s301
    %p303 = scmp.eq.s32.totalorder %s25, 0
    %p304 = por %p302, %p303
    %s305 = ssub.s32 %s19, %s26
    %p306 = scmp.eq.s32.totalorder %s305, 0
    %s308 = sadd.s32 %s307, 1
    %s309 = scalar_select %p306, %s307, %s308
    %p312 = pneg %p306
    %p313 = scmp.eq.s32.totalorder %s19, 1
    %p314 = por %p312, %p313
    %p315 = scmp.ne.s32.totalorder %s307, %s310
    %p316 = scmp.eq.s32.totalorder %s19, 0
    %p317 = por %p315, %p316
    %p318 = scmp.ne.s32.totalorder %s307, %s310
    %p319 = scmp.eq.s32.totalorder %s24, 1
    %p320 = por %p318, %p319
    %p321 = scmp.ne.s32.totalorder %s310, %s311
    %p322 = scmp.eq.s32.totalorder %s24, 0
    %p323 = por %p321, %p322
    %p324 = scmp.ne.s32.totalorder %s310, %s311
    %p325 = scmp.eq.s32.totalorder %s25, 1
    %p326 = por %p324, %p325
    %p328 = scmp.ne.s32.totalorder %s311, %s327
    %p329 = scmp.eq.s32.totalorder %s25, 0
    %p330 = por %p328, %p329
    %p331 = scmp.le.s32.totalorder 1, %s19
    %p332 = scmp.lt.s32.totalorder %s19, 3
    %p333 = pnand %p331, %p332
    %p334 = pneg %p333
    // Predicated region
    $region9: #{extralonger_forward.16} parent=5 // pred_check
      _
    $region10: #{extralonger_forward.16} parent=5 // pred_check_branch
      %336 = sbr.rel (%p333) target = $region12
    $region11: #{extralonger_forward.16} parent=5 // pred_region
      %s337 = ssub.s32 %s19, 1
      // Predicated region
      $region13: #{extralonger_forward.16} parent=11 // pred_check
        %p338 = pneg %p66
      $region14: #{extralonger_forward.16} parent=11 // pred_check_branch
        %340 = sbr.rel (%p338) target = $region16
      $region15: #{extralonger_forward.16} parent=11 // pred_region
        _
      $region16: #{extralonger_forward.16} parent=11 // pred_fallthru
        _
      // Predicated region
      $region17: #{extralonger_forward.16} parent=11 // pred_check
        %p341 = pneg %p87
      $region18: #{extralonger_forward.16} parent=11 // pred_check_branch
        %343 = sbr.rel (%p341) target = $region20
      $region19: #{extralonger_forward.16} parent=11 // pred_region
        _
      $region20: #{extralonger_forward.16} parent=11 // pred_fallthru
        _
      // Predicated region
      $region21: #{extralonger_forward.16} parent=11 // pred_check
        %p344 = pneg %p108
      $region22: #{extralonger_forward.16} parent=11 // pred_check_branch
        %346 = sbr.rel (%p344) target = $region24
      $region23: #{extralonger_forward.16} parent=11 // pred_region
        _
      $region24: #{extralonger_forward.16} parent=11 // pred_fallthru
        _
      // Predicated region
      $region25: #{extralonger_forward.16} parent=11 // pred_check
        %p347 = pneg %p129
      $region26: #{extralonger_forward.16} parent=11 // pred_check_branch
        %349 = sbr.rel (%p347) target = $region28
      $region27: #{extralonger_forward.16} parent=11 // pred_region
        _
      $region28: #{extralonger_forward.16} parent=11 // pred_fallthru
        _
      // Predicated region
      $region29: #{extralonger_forward.16} parent=11 // pred_check
        %p350 = pneg %p150
      $region30: #{extralonger_forward.16} parent=11 // pred_check_branch
        %352 = sbr.rel (%p350) target = $region32
      $region31: #{extralonger_forward.16} parent=11 // pred_region
        _
      $region32: #{extralonger_forward.16} parent=11 // pred_fallthru
        _
      // Predicated region
      $region33: #{extralonger_forward.16} parent=11 // pred_check
        %p353 = pneg %p171
      $region34: #{extralonger_forward.16} parent=11 // pred_check_branch
        %355 = sbr.rel (%p353) target = $region36
      $region35: #{extralonger_forward.16} parent=11 // pred_region
        _
      $region36: #{extralonger_forward.16} parent=11 // pred_fallthru
        _
      // Predicated region
      $region37: #{extralonger_forward.16} parent=11 // pred_check
        %p356 = pneg %p192
      $region38: #{extralonger_forward.16} parent=11 // pred_check_branch
        %358 = sbr.rel (%p356) target = $region40
      $region39: #{extralonger_forward.16} parent=11 // pred_region
        _
      $region40: #{extralonger_forward.16} parent=11 // pred_fallthru
        _
      // Predicated region
      $region41: #{extralonger_forward.16} parent=11 // pred_check
        %p359 = pneg %p213
      $region42: #{extralonger_forward.16} parent=11 // pred_check_branch
        %361 = sbr.rel (%p359) target = $region44
      $region43: #{extralonger_forward.16} parent=11 // pred_region
        _
      $region44: #{extralonger_forward.16} parent=11 // pred_fallthru
        _
      // Predicated region
      $region45: #{extralonger_forward.16} parent=11 // pred_check
        %p362 = pneg %p234
      $region46: #{extralonger_forward.16} parent=11 // pred_check_branch
        %364 = sbr.rel (%p362) target = $region48
      $region47: #{extralonger_forward.16} parent=11 // pred_region
        _
      $region48: #{extralonger_forward.16} parent=11 // pred_fallthru
        _
      // Predicated region
      $region49: #{extralonger_forward.16} parent=11 // pred_check
        %p365 = pneg %p255
      $region50: #{extralonger_forward.16} parent=11 // pred_check_branch
        %367 = sbr.rel (%p365) target = $region52
      $region51: #{extralonger_forward.16} parent=11 // pred_region
        _
      $region52: #{extralonger_forward.16} parent=11 // pred_fallthru
        _
      // Predicated region
      $region53: #{extralonger_forward.16} parent=11 // pred_check
        %p368 = pneg %p276
      $region54: #{extralonger_forward.16} parent=11 // pred_check_branch
        %370 = sbr.rel (%p368) target = $region56
      $region55: #{extralonger_forward.16} parent=11 // pred_region
        _
      $region56: #{extralonger_forward.16} parent=11 // pred_fallthru
        _
      // Predicated region
      $region57: #{extralonger_forward.16} parent=11 // pred_check
        %p371 = pneg %p297
      $region58: #{extralonger_forward.16} parent=11 // pred_check_branch
        %373 = sbr.rel (%p371) target = $region60
      $region59: #{extralonger_forward.16} parent=11 // pred_region
        _
      $region60: #{extralonger_forward.16} parent=11 // pred_fallthru
        _
    $region12: #{extralonger_forward.16} parent=5 // pred_fallthru
      _
    %p374 = scmp.lt.s32.totalorder %s19, 2
    // Predicated region
    $region61: #{extralonger_forward.16} parent=5 // pred_check
      %p375 = pneg %p374
    $region62: #{extralonger_forward.16} parent=5 // pred_check_branch
      %377 = sbr.rel (%p375) target = $region64
    $region63: #{extralonger_forward.16} parent=5 // pred_region
      // Predicated region
      $region65: #{extralonger_forward.16} parent=63 // pred_check
        %p378 = pneg %p39
      $region66: #{extralonger_forward.16} parent=63 // pred_check_branch
        %380 = sbr.rel (%p378) target = $region68
      $region67: #{extralonger_forward.16} parent=63 // pred_region
        %p381 = scmp.lt.s32.totalorder %s19, 1
        %s382 = scalar_select %p381, %s19, 1
        %s383 = smul.addr %s382, 2
        %s384 = smul.addr %s383, 8
        %s385 = scalar_lea.vmem %s0, %s384
      $region68: #{extralonger_forward.16} parent=63 // pred_fallthru
        _
    $region64: #{extralonger_forward.16} parent=5 // pred_fallthru
      _
    %p386 = scmp.le.s32.totalorder 1, %s19
    %p387 = scmp.lt.s32.totalorder %s19, 3
    %p388 = pnand %p386, %p387
    %p389 = pneg %p388
    // Predicated region
    $region69: #{extralonger_forward.16} parent=5 // pred_check
      _
    $region70: #{extralonger_forward.16} parent=5 // pred_check_branch
      %391 = sbr.rel (%p388) target = $region72
    $region71: #{extralonger_forward.16} parent=5 // pred_region
      %s392 = ssub.s32 %s19, 1
      %p393 = scmp.lt.s32.totalorder %s24, 1
      %s394 = scalar_select %p393, %s24, 1
      %s395 = smul.addr %s394, 2
      %s396 = smul.addr %s395, 8
      %s397 = scalar_lea.vmem %s0, %s396
      %p398 = pneg %p45
      %p399 = pneg %p42
      %p400 = pneg %p66
      %p401 = pneg %p63
      %p402 = pneg %p87
      %p403 = pneg %p84
      %p404 = pneg %p108
      %p405 = pneg %p105
      %p406 = pneg %p129
      %p407 = pneg %p126
      %p408 = pneg %p150
      %p409 = pneg %p147
      %p410 = pneg %p171
      %p411 = pneg %p168
      %p412 = pneg %p192
      %p413 = pneg %p189
      %p414 = pneg %p213
      %p415 = pneg %p210
      %p416 = pneg %p234
      %p417 = pneg %p231
      %p418 = pneg %p255
      %p419 = pneg %p252
      %p420 = pneg %p276
      %p421 = pneg %p273
      %p422 = pneg %p297
      %p423 = pneg %p294
      %p424 = pneg %p323
      %p425 = pneg %p320
      %p426 = scmp.lt.s32.totalorder %s24, 1
      %s427 = scalar_select %p426, %s24, 1
      %s428 = smul.addr %s427, 2
      %s429 = smul.addr %s428, 8
      %s430 = scalar_lea.vmem %s13, %s429
      %p431 = scmp.lt.s32.totalorder %s24, 1
      %s432 = scalar_select %p431, %s24, 1
      %s433 = smul.addr %s432, 2
      %s434 = smul.addr %s433, 8
      %s435 = scalar_lea.vmem %s0, %s434
      %p436 = scmp.lt.s32.totalorder %s24, 1
      %s437 = scalar_select %p436, %s24, 1
      %s438 = smul.addr %s437, 2
      %s439 = smul.addr %s438, 8
      %s440 = scalar_lea.vmem %s13, %s439
      %v442 = vld [vmem:[%s435] sm:$0xff]
      %v443 = vld [vmem:[%s435 + $0x8] sm:$0xff]
      %v444 = vpack.c.bf16 %v443, %v442
      %v445 = vld [vmem:[%s1] sm:$0xff]
      %v446 = vld [vmem:[%s1 + $0x8] sm:$0xff]
      %v447 = vld [vmem:[%s1 + $0x10] sm:$0xff]
      %v448 = vld [vmem:[%s1 + $0x18] sm:$0xff]
      %v449 = vld [vmem:[%s1 + $0x20] sm:$0xff]
      %v450 = vld [vmem:[%s1 + $0x28] sm:$0xff]
      %v451 = vld [vmem:[%s1 + $0x30] sm:$0xff]
      %v452 = vld [vmem:[%s1 + $0x38] sm:$0xff]
      %v453 = vld [vmem:[%s1 + $0x40] sm:$0xff]
      %v454 = vld [vmem:[%s1 + $0x48] sm:$0xff]
      %v455 = vld [vmem:[%s1 + $0x50] sm:$0xff]
      %v456 = vld [vmem:[%s1 + $0x58] sm:$0xff]
      %v457 = vld [vmem:[%s1 + $0x60] sm:$0xff]
      %v458 = vld [vmem:[%s1 + $0x68] sm:$0xff]
      %v459 = vld [vmem:[%s1 + $0x70] sm:$0xff]
      %v460 = vld [vmem:[%s1 + $0x78] sm:$0xff]
      %v461 = vld [vmem:[%s1 + $0x80] sm:$0xff]
      %v462 = vld [vmem:[%s1 + $0x88] sm:$0xff]
      %v463 = vld [vmem:[%s1 + $0x90] sm:$0xff]
      %v464 = vld [vmem:[%s1 + $0x98] sm:$0xff]
      %v465 = vld [vmem:[%s1 + $0xa0] sm:$0xff]
      %v466 = vld [vmem:[%s1 + $0xa8] sm:$0xff]
      %v467 = vld [vmem:[%s1 + $0xb0] sm:$0xff]
      %v468 = vld [vmem:[%s1 + $0xb8] sm:$0xff]
      %v469 = vld [vmem:[%s1 + $0xc0] sm:$0xff]
      %v470 = vld [vmem:[%s1 + $0xc8] sm:$0xff]
      %v471 = vld [vmem:[%s1 + $0xd0] sm:$0xff]
      %v472 = vld [vmem:[%s1 + $0xd8] sm:$0xff]
      %v473 = vld [vmem:[%s1 + $0xe0] sm:$0xff]
      %v474 = vld [vmem:[%s1 + $0xe8] sm:$0xff]
      %v475 = vld [vmem:[%s1 + $0xf0] sm:$0xff]
      %v476 = vld [vmem:[%s1 + $0xf8] sm:$0xff]
      %v477 = vld [vmem:[%s1 + $0x100] sm:$0xff]
      %v478 = vld [vmem:[%s1 + $0x108] sm:$0xff]
      %v479 = vld [vmem:[%s1 + $0x110] sm:$0xff]
      %v480 = vld [vmem:[%s1 + $0x118] sm:$0xff]
      %v481 = vld [vmem:[%s1 + $0x120] sm:$0xff]
      %v482 = vld [vmem:[%s1 + $0x128] sm:$0xff]
      %v483 = vld [vmem:[%s1 + $0x130] sm:$0xff]
      %v484 = vld [vmem:[%s1 + $0x138] sm:$0xff]
      %v485 = vld [vmem:[%s1 + $0x140] sm:$0xff]
      %v486 = vld [vmem:[%s1 + $0x148] sm:$0xff]
      %v487 = vld [vmem:[%s1 + $0x150] sm:$0xff]
      %v488 = vld [vmem:[%s1 + $0x158] sm:$0xff]
      %v489 = vld [vmem:[%s1 + $0x160] sm:$0xff]
      %v490 = vld [vmem:[%s1 + $0x168] sm:$0xff]
      %v491 = vld [vmem:[%s1 + $0x170] sm:$0xff]
      %v492 = vld [vmem:[%s1 + $0x178] sm:$0xff]
      %v493 = vpack.c.bf16 %v448, %v445
      %v494 = vpack.c.bf16 %v449, %v446
      %v495 = vpack.c.bf16 %v450, %v447
      %v496 = vpack.c.bf16 %v454, %v451
      %v497 = vpack.c.bf16 %v455, %v452
      %v498 = vpack.c.bf16 %v456, %v453
      %v499 = vpack.c.bf16 %v460, %v457
      %v500 = vpack.c.bf16 %v461, %v458
      %v501 = vpack.c.bf16 %v462, %v459
      %v502 = vpack.c.bf16 %v466, %v463
      %v503 = vpack.c.bf16 %v467, %v464
      %v504 = vpack.c.bf16 %v468, %v465
      %v505 = vpack.c.bf16 %v472, %v469
      %v506 = vpack.c.bf16 %v473, %v470
      %v507 = vpack.c.bf16 %v474, %v471
      %v508 = vpack.c.bf16 %v478, %v475
      %v509 = vpack.c.bf16 %v479, %v476
      %v510 = vpack.c.bf16 %v480, %v477
      %v511 = vpack.c.bf16 %v484, %v481
      %v512 = vpack.c.bf16 %v485, %v482
      %v513 = vpack.c.bf16 %v486, %v483
      %v514 = vpack.c.bf16 %v490, %v487
      %v515 = vpack.c.bf16 %v491, %v488
      %v516 = vpack.c.bf16 %v492, %v489
      %v517 = vld [vmem:[%s2] sm:$0x7]
      %v519 = vlaneseq
      %v520 = vshrl.u32 %v519, 7
      %v521 = vsub.s32 0, %v520
      %v522 = vrot.slane %v517, %v521
      %v523 = vlaneseq
      %v524 = vshrl.u32 %v523, 7
      %v525 = vsub.s32 1, %v524
      %v526 = vrot.slane %v517, %v525
      %v527 = vlaneseq
      %v528 = vshrl.u32 %v527, 7
      %v529 = vsub.s32 2, %v528
      %v530 = vrot.slane %v517, %v529
      %534 = vmatprep.subr.bf16.mxu0 %v494
      %535 = vmatpush1.bf16.msra.mxu0 %v493
      %536 = vmatprep.subr.bf16.mxu0 %v497
      %537 = vmatpush1.bf16.msra.mxu0 %v496
      %538 = vmatprep.subr.bf16.mxu0 %v500
      %539 = vmatpush1.bf16.msra.mxu0 %v499
      %540 = vmatprep.subr.bf16.mxu0 %v503
      %541 = vmatpush1.bf16.msra.mxu0 %v502
      %542 = vmatprep.subr.bf16.mxu0 %v506
      %543 = vmatpush1.bf16.msra.mxu0 %v505
      %544 = vmatprep.subr.bf16.mxu0 %v509
      %545 = vmatpush1.bf16.msra.mxu0 %v508
      %546 = vmatprep.subr.bf16.mxu0 %v512
      %547 = vmatpush1.bf16.msra.mxu0 %v511
      %548 = vmatprep.subr.bf16.mxu0 %v515
      %549 = vmatpush1.bf16.msra.mxu0 %v514
      %550 = vmatprep.subr.bf16.mxu0 0
      %551 = vmatpush1.bf16.msra.mxu0 0
      %552 = vmatprep.subr.bf16.mxu0 0
      %553 = vmatpush1.bf16.msra.mxu0 0
      %554 = vmatprep.subr.bf16.mxu0 0
      %555 = vmatpush1.bf16.msra.mxu0 0
      %556 = vmatprep.subr.bf16.mxu0 0
      %557 = vmatpush1.bf16.msra.mxu0 0
      %558 = vmatprep.subr.bf16.mxu0 0
      %559 = vmatpush1.bf16.msra.mxu0 0
      %560 = vmatprep.subr.bf16.mxu0 0
      %561 = vmatpush1.bf16.msra.mxu0 0
      %562 = vmatprep.subr.bf16.mxu0 0
      %563 = vmatpush1.bf16.msra.mxu0 0
      %564 = vmatprep.subr.bf16.mxu0 0
      %565 = vmatpush1.bf16.msra.mxu0 0
      %566 = vmatprep.mubr.bf16.mxu0 0
      %567 = vmatmul.mubr.bf16.gmra.mrb[0].mxu0 %v444
      %v568 = vpop.f32.mrb[0].mxu0
      %v569 = vadd.f32 %v522, %v568
      %v570 = vpop.f32.mrb[0].mxu0
      %v571 = vadd.f32 %v526, %v570
      %v572 = vpop.f32.mrb[0].mxu0
      %v573 = vadd.f32 %v522, %v572
      %v574 = vpop.f32.mrb[0].mxu0
      %v575 = vadd.f32 %v526, %v574
      %576 = vdwg.mxu0
      %577 = vmatprep.subr.bf16.mxu0 0
      %578 = vmatpush1.bf16.msra.mxu0 %v495
      %579 = vmatprep.subr.bf16.mxu0 0
      %580 = vmatpush1.bf16.msra.mxu0 %v498
      %581 = vmatprep.subr.bf16.mxu0 0
      %582 = vmatpush1.bf16.msra.mxu0 %v501
      %583 = vmatprep.subr.bf16.mxu0 0
      %584 = vmatpush1.bf16.msra.mxu0 %v504
      %585 = vmatprep.subr.bf16.mxu0 0
      %586 = vmatpush1.bf16.msra.mxu0 %v507
      %587 = vmatprep.subr.bf16.mxu0 0
      %588 = vmatpush1.bf16.msra.mxu0 %v510
      %589 = vmatprep.subr.bf16.mxu0 0
      %590 = vmatpush1.bf16.msra.mxu0 %v513
      %591 = vmatprep.subr.bf16.mxu0 0
      %592 = vmatpush1.bf16.msra.mxu0 %v516
      %593 = vmatprep.subr.bf16.mxu0 0
      %594 = vmatpush1.bf16.msra.mxu0 0
      %595 = vmatprep.subr.bf16.mxu0 0
      %596 = vmatpush1.bf16.msra.mxu0 0
      %597 = vmatprep.subr.bf16.mxu0 0
      %598 = vmatpush1.bf16.msra.mxu0 0
      %599 = vmatprep.subr.bf16.mxu0 0
      %600 = vmatpush1.bf16.msra.mxu0 0
      %601 = vmatprep.subr.bf16.mxu0 0
      %602 = vmatpush1.bf16.msra.mxu0 0
      %603 = vmatprep.subr.bf16.mxu0 0
      %604 = vmatpush1.bf16.msra.mxu0 0
      %605 = vmatprep.subr.bf16.mxu0 0
      %606 = vmatpush1.bf16.msra.mxu0 0
      %607 = vmatprep.subr.bf16.mxu0 0
      %608 = vmatpush1.bf16.msra.mxu0 0
      %609 = vmatprep.mubr.bf16.mxu0 0
      %610 = vmatmul.mubr.bf16.gmra.mrb[0].mxu0 %v444
      %v611 = vpop.f32.mrb[0].mxu0
      %v612 = vadd.f32 %v530, %v611
      %v613 = vpop.f32.mrb[0].mxu0
      %v614 = vpop.f32.mrb[0].mxu0
      %v615 = vadd.f32 %v530, %v614
      %v616 = vpop.f32.mrb[0].mxu0
      %617 = vdwg.mxu0
      %v618 = vmul.f32 %v569, 0.25
      %v619 = vmul.f32 %v573, 0.25
      %622 = vrot.lane.b32.xlu0 %v618, 112
      %v623 = vpop.permute.xlu0 %622
      %624 = vrot.lane.b32.xlu0 %v619, 112
      %v625 = vpop.permute.xlu0 %624
      %628 = vrot.lane.b32.xlu0 %v618, 96
      %v629 = vpop.permute.xlu0 %628
      %630 = vrot.lane.b32.xlu0 %v619, 96
      %v631 = vpop.permute.xlu0 %630
      %634 = vrot.lane.b32.xlu0 %v618, 80
      %v635 = vpop.permute.xlu0 %634
      %636 = vrot.lane.b32.xlu0 %v619, 80
      %v637 = vpop.permute.xlu0 %636
      %640 = vrot.lane.b32.xlu0 %v618, 64
      %v641 = vpop.permute.xlu0 %640
      %642 = vrot.lane.b32.xlu0 %v619, 64
      %v643 = vpop.permute.xlu0 %642
      %646 = vrot.lane.b32.xlu0 %v618, 48
      %v647 = vpop.permute.xlu0 %646
      %648 = vrot.lane.b32.xlu0 %v619, 48
      %v649 = vpop.permute.xlu0 %648
      %652 = vrot.lane.b32.xlu0 %v618, 32
      %v653 = vpop.permute.xlu0 %652
      %654 = vrot.lane.b32.xlu0 %v619, 32
      %v655 = vpop.permute.xlu0 %654
      %658 = vrot.lane.b32.xlu0 %v618, 16
      %v659 = vpop.permute.xlu0 %658
      %660 = vrot.lane.b32.xlu0 %v619, 16
      %v661 = vpop.permute.xlu0 %660
      %v664 = vcombine.low %v618, %v629
      %v665 = vcombine.high %v618, %v629
      %v667 = vunpack.c.l.s4 1983009808
      %v668 = vunpack.c.0.s8 %v667
      %v669 = vlaneseq
      %v670 = vshrl.u32 %v669, 7
      %v671 = vsub.s32 %v668, %v670
      %v672 = vrot.slane %v664, %v671
      %v674 = vunpack.c.l.s4 1983009808
      %v675 = vunpack.c.0.s8 %v674
      %v676 = vlaneseq
      %v677 = vshrl.u32 %v676, 7
      %v678 = vsub.s32 %v675, %v677
      %v679 = vrot.slane %v665, %v678
      %v680 = vcombine.low %v623, %v635
      %v681 = vcombine.high %v623, %v635
      %v683 = vunpack.c.l.s4 1983009808
      %v684 = vunpack.c.0.s8 %v683
      %v685 = vlaneseq
      %v686 = vshrl.u32 %v685, 7
      %v687 = vsub.s32 %v684, %v686
      %v688 = vrot.slane %v680, %v687
      %v690 = vunpack.c.l.s4 1983009808
      %v691 = vunpack.c.0.s8 %v690
      %v692 = vlaneseq
      %v693 = vshrl.u32 %v692, 7
      %v694 = vsub.s32 %v691, %v693
      %v695 = vrot.slane %v681, %v694
      %v696 = vcombine.low %v641, %v653
      %v697 = vcombine.high %v641, %v653
      %v699 = vunpack.c.l.s4 1983009808
      %v700 = vunpack.c.0.s8 %v699
      %v701 = vlaneseq
      %v702 = vshrl.u32 %v701, 7
      %v703 = vsub.s32 %v700, %v702
      %v704 = vrot.slane %v696, %v703
      %v706 = vunpack.c.l.s4 1983009808
      %v707 = vunpack.c.0.s8 %v706
      %v708 = vlaneseq
      %v709 = vshrl.u32 %v708, 7
      %v710 = vsub.s32 %v707, %v709
      %v711 = vrot.slane %v697, %v710
      %v712 = vcombine.low %v647, %v659
      %v713 = vcombine.high %v647, %v659
      %v715 = vunpack.c.l.s4 1983009808
      %v716 = vunpack.c.0.s8 %v715
      %v717 = vlaneseq
      %v718 = vshrl.u32 %v717, 7
      %v719 = vsub.s32 %v716, %v718
      %v720 = vrot.slane %v712, %v719
      %v722 = vunpack.c.l.s4 1983009808
      %v723 = vunpack.c.0.s8 %v722
      %v724 = vlaneseq
      %v725 = vshrl.u32 %v724, 7
      %v726 = vsub.s32 %v723, %v725
      %v727 = vrot.slane %v713, %v726
      %v728 = vcombine.low %v672, %v688
      %v729 = vcombine.high %v672, %v688
      %v731 = vunpack.c.l.s4 1934713408
      %v732 = vunpack.c.0.s8 %v731
      %v733 = vlaneseq
      %v734 = vshrl.u32 %v733, 7
      %v735 = vsub.s32 %v732, %v734
      %v736 = vrot.slane %v728, %v735
      %v738 = vunpack.c.l.s4 1934713408
      %v739 = vunpack.c.0.s8 %v738
      %v740 = vlaneseq
      %v741 = vshrl.u32 %v740, 7
      %v742 = vsub.s32 %v739, %v741
      %v743 = vrot.slane %v729, %v742
      %v744 = vcombine.low %v679, %v695
      %v745 = vcombine.high %v679, %v695
      %v747 = vunpack.c.l.s4 1934713408
      %v748 = vunpack.c.0.s8 %v747
      %v749 = vlaneseq
      %v750 = vshrl.u32 %v749, 7
      %v751 = vsub.s32 %v748, %v750
      %v752 = vrot.slane %v744, %v751
      %v754 = vunpack.c.l.s4 1934713408
      %v755 = vunpack.c.0.s8 %v754
      %v756 = vlaneseq
      %v757 = vshrl.u32 %v756, 7
      %v758 = vsub.s32 %v755, %v757
      %v759 = vrot.slane %v745, %v758
      %v760 = vcombine.low %v704, %v720
      %v761 = vcombine.high %v704, %v720
      %v763 = vunpack.c.l.s4 1934713408
      %v764 = vunpack.c.0.s8 %v763
      %v765 = vlaneseq
      %v766 = vshrl.u32 %v765, 7
      %v767 = vsub.s32 %v764, %v766
      %v768 = vrot.slane %v760, %v767
      %v770 = vunpack.c.l.s4 1934713408
      %v771 = vunpack.c.0.s8 %v770
      %v772 = vlaneseq
      %v773 = vshrl.u32 %v772, 7
      %v774 = vsub.s32 %v771, %v773
      %v775 = vrot.slane %v761, %v774
      %v776 = vcombine.low %v711, %v727
      %v777 = vcombine.high %v711, %v727
      %v779 = vunpack.c.l.s4 1934713408
      %v780 = vunpack.c.0.s8 %v779
      %v781 = vlaneseq
      %v782 = vshrl.u32 %v781, 7
      %v783 = vsub.s32 %v780, %v782
      %v784 = vrot.slane %v776, %v783
      %v786 = vunpack.c.l.s4 1934713408
      %v787 = vunpack.c.0.s8 %v786
      %v788 = vlaneseq
      %v789 = vshrl.u32 %v788, 7
      %v790 = vsub.s32 %v787, %v789
      %v791 = vrot.slane %v777, %v790
      %v792 = vcombine.low %v736, %v768
      %v793 = vcombine.high %v736, %v768
      %v794 = vcombine.low %v743, %v775
      %v795 = vcombine.high %v743, %v775
      %v796 = vcombine.low %v752, %v784
      %v797 = vcombine.high %v752, %v784
      %v798 = vcombine.low %v759, %v791
      %v799 = vcombine.high %v759, %v791
      %v800 = vcombine.low %v619, %v631
      %v801 = vcombine.high %v619, %v631
      %v803 = vunpack.c.l.s4 1983009808
      %v804 = vunpack.c.0.s8 %v803
      %v805 = vlaneseq
      %v806 = vshrl.u32 %v805, 7
      %v807 = vsub.s32 %v804, %v806
      %v808 = vrot.slane %v800, %v807
      %v810 = vunpack.c.l.s4 1983009808
      %v811 = vunpack.c.0.s8 %v810
      %v812 = vlaneseq
      %v813 = vshrl.u32 %v812, 7
      %v814 = vsub.s32 %v811, %v813
      %v815 = vrot.slane %v801, %v814
      %v816 = vcombine.low %v625, %v637
      %v817 = vcombine.high %v625, %v637
      %v819 = vunpack.c.l.s4 1983009808
      %v820 = vunpack.c.0.s8 %v819
      %v821 = vlaneseq
      %v822 = vshrl.u32 %v821, 7
      %v823 = vsub.s32 %v820, %v822
      %v824 = vrot.slane %v816, %v823
      %v826 = vunpack.c.l.s4 1983009808
      %v827 = vunpack.c.0.s8 %v826
      %v828 = vlaneseq
      %v829 = vshrl.u32 %v828, 7
      %v830 = vsub.s32 %v827, %v829
      %v831 = vrot.slane %v817, %v830
      %v832 = vcombine.low %v643, %v655
      %v833 = vcombine.high %v643, %v655
      %v835 = vunpack.c.l.s4 1983009808
      %v836 = vunpack.c.0.s8 %v835
      %v837 = vlaneseq
      %v838 = vshrl.u32 %v837, 7
      %v839 = vsub.s32 %v836, %v838
      %v840 = vrot.slane %v832, %v839
      %v842 = vunpack.c.l.s4 1983009808
      %v843 = vunpack.c.0.s8 %v842
      %v844 = vlaneseq
      %v845 = vshrl.u32 %v844, 7
      %v846 = vsub.s32 %v843, %v845
      %v847 = vrot.slane %v833, %v846
      %v848 = vcombine.low %v649, %v661
      %v849 = vcombine.high %v649, %v661
      %v851 = vunpack.c.l.s4 1983009808
      %v852 = vunpack.c.0.s8 %v851
      %v853 = vlaneseq
      %v854 = vshrl.u32 %v853, 7
      %v855 = vsub.s32 %v852, %v854
      %v856 = vrot.slane %v848, %v855
      %v858 = vunpack.c.l.s4 1983009808
      %v859 = vunpack.c.0.s8 %v858
      %v860 = vlaneseq
      %v861 = vshrl.u32 %v860, 7
      %v862 = vsub.s32 %v859, %v861
      %v863 = vrot.slane %v849, %v862
      %v864 = vcombine.low %v808, %v824
      %v865 = vcombine.high %v808, %v824
      %v867 = vunpack.c.l.s4 1934713408
      %v868 = vunpack.c.0.s8 %v867
      %v869 = vlaneseq
      %v870 = vshrl.u32 %v869, 7
      %v871 = vsub.s32 %v868, %v870
      %v872 = vrot.slane %v864, %v871
      %v874 = vunpack.c.l.s4 1934713408
      %v875 = vunpack.c.0.s8 %v874
      %v876 = vlaneseq
      %v877 = vshrl.u32 %v876, 7
      %v878 = vsub.s32 %v875, %v877
      %v879 = vrot.slane %v865, %v878
      %v880 = vcombine.low %v815, %v831
      %v881 = vcombine.high %v815, %v831
      %v883 = vunpack.c.l.s4 1934713408
      %v884 = vunpack.c.0.s8 %v883
      %v885 = vlaneseq
      %v886 = vshrl.u32 %v885, 7
      %v887 = vsub.s32 %v884, %v886
      %v888 = vrot.slane %v880, %v887
      %v890 = vunpack.c.l.s4 1934713408
      %v891 = vunpack.c.0.s8 %v890
      %v892 = vlaneseq
      %v893 = vshrl.u32 %v892, 7
      %v894 = vsub.s32 %v891, %v893
      %v895 = vrot.slane %v881, %v894
      %v896 = vcombine.low %v840, %v856
      %v897 = vcombine.high %v840, %v856
      %v899 = vunpack.c.l.s4 1934713408
      %v900 = vunpack.c.0.s8 %v899
      %v901 = vlaneseq
      %v902 = vshrl.u32 %v901, 7
      %v903 = vsub.s32 %v900, %v902
      %v904 = vrot.slane %v896, %v903
      %v906 = vunpack.c.l.s4 1934713408
      %v907 = vunpack.c.0.s8 %v906
      %v908 = vlaneseq
      %v909 = vshrl.u32 %v908, 7
      %v910 = vsub.s32 %v907, %v909
      %v911 = vrot.slane %v897, %v910
      %v912 = vcombine.low %v847, %v863
      %v913 = vcombine.high %v847, %v863
      %v915 = vunpack.c.l.s4 1934713408
      %v916 = vunpack.c.0.s8 %v915
      %v917 = vlaneseq
      %v918 = vshrl.u32 %v917, 7
      %v919 = vsub.s32 %v916, %v918
      %v920 = vrot.slane %v912, %v919
      %v922 = vunpack.c.l.s4 1934713408
      %v923 = vunpack.c.0.s8 %v922
      %v924 = vlaneseq
      %v925 = vshrl.u32 %v924, 7
      %v926 = vsub.s32 %v923, %v925
      %v927 = vrot.slane %v913, %v926
      %v928 = vcombine.low %v872, %v904
      %v929 = vcombine.high %v872, %v904
      %v930 = vcombine.low %v879, %v911
      %v931 = vcombine.high %v879, %v911
      %v932 = vcombine.low %v888, %v920
      %v933 = vcombine.high %v888, %v920
      %v934 = vcombine.low %v895, %v927
      %v935 = vcombine.high %v895, %v927
      %v936 = vcombine.low %v792, %v794
      %v937 = vcombine.high %v792, %v794
      %v939 = vunpack.c.l.s4 1983009808
      %v940 = vunpack.c.0.s8 %v939
      %v941 = vlaneseq
      %v942 = vshrl.u32 %v941, 7
      %v943 = vsub.s32 %v940, %v942
      %v944 = vrot.slane %v936, %v943
      %v946 = vunpack.c.l.s4 1983009808
      %v947 = vunpack.c.0.s8 %v946
      %v948 = vlaneseq
      %v949 = vshrl.u32 %v948, 7
      %v950 = vsub.s32 %v947, %v949
      %v951 = vrot.slane %v937, %v950
      %v952 = vcombine.low %v793, %v795
      %v953 = vcombine.high %v793, %v795
      %v955 = vunpack.c.l.s4 1983009808
      %v956 = vunpack.c.0.s8 %v955
      %v957 = vlaneseq
      %v958 = vshrl.u32 %v957, 7
      %v959 = vsub.s32 %v956, %v958
      %v960 = vrot.slane %v952, %v959
      %v962 = vunpack.c.l.s4 1983009808
      %v963 = vunpack.c.0.s8 %v962
      %v964 = vlaneseq
      %v965 = vshrl.u32 %v964, 7
      %v966 = vsub.s32 %v963, %v965
      %v967 = vrot.slane %v953, %v966
      %v968 = vcombine.low %v796, %v798
      %v969 = vcombine.high %v796, %v798
      %v971 = vunpack.c.l.s4 1983009808
      %v972 = vunpack.c.0.s8 %v971
      %v973 = vlaneseq
      %v974 = vshrl.u32 %v973, 7
      %v975 = vsub.s32 %v972, %v974
      %v976 = vrot.slane %v968, %v975
      %v978 = vunpack.c.l.s4 1983009808
      %v979 = vunpack.c.0.s8 %v978
      %v980 = vlaneseq
      %v981 = vshrl.u32 %v980, 7
      %v982 = vsub.s32 %v979, %v981
      %v983 = vrot.slane %v969, %v982
      %v984 = vcombine.low %v797, %v799
      %v985 = vcombine.high %v797, %v799
      %v987 = vunpack.c.l.s4 1983009808
      %v988 = vunpack.c.0.s8 %v987
      %v989 = vlaneseq
      %v990 = vshrl.u32 %v989, 7
      %v991 = vsub.s32 %v988, %v990
      %v992 = vrot.slane %v984, %v991
      %v994 = vunpack.c.l.s4 1983009808
      %v995 = vunpack.c.0.s8 %v994
      %v996 = vlaneseq
      %v997 = vshrl.u32 %v996, 7
      %v998 = vsub.s32 %v995, %v997
      %v999 = vrot.slane %v985, %v998
      %v1000 = vcombine.low %v944, %v960
      %v1001 = vcombine.high %v944, %v960
      %v1003 = vunpack.c.l.s4 1934713408
      %v1004 = vunpack.c.0.s8 %v1003
      %v1005 = vlaneseq
      %v1006 = vshrl.u32 %v1005, 7
      %v1007 = vsub.s32 %v1004, %v1006
      %v1008 = vrot.slane %v1000, %v1007
      %v1010 = vunpack.c.l.s4 1934713408
      %v1011 = vunpack.c.0.s8 %v1010
      %v1012 = vlaneseq
      %v1013 = vshrl.u32 %v1012, 7
      %v1014 = vsub.s32 %v1011, %v1013
      %v1015 = vrot.slane %v1001, %v1014
      %v1016 = vcombine.low %v951, %v967
      %v1017 = vcombine.high %v951, %v967
      %v1019 = vunpack.c.l.s4 1934713408
      %v1020 = vunpack.c.0.s8 %v1019
      %v1021 = vlaneseq
      %v1022 = vshrl.u32 %v1021, 7
      %v1023 = vsub.s32 %v1020, %v1022
      %v1024 = vrot.slane %v1016, %v1023
      %v1026 = vunpack.c.l.s4 1934713408
      %v1027 = vunpack.c.0.s8 %v1026
      %v1028 = vlaneseq
      %v1029 = vshrl.u32 %v1028, 7
      %v1030 = vsub.s32 %v1027, %v1029
      %v1031 = vrot.slane %v1017, %v1030
      %v1032 = vcombine.low %v976, %v992
      %v1033 = vcombine.high %v976, %v992
      %v1035 = vunpack.c.l.s4 1934713408
      %v1036 = vunpack.c.0.s8 %v1035
      %v1037 = vlaneseq
      %v1038 = vshrl.u32 %v1037, 7
      %v1039 = vsub.s32 %v1036, %v1038
      %v1040 = vrot.slane %v1032, %v1039
      %v1042 = vunpack.c.l.s4 1934713408
      %v1043 = vunpack.c.0.s8 %v1042
      %v1044 = vlaneseq
      %v1045 = vshrl.u32 %v1044, 7
      %v1046 = vsub.s32 %v1043, %v1045
      %v1047 = vrot.slane %v1033, %v1046
      %v1048 = vcombine.low %v983, %v999
      %v1049 = vcombine.high %v983, %v999
      %v1051 = vunpack.c.l.s4 1934713408
      %v1052 = vunpack.c.0.s8 %v1051
      %v1053 = vlaneseq
      %v1054 = vshrl.u32 %v1053, 7
      %v1055 = vsub.s32 %v1052, %v1054
      %v1056 = vrot.slane %v1048, %v1055
      %v1058 = vunpack.c.l.s4 1934713408
      %v1059 = vunpack.c.0.s8 %v1058
      %v1060 = vlaneseq
      %v1061 = vshrl.u32 %v1060, 7
      %v1062 = vsub.s32 %v1059, %v1061
      %v1063 = vrot.slane %v1049, %v1062
      %v1064 = vcombine.low %v1008, %v1040
      %v1065 = vcombine.high %v1008, %v1040
      %v1066 = vcombine.low %v1015, %v1047
      %v1067 = vcombine.high %v1015, %v1047
      %v1068 = vcombine.low %v1024, %v1056
      %v1069 = vcombine.high %v1024, %v1056
      %v1070 = vcombine.low %v1031, %v1063
      %v1071 = vcombine.high %v1031, %v1063
      %v1072 = vcombine.low %v928, %v930
      %v1073 = vcombine.high %v928, %v930
      %v1075 = vunpack.c.l.s4 1983009808
      %v1076 = vunpack.c.0.s8 %v1075
      %v1077 = vlaneseq
      %v1078 = vshrl.u32 %v1077, 7
      %v1079 = vsub.s32 %v1076, %v1078
      %v1080 = vrot.slane %v1072, %v1079
      %v1082 = vunpack.c.l.s4 1983009808
      %v1083 = vunpack.c.0.s8 %v1082
      %v1084 = vlaneseq
      %v1085 = vshrl.u32 %v1084, 7
      %v1086 = vsub.s32 %v1083, %v1085
      %v1087 = vrot.slane %v1073, %v1086
      %v1088 = vcombine.low %v929, %v931
      %v1089 = vcombine.high %v929, %v931
      %v1091 = vunpack.c.l.s4 1983009808
      %v1092 = vunpack.c.0.s8 %v1091
      %v1093 = vlaneseq
      %v1094 = vshrl.u32 %v1093, 7
      %v1095 = vsub.s32 %v1092, %v1094
      %v1096 = vrot.slane %v1088, %v1095
      %v1098 = vunpack.c.l.s4 1983009808
      %v1099 = vunpack.c.0.s8 %v1098
      %v1100 = vlaneseq
      %v1101 = vshrl.u32 %v1100, 7
      %v1102 = vsub.s32 %v1099, %v1101
      %v1103 = vrot.slane %v1089, %v1102
      %v1104 = vcombine.low %v932, %v934
      %v1105 = vcombine.high %v932, %v934
      %v1107 = vunpack.c.l.s4 1983009808
      %v1108 = vunpack.c.0.s8 %v1107
      %v1109 = vlaneseq
      %v1110 = vshrl.u32 %v1109, 7
      %v1111 = vsub.s32 %v1108, %v1110
      %v1112 = vrot.slane %v1104, %v1111
      %v1114 = vunpack.c.l.s4 1983009808
      %v1115 = vunpack.c.0.s8 %v1114
      %v1116 = vlaneseq
      %v1117 = vshrl.u32 %v1116, 7
      %v1118 = vsub.s32 %v1115, %v1117
      %v1119 = vrot.slane %v1105, %v1118
      %v1120 = vcombine.low %v933, %v935
      %v1121 = vcombine.high %v933, %v935
      %v1123 = vunpack.c.l.s4 1983009808
      %v1124 = vunpack.c.0.s8 %v1123
      %v1125 = vlaneseq
      %v1126 = vshrl.u32 %v1125, 7
      %v1127 = vsub.s32 %v1124, %v1126
      %v1128 = vrot.slane %v1120, %v1127
      %v1130 = vunpack.c.l.s4 1983009808
      %v1131 = vunpack.c.0.s8 %v1130
      %v1132 = vlaneseq
      %v1133 = vshrl.u32 %v1132, 7
      %v1134 = vsub.s32 %v1131, %v1133
      %v1135 = vrot.slane %v1121, %v1134
      %v1136 = vcombine.low %v1080, %v1096
      %v1137 = vcombine.high %v1080, %v1096
      %v1139 = vunpack.c.l.s4 1934713408
      %v1140 = vunpack.c.0.s8 %v1139
      %v1141 = vlaneseq
      %v1142 = vshrl.u32 %v1141, 7
      %v1143 = vsub.s32 %v1140, %v1142
      %v1144 = vrot.slane %v1136, %v1143
      %v1146 = vunpack.c.l.s4 1934713408
      %v1147 = vunpack.c.0.s8 %v1146
      %v1148 = vlaneseq
      %v1149 = vshrl.u32 %v1148, 7
      %v1150 = vsub.s32 %v1147, %v1149
      %v1151 = vrot.slane %v1137, %v1150
      %v1152 = vcombine.low %v1087, %v1103
      %v1153 = vcombine.high %v1087, %v1103
      %v1155 = vunpack.c.l.s4 1934713408
      %v1156 = vunpack.c.0.s8 %v1155
      %v1157 = vlaneseq
      %v1158 = vshrl.u32 %v1157, 7
      %v1159 = vsub.s32 %v1156, %v1158
      %v1160 = vrot.slane %v1152, %v1159
      %v1162 = vunpack.c.l.s4 1934713408
      %v1163 = vunpack.c.0.s8 %v1162
      %v1164 = vlaneseq
      %v1165 = vshrl.u32 %v1164, 7
      %v1166 = vsub.s32 %v1163, %v1165
      %v1167 = vrot.slane %v1153, %v1166
      %v1168 = vcombine.low %v1112, %v1128
      %v1169 = vcombine.high %v1112, %v1128
      %v1171 = vunpack.c.l.s4 1934713408
      %v1172 = vunpack.c.0.s8 %v1171
      %v1173 = vlaneseq
      %v1174 = vshrl.u32 %v1173, 7
      %v1175 = vsub.s32 %v1172, %v1174
      %v1176 = vrot.slane %v1168, %v1175
      %v1178 = vunpack.c.l.s4 1934713408
      %v1179 = vunpack.c.0.s8 %v1178
      %v1180 = vlaneseq
      %v1181 = vshrl.u32 %v1180, 7
      %v1182 = vsub.s32 %v1179, %v1181
      %v1183 = vrot.slane %v1169, %v1182
      %v1184 = vcombine.low %v1119, %v1135
      %v1185 = vcombine.high %v1119, %v1135
      %v1187 = vunpack.c.l.s4 1934713408
      %v1188 = vunpack.c.0.s8 %v1187
      %v1189 = vlaneseq
      %v1190 = vshrl.u32 %v1189, 7
      %v1191 = vsub.s32 %v1188, %v1190
      %v1192 = vrot.slane %v1184, %v1191
      %v1194 = vunpack.c.l.s4 1934713408
      %v1195 = vunpack.c.0.s8 %v1194
      %v1196 = vlaneseq
      %v1197 = vshrl.u32 %v1196, 7
      %v1198 = vsub.s32 %v1195, %v1197
      %v1199 = vrot.slane %v1185, %v1198
      %v1200 = vcombine.low %v1144, %v1176
      %v1201 = vcombine.high %v1144, %v1176
      %v1202 = vcombine.low %v1151, %v1183
      %v1203 = vcombine.high %v1151, %v1183
      %v1204 = vcombine.low %v1160, %v1192
      %v1205 = vcombine.high %v1160, %v1192
      %v1206 = vcombine.low %v1167, %v1199
      %v1207 = vcombine.high %v1167, %v1199
      %v1208 = vpack.c.bf16 %v1200, %v1064
      %v1209 = vpack.c.bf16 %v1201, %v1065
      %v1210 = vpack.c.bf16 %v1202, %v1066
      %v1211 = vpack.c.bf16 %v1203, %v1067
      %v1212 = vpack.c.bf16 %v1204, %v1068
      %v1213 = vpack.c.bf16 %v1205, %v1069
      %v1214 = vpack.c.bf16 %v1206, %v1070
      %v1215 = vpack.c.bf16 %v1207, %v1071
      %1218 = vrot.lane.b32.xlu0 %v571, 112
      %v1219 = vpop.permute.xlu0 %1218
      %1220 = vrot.lane.b32.xlu0 %v575, 112
      %v1221 = vpop.permute.xlu0 %1220
      %1224 = vrot.lane.b32.xlu0 %v571, 96
      %v1225 = vpop.permute.xlu0 %1224
      %1226 = vrot.lane.b32.xlu0 %v575, 96
      %v1227 = vpop.permute.xlu0 %1226
      %1230 = vrot.lane.b32.xlu0 %v571, 80
      %v1231 = vpop.permute.xlu0 %1230
      %1232 = vrot.lane.b32.xlu0 %v575, 80
      %v1233 = vpop.permute.xlu0 %1232
      %1236 = vrot.lane.b32.xlu0 %v571, 64
      %v1237 = vpop.permute.xlu0 %1236
      %1238 = vrot.lane.b32.xlu0 %v575, 64
      %v1239 = vpop.permute.xlu0 %1238
      %1242 = vrot.lane.b32.xlu0 %v571, 48
      %v1243 = vpop.permute.xlu0 %1242
      %1244 = vrot.lane.b32.xlu0 %v575, 48
      %v1245 = vpop.permute.xlu0 %1244
      %1248 = vrot.lane.b32.xlu0 %v571, 32
      %v1249 = vpop.permute.xlu0 %1248
      %1250 = vrot.lane.b32.xlu0 %v575, 32
      %v1251 = vpop.permute.xlu0 %1250
      %1254 = vrot.lane.b32.xlu0 %v571, 16
      %v1255 = vpop.permute.xlu0 %1254
      %1256 = vrot.lane.b32.xlu0 %v575, 16
      %v1257 = vpop.permute.xlu0 %1256
      %v1260 = vcombine.low %v571, %v1225
      %v1261 = vcombine.high %v571, %v1225
      %v1263 = vunpack.c.l.s4 1983009808
      %v1264 = vunpack.c.0.s8 %v1263
      %v1265 = vlaneseq
      %v1266 = vshrl.u32 %v1265, 7
      %v1267 = vsub.s32 %v1264, %v1266
      %v1268 = vrot.slane %v1260, %v1267
      %v1270 = vunpack.c.l.s4 1983009808
      %v1271 = vunpack.c.0.s8 %v1270
      %v1272 = vlaneseq
      %v1273 = vshrl.u32 %v1272, 7
      %v1274 = vsub.s32 %v1271, %v1273
      %v1275 = vrot.slane %v1261, %v1274
      %v1276 = vcombine.low %v1219, %v1231
      %v1277 = vcombine.high %v1219, %v1231
      %v1279 = vunpack.c.l.s4 1983009808
      %v1280 = vunpack.c.0.s8 %v1279
      %v1281 = vlaneseq
      %v1282 = vshrl.u32 %v1281, 7
      %v1283 = vsub.s32 %v1280, %v1282
      %v1284 = vrot.slane %v1276, %v1283
      %v1286 = vunpack.c.l.s4 1983009808
      %v1287 = vunpack.c.0.s8 %v1286
      %v1288 = vlaneseq
      %v1289 = vshrl.u32 %v1288, 7
      %v1290 = vsub.s32 %v1287, %v1289
      %v1291 = vrot.slane %v1277, %v1290
      %v1292 = vcombine.low %v1237, %v1249
      %v1293 = vcombine.high %v1237, %v1249
      %v1295 = vunpack.c.l.s4 1983009808
      %v1296 = vunpack.c.0.s8 %v1295
      %v1297 = vlaneseq
      %v1298 = vshrl.u32 %v1297, 7
      %v1299 = vsub.s32 %v1296, %v1298
      %v1300 = vrot.slane %v1292, %v1299
      %v1302 = vunpack.c.l.s4 1983009808
      %v1303 = vunpack.c.0.s8 %v1302
      %v1304 = vlaneseq
      %v1305 = vshrl.u32 %v1304, 7
      %v1306 = vsub.s32 %v1303, %v1305
      %v1307 = vrot.slane %v1293, %v1306
      %v1308 = vcombine.low %v1243, %v1255
      %v1309 = vcombine.high %v1243, %v1255
      %v1311 = vunpack.c.l.s4 1983009808
      %v1312 = vunpack.c.0.s8 %v1311
      %v1313 = vlaneseq
      %v1314 = vshrl.u32 %v1313, 7
      %v1315 = vsub.s32 %v1312, %v1314
      %v1316 = vrot.slane %v1308, %v1315
      %v1318 = vunpack.c.l.s4 1983009808
      %v1319 = vunpack.c.0.s8 %v1318
      %v1320 = vlaneseq
      %v1321 = vshrl.u32 %v1320, 7
      %v1322 = vsub.s32 %v1319, %v1321
      %v1323 = vrot.slane %v1309, %v1322
      %v1324 = vcombine.low %v1268, %v1284
      %v1325 = vcombine.high %v1268, %v1284
      %v1327 = vunpack.c.l.s4 1934713408
      %v1328 = vunpack.c.0.s8 %v1327
      %v1329 = vlaneseq
      %v1330 = vshrl.u32 %v1329, 7
      %v1331 = vsub.s32 %v1328, %v1330
      %v1332 = vrot.slane %v1324, %v1331
      %v1334 = vunpack.c.l.s4 1934713408
      %v1335 = vunpack.c.0.s8 %v1334
      %v1336 = vlaneseq
      %v1337 = vshrl.u32 %v1336, 7
      %v1338 = vsub.s32 %v1335, %v1337
      %v1339 = vrot.slane %v1325, %v1338
      %v1340 = vcombine.low %v1275, %v1291
      %v1341 = vcombine.high %v1275, %v1291
      %v1343 = vunpack.c.l.s4 1934713408
      %v1344 = vunpack.c.0.s8 %v1343
      %v1345 = vlaneseq
      %v1346 = vshrl.u32 %v1345, 7
      %v1347 = vsub.s32 %v1344, %v1346
      %v1348 = vrot.slane %v1340, %v1347
      %v1350 = vunpack.c.l.s4 1934713408
      %v1351 = vunpack.c.0.s8 %v1350
      %v1352 = vlaneseq
      %v1353 = vshrl.u32 %v1352, 7
      %v1354 = vsub.s32 %v1351, %v1353
      %v1355 = vrot.slane %v1341, %v1354
      %v1356 = vcombine.low %v1300, %v1316
      %v1357 = vcombine.high %v1300, %v1316
      %v1359 = vunpack.c.l.s4 1934713408
      %v1360 = vunpack.c.0.s8 %v1359
      %v1361 = vlaneseq
      %v1362 = vshrl.u32 %v1361, 7
      %v1363 = vsub.s32 %v1360, %v1362
      %v1364 = vrot.slane %v1356, %v1363
      %v1366 = vunpack.c.l.s4 1934713408
      %v1367 = vunpack.c.0.s8 %v1366
      %v1368 = vlaneseq
      %v1369 = vshrl.u32 %v1368, 7
      %v1370 = vsub.s32 %v1367, %v1369
      %v1371 = vrot.slane %v1357, %v1370
      %v1372 = vcombine.low %v1307, %v1323
      %v1373 = vcombine.high %v1307, %v1323
      %v1375 = vunpack.c.l.s4 1934713408
      %v1376 = vunpack.c.0.s8 %v1375
      %v1377 = vlaneseq
      %v1378 = vshrl.u32 %v1377, 7
      %v1379 = vsub.s32 %v1376, %v1378
      %v1380 = vrot.slane %v1372, %v1379
      %v1382 = vunpack.c.l.s4 1934713408
      %v1383 = vunpack.c.0.s8 %v1382
      %v1384 = vlaneseq
      %v1385 = vshrl.u32 %v1384, 7
      %v1386 = vsub.s32 %v1383, %v1385
      %v1387 = vrot.slane %v1373, %v1386
      %v1388 = vcombine.low %v1332, %v1364
      %v1389 = vcombine.high %v1332, %v1364
      %v1390 = vcombine.low %v1339, %v1371
      %v1391 = vcombine.high %v1339, %v1371
      %v1392 = vcombine.low %v1348, %v1380
      %v1393 = vcombine.high %v1348, %v1380
      %v1394 = vcombine.low %v1355, %v1387
      %v1395 = vcombine.high %v1355, %v1387
      %v1396 = vcombine.low %v575, %v1227
      %v1397 = vcombine.high %v575, %v1227
      %v1399 = vunpack.c.l.s4 1983009808
      %v1400 = vunpack.c.0.s8 %v1399
      %v1401 = vlaneseq
      %v1402 = vshrl.u32 %v1401, 7
      %v1403 = vsub.s32 %v1400, %v1402
      %v1404 = vrot.slane %v1396, %v1403
      %v1406 = vunpack.c.l.s4 1983009808
      %v1407 = vunpack.c.0.s8 %v1406
      %v1408 = vlaneseq
      %v1409 = vshrl.u32 %v1408, 7
      %v1410 = vsub.s32 %v1407, %v1409
      %v1411 = vrot.slane %v1397, %v1410
      %v1412 = vcombine.low %v1221, %v1233
      %v1413 = vcombine.high %v1221, %v1233
      %v1415 = vunpack.c.l.s4 1983009808
      %v1416 = vunpack.c.0.s8 %v1415
      %v1417 = vlaneseq
      %v1418 = vshrl.u32 %v1417, 7
      %v1419 = vsub.s32 %v1416, %v1418
      %v1420 = vrot.slane %v1412, %v1419
      %v1422 = vunpack.c.l.s4 1983009808
      %v1423 = vunpack.c.0.s8 %v1422
      %v1424 = vlaneseq
      %v1425 = vshrl.u32 %v1424, 7
      %v1426 = vsub.s32 %v1423, %v1425
      %v1427 = vrot.slane %v1413, %v1426
      %v1428 = vcombine.low %v1239, %v1251
      %v1429 = vcombine.high %v1239, %v1251
      %v1431 = vunpack.c.l.s4 1983009808
      %v1432 = vunpack.c.0.s8 %v1431
      %v1433 = vlaneseq
      %v1434 = vshrl.u32 %v1433, 7
      %v1435 = vsub.s32 %v1432, %v1434
      %v1436 = vrot.slane %v1428, %v1435
      %v1438 = vunpack.c.l.s4 1983009808
      %v1439 = vunpack.c.0.s8 %v1438
      %v1440 = vlaneseq
      %v1441 = vshrl.u32 %v1440, 7
      %v1442 = vsub.s32 %v1439, %v1441
      %v1443 = vrot.slane %v1429, %v1442
      %v1444 = vcombine.low %v1245, %v1257
      %v1445 = vcombine.high %v1245, %v1257
      %v1447 = vunpack.c.l.s4 1983009808
      %v1448 = vunpack.c.0.s8 %v1447
      %v1449 = vlaneseq
      %v1450 = vshrl.u32 %v1449, 7
      %v1451 = vsub.s32 %v1448, %v1450
      %v1452 = vrot.slane %v1444, %v1451
      %v1454 = vunpack.c.l.s4 1983009808
      %v1455 = vunpack.c.0.s8 %v1454
      %v1456 = vlaneseq
      %v1457 = vshrl.u32 %v1456, 7
      %v1458 = vsub.s32 %v1455, %v1457
      %v1459 = vrot.slane %v1445, %v1458
      %v1460 = vcombine.low %v1404, %v1420
      %v1461 = vcombine.high %v1404, %v1420
      %v1463 = vunpack.c.l.s4 1934713408
      %v1464 = vunpack.c.0.s8 %v1463
      %v1465 = vlaneseq
      %v1466 = vshrl.u32 %v1465, 7
      %v1467 = vsub.s32 %v1464, %v1466
      %v1468 = vrot.slane %v1460, %v1467
      %v1470 = vunpack.c.l.s4 1934713408
      %v1471 = vunpack.c.0.s8 %v1470
      %v1472 = vlaneseq
      %v1473 = vshrl.u32 %v1472, 7
      %v1474 = vsub.s32 %v1471, %v1473
      %v1475 = vrot.slane %v1461, %v1474
      %v1476 = vcombine.low %v1411, %v1427
      %v1477 = vcombine.high %v1411, %v1427
      %v1479 = vunpack.c.l.s4 1934713408
      %v1480 = vunpack.c.0.s8 %v1479
      %v1481 = vlaneseq
      %v1482 = vshrl.u32 %v1481, 7
      %v1483 = vsub.s32 %v1480, %v1482
      %v1484 = vrot.slane %v1476, %v1483
      %v1486 = vunpack.c.l.s4 1934713408
      %v1487 = vunpack.c.0.s8 %v1486
      %v1488 = vlaneseq
      %v1489 = vshrl.u32 %v1488, 7
      %v1490 = vsub.s32 %v1487, %v1489
      %v1491 = vrot.slane %v1477, %v1490
      %v1492 = vcombine.low %v1436, %v1452
      %v1493 = vcombine.high %v1436, %v1452
      %v1495 = vunpack.c.l.s4 1934713408
      %v1496 = vunpack.c.0.s8 %v1495
      %v1497 = vlaneseq
      %v1498 = vshrl.u32 %v1497, 7
      %v1499 = vsub.s32 %v1496, %v1498
      %v1500 = vrot.slane %v1492, %v1499
      %v1502 = vunpack.c.l.s4 1934713408
      %v1503 = vunpack.c.0.s8 %v1502
      %v1504 = vlaneseq
      %v1505 = vshrl.u32 %v1504, 7
      %v1506 = vsub.s32 %v1503, %v1505
      %v1507 = vrot.slane %v1493, %v1506
      %v1508 = vcombine.low %v1443, %v1459
      %v1509 = vcombine.high %v1443, %v1459
      %v1511 = vunpack.c.l.s4 1934713408
      %v1512 = vunpack.c.0.s8 %v1511
      %v1513 = vlaneseq
      %v1514 = vshrl.u32 %v1513, 7
      %v1515 = vsub.s32 %v1512, %v1514
      %v1516 = vrot.slane %v1508, %v1515
      %v1518 = vunpack.c.l.s4 1934713408
      %v1519 = vunpack.c.0.s8 %v1518
      %v1520 = vlaneseq
      %v1521 = vshrl.u32 %v1520, 7
      %v1522 = vsub.s32 %v1519, %v1521
      %v1523 = vrot.slane %v1509, %v1522
      %v1524 = vcombine.low %v1468, %v1500
      %v1525 = vcombine.high %v1468, %v1500
      %v1526 = vcombine.low %v1475, %v1507
      %v1527 = vcombine.high %v1475, %v1507
      %v1528 = vcombine.low %v1484, %v1516
      %v1529 = vcombine.high %v1484, %v1516
      %v1530 = vcombine.low %v1491, %v1523
      %v1531 = vcombine.high %v1491, %v1523
      %v1532 = vcombine.low %v1388, %v1390
      %v1533 = vcombine.high %v1388, %v1390
      %v1535 = vunpack.c.l.s4 1983009808
      %v1536 = vunpack.c.0.s8 %v1535
      %v1537 = vlaneseq
      %v1538 = vshrl.u32 %v1537, 7
      %v1539 = vsub.s32 %v1536, %v1538
      %v1540 = vrot.slane %v1532, %v1539
      %v1542 = vunpack.c.l.s4 1983009808
      %v1543 = vunpack.c.0.s8 %v1542
      %v1544 = vlaneseq
      %v1545 = vshrl.u32 %v1544, 7
      %v1546 = vsub.s32 %v1543, %v1545
      %v1547 = vrot.slane %v1533, %v1546
      %v1548 = vcombine.low %v1389, %v1391
      %v1549 = vcombine.high %v1389, %v1391
      %v1551 = vunpack.c.l.s4 1983009808
      %v1552 = vunpack.c.0.s8 %v1551
      %v1553 = vlaneseq
      %v1554 = vshrl.u32 %v1553, 7
      %v1555 = vsub.s32 %v1552, %v1554
      %v1556 = vrot.slane %v1548, %v1555
      %v1558 = vunpack.c.l.s4 1983009808
      %v1559 = vunpack.c.0.s8 %v1558
      %v1560 = vlaneseq
      %v1561 = vshrl.u32 %v1560, 7
      %v1562 = vsub.s32 %v1559, %v1561
      %v1563 = vrot.slane %v1549, %v1562
      %v1564 = vcombine.low %v1392, %v1394
      %v1565 = vcombine.high %v1392, %v1394
      %v1567 = vunpack.c.l.s4 1983009808
      %v1568 = vunpack.c.0.s8 %v1567
      %v1569 = vlaneseq
      %v1570 = vshrl.u32 %v1569, 7
      %v1571 = vsub.s32 %v1568, %v1570
      %v1572 = vrot.slane %v1564, %v1571
      %v1574 = vunpack.c.l.s4 1983009808
      %v1575 = vunpack.c.0.s8 %v1574
      %v1576 = vlaneseq
      %v1577 = vshrl.u32 %v1576, 7
      %v1578 = vsub.s32 %v1575, %v1577
      %v1579 = vrot.slane %v1565, %v1578
      %v1580 = vcombine.low %v1393, %v1395
      %v1581 = vcombine.high %v1393, %v1395
      %v1583 = vunpack.c.l.s4 1983009808
      %v1584 = vunpack.c.0.s8 %v1583
      %v1585 = vlaneseq
      %v1586 = vshrl.u32 %v1585, 7
      %v1587 = vsub.s32 %v1584, %v1586
      %v1588 = vrot.slane %v1580, %v1587
      %v1590 = vunpack.c.l.s4 1983009808
      %v1591 = vunpack.c.0.s8 %v1590
      %v1592 = vlaneseq
      %v1593 = vshrl.u32 %v1592, 7
      %v1594 = vsub.s32 %v1591, %v1593
      %v1595 = vrot.slane %v1581, %v1594
      %v1596 = vcombine.low %v1540, %v1556
      %v1597 = vcombine.high %v1540, %v1556
      %v1599 = vunpack.c.l.s4 1934713408
      %v1600 = vunpack.c.0.s8 %v1599
      %v1601 = vlaneseq
      %v1602 = vshrl.u32 %v1601, 7
      %v1603 = vsub.s32 %v1600, %v1602
      %v1604 = vrot.slane %v1596, %v1603
      %v1606 = vunpack.c.l.s4 1934713408
      %v1607 = vunpack.c.0.s8 %v1606
      %v1608 = vlaneseq
      %v1609 = vshrl.u32 %v1608, 7
      %v1610 = vsub.s32 %v1607, %v1609
      %v1611 = vrot.slane %v1597, %v1610
      %v1612 = vcombine.low %v1547, %v1563
      %v1613 = vcombine.high %v1547, %v1563
      %v1615 = vunpack.c.l.s4 1934713408
      %v1616 = vunpack.c.0.s8 %v1615
      %v1617 = vlaneseq
      %v1618 = vshrl.u32 %v1617, 7
      %v1619 = vsub.s32 %v1616, %v1618
      %v1620 = vrot.slane %v1612, %v1619
      %v1622 = vunpack.c.l.s4 1934713408
      %v1623 = vunpack.c.0.s8 %v1622
      %v1624 = vlaneseq
      %v1625 = vshrl.u32 %v1624, 7
      %v1626 = vsub.s32 %v1623, %v1625
      %v1627 = vrot.slane %v1613, %v1626
      %v1628 = vcombine.low %v1572, %v1588
      %v1629 = vcombine.high %v1572, %v1588
      %v1631 = vunpack.c.l.s4 1934713408
      %v1632 = vunpack.c.0.s8 %v1631
      %v1633 = vlaneseq
      %v1634 = vshrl.u32 %v1633, 7
      %v1635 = vsub.s32 %v1632, %v1634
      %v1636 = vrot.slane %v1628, %v1635
      %v1638 = vunpack.c.l.s4 1934713408
      %v1639 = vunpack.c.0.s8 %v1638
      %v1640 = vlaneseq
      %v1641 = vshrl.u32 %v1640, 7
      %v1642 = vsub.s32 %v1639, %v1641
      %v1643 = vrot.slane %v1629, %v1642
      %v1644 = vcombine.low %v1579, %v1595
      %v1645 = vcombine.high %v1579, %v1595
      %v1647 = vunpack.c.l.s4 1934713408
      %v1648 = vunpack.c.0.s8 %v1647
      %v1649 = vlaneseq
      %v1650 = vshrl.u32 %v1649, 7
      %v1651 = vsub.s32 %v1648, %v1650
      %v1652 = vrot.slane %v1644, %v1651
      %v1654 = vunpack.c.l.s4 1934713408
      %v1655 = vunpack.c.0.s8 %v1654
      %v1656 = vlaneseq
      %v1657 = vshrl.u32 %v1656, 7
      %v1658 = vsub.s32 %v1655, %v1657
      %v1659 = vrot.slane %v1645, %v1658
      %v1660 = vcombine.low %v1604, %v1636
      %v1661 = vcombine.high %v1604, %v1636
      %v1662 = vcombine.low %v1611, %v1643
      %v1663 = vcombine.high %v1611, %v1643
      %v1664 = vcombine.low %v1620, %v1652
      %v1665 = vcombine.high %v1620, %v1652
      %v1666 = vcombine.low %v1627, %v1659
      %v1667 = vcombine.high %v1627, %v1659
      %v1668 = vcombine.low %v1524, %v1526
      %v1669 = vcombine.high %v1524, %v1526
      %v1671 = vunpack.c.l.s4 1983009808
      %v1672 = vunpack.c.0.s8 %v1671
      %v1673 = vlaneseq
      %v1674 = vshrl.u32 %v1673, 7
      %v1675 = vsub.s32 %v1672, %v1674
      %v1676 = vrot.slane %v1668, %v1675
      %v1678 = vunpack.c.l.s4 1983009808
      %v1679 = vunpack.c.0.s8 %v1678
      %v1680 = vlaneseq
      %v1681 = vshrl.u32 %v1680, 7
      %v1682 = vsub.s32 %v1679, %v1681
      %v1683 = vrot.slane %v1669, %v1682
      %v1684 = vcombine.low %v1525, %v1527
      %v1685 = vcombine.high %v1525, %v1527
      %v1687 = vunpack.c.l.s4 1983009808
      %v1688 = vunpack.c.0.s8 %v1687
      %v1689 = vlaneseq
      %v1690 = vshrl.u32 %v1689, 7
      %v1691 = vsub.s32 %v1688, %v1690
      %v1692 = vrot.slane %v1684, %v1691
      %v1694 = vunpack.c.l.s4 1983009808
      %v1695 = vunpack.c.0.s8 %v1694
      %v1696 = vlaneseq
      %v1697 = vshrl.u32 %v1696, 7
      %v1698 = vsub.s32 %v1695, %v1697
      %v1699 = vrot.slane %v1685, %v1698
      %v1700 = vcombine.low %v1528, %v1530
      %v1701 = vcombine.high %v1528, %v1530
      %v1703 = vunpack.c.l.s4 1983009808
      %v1704 = vunpack.c.0.s8 %v1703
      %v1705 = vlaneseq
      %v1706 = vshrl.u32 %v1705, 7
      %v1707 = vsub.s32 %v1704, %v1706
      %v1708 = vrot.slane %v1700, %v1707
      %v1710 = vunpack.c.l.s4 1983009808
      %v1711 = vunpack.c.0.s8 %v1710
      %v1712 = vlaneseq
      %v1713 = vshrl.u32 %v1712, 7
      %v1714 = vsub.s32 %v1711, %v1713
      %v1715 = vrot.slane %v1701, %v1714
      %v1716 = vcombine.low %v1529, %v1531
      %v1717 = vcombine.high %v1529, %v1531
      %v1719 = vunpack.c.l.s4 1983009808
      %v1720 = vunpack.c.0.s8 %v1719
      %v1721 = vlaneseq
      %v1722 = vshrl.u32 %v1721, 7
      %v1723 = vsub.s32 %v1720, %v1722
      %v1724 = vrot.slane %v1716, %v1723
      %v1726 = vunpack.c.l.s4 1983009808
      %v1727 = vunpack.c.0.s8 %v1726
      %v1728 = vlaneseq
      %v1729 = vshrl.u32 %v1728, 7
      %v1730 = vsub.s32 %v1727, %v1729
      %v1731 = vrot.slane %v1717, %v1730
      %v1732 = vcombine.low %v1676, %v1692
      %v1733 = vcombine.high %v1676, %v1692
      %v1735 = vunpack.c.l.s4 1934713408
      %v1736 = vunpack.c.0.s8 %v1735
      %v1737 = vlaneseq
      %v1738 = vshrl.u32 %v1737, 7
      %v1739 = vsub.s32 %v1736, %v1738
      %v1740 = vrot.slane %v1732, %v1739
      %v1742 = vunpack.c.l.s4 1934713408
      %v1743 = vunpack.c.0.s8 %v1742
      %v1744 = vlaneseq
      %v1745 = vshrl.u32 %v1744, 7
      %v1746 = vsub.s32 %v1743, %v1745
      %v1747 = vrot.slane %v1733, %v1746
      %v1748 = vcombine.low %v1683, %v1699
      %v1749 = vcombine.high %v1683, %v1699
      %v1751 = vunpack.c.l.s4 1934713408
      %v1752 = vunpack.c.0.s8 %v1751
      %v1753 = vlaneseq
      %v1754 = vshrl.u32 %v1753, 7
      %v1755 = vsub.s32 %v1752, %v1754
      %v1756 = vrot.slane %v1748, %v1755
      %v1758 = vunpack.c.l.s4 1934713408
      %v1759 = vunpack.c.0.s8 %v1758
      %v1760 = vlaneseq
      %v1761 = vshrl.u32 %v1760, 7
      %v1762 = vsub.s32 %v1759, %v1761
      %v1763 = vrot.slane %v1749, %v1762
      %v1764 = vcombine.low %v1708, %v1724
      %v1765 = vcombine.high %v1708, %v1724
      %v1767 = vunpack.c.l.s4 1934713408
      %v1768 = vunpack.c.0.s8 %v1767
      %v1769 = vlaneseq
      %v1770 = vshrl.u32 %v1769, 7
      %v1771 = vsub.s32 %v1768, %v1770
      %v1772 = vrot.slane %v1764, %v1771
      %v1774 = vunpack.c.l.s4 1934713408
      %v1775 = vunpack.c.0.s8 %v1774
      %v1776 = vlaneseq
      %v1777 = vshrl.u32 %v1776, 7
      %v1778 = vsub.s32 %v1775, %v1777
      %v1779 = vrot.slane %v1765, %v1778
      %v1780 = vcombine.low %v1715, %v1731
      %v1781 = vcombine.high %v1715, %v1731
      %v1783 = vunpack.c.l.s4 1934713408
      %v1784 = vunpack.c.0.s8 %v1783
      %v1785 = vlaneseq
      %v1786 = vshrl.u32 %v1785, 7
      %v1787 = vsub.s32 %v1784, %v1786
      %v1788 = vrot.slane %v1780, %v1787
      %v1790 = vunpack.c.l.s4 1934713408
      %v1791 = vunpack.c.0.s8 %v1790
      %v1792 = vlaneseq
      %v1793 = vshrl.u32 %v1792, 7
      %v1794 = vsub.s32 %v1791, %v1793
      %v1795 = vrot.slane %v1781, %v1794
      %v1796 = vcombine.low %v1740, %v1772
      %v1797 = vcombine.high %v1740, %v1772
      %v1798 = vcombine.low %v1747, %v1779
      %v1799 = vcombine.high %v1747, %v1779
      %v1800 = vcombine.low %v1756, %v1788
      %v1801 = vcombine.high %v1756, %v1788
      %v1802 = vcombine.low %v1763, %v1795
      %v1803 = vcombine.high %v1763, %v1795
      %v1804 = vpack.c.bf16 %v1796, %v1660
      %v1805 = vpack.c.bf16 %v1797, %v1661
      %v1806 = vpack.c.bf16 %v1798, %v1662
      %v1807 = vpack.c.bf16 %v1799, %v1663
      %v1808 = vpack.c.bf16 %v1800, %v1664
      %v1809 = vpack.c.bf16 %v1801, %v1665
      %v1810 = vpack.c.bf16 %v1802, %v1666
      %v1811 = vpack.c.bf16 %v1803, %v1667
      %1814 = vrot.lane.b32.xlu0 %v612, 112
      %v1815 = vpop.permute.xlu0 %1814
      %1816 = vrot.lane.b32.xlu0 %v615, 112
      %v1817 = vpop.permute.xlu0 %1816
      %1820 = vrot.lane.b32.xlu0 %v612, 96
      %v1821 = vpop.permute.xlu0 %1820
      %1822 = vrot.lane.b32.xlu0 %v615, 96
      %v1823 = vpop.permute.xlu0 %1822
      %1826 = vrot.lane.b32.xlu0 %v612, 80
      %v1827 = vpop.permute.xlu0 %1826
      %1828 = vrot.lane.b32.xlu0 %v615, 80
      %v1829 = vpop.permute.xlu0 %1828
      %1832 = vrot.lane.b32.xlu0 %v612, 64
      %v1833 = vpop.permute.xlu0 %1832
      %1834 = vrot.lane.b32.xlu0 %v615, 64
      %v1835 = vpop.permute.xlu0 %1834
      %1838 = vrot.lane.b32.xlu0 %v612, 48
      %v1839 = vpop.permute.xlu0 %1838
      %1840 = vrot.lane.b32.xlu0 %v615, 48
      %v1841 = vpop.permute.xlu0 %1840
      %1844 = vrot.lane.b32.xlu0 %v612, 32
      %v1845 = vpop.permute.xlu0 %1844
      %1846 = vrot.lane.b32.xlu0 %v615, 32
      %v1847 = vpop.permute.xlu0 %1846
      %1850 = vrot.lane.b32.xlu0 %v612, 16
      %v1851 = vpop.permute.xlu0 %1850
      %1852 = vrot.lane.b32.xlu0 %v615, 16
      %v1853 = vpop.permute.xlu0 %1852
      %v1856 = vcombine.low %v612, %v1821
      %v1857 = vcombine.high %v612, %v1821
      %v1859 = vunpack.c.l.s4 1983009808
      %v1860 = vunpack.c.0.s8 %v1859
      %v1861 = vlaneseq
      %v1862 = vshrl.u32 %v1861, 7
      %v1863 = vsub.s32 %v1860, %v1862
      %v1864 = vrot.slane %v1856, %v1863
      %v1866 = vunpack.c.l.s4 1983009808
      %v1867 = vunpack.c.0.s8 %v1866
      %v1868 = vlaneseq
      %v1869 = vshrl.u32 %v1868, 7
      %v1870 = vsub.s32 %v1867, %v1869
      %v1871 = vrot.slane %v1857, %v1870
      %v1872 = vcombine.low %v1815, %v1827
      %v1873 = vcombine.high %v1815, %v1827
      %v1875 = vunpack.c.l.s4 1983009808
      %v1876 = vunpack.c.0.s8 %v1875
      %v1877 = vlaneseq
      %v1878 = vshrl.u32 %v1877, 7
      %v1879 = vsub.s32 %v1876, %v1878
      %v1880 = vrot.slane %v1872, %v1879
      %v1882 = vunpack.c.l.s4 1983009808
      %v1883 = vunpack.c.0.s8 %v1882
      %v1884 = vlaneseq
      %v1885 = vshrl.u32 %v1884, 7
      %v1886 = vsub.s32 %v1883, %v1885
      %v1887 = vrot.slane %v1873, %v1886
      %v1888 = vcombine.low %v1833, %v1845
      %v1889 = vcombine.high %v1833, %v1845
      %v1891 = vunpack.c.l.s4 1983009808
      %v1892 = vunpack.c.0.s8 %v1891
      %v1893 = vlaneseq
      %v1894 = vshrl.u32 %v1893, 7
      %v1895 = vsub.s32 %v1892, %v1894
      %v1896 = vrot.slane %v1888, %v1895
      %v1898 = vunpack.c.l.s4 1983009808
      %v1899 = vunpack.c.0.s8 %v1898
      %v1900 = vlaneseq
      %v1901 = vshrl.u32 %v1900, 7
      %v1902 = vsub.s32 %v1899, %v1901
      %v1903 = vrot.slane %v1889, %v1902
      %v1904 = vcombine.low %v1839, %v1851
      %v1905 = vcombine.high %v1839, %v1851
      %v1907 = vunpack.c.l.s4 1983009808
      %v1908 = vunpack.c.0.s8 %v1907
      %v1909 = vlaneseq
      %v1910 = vshrl.u32 %v1909, 7
      %v1911 = vsub.s32 %v1908, %v1910
      %v1912 = vrot.slane %v1904, %v1911
      %v1914 = vunpack.c.l.s4 1983009808
      %v1915 = vunpack.c.0.s8 %v1914
      %v1916 = vlaneseq
      %v1917 = vshrl.u32 %v1916, 7
      %v1918 = vsub.s32 %v1915, %v1917
      %v1919 = vrot.slane %v1905, %v1918
      %v1920 = vcombine.low %v1864, %v1880
      %v1921 = vcombine.high %v1864, %v1880
      %v1923 = vunpack.c.l.s4 1934713408
      %v1924 = vunpack.c.0.s8 %v1923
      %v1925 = vlaneseq
      %v1926 = vshrl.u32 %v1925, 7
      %v1927 = vsub.s32 %v1924, %v1926
      %v1928 = vrot.slane %v1920, %v1927
      %v1930 = vunpack.c.l.s4 1934713408
      %v1931 = vunpack.c.0.s8 %v1930
      %v1932 = vlaneseq
      %v1933 = vshrl.u32 %v1932, 7
      %v1934 = vsub.s32 %v1931, %v1933
      %v1935 = vrot.slane %v1921, %v1934
      %v1936 = vcombine.low %v1871, %v1887
      %v1937 = vcombine.high %v1871, %v1887
      %v1939 = vunpack.c.l.s4 1934713408
      %v1940 = vunpack.c.0.s8 %v1939
      %v1941 = vlaneseq
      %v1942 = vshrl.u32 %v1941, 7
      %v1943 = vsub.s32 %v1940, %v1942
      %v1944 = vrot.slane %v1936, %v1943
      %v1946 = vunpack.c.l.s4 1934713408
      %v1947 = vunpack.c.0.s8 %v1946
      %v1948 = vlaneseq
      %v1949 = vshrl.u32 %v1948, 7
      %v1950 = vsub.s32 %v1947, %v1949
      %v1951 = vrot.slane %v1937, %v1950
      %v1952 = vcombine.low %v1896, %v1912
      %v1953 = vcombine.high %v1896, %v1912
      %v1955 = vunpack.c.l.s4 1934713408
      %v1956 = vunpack.c.0.s8 %v1955
      %v1957 = vlaneseq
      %v1958 = vshrl.u32 %v1957, 7
      %v1959 = vsub.s32 %v1956, %v1958
      %v1960 = vrot.slane %v1952, %v1959
      %v1962 = vunpack.c.l.s4 1934713408
      %v1963 = vunpack.c.0.s8 %v1962
      %v1964 = vlaneseq
      %v1965 = vshrl.u32 %v1964, 7
      %v1966 = vsub.s32 %v1963, %v1965
      %v1967 = vrot.slane %v1953, %v1966
      %v1968 = vcombine.low %v1903, %v1919
      %v1969 = vcombine.high %v1903, %v1919
      %v1971 = vunpack.c.l.s4 1934713408
      %v1972 = vunpack.c.0.s8 %v1971
      %v1973 = vlaneseq
      %v1974 = vshrl.u32 %v1973, 7
      %v1975 = vsub.s32 %v1972, %v1974
      %v1976 = vrot.slane %v1968, %v1975
      %v1978 = vunpack.c.l.s4 1934713408
      %v1979 = vunpack.c.0.s8 %v1978
      %v1980 = vlaneseq
      %v1981 = vshrl.u32 %v1980, 7
      %v1982 = vsub.s32 %v1979, %v1981
      %v1983 = vrot.slane %v1969, %v1982
      %v1984 = vcombine.low %v1928, %v1960
      %v1985 = vcombine.high %v1928, %v1960
      %v1986 = vcombine.low %v1935, %v1967
      %v1987 = vcombine.high %v1935, %v1967
      %v1988 = vcombine.low %v1944, %v1976
      %v1989 = vcombine.high %v1944, %v1976
      %v1990 = vcombine.low %v1951, %v1983
      %v1991 = vcombine.high %v1951, %v1983
      %v1992 = vcombine.low %v615, %v1823
      %v1993 = vcombine.high %v615, %v1823
      %v1995 = vunpack.c.l.s4 1983009808
      %v1996 = vunpack.c.0.s8 %v1995
      %v1997 = vlaneseq
      %v1998 = vshrl.u32 %v1997, 7
      %v1999 = vsub.s32 %v1996, %v1998
      %v2000 = vrot.slane %v1992, %v1999
      %v2002 = vunpack.c.l.s4 1983009808
      %v2003 = vunpack.c.0.s8 %v2002
      %v2004 = vlaneseq
      %v2005 = vshrl.u32 %v2004, 7
      %v2006 = vsub.s32 %v2003, %v2005
      %v2007 = vrot.slane %v1993, %v2006
      %v2008 = vcombine.low %v1817, %v1829
      %v2009 = vcombine.high %v1817, %v1829
      %v2011 = vunpack.c.l.s4 1983009808
      %v2012 = vunpack.c.0.s8 %v2011
      %v2013 = vlaneseq
      %v2014 = vshrl.u32 %v2013, 7
      %v2015 = vsub.s32 %v2012, %v2014
      %v2016 = vrot.slane %v2008, %v2015
      %v2018 = vunpack.c.l.s4 1983009808
      %v2019 = vunpack.c.0.s8 %v2018
      %v2020 = vlaneseq
      %v2021 = vshrl.u32 %v2020, 7
      %v2022 = vsub.s32 %v2019, %v2021
      %v2023 = vrot.slane %v2009, %v2022
      %v2024 = vcombine.low %v1835, %v1847
      %v2025 = vcombine.high %v1835, %v1847
      %v2027 = vunpack.c.l.s4 1983009808
      %v2028 = vunpack.c.0.s8 %v2027
      %v2029 = vlaneseq
      %v2030 = vshrl.u32 %v2029, 7
      %v2031 = vsub.s32 %v2028, %v2030
      %v2032 = vrot.slane %v2024, %v2031
      %v2034 = vunpack.c.l.s4 1983009808
      %v2035 = vunpack.c.0.s8 %v2034
      %v2036 = vlaneseq
      %v2037 = vshrl.u32 %v2036, 7
      %v2038 = vsub.s32 %v2035, %v2037
      %v2039 = vrot.slane %v2025, %v2038
      %v2040 = vcombine.low %v1841, %v1853
      %v2041 = vcombine.high %v1841, %v1853
      %v2043 = vunpack.c.l.s4 1983009808
      %v2044 = vunpack.c.0.s8 %v2043
      %v2045 = vlaneseq
      %v2046 = vshrl.u32 %v2045, 7
      %v2047 = vsub.s32 %v2044, %v2046
      %v2048 = vrot.slane %v2040, %v2047
      %v2050 = vunpack.c.l.s4 1983009808
      %v2051 = vunpack.c.0.s8 %v2050
      %v2052 = vlaneseq
      %v2053 = vshrl.u32 %v2052, 7
      %v2054 = vsub.s32 %v2051, %v2053
      %v2055 = vrot.slane %v2041, %v2054
      %v2056 = vcombine.low %v2000, %v2016
      %v2057 = vcombine.high %v2000, %v2016
      %v2059 = vunpack.c.l.s4 1934713408
      %v2060 = vunpack.c.0.s8 %v2059
      %v2061 = vlaneseq
      %v2062 = vshrl.u32 %v2061, 7
      %v2063 = vsub.s32 %v2060, %v2062
      %v2064 = vrot.slane %v2056, %v2063
      %v2066 = vunpack.c.l.s4 1934713408
      %v2067 = vunpack.c.0.s8 %v2066
      %v2068 = vlaneseq
      %v2069 = vshrl.u32 %v2068, 7
      %v2070 = vsub.s32 %v2067, %v2069
      %v2071 = vrot.slane %v2057, %v2070
      %v2072 = vcombine.low %v2007, %v2023
      %v2073 = vcombine.high %v2007, %v2023
      %v2075 = vunpack.c.l.s4 1934713408
      %v2076 = vunpack.c.0.s8 %v2075
      %v2077 = vlaneseq
      %v2078 = vshrl.u32 %v2077, 7
      %v2079 = vsub.s32 %v2076, %v2078
      %v2080 = vrot.slane %v2072, %v2079
      %v2082 = vunpack.c.l.s4 1934713408
      %v2083 = vunpack.c.0.s8 %v2082
      %v2084 = vlaneseq
      %v2085 = vshrl.u32 %v2084, 7
      %v2086 = vsub.s32 %v2083, %v2085
      %v2087 = vrot.slane %v2073, %v2086
      %v2088 = vcombine.low %v2032, %v2048
      %v2089 = vcombine.high %v2032, %v2048
      %v2091 = vunpack.c.l.s4 1934713408
      %v2092 = vunpack.c.0.s8 %v2091
      %v2093 = vlaneseq
      %v2094 = vshrl.u32 %v2093, 7
      %v2095 = vsub.s32 %v2092, %v2094
      %v2096 = vrot.slane %v2088, %v2095
      %v2098 = vunpack.c.l.s4 1934713408
      %v2099 = vunpack.c.0.s8 %v2098
      %v2100 = vlaneseq
      %v2101 = vshrl.u32 %v2100, 7
      %v2102 = vsub.s32 %v2099, %v2101
      %v2103 = vrot.slane %v2089, %v2102
      %v2104 = vcombine.low %v2039, %v2055
      %v2105 = vcombine.high %v2039, %v2055
      %v2107 = vunpack.c.l.s4 1934713408
      %v2108 = vunpack.c.0.s8 %v2107
      %v2109 = vlaneseq
      %v2110 = vshrl.u32 %v2109, 7
      %v2111 = vsub.s32 %v2108, %v2110
      %v2112 = vrot.slane %v2104, %v2111
      %v2114 = vunpack.c.l.s4 1934713408
      %v2115 = vunpack.c.0.s8 %v2114
      %v2116 = vlaneseq
      %v2117 = vshrl.u32 %v2116, 7
      %v2118 = vsub.s32 %v2115, %v2117
      %v2119 = vrot.slane %v2105, %v2118
      %v2120 = vcombine.low %v2064, %v2096
      %v2121 = vcombine.high %v2064, %v2096
      %v2122 = vcombine.low %v2071, %v2103
      %v2123 = vcombine.high %v2071, %v2103
      %v2124 = vcombine.low %v2080, %v2112
      %v2125 = vcombine.high %v2080, %v2112
      %v2126 = vcombine.low %v2087, %v2119
      %v2127 = vcombine.high %v2087, %v2119
      %v2128 = vcombine.low %v1984, %v1986
      %v2129 = vcombine.high %v1984, %v1986
      %v2131 = vunpack.c.l.s4 1983009808
      %v2132 = vunpack.c.0.s8 %v2131
      %v2133 = vlaneseq
      %v2134 = vshrl.u32 %v2133, 7
      %v2135 = vsub.s32 %v2132, %v2134
      %v2136 = vrot.slane %v2128, %v2135
      %v2138 = vunpack.c.l.s4 1983009808
      %v2139 = vunpack.c.0.s8 %v2138
      %v2140 = vlaneseq
      %v2141 = vshrl.u32 %v2140, 7
      %v2142 = vsub.s32 %v2139, %v2141
      %v2143 = vrot.slane %v2129, %v2142
      %v2144 = vcombine.low %v1985, %v1987
      %v2145 = vcombine.high %v1985, %v1987
      %v2147 = vunpack.c.l.s4 1983009808
      %v2148 = vunpack.c.0.s8 %v2147
      %v2149 = vlaneseq
      %v2150 = vshrl.u32 %v2149, 7
      %v2151 = vsub.s32 %v2148, %v2150
      %v2152 = vrot.slane %v2144, %v2151
      %v2154 = vunpack.c.l.s4 1983009808
      %v2155 = vunpack.c.0.s8 %v2154
      %v2156 = vlaneseq
      %v2157 = vshrl.u32 %v2156, 7
      %v2158 = vsub.s32 %v2155, %v2157
      %v2159 = vrot.slane %v2145, %v2158
      %v2160 = vcombine.low %v1988, %v1990
      %v2161 = vcombine.high %v1988, %v1990
      %v2163 = vunpack.c.l.s4 1983009808
      %v2164 = vunpack.c.0.s8 %v2163
      %v2165 = vlaneseq
      %v2166 = vshrl.u32 %v2165, 7
      %v2167 = vsub.s32 %v2164, %v2166
      %v2168 = vrot.slane %v2160, %v2167
      %v2170 = vunpack.c.l.s4 1983009808
      %v2171 = vunpack.c.0.s8 %v2170
      %v2172 = vlaneseq
      %v2173 = vshrl.u32 %v2172, 7
      %v2174 = vsub.s32 %v2171, %v2173
      %v2175 = vrot.slane %v2161, %v2174
      %v2176 = vcombine.low %v1989, %v1991
      %v2177 = vcombine.high %v1989, %v1991
      %v2179 = vunpack.c.l.s4 1983009808
      %v2180 = vunpack.c.0.s8 %v2179
      %v2181 = vlaneseq
      %v2182 = vshrl.u32 %v2181, 7
      %v2183 = vsub.s32 %v2180, %v2182
      %v2184 = vrot.slane %v2176, %v2183
      %v2186 = vunpack.c.l.s4 1983009808
      %v2187 = vunpack.c.0.s8 %v2186
      %v2188 = vlaneseq
      %v2189 = vshrl.u32 %v2188, 7
      %v2190 = vsub.s32 %v2187, %v2189
      %v2191 = vrot.slane %v2177, %v2190
      %v2192 = vcombine.low %v2136, %v2152
      %v2193 = vcombine.high %v2136, %v2152
      %v2195 = vunpack.c.l.s4 1934713408
      %v2196 = vunpack.c.0.s8 %v2195
      %v2197 = vlaneseq
      %v2198 = vshrl.u32 %v2197, 7
      %v2199 = vsub.s32 %v2196, %v2198
      %v2200 = vrot.slane %v2192, %v2199
      %v2202 = vunpack.c.l.s4 1934713408
      %v2203 = vunpack.c.0.s8 %v2202
      %v2204 = vlaneseq
      %v2205 = vshrl.u32 %v2204, 7
      %v2206 = vsub.s32 %v2203, %v2205
      %v2207 = vrot.slane %v2193, %v2206
      %v2208 = vcombine.low %v2143, %v2159
      %v2209 = vcombine.high %v2143, %v2159
      %v2211 = vunpack.c.l.s4 1934713408
      %v2212 = vunpack.c.0.s8 %v2211
      %v2213 = vlaneseq
      %v2214 = vshrl.u32 %v2213, 7
      %v2215 = vsub.s32 %v2212, %v2214
      %v2216 = vrot.slane %v2208, %v2215
      %v2218 = vunpack.c.l.s4 1934713408
      %v2219 = vunpack.c.0.s8 %v2218
      %v2220 = vlaneseq
      %v2221 = vshrl.u32 %v2220, 7
      %v2222 = vsub.s32 %v2219, %v2221
      %v2223 = vrot.slane %v2209, %v2222
      %v2224 = vcombine.low %v2168, %v2184
      %v2225 = vcombine.high %v2168, %v2184
      %v2227 = vunpack.c.l.s4 1934713408
      %v2228 = vunpack.c.0.s8 %v2227
      %v2229 = vlaneseq
      %v2230 = vshrl.u32 %v2229, 7
      %v2231 = vsub.s32 %v2228, %v2230
      %v2232 = vrot.slane %v2224, %v2231
      %v2234 = vunpack.c.l.s4 1934713408
      %v2235 = vunpack.c.0.s8 %v2234
      %v2236 = vlaneseq
      %v2237 = vshrl.u32 %v2236, 7
      %v2238 = vsub.s32 %v2235, %v2237
      %v2239 = vrot.slane %v2225, %v2238
      %v2240 = vcombine.low %v2175, %v2191
      %v2241 = vcombine.high %v2175, %v2191
      %v2243 = vunpack.c.l.s4 1934713408
      %v2244 = vunpack.c.0.s8 %v2243
      %v2245 = vlaneseq
      %v2246 = vshrl.u32 %v2245, 7
      %v2247 = vsub.s32 %v2244, %v2246
      %v2248 = vrot.slane %v2240, %v2247
      %v2250 = vunpack.c.l.s4 1934713408
      %v2251 = vunpack.c.0.s8 %v2250
      %v2252 = vlaneseq
      %v2253 = vshrl.u32 %v2252, 7
      %v2254 = vsub.s32 %v2251, %v2253
      %v2255 = vrot.slane %v2241, %v2254
      %v2256 = vcombine.low %v2200, %v2232
      %v2257 = vcombine.high %v2200, %v2232
      %v2258 = vcombine.low %v2207, %v2239
      %v2259 = vcombine.high %v2207, %v2239
      %v2260 = vcombine.low %v2216, %v2248
      %v2261 = vcombine.high %v2216, %v2248
      %v2262 = vcombine.low %v2223, %v2255
      %v2263 = vcombine.high %v2223, %v2255
      %v2264 = vcombine.low %v2120, %v2122
      %v2265 = vcombine.high %v2120, %v2122
      %v2267 = vunpack.c.l.s4 1983009808
      %v2268 = vunpack.c.0.s8 %v2267
      %v2269 = vlaneseq
      %v2270 = vshrl.u32 %v2269, 7
      %v2271 = vsub.s32 %v2268, %v2270
      %v2272 = vrot.slane %v2264, %v2271
      %v2274 = vunpack.c.l.s4 1983009808
      %v2275 = vunpack.c.0.s8 %v2274
      %v2276 = vlaneseq
      %v2277 = vshrl.u32 %v2276, 7
      %v2278 = vsub.s32 %v2275, %v2277
      %v2279 = vrot.slane %v2265, %v2278
      %v2280 = vcombine.low %v2121, %v2123
      %v2281 = vcombine.high %v2121, %v2123
      %v2283 = vunpack.c.l.s4 1983009808
      %v2284 = vunpack.c.0.s8 %v2283
      %v2285 = vlaneseq
      %v2286 = vshrl.u32 %v2285, 7
      %v2287 = vsub.s32 %v2284, %v2286
      %v2288 = vrot.slane %v2280, %v2287
      %v2290 = vunpack.c.l.s4 1983009808
      %v2291 = vunpack.c.0.s8 %v2290
      %v2292 = vlaneseq
      %v2293 = vshrl.u32 %v2292, 7
      %v2294 = vsub.s32 %v2291, %v2293
      %v2295 = vrot.slane %v2281, %v2294
      %v2296 = vcombine.low %v2124, %v2126
      %v2297 = vcombine.high %v2124, %v2126
      %v2299 = vunpack.c.l.s4 1983009808
      %v2300 = vunpack.c.0.s8 %v2299
      %v2301 = vlaneseq
      %v2302 = vshrl.u32 %v2301, 7
      %v2303 = vsub.s32 %v2300, %v2302
      %v2304 = vrot.slane %v2296, %v2303
      %v2306 = vunpack.c.l.s4 1983009808
      %v2307 = vunpack.c.0.s8 %v2306
      %v2308 = vlaneseq
      %v2309 = vshrl.u32 %v2308, 7
      %v2310 = vsub.s32 %v2307, %v2309
      %v2311 = vrot.slane %v2297, %v2310
      %v2312 = vcombine.low %v2125, %v2127
      %v2313 = vcombine.high %v2125, %v2127
      %v2315 = vunpack.c.l.s4 1983009808
      %v2316 = vunpack.c.0.s8 %v2315
      %v2317 = vlaneseq
      %v2318 = vshrl.u32 %v2317, 7
      %v2319 = vsub.s32 %v2316, %v2318
      %v2320 = vrot.slane %v2312, %v2319
      %v2322 = vunpack.c.l.s4 1983009808
      %v2323 = vunpack.c.0.s8 %v2322
      %v2324 = vlaneseq
      %v2325 = vshrl.u32 %v2324, 7
      %v2326 = vsub.s32 %v2323, %v2325
      %v2327 = vrot.slane %v2313, %v2326
      %v2328 = vcombine.low %v2272, %v2288
      %v2329 = vcombine.high %v2272, %v2288
      %v2331 = vunpack.c.l.s4 1934713408
      %v2332 = vunpack.c.0.s8 %v2331
      %v2333 = vlaneseq
      %v2334 = vshrl.u32 %v2333, 7
      %v2335 = vsub.s32 %v2332, %v2334
      %v2336 = vrot.slane %v2328, %v2335
      %v2338 = vunpack.c.l.s4 1934713408
      %v2339 = vunpack.c.0.s8 %v2338
      %v2340 = vlaneseq
      %v2341 = vshrl.u32 %v2340, 7
      %v2342 = vsub.s32 %v2339, %v2341
      %v2343 = vrot.slane %v2329, %v2342
      %v2344 = vcombine.low %v2279, %v2295
      %v2345 = vcombine.high %v2279, %v2295
      %v2347 = vunpack.c.l.s4 1934713408
      %v2348 = vunpack.c.0.s8 %v2347
      %v2349 = vlaneseq
      %v2350 = vshrl.u32 %v2349, 7
      %v2351 = vsub.s32 %v2348, %v2350
      %v2352 = vrot.slane %v2344, %v2351
      %v2354 = vunpack.c.l.s4 1934713408
      %v2355 = vunpack.c.0.s8 %v2354
      %v2356 = vlaneseq
      %v2357 = vshrl.u32 %v2356, 7
      %v2358 = vsub.s32 %v2355, %v2357
      %v2359 = vrot.slane %v2345, %v2358
      %v2360 = vcombine.low %v2304, %v2320
      %v2361 = vcombine.high %v2304, %v2320
      %v2363 = vunpack.c.l.s4 1934713408
      %v2364 = vunpack.c.0.s8 %v2363
      %v2365 = vlaneseq
      %v2366 = vshrl.u32 %v2365, 7
      %v2367 = vsub.s32 %v2364, %v2366
      %v2368 = vrot.slane %v2360, %v2367
      %v2370 = vunpack.c.l.s4 1934713408
      %v2371 = vunpack.c.0.s8 %v2370
      %v2372 = vlaneseq
      %v2373 = vshrl.u32 %v2372, 7
      %v2374 = vsub.s32 %v2371, %v2373
      %v2375 = vrot.slane %v2361, %v2374
      %v2376 = vcombine.low %v2311, %v2327
      %v2377 = vcombine.high %v2311, %v2327
      %v2379 = vunpack.c.l.s4 1934713408
      %v2380 = vunpack.c.0.s8 %v2379
      %v2381 = vlaneseq
      %v2382 = vshrl.u32 %v2381, 7
      %v2383 = vsub.s32 %v2380, %v2382
      %v2384 = vrot.slane %v2376, %v2383
      %v2386 = vunpack.c.l.s4 1934713408
      %v2387 = vunpack.c.0.s8 %v2386
      %v2388 = vlaneseq
      %v2389 = vshrl.u32 %v2388, 7
      %v2390 = vsub.s32 %v2387, %v2389
      %v2391 = vrot.slane %v2377, %v2390
      %v2392 = vcombine.low %v2336, %v2368
      %v2393 = vcombine.high %v2336, %v2368
      %v2394 = vcombine.low %v2343, %v2375
      %v2395 = vcombine.high %v2343, %v2375
      %v2396 = vcombine.low %v2352, %v2384
      %v2397 = vcombine.high %v2352, %v2384
      %v2398 = vcombine.low %v2359, %v2391
      %v2399 = vcombine.high %v2359, %v2391
      %v2400 = vpack.c.bf16 %v2392, %v2256
      %v2401 = vpack.c.bf16 %v2393, %v2257
      %v2402 = vpack.c.bf16 %v2394, %v2258
      %v2403 = vpack.c.bf16 %v2395, %v2259
      %v2404 = vpack.c.bf16 %v2396, %v2260
      %v2405 = vpack.c.bf16 %v2397, %v2261
      %v2406 = vpack.c.bf16 %v2398, %v2262
      %v2407 = vpack.c.bf16 %v2399, %v2263
      %vm2408 = vcmask 130048
      %v2410 = vsel %vm2408, %v1208, 0
      %v2413 = vsel %vm2408, %v1804, 0
      %2415 = vmatprep.subr.bf16.mxu0 0
      %2416 = vmatpush1.bf16.xpose.msra.mxu0 %v2413
      %2417 = vmatprep.subr.bf16.mxu0 0
      %2418 = vmatpush1.bf16.xpose.msra.mxu0 0
      %2419 = vmatprep.subr.bf16.mxu0 0
      %2420 = vmatpush1.bf16.xpose.msra.mxu0 0
      %2421 = vmatprep.subr.bf16.mxu0 0
      %2422 = vmatpush1.bf16.xpose.msra.mxu0 0
      %2423 = vmatprep.subr.bf16.mxu0 0
      %2424 = vmatpush1.bf16.xpose.msra.mxu0 0
      %2425 = vmatprep.subr.bf16.mxu0 0
      %2426 = vmatpush1.bf16.xpose.msra.mxu0 0
      %2427 = vmatprep.subr.bf16.mxu0 0
      %2428 = vmatpush1.bf16.xpose.msra.mxu0 0
      %2429 = vmatprep.subr.bf16.mxu0 0
      %2430 = vmatpush1.bf16.xpose.msra.mxu0 0
      %2431 = vmatprep.subr.bf16.mxu0 0
      %2432 = vmatpush1.bf16.xpose.msra.mxu0 0
      %2433 = vmatprep.subr.bf16.mxu0 0
      %2434 = vmatpush1.bf16.xpose.msra.mxu0 0
      %2435 = vmatprep.subr.bf16.mxu0 0
      %2436 = vmatpush1.bf16.xpose.msra.mxu0 0
      %2437 = vmatprep.subr.bf16.mxu0 0
      %2438 = vmatpush1.bf16.xpose.msra.mxu0 0
      %2439 = vmatprep.subr.bf16.mxu0 0
      %2440 = vmatpush1.bf16.xpose.msra.mxu0 0
      %2441 = vmatprep.subr.bf16.mxu0 0
      %2442 = vmatpush1.bf16.xpose.msra.mxu0 0
      %2443 = vmatprep.subr.bf16.mxu0 0
      %2444 = vmatpush1.bf16.xpose.msra.mxu0 0
      %2445 = vmatprep.subr.bf16.mxu0 0
      %2446 = vmatpush1.bf16.xpose.msra.mxu0 0
      %2447 = vmatprep.mubr.bf16.mxu0 0
      %2448 = vmatmul.mubr.bf16.gmra.mrb[0].mxu0 %v2410
      %v2449 = vpop.f32.mrb[0].mxu0
      %v2450 = vadd.f32 0.0, %v2449
      %v2451 = vpop.f32.mrb[0].mxu0
      %v2452 = vpop.f32.mrb[0].mxu0
      %v2453 = vadd.f32 0.0, %v2452
      %v2454 = vpop.f32.mrb[0].mxu0
      %2455 = vdwg.mxu0
      %v2457 = vsel %vm2408, %v1209, 0
      %v2460 = vsel %vm2408, %v1805, 0
      %2462 = vmatprep.subr.bf16.mxu0 0
      %2463 = vmatpush1.bf16.xpose.msra.mxu0 %v2460
      %2464 = vmatprep.subr.bf16.mxu0 0
      %2465 = vmatpush1.bf16.xpose.msra.mxu0 0
      %2466 = vmatprep.subr.bf16.mxu0 0
      %2467 = vmatpush1.bf16.xpose.msra.mxu0 0
      %2468 = vmatprep.subr.bf16.mxu0 0
      %2469 = vmatpush1.bf16.xpose.msra.mxu0 0
      %2470 = vmatprep.subr.bf16.mxu0 0
      %2471 = vmatpush1.bf16.xpose.msra.mxu0 0
      %2472 = vmatprep.subr.bf16.mxu0 0
      %2473 = vmatpush1.bf16.xpose.msra.mxu0 0
      %2474 = vmatprep.subr.bf16.mxu0 0
      %2475 = vmatpush1.bf16.xpose.msra.mxu0 0
      %2476 = vmatprep.subr.bf16.mxu0 0
      %2477 = vmatpush1.bf16.xpose.msra.mxu0 0
      %2478 = vmatprep.subr.bf16.mxu0 0
      %2479 = vmatpush1.bf16.xpose.msra.mxu0 0
      %2480 = vmatprep.subr.bf16.mxu0 0
      %2481 = vmatpush1.bf16.xpose.msra.mxu0 0
      %2482 = vmatprep.subr.bf16.mxu0 0
      %2483 = vmatpush1.bf16.xpose.msra.mxu0 0
      %2484 = vmatprep.subr.bf16.mxu0 0
      %2485 = vmatpush1.bf16.xpose.msra.mxu0 0
      %2486 = vmatprep.subr.bf16.mxu0 0
      %2487 = vmatpush1.bf16.xpose.msra.mxu0 0
      %2488 = vmatprep.subr.bf16.mxu0 0
      %2489 = vmatpush1.bf16.xpose.msra.mxu0 0
      %2490 = vmatprep.subr.bf16.mxu0 0
      %2491 = vmatpush1.bf16.xpose.msra.mxu0 0
      %2492 = vmatprep.subr.bf16.mxu0 0
      %2493 = vmatpush1.bf16.xpose.msra.mxu0 0
      %2494 = vmatprep.mubr.bf16.mxu0 0
      %2495 = vmatmul.mubr.bf16.gmra.mrb[0].mxu0 %v2457
      %v2496 = vpop.f32.mrb[0].mxu0
      %v2497 = vadd.f32 0.0, %v2496
      %v2498 = vpop.f32.mrb[0].mxu0
      %v2499 = vpop.f32.mrb[0].mxu0
      %v2500 = vadd.f32 0.0, %v2499
      %v2501 = vpop.f32.mrb[0].mxu0
      %2502 = vdwg.mxu0
      %v2504 = vsel %vm2408, %v1210, 0
      %v2507 = vsel %vm2408, %v1806, 0
      %2509 = vmatprep.subr.bf16.mxu0 0
      %2510 = vmatpush1.bf16.xpose.msra.mxu0 %v2507
      %2511 = vmatprep.subr.bf16.mxu0 0
      %2512 = vmatpush1.bf16.xpose.msra.mxu0 0
      %2513 = vmatprep.subr.bf16.mxu0 0
      %2514 = vmatpush1.bf16.xpose.msra.mxu0 0
      %2515 = vmatprep.subr.bf16.mxu0 0
      %2516 = vmatpush1.bf16.xpose.msra.mxu0 0
      %2517 = vmatprep.subr.bf16.mxu0 0
      %2518 = vmatpush1.bf16.xpose.msra.mxu0 0
      %2519 = vmatprep.subr.bf16.mxu0 0
      %2520 = vmatpush1.bf16.xpose.msra.mxu0 0
      %2521 = vmatprep.subr.bf16.mxu0 0
      %2522 = vmatpush1.bf16.xpose.msra.mxu0 0
      %2523 = vmatprep.subr.bf16.mxu0 0
      %2524 = vmatpush1.bf16.xpose.msra.mxu0 0
      %2525 = vmatprep.subr.bf16.mxu0 0
      %2526 = vmatpush1.bf16.xpose.msra.mxu0 0
      %2527 = vmatprep.subr.bf16.mxu0 0
      %2528 = vmatpush1.bf16.xpose.msra.mxu0 0
      %2529 = vmatprep.subr.bf16.mxu0 0
      %2530 = vmatpush1.bf16.xpose.msra.mxu0 0
      %2531 = vmatprep.subr.bf16.mxu0 0
      %2532 = vmatpush1.bf16.xpose.msra.mxu0 0
      %2533 = vmatprep.subr.bf16.mxu0 0
      %2534 = vmatpush1.bf16.xpose.msra.mxu0 0
      %2535 = vmatprep.subr.bf16.mxu0 0
      %2536 = vmatpush1.bf16.xpose.msra.mxu0 0
      %2537 = vmatprep.subr.bf16.mxu0 0
      %2538 = vmatpush1.bf16.xpose.msra.mxu0 0
      %2539 = vmatprep.subr.bf16.mxu0 0
      %2540 = vmatpush1.bf16.xpose.msra.mxu0 0
      %2541 = vmatprep.mubr.bf16.mxu0 0
      %2542 = vmatmul.mubr.bf16.gmra.mrb[0].mxu0 %v2504
      %v2543 = vpop.f32.mrb[0].mxu0
      %v2544 = vadd.f32 0.0, %v2543
      %v2545 = vpop.f32.mrb[0].mxu0
      %v2546 = vpop.f32.mrb[0].mxu0
      %v2547 = vadd.f32 0.0, %v2546
      %v2548 = vpop.f32.mrb[0].mxu0
      %2549 = vdwg.mxu0
      %v2551 = vsel %vm2408, %v1211, 0
      %v2554 = vsel %vm2408, %v1807, 0
      %2556 = vmatprep.subr.bf16.mxu0 0
      %2557 = vmatpush1.bf16.xpose.msra.mxu0 %v2554
      %2558 = vmatprep.subr.bf16.mxu0 0
      %2559 = vmatpush1.bf16.xpose.msra.mxu0 0
      %2560 = vmatprep.subr.bf16.mxu0 0
      %2561 = vmatpush1.bf16.xpose.msra.mxu0 0
      %2562 = vmatprep.subr.bf16.mxu0 0
      %2563 = vmatpush1.bf16.xpose.msra.mxu0 0
      %2564 = vmatprep.subr.bf16.mxu0 0
      %2565 = vmatpush1.bf16.xpose.msra.mxu0 0
      %2566 = vmatprep.subr.bf16.mxu0 0
      %2567 = vmatpush1.bf16.xpose.msra.mxu0 0
      %2568 = vmatprep.subr.bf16.mxu0 0
      %2569 = vmatpush1.bf16.xpose.msra.mxu0 0
      %2570 = vmatprep.subr.bf16.mxu0 0
      %2571 = vmatpush1.bf16.xpose.msra.mxu0 0
      %2572 = vmatprep.subr.bf16.mxu0 0
      %2573 = vmatpush1.bf16.xpose.msra.mxu0 0
      %2574 = vmatprep.subr.bf16.mxu0 0
      %2575 = vmatpush1.bf16.xpose.msra.mxu0 0
      %2576 = vmatprep.subr.bf16.mxu0 0
      %2577 = vmatpush1.bf16.xpose.msra.mxu0 0
      %2578 = vmatprep.subr.bf16.mxu0 0
      %2579 = vmatpush1.bf16.xpose.msra.mxu0 0
      %2580 = vmatprep.subr.bf16.mxu0 0
      %2581 = vmatpush1.bf16.xpose.msra.mxu0 0
      %2582 = vmatprep.subr.bf16.mxu0 0
      %2583 = vmatpush1.bf16.xpose.msra.mxu0 0
      %2584 = vmatprep.subr.bf16.mxu0 0
      %2585 = vmatpush1.bf16.xpose.msra.mxu0 0
      %2586 = vmatprep.subr.bf16.mxu0 0
      %2587 = vmatpush1.bf16.xpose.msra.mxu0 0
      %2588 = vmatprep.mubr.bf16.mxu0 0
      %2589 = vmatmul.mubr.bf16.gmra.mrb[0].mxu0 %v2551
      %v2590 = vpop.f32.mrb[0].mxu0
      %v2591 = vadd.f32 0.0, %v2590
      %v2592 = vpop.f32.mrb[0].mxu0
      %v2593 = vpop.f32.mrb[0].mxu0
      %v2594 = vadd.f32 0.0, %v2593
      %v2595 = vpop.f32.mrb[0].mxu0
      %2596 = vdwg.mxu0
      %v2598 = vsel %vm2408, %v1212, 0
      %v2601 = vsel %vm2408, %v1808, 0
      %2603 = vmatprep.subr.bf16.mxu0 0
      %2604 = vmatpush1.bf16.xpose.msra.mxu0 %v2601
      %2605 = vmatprep.subr.bf16.mxu0 0
      %2606 = vmatpush1.bf16.xpose.msra.mxu0 0
      %2607 = vmatprep.subr.bf16.mxu0 0
      %2608 = vmatpush1.bf16.xpose.msra.mxu0 0
      %2609 = vmatprep.subr.bf16.mxu0 0
      %2610 = vmatpush1.bf16.xpose.msra.mxu0 0
      %2611 = vmatprep.subr.bf16.mxu0 0
      %2612 = vmatpush1.bf16.xpose.msra.mxu0 0
      %2613 = vmatprep.subr.bf16.mxu0 0
      %2614 = vmatpush1.bf16.xpose.msra.mxu0 0
      %2615 = vmatprep.subr.bf16.mxu0 0
      %2616 = vmatpush1.bf16.xpose.msra.mxu0 0
      %2617 = vmatprep.subr.bf16.mxu0 0
      %2618 = vmatpush1.bf16.xpose.msra.mxu0 0
      %2619 = vmatprep.subr.bf16.mxu0 0
      %2620 = vmatpush1.bf16.xpose.msra.mxu0 0
      %2621 = vmatprep.subr.bf16.mxu0 0
      %2622 = vmatpush1.bf16.xpose.msra.mxu0 0
      %2623 = vmatprep.subr.bf16.mxu0 0
      %2624 = vmatpush1.bf16.xpose.msra.mxu0 0
      %2625 = vmatprep.subr.bf16.mxu0 0
      %2626 = vmatpush1.bf16.xpose.msra.mxu0 0
      %2627 = vmatprep.subr.bf16.mxu0 0
      %2628 = vmatpush1.bf16.xpose.msra.mxu0 0
      %2629 = vmatprep.subr.bf16.mxu0 0
      %2630 = vmatpush1.bf16.xpose.msra.mxu0 0
      %2631 = vmatprep.subr.bf16.mxu0 0
      %2632 = vmatpush1.bf16.xpose.msra.mxu0 0
      %2633 = vmatprep.subr.bf16.mxu0 0
      %2634 = vmatpush1.bf16.xpose.msra.mxu0 0
      %2635 = vmatprep.mubr.bf16.mxu0 0
      %2636 = vmatmul.mubr.bf16.gmra.mrb[0].mxu0 %v2598
      %v2637 = vpop.f32.mrb[0].mxu0
      %v2638 = vadd.f32 0.0, %v2637
      %v2639 = vpop.f32.mrb[0].mxu0
      %v2640 = vpop.f32.mrb[0].mxu0
      %v2641 = vadd.f32 0.0, %v2640
      %v2642 = vpop.f32.mrb[0].mxu0
      %2643 = vdwg.mxu0
      %v2645 = vsel %vm2408, %v1213, 0
      %v2648 = vsel %vm2408, %v1809, 0
      %2650 = vmatprep.subr.bf16.mxu0 0
      %2651 = vmatpush1.bf16.xpose.msra.mxu0 %v2648
      %2652 = vmatprep.subr.bf16.mxu0 0
      %2653 = vmatpush1.bf16.xpose.msra.mxu0 0
      %2654 = vmatprep.subr.bf16.mxu0 0
      %2655 = vmatpush1.bf16.xpose.msra.mxu0 0
      %2656 = vmatprep.subr.bf16.mxu0 0
      %2657 = vmatpush1.bf16.xpose.msra.mxu0 0
      %2658 = vmatprep.subr.bf16.mxu0 0
      %2659 = vmatpush1.bf16.xpose.msra.mxu0 0
      %2660 = vmatprep.subr.bf16.mxu0 0
      %2661 = vmatpush1.bf16.xpose.msra.mxu0 0
      %2662 = vmatprep.subr.bf16.mxu0 0
      %2663 = vmatpush1.bf16.xpose.msra.mxu0 0
      %2664 = vmatprep.subr.bf16.mxu0 0
      %2665 = vmatpush1.bf16.xpose.msra.mxu0 0
      %2666 = vmatprep.subr.bf16.mxu0 0
      %2667 = vmatpush1.bf16.xpose.msra.mxu0 0
      %2668 = vmatprep.subr.bf16.mxu0 0
      %2669 = vmatpush1.bf16.xpose.msra.mxu0 0
      %2670 = vmatprep.subr.bf16.mxu0 0
      %2671 = vmatpush1.bf16.xpose.msra.mxu0 0
      %2672 = vmatprep.subr.bf16.mxu0 0
      %2673 = vmatpush1.bf16.xpose.msra.mxu0 0
      %2674 = vmatprep.subr.bf16.mxu0 0
      %2675 = vmatpush1.bf16.xpose.msra.mxu0 0
      %2676 = vmatprep.subr.bf16.mxu0 0
      %2677 = vmatpush1.bf16.xpose.msra.mxu0 0
      %2678 = vmatprep.subr.bf16.mxu0 0
      %2679 = vmatpush1.bf16.xpose.msra.mxu0 0
      %2680 = vmatprep.subr.bf16.mxu0 0
      %2681 = vmatpush1.bf16.xpose.msra.mxu0 0
      %2682 = vmatprep.mubr.bf16.mxu0 0
      %2683 = vmatmul.mubr.bf16.gmra.mrb[0].mxu0 %v2645
      %v2684 = vpop.f32.mrb[0].mxu0
      %v2685 = vadd.f32 0.0, %v2684
      %v2686 = vpop.f32.mrb[0].mxu0
      %v2687 = vpop.f32.mrb[0].mxu0
      %v2688 = vadd.f32 0.0, %v2687
      %v2689 = vpop.f32.mrb[0].mxu0
      %2690 = vdwg.mxu0
      %v2692 = vsel %vm2408, %v1214, 0
      %v2695 = vsel %vm2408, %v1810, 0
      %2697 = vmatprep.subr.bf16.mxu0 0
      %2698 = vmatpush1.bf16.xpose.msra.mxu0 %v2695
      %2699 = vmatprep.subr.bf16.mxu0 0
      %2700 = vmatpush1.bf16.xpose.msra.mxu0 0
      %2701 = vmatprep.subr.bf16.mxu0 0
      %2702 = vmatpush1.bf16.xpose.msra.mxu0 0
      %2703 = vmatprep.subr.bf16.mxu0 0
      %2704 = vmatpush1.bf16.xpose.msra.mxu0 0
      %2705 = vmatprep.subr.bf16.mxu0 0
      %2706 = vmatpush1.bf16.xpose.msra.mxu0 0
      %2707 = vmatprep.subr.bf16.mxu0 0
      %2708 = vmatpush1.bf16.xpose.msra.mxu0 0
      %2709 = vmatprep.subr.bf16.mxu0 0
      %2710 = vmatpush1.bf16.xpose.msra.mxu0 0
      %2711 = vmatprep.subr.bf16.mxu0 0
      %2712 = vmatpush1.bf16.xpose.msra.mxu0 0
      %2713 = vmatprep.subr.bf16.mxu0 0
      %2714 = vmatpush1.bf16.xpose.msra.mxu0 0
      %2715 = vmatprep.subr.bf16.mxu0 0
      %2716 = vmatpush1.bf16.xpose.msra.mxu0 0
      %2717 = vmatprep.subr.bf16.mxu0 0
      %2718 = vmatpush1.bf16.xpose.msra.mxu0 0
      %2719 = vmatprep.subr.bf16.mxu0 0
      %2720 = vmatpush1.bf16.xpose.msra.mxu0 0
      %2721 = vmatprep.subr.bf16.mxu0 0
      %2722 = vmatpush1.bf16.xpose.msra.mxu0 0
      %2723 = vmatprep.subr.bf16.mxu0 0
      %2724 = vmatpush1.bf16.xpose.msra.mxu0 0
      %2725 = vmatprep.subr.bf16.mxu0 0
      %2726 = vmatpush1.bf16.xpose.msra.mxu0 0
      %2727 = vmatprep.subr.bf16.mxu0 0
      %2728 = vmatpush1.bf16.xpose.msra.mxu0 0
      %2729 = vmatprep.mubr.bf16.mxu0 0
      %2730 = vmatmul.mubr.bf16.gmra.mrb[0].mxu0 %v2692
      %v2731 = vpop.f32.mrb[0].mxu0
      %v2732 = vadd.f32 0.0, %v2731
      %v2733 = vpop.f32.mrb[0].mxu0
      %v2734 = vpop.f32.mrb[0].mxu0
      %v2735 = vadd.f32 0.0, %v2734
      %v2736 = vpop.f32.mrb[0].mxu0
      %2737 = vdwg.mxu0
      %v2739 = vsel %vm2408, %v1215, 0
      %v2742 = vsel %vm2408, %v1811, 0
      %2744 = vmatprep.subr.bf16.mxu0 0
      %2745 = vmatpush1.bf16.xpose.msra.mxu0 %v2742
      %2746 = vmatprep.subr.bf16.mxu0 0
      %2747 = vmatpush1.bf16.xpose.msra.mxu0 0
      %2748 = vmatprep.subr.bf16.mxu0 0
      %2749 = vmatpush1.bf16.xpose.msra.mxu0 0
      %2750 = vmatprep.subr.bf16.mxu0 0
      %2751 = vmatpush1.bf16.xpose.msra.mxu0 0
      %2752 = vmatprep.subr.bf16.mxu0 0
      %2753 = vmatpush1.bf16.xpose.msra.mxu0 0
      %2754 = vmatprep.subr.bf16.mxu0 0
      %2755 = vmatpush1.bf16.xpose.msra.mxu0 0
      %2756 = vmatprep.subr.bf16.mxu0 0
      %2757 = vmatpush1.bf16.xpose.msra.mxu0 0
      %2758 = vmatprep.subr.bf16.mxu0 0
      %2759 = vmatpush1.bf16.xpose.msra.mxu0 0
      %2760 = vmatprep.subr.bf16.mxu0 0
      %2761 = vmatpush1.bf16.xpose.msra.mxu0 0
      %2762 = vmatprep.subr.bf16.mxu0 0
      %2763 = vmatpush1.bf16.xpose.msra.mxu0 0
      %2764 = vmatprep.subr.bf16.mxu0 0
      %2765 = vmatpush1.bf16.xpose.msra.mxu0 0
      %2766 = vmatprep.subr.bf16.mxu0 0
      %2767 = vmatpush1.bf16.xpose.msra.mxu0 0
      %2768 = vmatprep.subr.bf16.mxu0 0
      %2769 = vmatpush1.bf16.xpose.msra.mxu0 0
      %2770 = vmatprep.subr.bf16.mxu0 0
      %2771 = vmatpush1.bf16.xpose.msra.mxu0 0
      %2772 = vmatprep.subr.bf16.mxu0 0
      %2773 = vmatpush1.bf16.xpose.msra.mxu0 0
      %2774 = vmatprep.subr.bf16.mxu0 0
      %2775 = vmatpush1.bf16.xpose.msra.mxu0 0
      %2776 = vmatprep.mubr.bf16.mxu0 0
      %2777 = vmatmul.mubr.bf16.gmra.mrb[0].mxu0 %v2739
      %v2778 = vpop.f32.mrb[0].mxu0
      %v2779 = vadd.f32 0.0, %v2778
      %v2780 = vpop.f32.mrb[0].mxu0
      %v2781 = vpop.f32.mrb[0].mxu0
      %v2782 = vadd.f32 0.0, %v2781
      %v2783 = vpop.f32.mrb[0].mxu0
      %2784 = vdwg.mxu0
      %v2785 = vsel %vm2408, %v2450, -inf
      %2786 = vmax.xlane.f32.xlu0 %v2785
      %v2787 = vpop.xlane.xlu0 %2786
      %v2788 = vsel %vm2408, %v2453, -inf
      %2789 = vmax.xlane.f32.xlu0 %v2788
      %v2790 = vpop.xlane.xlu0 %2789
      %v2791 = vsel %vm2408, %v2497, -inf
      %2792 = vmax.xlane.f32.xlu0 %v2791
      %v2793 = vpop.xlane.xlu0 %2792
      %v2794 = vsel %vm2408, %v2500, -inf
      %2795 = vmax.xlane.f32.xlu0 %v2794
      %v2796 = vpop.xlane.xlu0 %2795
      %v2797 = vsel %vm2408, %v2544, -inf
      %2798 = vmax.xlane.f32.xlu0 %v2797
      %v2799 = vpop.xlane.xlu0 %2798
      %v2800 = vsel %vm2408, %v2547, -inf
      %2801 = vmax.xlane.f32.xlu0 %v2800
      %v2802 = vpop.xlane.xlu0 %2801
      %v2803 = vsel %vm2408, %v2591, -inf
      %2804 = vmax.xlane.f32.xlu0 %v2803
      %v2805 = vpop.xlane.xlu0 %2804
      %v2806 = vsel %vm2408, %v2594, -inf
      %2807 = vmax.xlane.f32.xlu0 %v2806
      %v2808 = vpop.xlane.xlu0 %2807
      %v2809 = vsel %vm2408, %v2638, -inf
      %2810 = vmax.xlane.f32.xlu0 %v2809
      %v2811 = vpop.xlane.xlu0 %2810
      %v2812 = vsel %vm2408, %v2641, -inf
      %2813 = vmax.xlane.f32.xlu0 %v2812
      %v2814 = vpop.xlane.xlu0 %2813
      %v2815 = vsel %vm2408, %v2685, -inf
      %2816 = vmax.xlane.f32.xlu0 %v2815
      %v2817 = vpop.xlane.xlu0 %2816
      %v2818 = vsel %vm2408, %v2688, -inf
      %2819 = vmax.xlane.f32.xlu0 %v2818
      %v2820 = vpop.xlane.xlu0 %2819
      %v2821 = vsel %vm2408, %v2732, -inf
      %2822 = vmax.xlane.f32.xlu0 %v2821
      %v2823 = vpop.xlane.xlu0 %2822
      %v2824 = vsel %vm2408, %v2735, -inf
      %2825 = vmax.xlane.f32.xlu0 %v2824
      %v2826 = vpop.xlane.xlu0 %2825
      %v2827 = vsel %vm2408, %v2779, -inf
      %2828 = vmax.xlane.f32.xlu0 %v2827
      %v2829 = vpop.xlane.xlu0 %2828
      %v2830 = vsel %vm2408, %v2782, -inf
      %2831 = vmax.xlane.f32.xlu0 %v2830
      %v2832 = vpop.xlane.xlu0 %2831
      %v2833 = vsub.f32 %v2450, %v2787
      %v2834 = vsub.f32 %v2453, %v2790
      %v2835 = vsub.f32 %v2497, %v2793
      %v2836 = vsub.f32 %v2500, %v2796
      %v2837 = vsub.f32 %v2544, %v2799
      %v2838 = vsub.f32 %v2547, %v2802
      %v2839 = vsub.f32 %v2591, %v2805
      %v2840 = vsub.f32 %v2594, %v2808
      %v2841 = vsub.f32 %v2638, %v2811
      %v2842 = vsub.f32 %v2641, %v2814
      %v2843 = vsub.f32 %v2685, %v2817
      %v2844 = vsub.f32 %v2688, %v2820
      %v2845 = vsub.f32 %v2732, %v2823
      %v2846 = vsub.f32 %v2735, %v2826
      %v2847 = vsub.f32 %v2779, %v2829
      %v2848 = vsub.f32 %v2782, %v2832
      %v2849 = vmul.f32 %v2833, 1.442695
      %v2850 = vpow.pop %v2849
      %v2851 = vmul.f32 %v2834, 1.442695
      %v2852 = vpow.pop %v2851
      %v2853 = vmul.f32 %v2835, 1.442695
      %v2854 = vpow.pop %v2853
      %v2855 = vmul.f32 %v2836, 1.442695
      %v2856 = vpow.pop %v2855
      %v2857 = vmul.f32 %v2837, 1.442695
      %v2858 = vpow.pop %v2857
      %v2859 = vmul.f32 %v2838, 1.442695
      %v2860 = vpow.pop %v2859
      %v2861 = vmul.f32 %v2839, 1.442695
      %v2862 = vpow.pop %v2861
      %v2863 = vmul.f32 %v2840, 1.442695
      %v2864 = vpow.pop %v2863
      %v2865 = vmul.f32 %v2841, 1.442695
      %v2866 = vpow.pop %v2865
      %v2867 = vmul.f32 %v2842, 1.442695
      %v2868 = vpow.pop %v2867
      %v2869 = vmul.f32 %v2843, 1.442695
      %v2870 = vpow.pop %v2869
      %v2871 = vmul.f32 %v2844, 1.442695
      %v2872 = vpow.pop %v2871
      %v2873 = vmul.f32 %v2845, 1.442695
      %v2874 = vpow.pop %v2873
      %v2875 = vmul.f32 %v2846, 1.442695
      %v2876 = vpow.pop %v2875
      %v2877 = vmul.f32 %v2847, 1.442695
      %v2878 = vpow.pop %v2877
      %v2879 = vmul.f32 %v2848, 1.442695
      %v2880 = vpow.pop %v2879
      %v2881 = vsel %vm2408, %v2850, 0.0
      %2882 = vadd.xlane.f32.xlu0 %v2881
      %v2883 = vpop.xlane.xlu0 %2882
      %v2884 = vsel %vm2408, %v2852, 0.0
      %2885 = vadd.xlane.f32.xlu0 %v2884
      %v2886 = vpop.xlane.xlu0 %2885
      %v2887 = vsel %vm2408, %v2854, 0.0
      %2888 = vadd.xlane.f32.xlu0 %v2887
      %v2889 = vpop.xlane.xlu0 %2888
      %v2890 = vsel %vm2408, %v2856, 0.0
      %2891 = vadd.xlane.f32.xlu0 %v2890
      %v2892 = vpop.xlane.xlu0 %2891
      %v2893 = vsel %vm2408, %v2858, 0.0
      %2894 = vadd.xlane.f32.xlu0 %v2893
      %v2895 = vpop.xlane.xlu0 %2894
      %v2896 = vsel %vm2408, %v2860, 0.0
      %2897 = vadd.xlane.f32.xlu0 %v2896
      %v2898 = vpop.xlane.xlu0 %2897
      %v2899 = vsel %vm2408, %v2862, 0.0
      %2900 = vadd.xlane.f32.xlu0 %v2899
      %v2901 = vpop.xlane.xlu0 %2900
      %v2902 = vsel %vm2408, %v2864, 0.0
      %2903 = vadd.xlane.f32.xlu0 %v2902
      %v2904 = vpop.xlane.xlu0 %2903
      %v2905 = vsel %vm2408, %v2866, 0.0
      %2906 = vadd.xlane.f32.xlu0 %v2905
      %v2907 = vpop.xlane.xlu0 %2906
      %v2908 = vsel %vm2408, %v2868, 0.0
      %2909 = vadd.xlane.f32.xlu0 %v2908
      %v2910 = vpop.xlane.xlu0 %2909
      %v2911 = vsel %vm2408, %v2870, 0.0
      %2912 = vadd.xlane.f32.xlu0 %v2911
      %v2913 = vpop.xlane.xlu0 %2912
      %v2914 = vsel %vm2408, %v2872, 0.0
      %2915 = vadd.xlane.f32.xlu0 %v2914
      %v2916 = vpop.xlane.xlu0 %2915
      %v2917 = vsel %vm2408, %v2874, 0.0
      %2918 = vadd.xlane.f32.xlu0 %v2917
      %v2919 = vpop.xlane.xlu0 %2918
      %v2920 = vsel %vm2408, %v2876, 0.0
      %2921 = vadd.xlane.f32.xlu0 %v2920
      %v2922 = vpop.xlane.xlu0 %2921
      %v2923 = vsel %vm2408, %v2878, 0.0
      %2924 = vadd.xlane.f32.xlu0 %v2923
      %v2925 = vpop.xlane.xlu0 %2924
      %v2926 = vsel %vm2408, %v2880, 0.0
      %2927 = vadd.xlane.f32.xlu0 %v2926
      %v2928 = vpop.xlane.xlu0 %2927
      %v2929 = vrcp.pop %v2883
      %v2930 = vrcp.pop %v2886
      %v2931 = vrcp.pop %v2889
      %v2932 = vrcp.pop %v2892
      %v2933 = vrcp.pop %v2895
      %v2934 = vrcp.pop %v2898
      %v2935 = vrcp.pop %v2901
      %v2936 = vrcp.pop %v2904
      %v2937 = vrcp.pop %v2907
      %v2938 = vrcp.pop %v2910
      %v2939 = vrcp.pop %v2913
      %v2940 = vrcp.pop %v2916
      %v2941 = vrcp.pop %v2919
      %v2942 = vrcp.pop %v2922
      %v2943 = vrcp.pop %v2925
      %v2944 = vrcp.pop %v2928
      %v2945 = vmul.f32 %v2850, %v2929
      %v2946 = vmul.f32 %v2852, %v2930
      %v2947 = vmul.f32 %v2854, %v2931
      %v2948 = vmul.f32 %v2856, %v2932
      %v2949 = vmul.f32 %v2858, %v2933
      %v2950 = vmul.f32 %v2860, %v2934
      %v2951 = vmul.f32 %v2862, %v2935
      %v2952 = vmul.f32 %v2864, %v2936
      %v2953 = vmul.f32 %v2866, %v2937
      %v2954 = vmul.f32 %v2868, %v2938
      %v2955 = vmul.f32 %v2870, %v2939
      %v2956 = vmul.f32 %v2872, %v2940
      %v2957 = vmul.f32 %v2874, %v2941
      %v2958 = vmul.f32 %v2876, %v2942
      %v2959 = vmul.f32 %v2878, %v2943
      %v2960 = vmul.f32 %v2880, %v2944
      %v2961 = vpack.c.bf16 %v2946, %v2945
      %v2962 = vpack.c.bf16 %v2948, %v2947
      %v2963 = vpack.c.bf16 %v2950, %v2949
      %v2964 = vpack.c.bf16 %v2952, %v2951
      %v2965 = vpack.c.bf16 %v2954, %v2953
      %v2966 = vpack.c.bf16 %v2956, %v2955
      %v2967 = vpack.c.bf16 %v2958, %v2957
      %v2968 = vpack.c.bf16 %v2960, %v2959
      %v2970 = vsel %vm2408, %v2961, 0
      %2972 = vmatprep.subr.bf16.mxu0 0
      %2973 = vmatpush1.bf16.msra.mxu0 %v2400
      %2974 = vmatprep.subr.bf16.mxu0 0
      %2975 = vmatpush1.bf16.msra.mxu0 0
      %2976 = vmatprep.subr.bf16.mxu0 0
      %2977 = vmatpush1.bf16.msra.mxu0 0
      %2978 = vmatprep.subr.bf16.mxu0 0
      %2979 = vmatpush1.bf16.msra.mxu0 0
      %2980 = vmatprep.subr.bf16.mxu0 0
      %2981 = vmatpush1.bf16.msra.mxu0 0
      %2982 = vmatprep.subr.bf16.mxu0 0
      %2983 = vmatpush1.bf16.msra.mxu0 0
      %2984 = vmatprep.subr.bf16.mxu0 0
      %2985 = vmatpush1.bf16.msra.mxu0 0
      %2986 = vmatprep.subr.bf16.mxu0 0
      %2987 = vmatpush1.bf16.msra.mxu0 0
      %2988 = vmatprep.subr.bf16.mxu0 0
      %2989 = vmatpush1.bf16.msra.mxu0 0
      %2990 = vmatprep.subr.bf16.mxu0 0
      %2991 = vmatpush1.bf16.msra.mxu0 0
      %2992 = vmatprep.subr.bf16.mxu0 0
      %2993 = vmatpush1.bf16.msra.mxu0 0
      %2994 = vmatprep.subr.bf16.mxu0 0
      %2995 = vmatpush1.bf16.msra.mxu0 0
      %2996 = vmatprep.subr.bf16.mxu0 0
      %2997 = vmatpush1.bf16.msra.mxu0 0
      %2998 = vmatprep.subr.bf16.mxu0 0
      %2999 = vmatpush1.bf16.msra.mxu0 0
      %3000 = vmatprep.subr.bf16.mxu0 0
      %3001 = vmatpush1.bf16.msra.mxu0 0
      %3002 = vmatprep.subr.bf16.mxu0 0
      %3003 = vmatpush1.bf16.msra.mxu0 0
      %3004 = vmatprep.mubr.bf16.mxu0 0
      %3005 = vmatmul.mubr.bf16.gmra.mrb[0].mxu0 %v2970
      %v3006 = vpop.f32.mrb[0].mxu0
      %v3007 = vadd.f32 0.0, %v3006
      %v3008 = vpop.f32.mrb[0].mxu0
      %v3009 = vpop.f32.mrb[0].mxu0
      %v3010 = vadd.f32 0.0, %v3009
      %v3011 = vpop.f32.mrb[0].mxu0
      %3012 = vdwg.mxu0
      %v3014 = vsel %vm2408, %v2962, 0
      %3016 = vmatprep.subr.bf16.mxu0 0
      %3017 = vmatpush1.bf16.msra.mxu0 %v2401
      %3018 = vmatprep.subr.bf16.mxu0 0
      %3019 = vmatpush1.bf16.msra.mxu0 0
      %3020 = vmatprep.subr.bf16.mxu0 0
      %3021 = vmatpush1.bf16.msra.mxu0 0
      %3022 = vmatprep.subr.bf16.mxu0 0
      %3023 = vmatpush1.bf16.msra.mxu0 0
      %3024 = vmatprep.subr.bf16.mxu0 0
      %3025 = vmatpush1.bf16.msra.mxu0 0
      %3026 = vmatprep.subr.bf16.mxu0 0
      %3027 = vmatpush1.bf16.msra.mxu0 0
      %3028 = vmatprep.subr.bf16.mxu0 0
      %3029 = vmatpush1.bf16.msra.mxu0 0
      %3030 = vmatprep.subr.bf16.mxu0 0
      %3031 = vmatpush1.bf16.msra.mxu0 0
      %3032 = vmatprep.subr.bf16.mxu0 0
      %3033 = vmatpush1.bf16.msra.mxu0 0
      %3034 = vmatprep.subr.bf16.mxu0 0
      %3035 = vmatpush1.bf16.msra.mxu0 0
      %3036 = vmatprep.subr.bf16.mxu0 0
      %3037 = vmatpush1.bf16.msra.mxu0 0
      %3038 = vmatprep.subr.bf16.mxu0 0
      %3039 = vmatpush1.bf16.msra.mxu0 0
      %3040 = vmatprep.subr.bf16.mxu0 0
      %3041 = vmatpush1.bf16.msra.mxu0 0
      %3042 = vmatprep.subr.bf16.mxu0 0
      %3043 = vmatpush1.bf16.msra.mxu0 0
      %3044 = vmatprep.subr.bf16.mxu0 0
      %3045 = vmatpush1.bf16.msra.mxu0 0
      %3046 = vmatprep.subr.bf16.mxu0 0
      %3047 = vmatpush1.bf16.msra.mxu0 0
      %3048 = vmatprep.mubr.bf16.mxu0 0
      %3049 = vmatmul.mubr.bf16.gmra.mrb[0].mxu0 %v3014
      %v3050 = vpop.f32.mrb[0].mxu0
      %v3051 = vadd.f32 0.0, %v3050
      %v3052 = vpop.f32.mrb[0].mxu0
      %v3053 = vpop.f32.mrb[0].mxu0
      %v3054 = vadd.f32 0.0, %v3053
      %v3055 = vpop.f32.mrb[0].mxu0
      %3056 = vdwg.mxu0
      %v3058 = vsel %vm2408, %v2963, 0
      %3060 = vmatprep.subr.bf16.mxu0 0
      %3061 = vmatpush1.bf16.msra.mxu0 %v2402
      %3062 = vmatprep.subr.bf16.mxu0 0
      %3063 = vmatpush1.bf16.msra.mxu0 0
      %3064 = vmatprep.subr.bf16.mxu0 0
      %3065 = vmatpush1.bf16.msra.mxu0 0
      %3066 = vmatprep.subr.bf16.mxu0 0
      %3067 = vmatpush1.bf16.msra.mxu0 0
      %3068 = vmatprep.subr.bf16.mxu0 0
      %3069 = vmatpush1.bf16.msra.mxu0 0
      %3070 = vmatprep.subr.bf16.mxu0 0
      %3071 = vmatpush1.bf16.msra.mxu0 0
      %3072 = vmatprep.subr.bf16.mxu0 0
      %3073 = vmatpush1.bf16.msra.mxu0 0
      %3074 = vmatprep.subr.bf16.mxu0 0
      %3075 = vmatpush1.bf16.msra.mxu0 0
      %3076 = vmatprep.subr.bf16.mxu0 0
      %3077 = vmatpush1.bf16.msra.mxu0 0
      %3078 = vmatprep.subr.bf16.mxu0 0
      %3079 = vmatpush1.bf16.msra.mxu0 0
      %3080 = vmatprep.subr.bf16.mxu0 0
      %3081 = vmatpush1.bf16.msra.mxu0 0
      %3082 = vmatprep.subr.bf16.mxu0 0
      %3083 = vmatpush1.bf16.msra.mxu0 0
      %3084 = vmatprep.subr.bf16.mxu0 0
      %3085 = vmatpush1.bf16.msra.mxu0 0
      %3086 = vmatprep.subr.bf16.mxu0 0
      %3087 = vmatpush1.bf16.msra.mxu0 0
      %3088 = vmatprep.subr.bf16.mxu0 0
      %3089 = vmatpush1.bf16.msra.mxu0 0
      %3090 = vmatprep.subr.bf16.mxu0 0
      %3091 = vmatpush1.bf16.msra.mxu0 0
      %3092 = vmatprep.mubr.bf16.mxu0 0
      %3093 = vmatmul.mubr.bf16.gmra.mrb[0].mxu0 %v3058
      %v3094 = vpop.f32.mrb[0].mxu0
      %v3095 = vadd.f32 0.0, %v3094
      %v3096 = vpop.f32.mrb[0].mxu0
      %v3097 = vpop.f32.mrb[0].mxu0
      %v3098 = vadd.f32 0.0, %v3097
      %v3099 = vpop.f32.mrb[0].mxu0
      %3100 = vdwg.mxu0
      %v3102 = vsel %vm2408, %v2964, 0
      %3104 = vmatprep.subr.bf16.mxu0 0
      %3105 = vmatpush1.bf16.msra.mxu0 %v2403
      %3106 = vmatprep.subr.bf16.mxu0 0
      %3107 = vmatpush1.bf16.msra.mxu0 0
      %3108 = vmatprep.subr.bf16.mxu0 0
      %3109 = vmatpush1.bf16.msra.mxu0 0
      %3110 = vmatprep.subr.bf16.mxu0 0
      %3111 = vmatpush1.bf16.msra.mxu0 0
      %3112 = vmatprep.subr.bf16.mxu0 0
      %3113 = vmatpush1.bf16.msra.mxu0 0
      %3114 = vmatprep.subr.bf16.mxu0 0
      %3115 = vmatpush1.bf16.msra.mxu0 0
      %3116 = vmatprep.subr.bf16.mxu0 0
      %3117 = vmatpush1.bf16.msra.mxu0 0
      %3118 = vmatprep.subr.bf16.mxu0 0
      %3119 = vmatpush1.bf16.msra.mxu0 0
      %3120 = vmatprep.subr.bf16.mxu0 0
      %3121 = vmatpush1.bf16.msra.mxu0 0
      %3122 = vmatprep.subr.bf16.mxu0 0
      %3123 = vmatpush1.bf16.msra.mxu0 0
      %3124 = vmatprep.subr.bf16.mxu0 0
      %3125 = vmatpush1.bf16.msra.mxu0 0
      %3126 = vmatprep.subr.bf16.mxu0 0
      %3127 = vmatpush1.bf16.msra.mxu0 0
      %3128 = vmatprep.subr.bf16.mxu0 0
      %3129 = vmatpush1.bf16.msra.mxu0 0
      %3130 = vmatprep.subr.bf16.mxu0 0
      %3131 = vmatpush1.bf16.msra.mxu0 0
      %3132 = vmatprep.subr.bf16.mxu0 0
      %3133 = vmatpush1.bf16.msra.mxu0 0
      %3134 = vmatprep.subr.bf16.mxu0 0
      %3135 = vmatpush1.bf16.msra.mxu0 0
      %3136 = vmatprep.mubr.bf16.mxu0 0
      %3137 = vmatmul.mubr.bf16.gmra.mrb[0].mxu0 %v3102
      %v3138 = vpop.f32.mrb[0].mxu0
      %v3139 = vadd.f32 0.0, %v3138
      %v3140 = vpop.f32.mrb[0].mxu0
      %v3141 = vpop.f32.mrb[0].mxu0
      %v3142 = vadd.f32 0.0, %v3141
      %v3143 = vpop.f32.mrb[0].mxu0
      %3144 = vdwg.mxu0
      %v3146 = vsel %vm2408, %v2965, 0
      %3148 = vmatprep.subr.bf16.mxu0 0
      %3149 = vmatpush1.bf16.msra.mxu0 %v2404
      %3150 = vmatprep.subr.bf16.mxu0 0
      %3151 = vmatpush1.bf16.msra.mxu0 0
      %3152 = vmatprep.subr.bf16.mxu0 0
      %3153 = vmatpush1.bf16.msra.mxu0 0
      %3154 = vmatprep.subr.bf16.mxu0 0
      %3155 = vmatpush1.bf16.msra.mxu0 0
      %3156 = vmatprep.subr.bf16.mxu0 0
      %3157 = vmatpush1.bf16.msra.mxu0 0
      %3158 = vmatprep.subr.bf16.mxu0 0
      %3159 = vmatpush1.bf16.msra.mxu0 0
      %3160 = vmatprep.subr.bf16.mxu0 0
      %3161 = vmatpush1.bf16.msra.mxu0 0
      %3162 = vmatprep.subr.bf16.mxu0 0
      %3163 = vmatpush1.bf16.msra.mxu0 0
      %3164 = vmatprep.subr.bf16.mxu0 0
      %3165 = vmatpush1.bf16.msra.mxu0 0
      %3166 = vmatprep.subr.bf16.mxu0 0
      %3167 = vmatpush1.bf16.msra.mxu0 0
      %3168 = vmatprep.subr.bf16.mxu0 0
      %3169 = vmatpush1.bf16.msra.mxu0 0
      %3170 = vmatprep.subr.bf16.mxu0 0
      %3171 = vmatpush1.bf16.msra.mxu0 0
      %3172 = vmatprep.subr.bf16.mxu0 0
      %3173 = vmatpush1.bf16.msra.mxu0 0
      %3174 = vmatprep.subr.bf16.mxu0 0
      %3175 = vmatpush1.bf16.msra.mxu0 0
      %3176 = vmatprep.subr.bf16.mxu0 0
      %3177 = vmatpush1.bf16.msra.mxu0 0
      %3178 = vmatprep.subr.bf16.mxu0 0
      %3179 = vmatpush1.bf16.msra.mxu0 0
      %3180 = vmatprep.mubr.bf16.mxu0 0
      %3181 = vmatmul.mubr.bf16.gmra.mrb[0].mxu0 %v3146
      %v3182 = vpop.f32.mrb[0].mxu0
      %v3183 = vadd.f32 0.0, %v3182
      %v3184 = vpop.f32.mrb[0].mxu0
      %v3185 = vpop.f32.mrb[0].mxu0
      %v3186 = vadd.f32 0.0, %v3185
      %v3187 = vpop.f32.mrb[0].mxu0
      %3188 = vdwg.mxu0
      %v3190 = vsel %vm2408, %v2966, 0
      %3192 = vmatprep.subr.bf16.mxu0 0
      %3193 = vmatpush1.bf16.msra.mxu0 %v2405
      %3194 = vmatprep.subr.bf16.mxu0 0
      %3195 = vmatpush1.bf16.msra.mxu0 0
      %3196 = vmatprep.subr.bf16.mxu0 0
      %3197 = vmatpush1.bf16.msra.mxu0 0
      %3198 = vmatprep.subr.bf16.mxu0 0
      %3199 = vmatpush1.bf16.msra.mxu0 0
      %3200 = vmatprep.subr.bf16.mxu0 0
      %3201 = vmatpush1.bf16.msra.mxu0 0
      %3202 = vmatprep.subr.bf16.mxu0 0
      %3203 = vmatpush1.bf16.msra.mxu0 0
      %3204 = vmatprep.subr.bf16.mxu0 0
      %3205 = vmatpush1.bf16.msra.mxu0 0
      %3206 = vmatprep.subr.bf16.mxu0 0
      %3207 = vmatpush1.bf16.msra.mxu0 0
      %3208 = vmatprep.subr.bf16.mxu0 0
      %3209 = vmatpush1.bf16.msra.mxu0 0
      %3210 = vmatprep.subr.bf16.mxu0 0
      %3211 = vmatpush1.bf16.msra.mxu0 0
      %3212 = vmatprep.subr.bf16.mxu0 0
      %3213 = vmatpush1.bf16.msra.mxu0 0
      %3214 = vmatprep.subr.bf16.mxu0 0
      %3215 = vmatpush1.bf16.msra.mxu0 0
      %3216 = vmatprep.subr.bf16.mxu0 0
      %3217 = vmatpush1.bf16.msra.mxu0 0
      %3218 = vmatprep.subr.bf16.mxu0 0
      %3219 = vmatpush1.bf16.msra.mxu0 0
      %3220 = vmatprep.subr.bf16.mxu0 0
      %3221 = vmatpush1.bf16.msra.mxu0 0
      %3222 = vmatprep.subr.bf16.mxu0 0
      %3223 = vmatpush1.bf16.msra.mxu0 0
      %3224 = vmatprep.mubr.bf16.mxu0 0
      %3225 = vmatmul.mubr.bf16.gmra.mrb[0].mxu0 %v3190
      %v3226 = vpop.f32.mrb[0].mxu0
      %v3227 = vadd.f32 0.0, %v3226
      %v3228 = vpop.f32.mrb[0].mxu0
      %v3229 = vpop.f32.mrb[0].mxu0
      %v3230 = vadd.f32 0.0, %v3229
      %v3231 = vpop.f32.mrb[0].mxu0
      %3232 = vdwg.mxu0
      %v3234 = vsel %vm2408, %v2967, 0
      %3236 = vmatprep.subr.bf16.mxu0 0
      %3237 = vmatpush1.bf16.msra.mxu0 %v2406
      %3238 = vmatprep.subr.bf16.mxu0 0
      %3239 = vmatpush1.bf16.msra.mxu0 0
      %3240 = vmatprep.subr.bf16.mxu0 0
      %3241 = vmatpush1.bf16.msra.mxu0 0
      %3242 = vmatprep.subr.bf16.mxu0 0
      %3243 = vmatpush1.bf16.msra.mxu0 0
      %3244 = vmatprep.subr.bf16.mxu0 0
      %3245 = vmatpush1.bf16.msra.mxu0 0
      %3246 = vmatprep.subr.bf16.mxu0 0
      %3247 = vmatpush1.bf16.msra.mxu0 0
      %3248 = vmatprep.subr.bf16.mxu0 0
      %3249 = vmatpush1.bf16.msra.mxu0 0
      %3250 = vmatprep.subr.bf16.mxu0 0
      %3251 = vmatpush1.bf16.msra.mxu0 0
      %3252 = vmatprep.subr.bf16.mxu0 0
      %3253 = vmatpush1.bf16.msra.mxu0 0
      %3254 = vmatprep.subr.bf16.mxu0 0
      %3255 = vmatpush1.bf16.msra.mxu0 0
      %3256 = vmatprep.subr.bf16.mxu0 0
      %3257 = vmatpush1.bf16.msra.mxu0 0
      %3258 = vmatprep.subr.bf16.mxu0 0
      %3259 = vmatpush1.bf16.msra.mxu0 0
      %3260 = vmatprep.subr.bf16.mxu0 0
      %3261 = vmatpush1.bf16.msra.mxu0 0
      %3262 = vmatprep.subr.bf16.mxu0 0
      %3263 = vmatpush1.bf16.msra.mxu0 0
      %3264 = vmatprep.subr.bf16.mxu0 0
      %3265 = vmatpush1.bf16.msra.mxu0 0
      %3266 = vmatprep.subr.bf16.mxu0 0
      %3267 = vmatpush1.bf16.msra.mxu0 0
      %3268 = vmatprep.mubr.bf16.mxu0 0
      %3269 = vmatmul.mubr.bf16.gmra.mrb[0].mxu0 %v3234
      %v3270 = vpop.f32.mrb[0].mxu0
      %v3271 = vadd.f32 0.0, %v3270
      %v3272 = vpop.f32.mrb[0].mxu0
      %v3273 = vpop.f32.mrb[0].mxu0
      %v3274 = vadd.f32 0.0, %v3273
      %v3275 = vpop.f32.mrb[0].mxu0
      %3276 = vdwg.mxu0
      %v3278 = vsel %vm2408, %v2968, 0
      %3280 = vmatprep.subr.bf16.mxu0 0
      %3281 = vmatpush1.bf16.msra.mxu0 %v2407
      %3282 = vmatprep.subr.bf16.mxu0 0
      %3283 = vmatpush1.bf16.msra.mxu0 0
      %3284 = vmatprep.subr.bf16.mxu0 0
      %3285 = vmatpush1.bf16.msra.mxu0 0
      %3286 = vmatprep.subr.bf16.mxu0 0
      %3287 = vmatpush1.bf16.msra.mxu0 0
      %3288 = vmatprep.subr.bf16.mxu0 0
      %3289 = vmatpush1.bf16.msra.mxu0 0
      %3290 = vmatprep.subr.bf16.mxu0 0
      %3291 = vmatpush1.bf16.msra.mxu0 0
      %3292 = vmatprep.subr.bf16.mxu0 0
      %3293 = vmatpush1.bf16.msra.mxu0 0
      %3294 = vmatprep.subr.bf16.mxu0 0
      %3295 = vmatpush1.bf16.msra.mxu0 0
      %3296 = vmatprep.subr.bf16.mxu0 0
      %3297 = vmatpush1.bf16.msra.mxu0 0
      %3298 = vmatprep.subr.bf16.mxu0 0
      %3299 = vmatpush1.bf16.msra.mxu0 0
      %3300 = vmatprep.subr.bf16.mxu0 0
      %3301 = vmatpush1.bf16.msra.mxu0 0
      %3302 = vmatprep.subr.bf16.mxu0 0
      %3303 = vmatpush1.bf16.msra.mxu0 0
      %3304 = vmatprep.subr.bf16.mxu0 0
      %3305 = vmatpush1.bf16.msra.mxu0 0
      %3306 = vmatprep.subr.bf16.mxu0 0
      %3307 = vmatpush1.bf16.msra.mxu0 0
      %3308 = vmatprep.subr.bf16.mxu0 0
      %3309 = vmatpush1.bf16.msra.mxu0 0
      %3310 = vmatprep.subr.bf16.mxu0 0
      %3311 = vmatpush1.bf16.msra.mxu0 0
      %3312 = vmatprep.mubr.bf16.mxu0 0
      %3313 = vmatmul.mubr.bf16.gmra.mrb[0].mxu0 %v3278
      %v3314 = vpop.f32.mrb[0].mxu0
      %v3315 = vadd.f32 0.0, %v3314
      %v3316 = vpop.f32.mrb[0].mxu0
      %v3317 = vpop.f32.mrb[0].mxu0
      %v3318 = vadd.f32 0.0, %v3317
      %v3319 = vpop.f32.mrb[0].mxu0
      %3320 = vdwg.mxu0
      %v3321 = vcombine.low %v3007, %v3095
      %v3322 = vcombine.high %v3007, %v3095
      %v3324 = vunpack.c.l.s4 1983009808
      %v3325 = vunpack.c.0.s8 %v3324
      %v3326 = vlaneseq
      %v3327 = vshrl.u32 %v3326, 7
      %v3328 = vsub.s32 %v3325, %v3327
      %v3329 = vrot.slane %v3321, %v3328
      %v3331 = vunpack.c.l.s4 1983009808
      %v3332 = vunpack.c.0.s8 %v3331
      %v3333 = vlaneseq
      %v3334 = vshrl.u32 %v3333, 7
      %v3335 = vsub.s32 %v3332, %v3334
      %v3336 = vrot.slane %v3322, %v3335
      %v3337 = vcombine.low %v3051, %v3139
      %v3338 = vcombine.high %v3051, %v3139
      %v3340 = vunpack.c.l.s4 1983009808
      %v3341 = vunpack.c.0.s8 %v3340
      %v3342 = vlaneseq
      %v3343 = vshrl.u32 %v3342, 7
      %v3344 = vsub.s32 %v3341, %v3343
      %v3345 = vrot.slane %v3337, %v3344
      %v3347 = vunpack.c.l.s4 1983009808
      %v3348 = vunpack.c.0.s8 %v3347
      %v3349 = vlaneseq
      %v3350 = vshrl.u32 %v3349, 7
      %v3351 = vsub.s32 %v3348, %v3350
      %v3352 = vrot.slane %v3338, %v3351
      %v3353 = vcombine.low %v3183, %v3271
      %v3354 = vcombine.high %v3183, %v3271
      %v3356 = vunpack.c.l.s4 1983009808
      %v3357 = vunpack.c.0.s8 %v3356
      %v3358 = vlaneseq
      %v3359 = vshrl.u32 %v3358, 7
      %v3360 = vsub.s32 %v3357, %v3359
      %v3361 = vrot.slane %v3353, %v3360
      %v3363 = vunpack.c.l.s4 1983009808
      %v3364 = vunpack.c.0.s8 %v3363
      %v3365 = vlaneseq
      %v3366 = vshrl.u32 %v3365, 7
      %v3367 = vsub.s32 %v3364, %v3366
      %v3368 = vrot.slane %v3354, %v3367
      %v3369 = vcombine.low %v3227, %v3315
      %v3370 = vcombine.high %v3227, %v3315
      %v3372 = vunpack.c.l.s4 1983009808
      %v3373 = vunpack.c.0.s8 %v3372
      %v3374 = vlaneseq
      %v3375 = vshrl.u32 %v3374, 7
      %v3376 = vsub.s32 %v3373, %v3375
      %v3377 = vrot.slane %v3369, %v3376
      %v3379 = vunpack.c.l.s4 1983009808
      %v3380 = vunpack.c.0.s8 %v3379
      %v3381 = vlaneseq
      %v3382 = vshrl.u32 %v3381, 7
      %v3383 = vsub.s32 %v3380, %v3382
      %v3384 = vrot.slane %v3370, %v3383
      %v3385 = vcombine.low %v3329, %v3345
      %v3386 = vcombine.high %v3329, %v3345
      %v3388 = vunpack.c.l.s4 1934713408
      %v3389 = vunpack.c.0.s8 %v3388
      %v3390 = vlaneseq
      %v3391 = vshrl.u32 %v3390, 7
      %v3392 = vsub.s32 %v3389, %v3391
      %v3393 = vrot.slane %v3385, %v3392
      %v3395 = vunpack.c.l.s4 1934713408
      %v3396 = vunpack.c.0.s8 %v3395
      %v3397 = vlaneseq
      %v3398 = vshrl.u32 %v3397, 7
      %v3399 = vsub.s32 %v3396, %v3398
      %v3400 = vrot.slane %v3386, %v3399
      %v3401 = vcombine.low %v3336, %v3352
      %v3402 = vcombine.high %v3336, %v3352
      %v3404 = vunpack.c.l.s4 1934713408
      %v3405 = vunpack.c.0.s8 %v3404
      %v3406 = vlaneseq
      %v3407 = vshrl.u32 %v3406, 7
      %v3408 = vsub.s32 %v3405, %v3407
      %v3409 = vrot.slane %v3401, %v3408
      %v3411 = vunpack.c.l.s4 1934713408
      %v3412 = vunpack.c.0.s8 %v3411
      %v3413 = vlaneseq
      %v3414 = vshrl.u32 %v3413, 7
      %v3415 = vsub.s32 %v3412, %v3414
      %v3416 = vrot.slane %v3402, %v3415
      %v3417 = vcombine.low %v3361, %v3377
      %v3418 = vcombine.high %v3361, %v3377
      %v3420 = vunpack.c.l.s4 1934713408
      %v3421 = vunpack.c.0.s8 %v3420
      %v3422 = vlaneseq
      %v3423 = vshrl.u32 %v3422, 7
      %v3424 = vsub.s32 %v3421, %v3423
      %v3425 = vrot.slane %v3417, %v3424
      %v3427 = vunpack.c.l.s4 1934713408
      %v3428 = vunpack.c.0.s8 %v3427
      %v3429 = vlaneseq
      %v3430 = vshrl.u32 %v3429, 7
      %v3431 = vsub.s32 %v3428, %v3430
      %v3432 = vrot.slane %v3418, %v3431
      %v3433 = vcombine.low %v3368, %v3384
      %v3434 = vcombine.high %v3368, %v3384
      %v3436 = vunpack.c.l.s4 1934713408
      %v3437 = vunpack.c.0.s8 %v3436
      %v3438 = vlaneseq
      %v3439 = vshrl.u32 %v3438, 7
      %v3440 = vsub.s32 %v3437, %v3439
      %v3441 = vrot.slane %v3433, %v3440
      %v3443 = vunpack.c.l.s4 1934713408
      %v3444 = vunpack.c.0.s8 %v3443
      %v3445 = vlaneseq
      %v3446 = vshrl.u32 %v3445, 7
      %v3447 = vsub.s32 %v3444, %v3446
      %v3448 = vrot.slane %v3434, %v3447
      %v3449 = vcombine.low %v3393, %v3425
      %v3450 = vcombine.high %v3393, %v3425
      %v3451 = vcombine.low %v3400, %v3432
      %v3452 = vcombine.high %v3400, %v3432
      %v3453 = vcombine.low %v3409, %v3441
      %v3454 = vcombine.high %v3409, %v3441
      %v3455 = vcombine.low %v3416, %v3448
      %v3456 = vcombine.high %v3416, %v3448
      %v3457 = vcombine.low %v3010, %v3098
      %v3458 = vcombine.high %v3010, %v3098
      %v3460 = vunpack.c.l.s4 1983009808
      %v3461 = vunpack.c.0.s8 %v3460
      %v3462 = vlaneseq
      %v3463 = vshrl.u32 %v3462, 7
      %v3464 = vsub.s32 %v3461, %v3463
      %v3465 = vrot.slane %v3457, %v3464
      %v3467 = vunpack.c.l.s4 1983009808
      %v3468 = vunpack.c.0.s8 %v3467
      %v3469 = vlaneseq
      %v3470 = vshrl.u32 %v3469, 7
      %v3471 = vsub.s32 %v3468, %v3470
      %v3472 = vrot.slane %v3458, %v3471
      %v3473 = vcombine.low %v3054, %v3142
      %v3474 = vcombine.high %v3054, %v3142
      %v3476 = vunpack.c.l.s4 1983009808
      %v3477 = vunpack.c.0.s8 %v3476
      %v3478 = vlaneseq
      %v3479 = vshrl.u32 %v3478, 7
      %v3480 = vsub.s32 %v3477, %v3479
      %v3481 = vrot.slane %v3473, %v3480
      %v3483 = vunpack.c.l.s4 1983009808
      %v3484 = vunpack.c.0.s8 %v3483
      %v3485 = vlaneseq
      %v3486 = vshrl.u32 %v3485, 7
      %v3487 = vsub.s32 %v3484, %v3486
      %v3488 = vrot.slane %v3474, %v3487
      %v3489 = vcombine.low %v3186, %v3274
      %v3490 = vcombine.high %v3186, %v3274
      %v3492 = vunpack.c.l.s4 1983009808
      %v3493 = vunpack.c.0.s8 %v3492
      %v3494 = vlaneseq
      %v3495 = vshrl.u32 %v3494, 7
      %v3496 = vsub.s32 %v3493, %v3495
      %v3497 = vrot.slane %v3489, %v3496
      %v3499 = vunpack.c.l.s4 1983009808
      %v3500 = vunpack.c.0.s8 %v3499
      %v3501 = vlaneseq
      %v3502 = vshrl.u32 %v3501, 7
      %v3503 = vsub.s32 %v3500, %v3502
      %v3504 = vrot.slane %v3490, %v3503
      %v3505 = vcombine.low %v3230, %v3318
      %v3506 = vcombine.high %v3230, %v3318
      %v3508 = vunpack.c.l.s4 1983009808
      %v3509 = vunpack.c.0.s8 %v3508
      %v3510 = vlaneseq
      %v3511 = vshrl.u32 %v3510, 7
      %v3512 = vsub.s32 %v3509, %v3511
      %v3513 = vrot.slane %v3505, %v3512
      %v3515 = vunpack.c.l.s4 1983009808
      %v3516 = vunpack.c.0.s8 %v3515
      %v3517 = vlaneseq
      %v3518 = vshrl.u32 %v3517, 7
      %v3519 = vsub.s32 %v3516, %v3518
      %v3520 = vrot.slane %v3506, %v3519
      %v3521 = vcombine.low %v3465, %v3481
      %v3522 = vcombine.high %v3465, %v3481
      %v3524 = vunpack.c.l.s4 1934713408
      %v3525 = vunpack.c.0.s8 %v3524
      %v3526 = vlaneseq
      %v3527 = vshrl.u32 %v3526, 7
      %v3528 = vsub.s32 %v3525, %v3527
      %v3529 = vrot.slane %v3521, %v3528
      %v3531 = vunpack.c.l.s4 1934713408
      %v3532 = vunpack.c.0.s8 %v3531
      %v3533 = vlaneseq
      %v3534 = vshrl.u32 %v3533, 7
      %v3535 = vsub.s32 %v3532, %v3534
      %v3536 = vrot.slane %v3522, %v3535
      %v3537 = vcombine.low %v3472, %v3488
      %v3538 = vcombine.high %v3472, %v3488
      %v3540 = vunpack.c.l.s4 1934713408
      %v3541 = vunpack.c.0.s8 %v3540
      %v3542 = vlaneseq
      %v3543 = vshrl.u32 %v3542, 7
      %v3544 = vsub.s32 %v3541, %v3543
      %v3545 = vrot.slane %v3537, %v3544
      %v3547 = vunpack.c.l.s4 1934713408
      %v3548 = vunpack.c.0.s8 %v3547
      %v3549 = vlaneseq
      %v3550 = vshrl.u32 %v3549, 7
      %v3551 = vsub.s32 %v3548, %v3550
      %v3552 = vrot.slane %v3538, %v3551
      %v3553 = vcombine.low %v3497, %v3513
      %v3554 = vcombine.high %v3497, %v3513
      %v3556 = vunpack.c.l.s4 1934713408
      %v3557 = vunpack.c.0.s8 %v3556
      %v3558 = vlaneseq
      %v3559 = vshrl.u32 %v3558, 7
      %v3560 = vsub.s32 %v3557, %v3559
      %v3561 = vrot.slane %v3553, %v3560
      %v3563 = vunpack.c.l.s4 1934713408
      %v3564 = vunpack.c.0.s8 %v3563
      %v3565 = vlaneseq
      %v3566 = vshrl.u32 %v3565, 7
      %v3567 = vsub.s32 %v3564, %v3566
      %v3568 = vrot.slane %v3554, %v3567
      %v3569 = vcombine.low %v3504, %v3520
      %v3570 = vcombine.high %v3504, %v3520
      %v3572 = vunpack.c.l.s4 1934713408
      %v3573 = vunpack.c.0.s8 %v3572
      %v3574 = vlaneseq
      %v3575 = vshrl.u32 %v3574, 7
      %v3576 = vsub.s32 %v3573, %v3575
      %v3577 = vrot.slane %v3569, %v3576
      %v3579 = vunpack.c.l.s4 1934713408
      %v3580 = vunpack.c.0.s8 %v3579
      %v3581 = vlaneseq
      %v3582 = vshrl.u32 %v3581, 7
      %v3583 = vsub.s32 %v3580, %v3582
      %v3584 = vrot.slane %v3570, %v3583
      %v3585 = vcombine.low %v3529, %v3561
      %v3586 = vcombine.high %v3529, %v3561
      %v3587 = vcombine.low %v3536, %v3568
      %v3588 = vcombine.high %v3536, %v3568
      %v3589 = vcombine.low %v3545, %v3577
      %v3590 = vcombine.high %v3545, %v3577
      %v3591 = vcombine.low %v3552, %v3584
      %v3592 = vcombine.high %v3552, %v3584
      %v3593 = vcombine.low %v3449, %v3451
      %v3594 = vcombine.high %v3449, %v3451
      %v3596 = vunpack.c.l.s4 1983009808
      %v3597 = vunpack.c.0.s8 %v3596
      %v3598 = vlaneseq
      %v3599 = vshrl.u32 %v3598, 7
      %v3600 = vsub.s32 %v3597, %v3599
      %v3601 = vrot.slane %v3593, %v3600
      %v3603 = vunpack.c.l.s4 1983009808
      %v3604 = vunpack.c.0.s8 %v3603
      %v3605 = vlaneseq
      %v3606 = vshrl.u32 %v3605, 7
      %v3607 = vsub.s32 %v3604, %v3606
      %v3608 = vrot.slane %v3594, %v3607
      %v3609 = vcombine.low %v3450, %v3452
      %v3610 = vcombine.high %v3450, %v3452
      %v3612 = vunpack.c.l.s4 1983009808
      %v3613 = vunpack.c.0.s8 %v3612
      %v3614 = vlaneseq
      %v3615 = vshrl.u32 %v3614, 7
      %v3616 = vsub.s32 %v3613, %v3615
      %v3617 = vrot.slane %v3609, %v3616
      %v3619 = vunpack.c.l.s4 1983009808
      %v3620 = vunpack.c.0.s8 %v3619
      %v3621 = vlaneseq
      %v3622 = vshrl.u32 %v3621, 7
      %v3623 = vsub.s32 %v3620, %v3622
      %v3624 = vrot.slane %v3610, %v3623
      %v3625 = vcombine.low %v3453, %v3455
      %v3626 = vcombine.high %v3453, %v3455
      %v3628 = vunpack.c.l.s4 1983009808
      %v3629 = vunpack.c.0.s8 %v3628
      %v3630 = vlaneseq
      %v3631 = vshrl.u32 %v3630, 7
      %v3632 = vsub.s32 %v3629, %v3631
      %v3633 = vrot.slane %v3625, %v3632
      %v3635 = vunpack.c.l.s4 1983009808
      %v3636 = vunpack.c.0.s8 %v3635
      %v3637 = vlaneseq
      %v3638 = vshrl.u32 %v3637, 7
      %v3639 = vsub.s32 %v3636, %v3638
      %v3640 = vrot.slane %v3626, %v3639
      %v3641 = vcombine.low %v3454, %v3456
      %v3642 = vcombine.high %v3454, %v3456
      %v3644 = vunpack.c.l.s4 1983009808
      %v3645 = vunpack.c.0.s8 %v3644
      %v3646 = vlaneseq
      %v3647 = vshrl.u32 %v3646, 7
      %v3648 = vsub.s32 %v3645, %v3647
      %v3649 = vrot.slane %v3641, %v3648
      %v3651 = vunpack.c.l.s4 1983009808
      %v3652 = vunpack.c.0.s8 %v3651
      %v3653 = vlaneseq
      %v3654 = vshrl.u32 %v3653, 7
      %v3655 = vsub.s32 %v3652, %v3654
      %v3656 = vrot.slane %v3642, %v3655
      %v3657 = vcombine.low %v3601, %v3617
      %v3658 = vcombine.high %v3601, %v3617
      %v3660 = vunpack.c.l.s4 1934713408
      %v3661 = vunpack.c.0.s8 %v3660
      %v3662 = vlaneseq
      %v3663 = vshrl.u32 %v3662, 7
      %v3664 = vsub.s32 %v3661, %v3663
      %v3665 = vrot.slane %v3657, %v3664
      %v3667 = vunpack.c.l.s4 1934713408
      %v3668 = vunpack.c.0.s8 %v3667
      %v3669 = vlaneseq
      %v3670 = vshrl.u32 %v3669, 7
      %v3671 = vsub.s32 %v3668, %v3670
      %v3672 = vrot.slane %v3658, %v3671
      %v3673 = vcombine.low %v3608, %v3624
      %v3674 = vcombine.high %v3608, %v3624
      %v3676 = vunpack.c.l.s4 1934713408
      %v3677 = vunpack.c.0.s8 %v3676
      %v3678 = vlaneseq
      %v3679 = vshrl.u32 %v3678, 7
      %v3680 = vsub.s32 %v3677, %v3679
      %v3681 = vrot.slane %v3673, %v3680
      %v3683 = vunpack.c.l.s4 1934713408
      %v3684 = vunpack.c.0.s8 %v3683
      %v3685 = vlaneseq
      %v3686 = vshrl.u32 %v3685, 7
      %v3687 = vsub.s32 %v3684, %v3686
      %v3688 = vrot.slane %v3674, %v3687
      %v3689 = vcombine.low %v3633, %v3649
      %v3690 = vcombine.high %v3633, %v3649
      %v3692 = vunpack.c.l.s4 1934713408
      %v3693 = vunpack.c.0.s8 %v3692
      %v3694 = vlaneseq
      %v3695 = vshrl.u32 %v3694, 7
      %v3696 = vsub.s32 %v3693, %v3695
      %v3697 = vrot.slane %v3689, %v3696
      %v3699 = vunpack.c.l.s4 1934713408
      %v3700 = vunpack.c.0.s8 %v3699
      %v3701 = vlaneseq
      %v3702 = vshrl.u32 %v3701, 7
      %v3703 = vsub.s32 %v3700, %v3702
      %v3704 = vrot.slane %v3690, %v3703
      %v3705 = vcombine.low %v3640, %v3656
      %v3706 = vcombine.high %v3640, %v3656
      %v3708 = vunpack.c.l.s4 1934713408
      %v3709 = vunpack.c.0.s8 %v3708
      %v3710 = vlaneseq
      %v3711 = vshrl.u32 %v3710, 7
      %v3712 = vsub.s32 %v3709, %v3711
      %v3713 = vrot.slane %v3705, %v3712
      %v3715 = vunpack.c.l.s4 1934713408
      %v3716 = vunpack.c.0.s8 %v3715
      %v3717 = vlaneseq
      %v3718 = vshrl.u32 %v3717, 7
      %v3719 = vsub.s32 %v3716, %v3718
      %v3720 = vrot.slane %v3706, %v3719
      %v3721 = vcombine.low %v3665, %v3697
      %v3722 = vcombine.high %v3665, %v3697
      %v3723 = vcombine.low %v3672, %v3704
      %v3724 = vcombine.high %v3672, %v3704
      %v3725 = vcombine.low %v3681, %v3713
      %v3726 = vcombine.high %v3681, %v3713
      %v3727 = vcombine.low %v3688, %v3720
      %v3728 = vcombine.high %v3688, %v3720
      %v3729 = vcombine.low %v3585, %v3587
      %v3730 = vcombine.high %v3585, %v3587
      %v3732 = vunpack.c.l.s4 1983009808
      %v3733 = vunpack.c.0.s8 %v3732
      %v3734 = vlaneseq
      %v3735 = vshrl.u32 %v3734, 7
      %v3736 = vsub.s32 %v3733, %v3735
      %v3737 = vrot.slane %v3729, %v3736
      %v3739 = vunpack.c.l.s4 1983009808
      %v3740 = vunpack.c.0.s8 %v3739
      %v3741 = vlaneseq
      %v3742 = vshrl.u32 %v3741, 7
      %v3743 = vsub.s32 %v3740, %v3742
      %v3744 = vrot.slane %v3730, %v3743
      %v3745 = vcombine.low %v3586, %v3588
      %v3746 = vcombine.high %v3586, %v3588
      %v3748 = vunpack.c.l.s4 1983009808
      %v3749 = vunpack.c.0.s8 %v3748
      %v3750 = vlaneseq
      %v3751 = vshrl.u32 %v3750, 7
      %v3752 = vsub.s32 %v3749, %v3751
      %v3753 = vrot.slane %v3745, %v3752
      %v3755 = vunpack.c.l.s4 1983009808
      %v3756 = vunpack.c.0.s8 %v3755
      %v3757 = vlaneseq
      %v3758 = vshrl.u32 %v3757, 7
      %v3759 = vsub.s32 %v3756, %v3758
      %v3760 = vrot.slane %v3746, %v3759
      %v3761 = vcombine.low %v3589, %v3591
      %v3762 = vcombine.high %v3589, %v3591
      %v3764 = vunpack.c.l.s4 1983009808
      %v3765 = vunpack.c.0.s8 %v3764
      %v3766 = vlaneseq
      %v3767 = vshrl.u32 %v3766, 7
      %v3768 = vsub.s32 %v3765, %v3767
      %v3769 = vrot.slane %v3761, %v3768
      %v3771 = vunpack.c.l.s4 1983009808
      %v3772 = vunpack.c.0.s8 %v3771
      %v3773 = vlaneseq
      %v3774 = vshrl.u32 %v3773, 7
      %v3775 = vsub.s32 %v3772, %v3774
      %v3776 = vrot.slane %v3762, %v3775
      %v3777 = vcombine.low %v3590, %v3592
      %v3778 = vcombine.high %v3590, %v3592
      %v3780 = vunpack.c.l.s4 1983009808
      %v3781 = vunpack.c.0.s8 %v3780
      %v3782 = vlaneseq
      %v3783 = vshrl.u32 %v3782, 7
      %v3784 = vsub.s32 %v3781, %v3783
      %v3785 = vrot.slane %v3777, %v3784
      %v3787 = vunpack.c.l.s4 1983009808
      %v3788 = vunpack.c.0.s8 %v3787
      %v3789 = vlaneseq
      %v3790 = vshrl.u32 %v3789, 7
      %v3791 = vsub.s32 %v3788, %v3790
      %v3792 = vrot.slane %v3778, %v3791
      %v3793 = vcombine.low %v3737, %v3753
      %v3794 = vcombine.high %v3737, %v3753
      %v3796 = vunpack.c.l.s4 1934713408
      %v3797 = vunpack.c.0.s8 %v3796
      %v3798 = vlaneseq
      %v3799 = vshrl.u32 %v3798, 7
      %v3800 = vsub.s32 %v3797, %v3799
      %v3801 = vrot.slane %v3793, %v3800
      %v3803 = vunpack.c.l.s4 1934713408
      %v3804 = vunpack.c.0.s8 %v3803
      %v3805 = vlaneseq
      %v3806 = vshrl.u32 %v3805, 7
      %v3807 = vsub.s32 %v3804, %v3806
      %v3808 = vrot.slane %v3794, %v3807
      %v3809 = vcombine.low %v3744, %v3760
      %v3810 = vcombine.high %v3744, %v3760
      %v3812 = vunpack.c.l.s4 1934713408
      %v3813 = vunpack.c.0.s8 %v3812
      %v3814 = vlaneseq
      %v3815 = vshrl.u32 %v3814, 7
      %v3816 = vsub.s32 %v3813, %v3815
      %v3817 = vrot.slane %v3809, %v3816
      %v3819 = vunpack.c.l.s4 1934713408
      %v3820 = vunpack.c.0.s8 %v3819
      %v3821 = vlaneseq
      %v3822 = vshrl.u32 %v3821, 7
      %v3823 = vsub.s32 %v3820, %v3822
      %v3824 = vrot.slane %v3810, %v3823
      %v3825 = vcombine.low %v3769, %v3785
      %v3826 = vcombine.high %v3769, %v3785
      %v3828 = vunpack.c.l.s4 1934713408
      %v3829 = vunpack.c.0.s8 %v3828
      %v3830 = vlaneseq
      %v3831 = vshrl.u32 %v3830, 7
      %v3832 = vsub.s32 %v3829, %v3831
      %v3833 = vrot.slane %v3825, %v3832
      %v3835 = vunpack.c.l.s4 1934713408
      %v3836 = vunpack.c.0.s8 %v3835
      %v3837 = vlaneseq
      %v3838 = vshrl.u32 %v3837, 7
      %v3839 = vsub.s32 %v3836, %v3838
      %v3840 = vrot.slane %v3826, %v3839
      %v3841 = vcombine.low %v3776, %v3792
      %v3842 = vcombine.high %v3776, %v3792
      %v3844 = vunpack.c.l.s4 1934713408
      %v3845 = vunpack.c.0.s8 %v3844
      %v3846 = vlaneseq
      %v3847 = vshrl.u32 %v3846, 7
      %v3848 = vsub.s32 %v3845, %v3847
      %v3849 = vrot.slane %v3841, %v3848
      %v3851 = vunpack.c.l.s4 1934713408
      %v3852 = vunpack.c.0.s8 %v3851
      %v3853 = vlaneseq
      %v3854 = vshrl.u32 %v3853, 7
      %v3855 = vsub.s32 %v3852, %v3854
      %v3856 = vrot.slane %v3842, %v3855
      %v3857 = vcombine.low %v3801, %v3833
      %v3858 = vcombine.high %v3801, %v3833
      %v3859 = vcombine.low %v3808, %v3840
      %v3860 = vcombine.high %v3808, %v3840
      %v3861 = vcombine.low %v3817, %v3849
      %v3862 = vcombine.high %v3817, %v3849
      %v3863 = vcombine.low %v3824, %v3856
      %v3864 = vcombine.high %v3824, %v3856
      %3867 = vrot.lane.b32.xlu0 %v3722, 16
      %v3868 = vpop.permute.xlu0 %3867
      %3869 = vrot.lane.b32.xlu0 %v3858, 16
      %v3870 = vpop.permute.xlu0 %3869
      %3875 = vrot.lane.b32.xlu0 %v3723, 32
      %v3876 = vpop.permute.xlu0 %3875
      %3877 = vrot.lane.b32.xlu0 %v3859, 32
      %v3878 = vpop.permute.xlu0 %3877
      %3883 = vrot.lane.b32.xlu0 %v3724, 48
      %v3884 = vpop.permute.xlu0 %3883
      %3885 = vrot.lane.b32.xlu0 %v3860, 48
      %v3886 = vpop.permute.xlu0 %3885
      %3891 = vrot.lane.b32.xlu0 %v3725, 64
      %v3892 = vpop.permute.xlu0 %3891
      %3893 = vrot.lane.b32.xlu0 %v3861, 64
      %v3894 = vpop.permute.xlu0 %3893
      %3899 = vrot.lane.b32.xlu0 %v3726, 80
      %v3900 = vpop.permute.xlu0 %3899
      %3901 = vrot.lane.b32.xlu0 %v3862, 80
      %v3902 = vpop.permute.xlu0 %3901
      %3907 = vrot.lane.b32.xlu0 %v3727, 96
      %v3908 = vpop.permute.xlu0 %3907
      %3909 = vrot.lane.b32.xlu0 %v3863, 96
      %v3910 = vpop.permute.xlu0 %3909
      %3915 = vrot.lane.b32.xlu0 %v3728, 112
      %v3916 = vpop.permute.xlu0 %3915
      %3917 = vrot.lane.b32.xlu0 %v3864, 112
      %v3918 = vpop.permute.xlu0 %3917
      %v3921 = vsel %vm2408, %v3721, %v3868
      %v3922 = vsel %vm2408, %v3857, %v3870
      %vm3923 = vcmask 261120
      %v3924 = vsel %vm3923, %v3921, %v3876
      %v3925 = vsel %vm3923, %v3922, %v3878
      %vm3926 = vcmask 392192
      %v3927 = vsel %vm3926, %v3924, %v3884
      %v3928 = vsel %vm3926, %v3925, %v3886
      %vm3929 = vcmask 523264
      %v3930 = vsel %vm3929, %v3927, %v3892
      %v3931 = vsel %vm3929, %v3928, %v3894
      %vm3932 = vcmask 654336
      %v3933 = vsel %vm3932, %v3930, %v3900
      %v3934 = vsel %vm3932, %v3931, %v3902
      %vm3935 = vcmask 785408
      %v3936 = vsel %vm3935, %v3933, %v3908
      %v3937 = vsel %vm3935, %v3934, %v3910
      %vm3938 = vcmask 916480
      %v3939 = vsel %vm3938, %v3936, %v3916
      %v3940 = vsel %vm3938, %v3937, %v3918
      %v3941 = vpack.c.bf16 %v3940, %v3939
      %v3942 = vld [vmem:[%s3] sm:$0xff]
      %v3943 = vld [vmem:[%s3 + $0x8] sm:$0xff]
      %v3944 = vld [vmem:[%s3 + $0x10] sm:$0xff]
      %v3945 = vld [vmem:[%s3 + $0x18] sm:$0xff]
      %v3946 = vld [vmem:[%s3 + $0x20] sm:$0xff]
      %v3947 = vld [vmem:[%s3 + $0x28] sm:$0xff]
      %v3948 = vld [vmem:[%s3 + $0x30] sm:$0xff]
      %v3949 = vld [vmem:[%s3 + $0x38] sm:$0xff]
      %v3950 = vld [vmem:[%s3 + $0x40] sm:$0xff]
      %v3951 = vld [vmem:[%s3 + $0x48] sm:$0xff]
      %v3952 = vld [vmem:[%s3 + $0x50] sm:$0xff]
      %v3953 = vld [vmem:[%s3 + $0x58] sm:$0xff]
      %v3954 = vld [vmem:[%s3 + $0x60] sm:$0xff]
      %v3955 = vld [vmem:[%s3 + $0x68] sm:$0xff]
      %v3956 = vld [vmem:[%s3 + $0x70] sm:$0xff]
      %v3957 = vld [vmem:[%s3 + $0x78] sm:$0xff]
      %v3958 = vpack.c.bf16 %v3943, %v3942
      %v3959 = vpack.c.bf16 %v3945, %v3944
      %v3960 = vpack.c.bf16 %v3947, %v3946
      %v3961 = vpack.c.bf16 %v3949, %v3948
      %v3962 = vpack.c.bf16 %v3951, %v3950
      %v3963 = vpack.c.bf16 %v3953, %v3952
      %v3964 = vpack.c.bf16 %v3955, %v3954
      %v3965 = vpack.c.bf16 %v3957, %v3956
      %v3966 = vld [vmem:[%s4] sm:$0x1]
      %v3968 = vlaneseq
      %v3969 = vshrl.u32 %v3968, 7
      %v3970 = vsub.s32 0, %v3969
      %v3971 = vrot.slane %v3966, %v3970
      %3973 = vmatprep.subr.bf16.mxu0 0
      %3974 = vmatpush1.bf16.msra.mxu0 %v3958
      %3975 = vmatprep.subr.bf16.mxu0 0
      %3976 = vmatpush1.bf16.msra.mxu0 %v3959
      %3977 = vmatprep.subr.bf16.mxu0 0
      %3978 = vmatpush1.bf16.msra.mxu0 %v3960
      %3979 = vmatprep.subr.bf16.mxu0 0
      %3980 = vmatpush1.bf16.msra.mxu0 %v3961
      %3981 = vmatprep.subr.bf16.mxu0 0
      %3982 = vmatpush1.bf16.msra.mxu0 %v3962
      %3983 = vmatprep.subr.bf16.mxu0 0
      %3984 = vmatpush1.bf16.msra.mxu0 %v3963
      %3985 = vmatprep.subr.bf16.mxu0 0
      %3986 = vmatpush1.bf16.msra.mxu0 %v3964
      %3987 = vmatprep.subr.bf16.mxu0 0
      %3988 = vmatpush1.bf16.msra.mxu0 %v3965
      %3989 = vmatprep.subr.bf16.mxu0 0
      %3990 = vmatpush1.bf16.msra.mxu0 0
      %3991 = vmatprep.subr.bf16.mxu0 0
      %3992 = vmatpush1.bf16.msra.mxu0 0
      %3993 = vmatprep.subr.bf16.mxu0 0
      %3994 = vmatpush1.bf16.msra.mxu0 0
      %3995 = vmatprep.subr.bf16.mxu0 0
      %3996 = vmatpush1.bf16.msra.mxu0 0
      %3997 = vmatprep.subr.bf16.mxu0 0
      %3998 = vmatpush1.bf16.msra.mxu0 0
      %3999 = vmatprep.subr.bf16.mxu0 0
      %4000 = vmatpush1.bf16.msra.mxu0 0
      %4001 = vmatprep.subr.bf16.mxu0 0
      %4002 = vmatpush1.bf16.msra.mxu0 0
      %4003 = vmatprep.subr.bf16.mxu0 0
      %4004 = vmatpush1.bf16.msra.mxu0 0
      %4005 = vmatprep.mubr.bf16.mxu0 0
      %4006 = vmatmul.mubr.bf16.gmra.mrb[0].mxu0 %v3941
      %v4007 = vpop.f32.mrb[0].mxu0
      %v4008 = vadd.f32 %v3971, %v4007
      %v4009 = vpop.f32.mrb[0].mxu0
      %v4010 = vpop.f32.mrb[0].mxu0
      %v4011 = vadd.f32 %v3971, %v4010
      %v4012 = vpop.f32.mrb[0].mxu0
      %4013 = vdwg.mxu0
      %v4014 = vadd.f32 %v442, %v4008
      %v4015 = vadd.f32 %v443, %v4011
      %v4016 = vld [vmem:[%s9] sm:$0x1]
      %v4017 = vld [vmem:[%s10] sm:$0x1]
      %4018 = vadd.xlane.f32.xlu0 %v4014
      %v4019 = vpop.xlane.xlu0 %4018
      %4020 = vadd.xlane.f32.xlu0 %v4015
      %v4021 = vpop.xlane.xlu0 %4020
      %v4022 = vrcp.pop 128.0
      %v4023 = vmul.f32 %v4019, %v4022
      %v4024 = vmul.f32 %v4021, %v4022
      %v4025 = vsub.f32 %v4014, %v4023
      %v4026 = vsub.f32 %v4015, %v4024
      %v4027 = vmul.f32 %v4025, %v4025
      %v4028 = vmul.f32 %v4026, %v4026
      %4029 = vadd.xlane.f32.xlu0 %v4027
      %v4030 = vpop.xlane.xlu0 %4029
      %4031 = vadd.xlane.f32.xlu0 %v4028
      %v4032 = vpop.xlane.xlu0 %4031
      %v4033 = vmul.f32 %v4030, %v4022
      %v4034 = vmul.f32 %v4032, %v4022
      %v4035 = vadd.f32 %v4033, 1e-05
      %v4036 = vadd.f32 %v4034, 1e-05
      %v4037 = vrsqrt.pop %v4035
      %v4038 = vrsqrt.pop %v4036
      %v4039 = vmul.f32 %v4025, %v4037
      %v4040 = vmul.f32 %v4026, %v4038
      %v4042 = vlaneseq
      %v4043 = vshrl.u32 %v4042, 7
      %v4044 = vsub.s32 0, %v4043
      %v4045 = vrot.slane %v4016, %v4044
      %v4047 = vmul.f32 %v4039, %v4045
      %v4048 = vmul.f32 %v4040, %v4045
      %v4050 = vlaneseq
      %v4051 = vshrl.u32 %v4050, 7
      %v4052 = vsub.s32 0, %v4051
      %v4053 = vrot.slane %v4017, %v4052
      %v4055 = vadd.f32 %v4047, %v4053
      %v4056 = vadd.f32 %v4048, %v4053
      %v4057 = vpack.c.bf16 %v4056, %v4055
      %v4058 = vld [vmem:[%s5] sm:$0xff]
      %v4059 = vld [vmem:[%s5 + $0x8] sm:$0xff]
      %v4060 = vld [vmem:[%s5 + $0x10] sm:$0xff]
      %v4061 = vld [vmem:[%s5 + $0x18] sm:$0xff]
      %v4062 = vld [vmem:[%s5 + $0x20] sm:$0xff]
      %v4063 = vld [vmem:[%s5 + $0x28] sm:$0xff]
      %v4064 = vld [vmem:[%s5 + $0x30] sm:$0xff]
      %v4065 = vld [vmem:[%s5 + $0x38] sm:$0xff]
      %v4066 = vld [vmem:[%s5 + $0x40] sm:$0xff]
      %v4067 = vld [vmem:[%s5 + $0x48] sm:$0xff]
      %v4068 = vld [vmem:[%s5 + $0x50] sm:$0xff]
      %v4069 = vld [vmem:[%s5 + $0x58] sm:$0xff]
      %v4070 = vld [vmem:[%s5 + $0x60] sm:$0xff]
      %v4071 = vld [vmem:[%s5 + $0x68] sm:$0xff]
      %v4072 = vld [vmem:[%s5 + $0x70] sm:$0xff]
      %v4073 = vld [vmem:[%s5 + $0x78] sm:$0xff]
      %v4074 = vpack.c.bf16 %v4059, %v4058
      %v4075 = vpack.c.bf16 %v4061, %v4060
      %v4076 = vpack.c.bf16 %v4063, %v4062
      %v4077 = vpack.c.bf16 %v4065, %v4064
      %v4078 = vpack.c.bf16 %v4067, %v4066
      %v4079 = vpack.c.bf16 %v4069, %v4068
      %v4080 = vpack.c.bf16 %v4071, %v4070
      %v4081 = vpack.c.bf16 %v4073, %v4072
      %v4082 = vld [vmem:[%s6] sm:$0x1]
      %v4084 = vlaneseq
      %v4085 = vshrl.u32 %v4084, 7
      %v4086 = vsub.s32 0, %v4085
      %v4087 = vrot.slane %v4082, %v4086
      %4089 = vmatprep.subr.bf16.mxu0 0
      %4090 = vmatpush1.bf16.msra.mxu0 %v4074
      %4091 = vmatprep.subr.bf16.mxu0 0
      %4092 = vmatpush1.bf16.msra.mxu0 %v4075
      %4093 = vmatprep.subr.bf16.mxu0 0
      %4094 = vmatpush1.bf16.msra.mxu0 %v4076
      %4095 = vmatprep.subr.bf16.mxu0 0
      %4096 = vmatpush1.bf16.msra.mxu0 %v4077
      %4097 = vmatprep.subr.bf16.mxu0 0
      %4098 = vmatpush1.bf16.msra.mxu0 %v4078
      %4099 = vmatprep.subr.bf16.mxu0 0
      %4100 = vmatpush1.bf16.msra.mxu0 %v4079
      %4101 = vmatprep.subr.bf16.mxu0 0
      %4102 = vmatpush1.bf16.msra.mxu0 %v4080
      %4103 = vmatprep.subr.bf16.mxu0 0
      %4104 = vmatpush1.bf16.msra.mxu0 %v4081
      %4105 = vmatprep.subr.bf16.mxu0 0
      %4106 = vmatpush1.bf16.msra.mxu0 0
      %4107 = vmatprep.subr.bf16.mxu0 0
      %4108 = vmatpush1.bf16.msra.mxu0 0
      %4109 = vmatprep.subr.bf16.mxu0 0
      %4110 = vmatpush1.bf16.msra.mxu0 0
      %4111 = vmatprep.subr.bf16.mxu0 0
      %4112 = vmatpush1.bf16.msra.mxu0 0
      %4113 = vmatprep.subr.bf16.mxu0 0
      %4114 = vmatpush1.bf16.msra.mxu0 0
      %4115 = vmatprep.subr.bf16.mxu0 0
      %4116 = vmatpush1.bf16.msra.mxu0 0
      %4117 = vmatprep.subr.bf16.mxu0 0
      %4118 = vmatpush1.bf16.msra.mxu0 0
      %4119 = vmatprep.subr.bf16.mxu0 0
      %4120 = vmatpush1.bf16.msra.mxu0 0
      %4121 = vmatprep.mubr.bf16.mxu0 0
      %4122 = vmatmul.mubr.bf16.gmra.mrb[0].mxu0 %v4057
      %v4123 = vpop.f32.mrb[0].mxu0
      %v4124 = vadd.f32 %v4087, %v4123
      %v4125 = vpop.f32.mrb[0].mxu0
      %v4126 = vpop.f32.mrb[0].mxu0
      %v4127 = vadd.f32 %v4087, %v4126
      %v4128 = vpop.f32.mrb[0].mxu0
      %4129 = vdwg.mxu0
      %v4130 = vmax.f32 %v4124, 0.0
      %v4131 = vmax.f32 %v4127, 0.0
      %v4132 = vpack.c.bf16 %v4131, %v4130
      %v4133 = vld [vmem:[%s7] sm:$0xff]
      %v4134 = vld [vmem:[%s7 + $0x8] sm:$0xff]
      %v4135 = vld [vmem:[%s7 + $0x10] sm:$0xff]
      %v4136 = vld [vmem:[%s7 + $0x18] sm:$0xff]
      %v4137 = vld [vmem:[%s7 + $0x20] sm:$0xff]
      %v4138 = vld [vmem:[%s7 + $0x28] sm:$0xff]
      %v4139 = vld [vmem:[%s7 + $0x30] sm:$0xff]
      %v4140 = vld [vmem:[%s7 + $0x38] sm:$0xff]
      %v4141 = vld [vmem:[%s7 + $0x40] sm:$0xff]
      %v4142 = vld [vmem:[%s7 + $0x48] sm:$0xff]
      %v4143 = vld [vmem:[%s7 + $0x50] sm:$0xff]
      %v4144 = vld [vmem:[%s7 + $0x58] sm:$0xff]
      %v4145 = vld [vmem:[%s7 + $0x60] sm:$0xff]
      %v4146 = vld [vmem:[%s7 + $0x68] sm:$0xff]
      %v4147 = vld [vmem:[%s7 + $0x70] sm:$0xff]
      %v4148 = vld [vmem:[%s7 + $0x78] sm:$0xff]
      %v4149 = vpack.c.bf16 %v4134, %v4133
      %v4150 = vpack.c.bf16 %v4136, %v4135
      %v4151 = vpack.c.bf16 %v4138, %v4137
      %v4152 = vpack.c.bf16 %v4140, %v4139
      %v4153 = vpack.c.bf16 %v4142, %v4141
      %v4154 = vpack.c.bf16 %v4144, %v4143
      %v4155 = vpack.c.bf16 %v4146, %v4145
      %v4156 = vpack.c.bf16 %v4148, %v4147
      %v4157 = vld [vmem:[%s8] sm:$0x1]
      %v4159 = vlaneseq
      %v4160 = vshrl.u32 %v4159, 7
      %v4161 = vsub.s32 0, %v4160
      %v4162 = vrot.slane %v4157, %v4161
      %4164 = vmatprep.subr.bf16.mxu0 0
      %4165 = vmatpush1.bf16.msra.mxu0 %v4149
      %4166 = vmatprep.subr.bf16.mxu0 0
      %4167 = vmatpush1.bf16.msra.mxu0 %v4150
      %4168 = vmatprep.subr.bf16.mxu0 0
      %4169 = vmatpush1.bf16.msra.mxu0 %v4151
      %4170 = vmatprep.subr.bf16.mxu0 0
      %4171 = vmatpush1.bf16.msra.mxu0 %v4152
      %4172 = vmatprep.subr.bf16.mxu0 0
      %4173 = vmatpush1.bf16.msra.mxu0 %v4153
      %4174 = vmatprep.subr.bf16.mxu0 0
      %4175 = vmatpush1.bf16.msra.mxu0 %v4154
      %4176 = vmatprep.subr.bf16.mxu0 0
      %4177 = vmatpush1.bf16.msra.mxu0 %v4155
      %4178 = vmatprep.subr.bf16.mxu0 0
      %4179 = vmatpush1.bf16.msra.mxu0 %v4156
      %4180 = vmatprep.subr.bf16.mxu0 0
      %4181 = vmatpush1.bf16.msra.mxu0 0
      %4182 = vmatprep.subr.bf16.mxu0 0
      %4183 = vmatpush1.bf16.msra.mxu0 0
      %4184 = vmatprep.subr.bf16.mxu0 0
      %4185 = vmatpush1.bf16.msra.mxu0 0
      %4186 = vmatprep.subr.bf16.mxu0 0
      %4187 = vmatpush1.bf16.msra.mxu0 0
      %4188 = vmatprep.subr.bf16.mxu0 0
      %4189 = vmatpush1.bf16.msra.mxu0 0
      %4190 = vmatprep.subr.bf16.mxu0 0
      %4191 = vmatpush1.bf16.msra.mxu0 0
      %4192 = vmatprep.subr.bf16.mxu0 0
      %4193 = vmatpush1.bf16.msra.mxu0 0
      %4194 = vmatprep.subr.bf16.mxu0 0
      %4195 = vmatpush1.bf16.msra.mxu0 0
      %4196 = vmatprep.mubr.bf16.mxu0 0
      %4197 = vmatmul.mubr.bf16.gmra.mrb[0].mxu0 %v4132
      %v4198 = vpop.f32.mrb[0].mxu0
      %v4199 = vadd.f32 %v4162, %v4198
      %v4200 = vpop.f32.mrb[0].mxu0
      %v4201 = vpop.f32.mrb[0].mxu0
      %v4202 = vadd.f32 %v4162, %v4201
      %v4203 = vpop.f32.mrb[0].mxu0
      %4204 = vdwg.mxu0
      %v4205 = vadd.f32 %v4055, %v4199
      %v4206 = vadd.f32 %v4056, %v4202
      %v4207 = vld [vmem:[%s11] sm:$0x1]
      %v4208 = vld [vmem:[%s12] sm:$0x1]
      %4209 = vadd.xlane.f32.xlu0 %v4205
      %v4210 = vpop.xlane.xlu0 %4209
      %4211 = vadd.xlane.f32.xlu0 %v4206
      %v4212 = vpop.xlane.xlu0 %4211
      %v4213 = vmul.f32 %v4210, %v4022
      %v4214 = vmul.f32 %v4212, %v4022
      %v4215 = vsub.f32 %v4205, %v4213
      %v4216 = vsub.f32 %v4206, %v4214
      %v4217 = vmul.f32 %v4215, %v4215
      %v4218 = vmul.f32 %v4216, %v4216
      %4219 = vadd.xlane.f32.xlu0 %v4217
      %v4220 = vpop.xlane.xlu0 %4219
      %4221 = vadd.xlane.f32.xlu0 %v4218
      %v4222 = vpop.xlane.xlu0 %4221
      %v4223 = vmul.f32 %v4220, %v4022
      %v4224 = vmul.f32 %v4222, %v4022
      %v4225 = vadd.f32 %v4223, 1e-05
      %v4226 = vadd.f32 %v4224, 1e-05
      %v4227 = vrsqrt.pop %v4225
      %v4228 = vrsqrt.pop %v4226
      %v4229 = vmul.f32 %v4215, %v4227
      %v4230 = vmul.f32 %v4216, %v4228
      %v4232 = vlaneseq
      %v4233 = vshrl.u32 %v4232, 7
      %v4234 = vsub.s32 0, %v4233
      %v4235 = vrot.slane %v4207, %v4234
      %v4237 = vmul.f32 %v4229, %v4235
      %v4238 = vmul.f32 %v4230, %v4235
      %v4240 = vlaneseq
      %v4241 = vshrl.u32 %v4240, 7
      %v4242 = vsub.s32 0, %v4241
      %v4243 = vrot.slane %v4208, %v4242
      %v4245 = vadd.f32 %v4237, %v4243
      %v4246 = vadd.f32 %v4238, %v4243
      %4247 = vst [vmem:[%s440] sm:$0xff] %v4245
      %4248 = vst [vmem:[%s440 + $0x8] sm:$0xff] %v4246
      %p4249 = scmp.lt.s32.totalorder %s24, 1
      %s4250 = scalar_select %p4249, %s24, 1
      %s4251 = smul.addr %s4250, 2
      %s4252 = smul.addr %s4251, 8
      %s4253 = scalar_lea.vmem %s13, %s4252
      // Predicated region
      $region73: #{extralonger_forward.16} parent=71 // pred_check
        %p4254 = pneg %p320
      $region74: #{extralonger_forward.16} parent=71 // pred_check_branch
        %4256 = sbr.rel (%p4254) target = $region76
      $region75: #{extralonger_forward.16} parent=71 // pred_region
        _
      $region76: #{extralonger_forward.16} parent=71 // pred_fallthru
        _
    $region72: #{extralonger_forward.16} parent=5 // pred_fallthru
      _
    %p4257 = scmp.le.s32.totalorder 2, %s19
    // Predicated region
    $region77: #{extralonger_forward.16} parent=5 // pred_check
      %p4258 = pneg %p4257
    $region78: #{extralonger_forward.16} parent=5 // pred_check_branch
      %4260 = sbr.rel (%p4258) target = $region80
    $region79: #{extralonger_forward.16} parent=5 // pred_region
      %s4261 = ssub.s32 %s19, 2
      // Predicated region
      $region81: #{extralonger_forward.16} parent=79 // pred_check
        %p4262 = pneg %p326
      $region82: #{extralonger_forward.16} parent=79 // pred_check_branch
        %4264 = sbr.rel (%p4262) target = $region84
      $region83: #{extralonger_forward.16} parent=79 // pred_region
        %p4265 = scmp.lt.s32.totalorder %s25, 1
        %s4266 = scalar_select %p4265, %s25, 1
        %s4267 = smul.addr %s4266, 2
        %s4268 = smul.addr %s4267, 8
        %s4269 = scalar_lea.vmem %s13, %s4268
      $region84: #{extralonger_forward.16} parent=79 // pred_fallthru
        _
    $region80: #{extralonger_forward.16} parent=5 // pred_fallthru
      _
  $region6: #{extralonger_forward.16} parent=0 // loop_footer
    %s23 = sadd.s32 1, %s19
  $region7: #{extralonger_forward.16} parent=0 // loop_footer_branch
    %18 = sbr.rel target = $region3
  $region8: #{extralonger_forward.16} parent=0 // loop_exit
    _

</llo_original>
